<compile_context>
chip_gen: v7x
topology: tpu7x:2x2x1
jax: 0.10.0
libtpu: 0.0.40
codegen_flags: <defaults>
</compile_context>

<pallas_src>
import functools
import math
from typing import NamedTuple

import jax
import jax.numpy as jnp
from jax.experimental import pallas as pl
from jax.experimental.pallas import tpu as pltpu

# ----------------------------- model constants -----------------------------
C = 32          # base UNet channels
GROUPS = 8      # group-norm groups
TIME_SIN_DIM = 32
TEMB_DIM = 64
ATTN_D = 32     # attention head dim (== C == cross-attn dim here)
EPS = 1e-5


class UNet2DConditionOutput(NamedTuple):
    sample: jnp.ndarray


# ----------------------------- fused Pallas kernel --------------------------
def _unet_fused_kernel(
    x_ref, tproj_ref, ehs_ref, ehsT_ref,
    wcin_ref, w288_ref, wattn_ref,
    vec_ref, bk_ref, mask_ref, gm_ref, gmt_ref,
    o_ref,
    col4_ref, colC_ref,
    *, Wimg,
):
    f32, bf16 = jnp.float32, jnp.bfloat16
    Cin, HW = x_ref.shape[1], x_ref.shape[2]
    Cc = vec_ref.shape[0]                 # 32 channels
    G = gm_ref.shape[1]
    A = wattn_ref.shape[-1]               # attention block size (= d = C = 32)
    ng = float(HW * (Cc // G))
    # Hoisted spatial-sum helper: per-channel sums as one MXU matmul.
    ones_sp = jnp.ones((HW, 8), f32)

    def vc(j, rows=None):
        """Per-channel parameter column j of the f32 vector slab -> (rows, 1)."""
        r = Cc if rows is None else rows
        return vec_ref[0:r, j:j + 1]

    # ---- 3x3 conv: roll-based im2col, channels on sublanes, pixels on lanes --
    def im2col(x, col_ref):
        Ci = x.shape[0]
        for t in range(9):
            dy, dx = t // 3 - 1, t % 3 - 1
            off = dy * Wimg + dx
            if off == 0:
                tap = x
            else:
                # rolled[:, p] = x[:, p + off]; mask kills out-of-image taps.
                tap = (pltpu.roll(x, shift=(-off) % HW, axis=1)
                       * mask_ref[t:t + 1, :])
            # Tile-aligned slab write (Ci rows at Ci-multiple sublane offsets,
            # 256 dense lanes), cast to bf16 at write time.
            col_ref[t * Ci:(t + 1) * Ci, :] = tap.astype(bf16)

    def conv3x3(x, w_t, b_col, col_ref):
        """x: (Ci, HW) f32; w_t: (Co, 9*Ci) bf16; returns (Co, HW) f32."""
        im2col(x, col_ref)
        return jnp.dot(w_t, col_ref[...], preferred_element_type=f32) + b_col

    # ---- GroupNorm(+SiLU): spatial sums on the MXU, group mixing via one-hot -
    def groupnorm(h, gamma, beta, silu):
        s1 = jnp.dot(h, ones_sp, preferred_element_type=f32)            # (C,8)
        mean_g = jnp.dot(gmt_ref[...], s1, preferred_element_type=f32) / ng
        mean_c = jnp.dot(gm_ref[...], mean_g,
                         preferred_element_type=f32)[:, 0:1]            # (C,1)
        xc = h - mean_c
        s2 = jnp.dot(xc * xc, ones_sp, preferred_element_type=f32)      # (C,8)
        var_g = jnp.dot(gmt_ref[...], s2, preferred_element_type=f32) / ng
        inv_c = jnp.dot(gm_ref[...], jax.lax.rsqrt(var_g + EPS),
                        preferred_element_type=f32)[:, 0:1]             # (C,1)
        y = xc * inv_c * gamma + beta
        if silu:
            y = y * jax.nn.sigmoid(y)
        return y

    # ---- conv_in ----
    h0 = conv3x3(x_ref[0], wcin_ref[...], vc(0), col4_ref)              # (C,HW)

    # ---- ResNet block with time-embedding injection ----
    h = groupnorm(h0, vc(1), vc(2), silu=True)
    h = conv3x3(h, w288_ref[0:Cc, :], vc(3), colC_ref)
    h = h + tproj_ref[0]                                                # (C,1) bcast
    h = groupnorm(h, vc(4), vc(5), silu=True)
    h = conv3x3(h, w288_ref[Cc:2 * Cc, :], vc(6), colC_ref)
    h = h + h0

    # ---- cross-attention (pixels on lanes, softmax over S sublanes) ----
    hn = groupnorm(h, vc(7), vc(8), silu=False)
    q = jnp.dot(wattn_ref[0:A, :], hn.astype(bf16),
                preferred_element_type=f32) + vc(9)                     # (d,HW)
    ehs = ehs_ref[0].astype(bf16)                                       # (S,XD)
    ehsT = ehsT_ref[0].astype(bf16)                                     # (XD,S)
    k = jnp.dot(ehs, wattn_ref[A:2 * A, :],
                preferred_element_type=f32) + bk_ref[...]               # (S,d)
    vT = jnp.dot(wattn_ref[2 * A:3 * A, :], ehsT,
                 preferred_element_type=f32) + vc(14)                   # (d,S)
    s = jnp.dot(k.astype(bf16), q.astype(bf16),
                preferred_element_type=f32) * (1.0 / math.sqrt(A))      # (S,HW)
    m = jnp.max(s, axis=0, keepdims=True)                               # 8-row max
    p = jnp.exp(s - m)
    p = p * pl.reciprocal(jnp.sum(p, axis=0, keepdims=True), approx=True)
    attn = jnp.dot(vT.astype(bf16), p.astype(bf16),
                   preferred_element_type=f32)                          # (d,HW)
    h = h + jnp.dot(wattn_ref[3 * A:4 * A, :], attn.astype(bf16),
                    preferred_element_type=f32) + vc(10)

    # ---- conv_out: lane-dense (Cin, HW) store (already NCHW element order) --
    h = groupnorm(h, vc(11), vc(12), silu=True)
    out = conv3x3(h, w288_ref[2 * Cc:2 * Cc + 8, :], vc(13, rows=8), colC_ref)
    o_ref[0] = out[0:Cin, :].astype(o_ref.dtype)


def _const_spec(arr):
    return pl.BlockSpec(arr.shape, lambda b: (0, 0))


# ----------------------------- glue (plain JAX) -----------------------------
def timestep_embedding(t, dim, max_period=10000.0):
    half = dim // 2
    freqs = jnp.exp(-math.log(max_period)
                    * jnp.arange(half, dtype=jnp.float32) / half)
    args = t.astype(jnp.float32)[:, None] * freqs[None, :]
    return jnp.concatenate([jnp.sin(args), jnp.cos(args)], axis=-1)


def init_params(key):
    ks = iter(jax.random.split(key, 32))
    w = lambda shape, s=0.05: jax.random.normal(next(ks), shape, jnp.float32) * s
    zeros = lambda n: jnp.zeros((n,), jnp.float32)
    ones = lambda n: jnp.ones((n,), jnp.float32)
    Cin = 4
    return dict(
        time_w1=w((TIME_SIN_DIM, TEMB_DIM)), time_b1=zeros(TEMB_DIM),
        time_w2=w((TEMB_DIM, TEMB_DIM)), time_b2=zeros(TEMB_DIM),
        conv_in_w=w((3, 3, Cin, C)), conv_in_b=zeros(C),
        gn1_g=ones(C), gn1_b=zeros(C),
        res_conv1_w=w((3, 3, C, C)), res_conv1_b=zeros(C),
        temb_proj_w=w((TEMB_DIM, C)), temb_proj_b=zeros(C),
        gn2_g=ones(C), gn2_b=zeros(C),
        res_conv2_w=w((3, 3, C, C)), res_conv2_b=zeros(C),
        gn_attn_g=ones(C), gn_attn_b=zeros(C),
        wq=w((C, ATTN_D)), bq=zeros(ATTN_D),
        wk=w((32, ATTN_D)), bk=zeros(ATTN_D),   # cross-attn dim = 32
        wv=w((32, ATTN_D)), bv=zeros(ATTN_D),
        wo=w((ATTN_D, C)), bo=zeros(C),
        gn_out_g=ones(C), gn_out_b=zeros(C),
        conv_out_w=w((3, 3, C, Cin)), conv_out_b=zeros(Cin),
    )


def mini_unet(params, sample_nchw, t_b, encoder_hidden_states):
    B, Cin, H, W = sample_nchw.shape
    HW = H * W
    S, XD = encoder_hidden_states.shape[1], encoder_hidden_states.shape[2]
    f32, bf16 = jnp.float32, jnp.bfloat16

    # Channels-first input is already the kernel layout: no transpose, no pad.
    x = sample_nchw.reshape(B, Cin, HW).astype(f32)

    # Tiny time-embedding MLP on B rows: plain JAX.
    temb = timestep_embedding(t_b, TIME_SIN_DIM)
    temb = jax.nn.silu(temb @ params["time_w1"] + params["time_b1"])
    temb = temb @ params["time_w2"] + params["time_b2"]
    tproj = jax.nn.silu(temb) @ params["temb_proj_w"] + params["temb_proj_b"]
    tproj = tproj.reshape(B, C, 1).astype(f32)          # per-channel column

    ehs = encoder_hidden_states.astype(f32)              # (B, S, XD)
    ehsT = jnp.transpose(ehs, (0, 2, 1))                 # (B, XD, S)

    # ---- packed, pre-transposed weights (channels-first / MXU-ready) ----
    def conv_wT(wc):  # (3,3,Ci,Co) -> (Co, 9*Ci) bf16 im2col weight
        return wc.reshape(9 * wc.shape[2], wc.shape[3]).T.astype(bf16)

    wcin = conv_wT(params["conv_in_w"])                              # (32, 36)
    cout = jnp.zeros((8, 9 * C), bf16).at[:Cin].set(
        conv_wT(params["conv_out_w"]))                               # (8, 288)
    w288 = jnp.concatenate([conv_wT(params["res_conv1_w"]),
                            conv_wT(params["res_conv2_w"]),
                            cout], axis=0)                           # (72, 288)

    # Attention weight slab: [Wq^T (d,C); Wk (XD,d); Wv^T (d,XD); Wo^T (C,d)]
    wattn = jnp.concatenate([params["wq"].T, params["wk"],
                             params["wv"].T, params["wo"].T],
                            axis=0).astype(bf16)                     # (128, 32)

    # f32 per-channel parameter columns (gammas / betas / biases).
    def col_(v):
        v = jnp.asarray(v, f32).reshape(-1)
        return jnp.pad(v, (0, C - v.shape[0]))
    vec_cols = [params["conv_in_b"], params["gn1_g"], params["gn1_b"],
                params["res_conv1_b"], params["gn2_g"], params["gn2_b"],
                params["res_conv2_b"], params["gn_attn_g"], params["gn_attn_b"],
                params["bq"], params["bo"], params["gn_out_g"], params["gn_out_b"],
                params["conv_out_b"], params["bv"], jnp.zeros((C,), f32)]
    vecs = jnp.stack([col_(v) for v in vec_cols], axis=1)            # (32, 16)

    bk_row = params["bk"].reshape(1, -1).astype(f32)                 # (1, 32)

    # Conv-tap validity masks (hoisted once): mask[t, p] = 1 iff pixel p
    # shifted by tap t stays inside the image.
    yy, xx = jnp.meshgrid(jnp.arange(H), jnp.arange(W), indexing="ij")
    mask_rows = []
    for t in range(9):
        dy, dx = t // 3 - 1, t % 3 - 1
        valid = (yy + dy >= 0) & (yy + dy < H) & (xx + dx >= 0) & (xx + dx < W)
        mask_rows.append(valid.reshape(-1))
    masks = jnp.stack(mask_rows, axis=0).astype(f32)                 # (9, HW)

    # One-hot channel->group matrix (and transpose) for GroupNorm stats.
    gm = (jnp.arange(C)[:, None] // (C // GROUPS)
          == jnp.arange(GROUPS)[None, :]).astype(f32)                # (C, G)
    gmt = gm.T                                                       # (G, C)

    consts = (wcin, w288, wattn, vecs, bk_row, masks, gm, gmt)

    kern = functools.partial(_unet_fused_kernel, Wimg=W)
    out = pl.pallas_call(
        kern,
        out_shape=jax.ShapeDtypeStruct((B, Cin, HW), f32),
        grid=(B,),
        in_specs=[
            pl.BlockSpec((1, Cin, HW), lambda b: (b, 0, 0)),
            pl.BlockSpec((1, C, 1), lambda b: (b, 0, 0)),
            pl.BlockSpec((1, S, XD), lambda b: (b, 0, 0)),
            pl.BlockSpec((1, XD, S), lambda b: (b, 0, 0)),
        ] + [_const_spec(a) for a in consts],
        out_specs=pl.BlockSpec((1, Cin, HW), lambda b: (b, 0, 0)),
        scratch_shapes=[
            pltpu.VMEM((9 * Cin, HW), bf16),   # im2col columns, conv_in
            pltpu.VMEM((9 * C, HW), bf16),     # im2col columns, C-channel convs
        ],
        compiler_params=pltpu.CompilerParams(
            dimension_semantics=("parallel",),   # per-sample split (v7x megacore)
        ),
    )(x, tproj, ehs, ehsT, *consts)

    # (B, Cin, H*W) is already NCHW element order: reshape only, no transpose.
    return out.reshape(B, Cin, H, W)


@jax.jit
def _neuron_unet_forward_jit(params, sample, timestep, encoder_hidden_states):
    B = sample.shape[0]
    # timestep.to(torch.bfloat16).expand((B,))  -- matches NeuronUNet.forward
    t_b = jnp.broadcast_to(jnp.asarray(timestep).astype(jnp.bfloat16), (B,))
    return mini_unet(params, sample, t_b, encoder_hidden_states)


def neuron_unet_forward(params, sample, timestep, encoder_hidden_states,
                        cross_attention_kwargs=None):
    """Mirrors NeuronUNet.forward (cross_attention_kwargs is unused)."""
    out = _neuron_unet_forward_jit(params, sample, timestep,
                                   encoder_hidden_states)
    return UNet2DConditionOutput(sample=out)


# --------------------------------- main -------------------------------------
if __name__ == "__main__":
    key = jax.random.PRNGKey(0)
    kp, kx, ke = jax.random.split(key, 3)
    params = init_params(kp)

    sample = jax.random.normal(kx, (2, 4, 16, 16), jnp.float32)   # NCHW
    timestep = jnp.asarray(50, jnp.int32)                         # scalar
    encoder_hidden_states = jax.random.normal(ke, (2, 8, 32), jnp.float32)

    out = neuron_unet_forward(params, sample, timestep, encoder_hidden_states)
    jax.block_until_ready(out.sample)
    assert out.sample.shape == (2, 4, 16, 16)
    assert bool(jnp.all(jnp.isfinite(out.sample)))
    print("KERNEL_OK")
</pallas_src>

<mosaic_0001>
module attributes {stable_mosaic.version = 11 : i64} {
  func.func @_unet_fused_kernel(%arg0: i32, %arg1: memref<1x4x256xf32, #tpu.memory_space<vmem>>, %arg2: memref<1x32x1xf32, #tpu.memory_space<vmem>>, %arg3: memref<1x8x32xf32, #tpu.memory_space<vmem>>, %arg4: memref<1x32x8xf32, #tpu.memory_space<vmem>>, %arg5: memref<32x36xbf16, #tpu.memory_space<vmem>>, %arg6: memref<72x288xbf16, #tpu.memory_space<vmem>>, %arg7: memref<128x32xbf16, #tpu.memory_space<vmem>>, %arg8: memref<32x16xf32, #tpu.memory_space<vmem>>, %arg9: memref<1x32xf32, #tpu.memory_space<vmem>>, %arg10: memref<9x256xf32, #tpu.memory_space<vmem>>, %arg11: memref<32x8xf32, #tpu.memory_space<vmem>>, %arg12: memref<8x32xf32, #tpu.memory_space<vmem>>, %arg13: memref<1x4x256xf32, #tpu.memory_space<vmem>>, %arg14: memref<36x256xbf16, #tpu.memory_space<vmem>>, %arg15: memref<288x256xbf16, #tpu.memory_space<vmem>>) attributes {dimension_semantics = [#tpu.dimension_semantics<parallel>], iteration_bounds = array<i64: 2>, scalar_prefetch = 0 : i64, scratch_operands = 2 : i64, tpu.core_type = #tpu.core_type<tc>, window_params = [{transform_indices = @transform_0, window_bounds = array<i64: 1, 4, 256>}, {transform_indices = @transform_1, window_bounds = array<i64: 1, 32, 1>}, {transform_indices = @transform_2, window_bounds = array<i64: 1, 8, 32>}, {transform_indices = @transform_3, window_bounds = array<i64: 1, 32, 8>}, {pipeline_mode = #tpu.pipeline_mode<synchronous>, transform_indices = @transform_4, window_bounds = array<i64: 32, 36>}, {pipeline_mode = #tpu.pipeline_mode<synchronous>, transform_indices = @transform_5, window_bounds = array<i64: 72, 288>}, {pipeline_mode = #tpu.pipeline_mode<synchronous>, transform_indices = @transform_6, window_bounds = array<i64: 128, 32>}, {pipeline_mode = #tpu.pipeline_mode<synchronous>, transform_indices = @transform_7, window_bounds = array<i64: 32, 16>}, {pipeline_mode = #tpu.pipeline_mode<synchronous>, transform_indices = @transform_8, window_bounds = array<i64: 1, 32>}, {pipeline_mode = #tpu.pipeline_mode<synchronous>, transform_indices = @transform_9, window_bounds = array<i64: 9, 256>}, {pipeline_mode = #tpu.pipeline_mode<synchronous>, transform_indices = @transform_10, window_bounds = array<i64: 32, 8>}, {pipeline_mode = #tpu.pipeline_mode<synchronous>, transform_indices = @transform_11, window_bounds = array<i64: 8, 32>}, {transform_indices = @transform_12, window_bounds = array<i64: 1, 4, 256>}]} {
    %cst = arith.constant 1.000000e+00 : f32
    %0 = vector.broadcast %cst : f32 to vector<256x8xf32>
    %c0 = arith.constant 0 : index
    %c0_0 = arith.constant 0 : index
    %c0_1 = arith.constant 0 : index
    %1 = vector.load %arg1[%c0, %c0_0, %c0_1] : memref<1x4x256xf32, #tpu.memory_space<vmem>>, vector<1x4x256xf32>
    %2 = vector.shape_cast %1 : vector<1x4x256xf32> to vector<4x256xf32>
    %c0_2 = arith.constant 0 : index
    %c0_3 = arith.constant 0 : index
    %3 = vector.load %arg5[%c0_2, %c0_3] : memref<32x36xbf16, #tpu.memory_space<vmem>>, vector<32x36xbf16>
    %c0_4 = arith.constant 0 : index
    %c0_5 = arith.constant 0 : index
    %4 = vector.load %arg8[%c0_4, %c0_5] : memref<32x16xf32, #tpu.memory_space<vmem>>, vector<32x1xf32>
    %c17_i32 = arith.constant 17 : i32
    %5 = tpu.dynamic_rotate %2 by %c17_i32 dim 1 : vector<4x256xf32>, i32 -> vector<4x256xf32>
    %c0_6 = arith.constant 0 : index
    %c0_7 = arith.constant 0 : index
    %6 = vector.load %arg10[%c0_6, %c0_7] : memref<9x256xf32, #tpu.memory_space<vmem>>, vector<1x256xf32>
    %7 = vector.broadcast %6 : vector<1x256xf32> to vector<4x256xf32>
    %8 = arith.mulf %5, %7 : vector<4x256xf32>
    %9 = arith.truncf %8 : vector<4x256xf32> to vector<4x256xbf16>
    %c0_8 = arith.constant 0 : index
    %c0_9 = arith.constant 0 : index
    %10 = vector.load %arg14[%c0_8, %c0_9] : memref<36x256xbf16, #tpu.memory_space<vmem>>, vector<4x256xbf16>
    tpu.vector_store %arg14[%c0_8, %c0_9], %9 {strides = array<i32>} : memref<36x256xbf16, #tpu.memory_space<vmem>>, vector<4x256xbf16>,
    %c16_i32 = arith.constant 16 : i32
    %11 = tpu.dynamic_rotate %2 by %c16_i32 dim 1 : vector<4x256xf32>, i32 -> vector<4x256xf32>
    %c1 = arith.constant 1 : index
    %c0_10 = arith.constant 0 : index
    %12 = vector.load %arg10[%c1, %c0_10] : memref<9x256xf32, #tpu.memory_space<vmem>>, vector<1x256xf32>
    %13 = vector.broadcast %12 : vector<1x256xf32> to vector<4x256xf32>
    %14 = arith.mulf %11, %13 : vector<4x256xf32>
    %15 = arith.truncf %14 : vector<4x256xf32> to vector<4x256xbf16>
    %c4 = arith.constant 4 : index
    %c0_11 = arith.constant 0 : index
    %16 = vector.load %arg14[%c4, %c0_11] : memref<36x256xbf16, #tpu.memory_space<vmem>>, vector<4x256xbf16>
    tpu.vector_store %arg14[%c4, %c0_11], %15 {strides = array<i32>} : memref<36x256xbf16, #tpu.memory_space<vmem>>, vector<4x256xbf16>,
    %c15_i32 = arith.constant 15 : i32
    %17 = tpu.dynamic_rotate %2 by %c15_i32 dim 1 : vector<4x256xf32>, i32 -> vector<4x256xf32>
    %c2 = arith.constant 2 : index
    %c0_12 = arith.constant 0 : index
    %18 = vector.load %arg10[%c2, %c0_12] : memref<9x256xf32, #tpu.memory_space<vmem>>, vector<1x256xf32>
    %19 = vector.broadcast %18 : vector<1x256xf32> to vector<4x256xf32>
    %20 = arith.mulf %17, %19 : vector<4x256xf32>
    %21 = arith.truncf %20 : vector<4x256xf32> to vector<4x256xbf16>
    %c8 = arith.constant 8 : index
    %c0_13 = arith.constant 0 : index
    %22 = vector.load %arg14[%c8, %c0_13] : memref<36x256xbf16, #tpu.memory_space<vmem>>, vector<4x256xbf16>
    tpu.vector_store %arg14[%c8, %c0_13], %21 {strides = array<i32>} : memref<36x256xbf16, #tpu.memory_space<vmem>>, vector<4x256xbf16>,
    %c1_i32 = arith.constant 1 : i32
    %23 = tpu.dynamic_rotate %2 by %c1_i32 dim 1 : vector<4x256xf32>, i32 -> vector<4x256xf32>
    %c3 = arith.constant 3 : index
    %c0_14 = arith.constant 0 : index
    %24 = vector.load %arg10[%c3, %c0_14] : memref<9x256xf32, #tpu.memory_space<vmem>>, vector<1x256xf32>
    %25 = vector.broadcast %24 : vector<1x256xf32> to vector<4x256xf32>
    %26 = arith.mulf %23, %25 : vector<4x256xf32>
    %27 = arith.truncf %26 : vector<4x256xf32> to vector<4x256xbf16>
    %c12 = arith.constant 12 : index
    %c0_15 = arith.constant 0 : index
    %28 = vector.load %arg14[%c12, %c0_15] : memref<36x256xbf16, #tpu.memory_space<vmem>>, vector<4x256xbf16>
    tpu.vector_store %arg14[%c12, %c0_15], %27 {strides = array<i32>} : memref<36x256xbf16, #tpu.memory_space<vmem>>, vector<4x256xbf16>,
    %29 = arith.truncf %2 : vector<4x256xf32> to vector<4x256xbf16>
    %c16 = arith.constant 16 : index
    %c0_16 = arith.constant 0 : index
    %30 = vector.load %arg14[%c16, %c0_16] : memref<36x256xbf16, #tpu.memory_space<vmem>>, vector<4x256xbf16>
    tpu.vector_store %arg14[%c16, %c0_16], %29 {strides = array<i32>} : memref<36x256xbf16, #tpu.memory_space<vmem>>, vector<4x256xbf16>,
    %c255_i32 = arith.constant 255 : i32
    %31 = tpu.dynamic_rotate %2 by %c255_i32 dim 1 : vector<4x256xf32>, i32 -> vector<4x256xf32>
    %c5 = arith.constant 5 : index
    %c0_17 = arith.constant 0 : index
    %32 = vector.load %arg10[%c5, %c0_17] : memref<9x256xf32, #tpu.memory_space<vmem>>, vector<1x256xf32>
    %33 = vector.broadcast %32 : vector<1x256xf32> to vector<4x256xf32>
    %34 = arith.mulf %31, %33 : vector<4x256xf32>
    %35 = arith.truncf %34 : vector<4x256xf32> to vector<4x256xbf16>
    %c20 = arith.constant 20 : index
    %c0_18 = arith.constant 0 : index
    %36 = vector.load %arg14[%c20, %c0_18] : memref<36x256xbf16, #tpu.memory_space<vmem>>, vector<4x256xbf16>
    tpu.vector_store %arg14[%c20, %c0_18], %35 {strides = array<i32>} : memref<36x256xbf16, #tpu.memory_space<vmem>>, vector<4x256xbf16>,
    %c241_i32 = arith.constant 241 : i32
    %37 = tpu.dynamic_rotate %2 by %c241_i32 dim 1 : vector<4x256xf32>, i32 -> vector<4x256xf32>
    %c6 = arith.constant 6 : index
    %c0_19 = arith.constant 0 : index
    %38 = vector.load %arg10[%c6, %c0_19] : memref<9x256xf32, #tpu.memory_space<vmem>>, vector<1x256xf32>
    %39 = vector.broadcast %38 : vector<1x256xf32> to vector<4x256xf32>
    %40 = arith.mulf %37, %39 : vector<4x256xf32>
    %41 = arith.truncf %40 : vector<4x256xf32> to vector<4x256xbf16>
    %c24 = arith.constant 24 : index
    %c0_20 = arith.constant 0 : index
    %42 = vector.load %arg14[%c24, %c0_20] : memref<36x256xbf16, #tpu.memory_space<vmem>>, vector<4x256xbf16>
    tpu.vector_store %arg14[%c24, %c0_20], %41 {strides = array<i32>} : memref<36x256xbf16, #tpu.memory_space<vmem>>, vector<4x256xbf16>,
    %c240_i32 = arith.constant 240 : i32
    %43 = tpu.dynamic_rotate %2 by %c240_i32 dim 1 : vector<4x256xf32>, i32 -> vector<4x256xf32>
    %c7 = arith.constant 7 : index
    %c0_21 = arith.constant 0 : index
    %44 = vector.load %arg10[%c7, %c0_21] : memref<9x256xf32, #tpu.memory_space<vmem>>, vector<1x256xf32>
    %45 = vector.broadcast %44 : vector<1x256xf32> to vector<4x256xf32>
    %46 = arith.mulf %43, %45 : vector<4x256xf32>
    %47 = arith.truncf %46 : vector<4x256xf32> to vector<4x256xbf16>
    %c28 = arith.constant 28 : index
    %c0_22 = arith.constant 0 : index
    %48 = vector.load %arg14[%c28, %c0_22] : memref<36x256xbf16, #tpu.memory_space<vmem>>, vector<4x256xbf16>
    tpu.vector_store %arg14[%c28, %c0_22], %47 {strides = array<i32>} : memref<36x256xbf16, #tpu.memory_space<vmem>>, vector<4x256xbf16>,
    %c239_i32 = arith.constant 239 : i32
    %49 = tpu.dynamic_rotate %2 by %c239_i32 dim 1 : vector<4x256xf32>, i32 -> vector<4x256xf32>
    %c8_23 = arith.constant 8 : index
    %c0_24 = arith.constant 0 : index
    %50 = vector.load %arg10[%c8_23, %c0_24] : memref<9x256xf32, #tpu.memory_space<vmem>>, vector<1x256xf32>
    %51 = vector.broadcast %50 : vector<1x256xf32> to vector<4x256xf32>
    %52 = arith.mulf %49, %51 : vector<4x256xf32>
    %53 = arith.truncf %52 : vector<4x256xf32> to vector<4x256xbf16>
    %c32 = arith.constant 32 : index
    %c0_25 = arith.constant 0 : index
    %54 = vector.load %arg14[%c32, %c0_25] : memref<36x256xbf16, #tpu.memory_space<vmem>>, vector<4x256xbf16>
    tpu.vector_store %arg14[%c32, %c0_25], %53 {strides = array<i32>} : memref<36x256xbf16, #tpu.memory_space<vmem>>, vector<4x256xbf16>,
    %c0_26 = arith.constant 0 : index
    %c0_27 = arith.constant 0 : index
    %55 = vector.load %arg14[%c0_26, %c0_27] : memref<36x256xbf16, #tpu.memory_space<vmem>>, vector<36x256xbf16>
    %cst_28 = arith.constant dense<0.000000e+00> : vector<32x256xf32>
    %56 = tpu.matmul %3, %55, %cst_28 {dimension_numbers = #tpu.dot_dimension_numbers<[1], [0], [0], [1], [0, 0, 1, 1], [], []>} : vector<32x36xbf16>, vector<36x256xbf16>, vector<32x256xf32> -> vector<32x256xf32>
    %57 = vector.broadcast %4 : vector<32x1xf32> to vector<32x256xf32>
    %58 = arith.addf %56, %57 : vector<32x256xf32>
    %c0_29 = arith.constant 0 : index
    %c1_30 = arith.constant 1 : index
    %59 = vector.load %arg8[%c0_29, %c1_30] : memref<32x16xf32, #tpu.memory_space<vmem>>, vector<32x1xf32>
    %c0_31 = arith.constant 0 : index
    %c2_32 = arith.constant 2 : index
    %60 = vector.load %arg8[%c0_31, %c2_32] : memref<32x16xf32, #tpu.memory_space<vmem>>, vector<32x1xf32>
    %cst_33 = arith.constant dense<0.000000e+00> : vector<32x8xf32>
    %61 = tpu.matmul %58, %0, %cst_33 {dimension_numbers = #tpu.dot_dimension_numbers<[1], [0], [0], [1], [0, 0, 1, 1], [], []>} : vector<32x256xf32>, vector<256x8xf32>, vector<32x8xf32> -> vector<32x8xf32>
    %c0_34 = arith.constant 0 : index
    %c0_35 = arith.constant 0 : index
    %62 = vector.load %arg12[%c0_34, %c0_35] : memref<8x32xf32, #tpu.memory_space<vmem>>, vector<8x32xf32>
    %cst_36 = arith.constant dense<0.000000e+00> : vector<8x8xf32>
    %63 = tpu.matmul %62, %61, %cst_36 {dimension_numbers = #tpu.dot_dimension_numbers<[1], [0], [0], [1], [0, 0, 1, 1], [], []>} : vector<8x32xf32>, vector<32x8xf32>, vector<8x8xf32> -> vector<8x8xf32>
    %cst_37 = arith.constant 1.024000e+03 : f32
    %64 = vector.broadcast %cst_37 : f32 to vector<8x8xf32>
    %65 = arith.divf %63, %64 : vector<8x8xf32>
    %c0_38 = arith.constant 0 : index
    %c0_39 = arith.constant 0 : index
    %66 = vector.load %arg11[%c0_38, %c0_39] : memref<32x8xf32, #tpu.memory_space<vmem>>, vector<32x8xf32>
    %cst_40 = arith.constant dense<0.000000e+00> : vector<32x8xf32>
    %67 = tpu.matmul %66, %65, %cst_40 {dimension_numbers = #tpu.dot_dimension_numbers<[1], [0], [0], [1], [0, 0, 1, 1], [], []>} : vector<32x8xf32>, vector<8x8xf32>, vector<32x8xf32> -> vector<32x8xf32>
    %68 = vector.extract_strided_slice %67 {offsets = [0, 0], sizes = [32, 1], strides = [1, 1]} : vector<32x8xf32> to vector<32x1xf32>
    %69 = vector.broadcast %68 : vector<32x1xf32> to vector<32x256xf32>
    %70 = arith.subf %58, %69 : vector<32x256xf32>
    %71 = arith.mulf %70, %70 : vector<32x256xf32>
    %cst_41 = arith.constant dense<0.000000e+00> : vector<32x8xf32>
    %72 = tpu.matmul %71, %0, %cst_41 {dimension_numbers = #tpu.dot_dimension_numbers<[1], [0], [0], [1], [0, 0, 1, 1], [], []>} : vector<32x256xf32>, vector<256x8xf32>, vector<32x8xf32> -> vector<32x8xf32>
    %c0_42 = arith.constant 0 : index
    %c0_43 = arith.constant 0 : index
    %73 = vector.load %arg12[%c0_42, %c0_43] : memref<8x32xf32, #tpu.memory_space<vmem>>, vector<8x32xf32>
    %cst_44 = arith.constant dense<0.000000e+00> : vector<8x8xf32>
    %74 = tpu.matmul %73, %72, %cst_44 {dimension_numbers = #tpu.dot_dimension_numbers<[1], [0], [0], [1], [0, 0, 1, 1], [], []>} : vector<8x32xf32>, vector<32x8xf32>, vector<8x8xf32> -> vector<8x8xf32>
    %cst_45 = arith.constant 1.024000e+03 : f32
    %75 = vector.broadcast %cst_45 : f32 to vector<8x8xf32>
    %76 = arith.divf %74, %75 : vector<8x8xf32>
    %c0_46 = arith.constant 0 : index
    %c0_47 = arith.constant 0 : index
    %77 = vector.load %arg11[%c0_46, %c0_47] : memref<32x8xf32, #tpu.memory_space<vmem>>, vector<32x8xf32>
    %cst_48 = arith.constant 9.99999974E-6 : f32
    %78 = vector.broadcast %cst_48 : f32 to vector<8x8xf32>
    %79 = arith.addf %76, %78 : vector<8x8xf32>
    %80 = math.rsqrt %79 : vector<8x8xf32>
    %cst_49 = arith.constant dense<0.000000e+00> : vector<32x8xf32>
    %81 = tpu.matmul %77, %80, %cst_49 {dimension_numbers = #tpu.dot_dimension_numbers<[1], [0], [0], [1], [0, 0, 1, 1], [], []>} : vector<32x8xf32>, vector<8x8xf32>, vector<32x8xf32> -> vector<32x8xf32>
    %82 = vector.extract_strided_slice %81 {offsets = [0, 0], sizes = [32, 1], strides = [1, 1]} : vector<32x8xf32> to vector<32x1xf32>
    %83 = vector.broadcast %82 : vector<32x1xf32> to vector<32x256xf32>
    %84 = arith.mulf %70, %83 : vector<32x256xf32>
    %85 = vector.broadcast %59 : vector<32x1xf32> to vector<32x256xf32>
    %86 = arith.mulf %84, %85 : vector<32x256xf32>
    %87 = vector.broadcast %60 : vector<32x1xf32> to vector<32x256xf32>
    %88 = arith.addf %86, %87 : vector<32x256xf32>
    %89 = arith.negf %88 : vector<32x256xf32>
    %90 = math.exp %89 : vector<32x256xf32>
    %cst_50 = arith.constant 1.000000e+00 : f32
    %91 = vector.broadcast %cst_50 : f32 to vector<32x256xf32>
    %92 = arith.addf %91, %90 : vector<32x256xf32>
    %93 = arith.divf %91, %92 : vector<32x256xf32>
    %94 = arith.mulf %88, %93 : vector<32x256xf32>
    %c0_51 = arith.constant 0 : index
    %c0_52 = arith.constant 0 : index
    %95 = vector.load %arg6[%c0_51, %c0_52] : memref<72x288xbf16, #tpu.memory_space<vmem>>, vector<32x288xbf16>
    %c0_53 = arith.constant 0 : index
    %c3_54 = arith.constant 3 : index
    %96 = vector.load %arg8[%c0_53, %c3_54] : memref<32x16xf32, #tpu.memory_space<vmem>>, vector<32x1xf32>
    %c17_i32_55 = arith.constant 17 : i32
    %97 = tpu.dynamic_rotate %94 by %c17_i32_55 dim 1 : vector<32x256xf32>, i32 -> vector<32x256xf32>
    %c0_56 = arith.constant 0 : index
    %c0_57 = arith.constant 0 : index
    %98 = vector.load %arg10[%c0_56, %c0_57] : memref<9x256xf32, #tpu.memory_space<vmem>>, vector<1x256xf32>
    %99 = vector.broadcast %98 : vector<1x256xf32> to vector<32x256xf32>
    %100 = arith.mulf %97, %99 : vector<32x256xf32>
    %101 = arith.truncf %100 : vector<32x256xf32> to vector<32x256xbf16>
    %c0_58 = arith.constant 0 : index
    %c0_59 = arith.constant 0 : index
    %102 = vector.load %arg15[%c0_58, %c0_59] : memref<288x256xbf16, #tpu.memory_space<vmem>>, vector<32x256xbf16>
    tpu.vector_store %arg15[%c0_58, %c0_59], %101 {strides = array<i32>} : memref<288x256xbf16, #tpu.memory_space<vmem>>, vector<32x256xbf16>,
    %c16_i32_60 = arith.constant 16 : i32
    %103 = tpu.dynamic_rotate %94 by %c16_i32_60 dim 1 : vector<32x256xf32>, i32 -> vector<32x256xf32>
    %c1_61 = arith.constant 1 : index
    %c0_62 = arith.constant 0 : index
    %104 = vector.load %arg10[%c1_61, %c0_62] : memref<9x256xf32, #tpu.memory_space<vmem>>, vector<1x256xf32>
    %105 = vector.broadcast %104 : vector<1x256xf32> to vector<32x256xf32>
    %106 = arith.mulf %103, %105 : vector<32x256xf32>
    %107 = arith.truncf %106 : vector<32x256xf32> to vector<32x256xbf16>
    %c32_63 = arith.constant 32 : index
    %c0_64 = arith.constant 0 : index
    %108 = vector.load %arg15[%c32_63, %c0_64] : memref<288x256xbf16, #tpu.memory_space<vmem>>, vector<32x256xbf16>
    tpu.vector_store %arg15[%c32_63, %c0_64], %107 {strides = array<i32>} : memref<288x256xbf16, #tpu.memory_space<vmem>>, vector<32x256xbf16>,
    %c15_i32_65 = arith.constant 15 : i32
    %109 = tpu.dynamic_rotate %94 by %c15_i32_65 dim 1 : vector<32x256xf32>, i32 -> vector<32x256xf32>
    %c2_66 = arith.constant 2 : index
    %c0_67 = arith.constant 0 : index
    %110 = vector.load %arg10[%c2_66, %c0_67] : memref<9x256xf32, #tpu.memory_space<vmem>>, vector<1x256xf32>
    %111 = vector.broadcast %110 : vector<1x256xf32> to vector<32x256xf32>
    %112 = arith.mulf %109, %111 : vector<32x256xf32>
    %113 = arith.truncf %112 : vector<32x256xf32> to vector<32x256xbf16>
    %c64 = arith.constant 64 : index
    %c0_68 = arith.constant 0 : index
    %114 = vector.load %arg15[%c64, %c0_68] : memref<288x256xbf16, #tpu.memory_space<vmem>>, vector<32x256xbf16>
    tpu.vector_store %arg15[%c64, %c0_68], %113 {strides = array<i32>} : memref<288x256xbf16, #tpu.memory_space<vmem>>, vector<32x256xbf16>,
    %c1_i32_69 = arith.constant 1 : i32
    %115 = tpu.dynamic_rotate %94 by %c1_i32_69 dim 1 : vector<32x256xf32>, i32 -> vector<32x256xf32>
    %c3_70 = arith.constant 3 : index
    %c0_71 = arith.constant 0 : index
    %116 = vector.load %arg10[%c3_70, %c0_71] : memref<9x256xf32, #tpu.memory_space<vmem>>, vector<1x256xf32>
    %117 = vector.broadcast %116 : vector<1x256xf32> to vector<32x256xf32>
    %118 = arith.mulf %115, %117 : vector<32x256xf32>
    %119 = arith.truncf %118 : vector<32x256xf32> to vector<32x256xbf16>
    %c96 = arith.constant 96 : index
    %c0_72 = arith.constant 0 : index
    %120 = vector.load %arg15[%c96, %c0_72] : memref<288x256xbf16, #tpu.memory_space<vmem>>, vector<32x256xbf16>
    tpu.vector_store %arg15[%c96, %c0_72], %119 {strides = array<i32>} : memref<288x256xbf16, #tpu.memory_space<vmem>>, vector<32x256xbf16>,
    %121 = arith.truncf %94 : vector<32x256xf32> to vector<32x256xbf16>
    %c128 = arith.constant 128 : index
    %c0_73 = arith.constant 0 : index
    %122 = vector.load %arg15[%c128, %c0_73] : memref<288x256xbf16, #tpu.memory_space<vmem>>, vector<32x256xbf16>
    tpu.vector_store %arg15[%c128, %c0_73], %121 {strides = array<i32>} : memref<288x256xbf16, #tpu.memory_space<vmem>>, vector<32x256xbf16>,
    %c255_i32_74 = arith.constant 255 : i32
    %123 = tpu.dynamic_rotate %94 by %c255_i32_74 dim 1 : vector<32x256xf32>, i32 -> vector<32x256xf32>
    %c5_75 = arith.constant 5 : index
    %c0_76 = arith.constant 0 : index
    %124 = vector.load %arg10[%c5_75, %c0_76] : memref<9x256xf32, #tpu.memory_space<vmem>>, vector<1x256xf32>
    %125 = vector.broadcast %124 : vector<1x256xf32> to vector<32x256xf32>
    %126 = arith.mulf %123, %125 : vector<32x256xf32>
    %127 = arith.truncf %126 : vector<32x256xf32> to vector<32x256xbf16>
    %c160 = arith.constant 160 : index
    %c0_77 = arith.constant 0 : index
    %128 = vector.load %arg15[%c160, %c0_77] : memref<288x256xbf16, #tpu.memory_space<vmem>>, vector<32x256xbf16>
    tpu.vector_store %arg15[%c160, %c0_77], %127 {strides = array<i32>} : memref<288x256xbf16, #tpu.memory_space<vmem>>, vector<32x256xbf16>,
    %c241_i32_78 = arith.constant 241 : i32
    %129 = tpu.dynamic_rotate %94 by %c241_i32_78 dim 1 : vector<32x256xf32>, i32 -> vector<32x256xf32>
    %c6_79 = arith.constant 6 : index
    %c0_80 = arith.constant 0 : index
    %130 = vector.load %arg10[%c6_79, %c0_80] : memref<9x256xf32, #tpu.memory_space<vmem>>, vector<1x256xf32>
    %131 = vector.broadcast %130 : vector<1x256xf32> to vector<32x256xf32>
    %132 = arith.mulf %129, %131 : vector<32x256xf32>
    %133 = arith.truncf %132 : vector<32x256xf32> to vector<32x256xbf16>
    %c192 = arith.constant 192 : index
    %c0_81 = arith.constant 0 : index
    %134 = vector.load %arg15[%c192, %c0_81] : memref<288x256xbf16, #tpu.memory_space<vmem>>, vector<32x256xbf16>
    tpu.vector_store %arg15[%c192, %c0_81], %133 {strides = array<i32>} : memref<288x256xbf16, #tpu.memory_space<vmem>>, vector<32x256xbf16>,
    %c240_i32_82 = arith.constant 240 : i32
    %135 = tpu.dynamic_rotate %94 by %c240_i32_82 dim 1 : vector<32x256xf32>, i32 -> vector<32x256xf32>
    %c7_83 = arith.constant 7 : index
    %c0_84 = arith.constant 0 : index
    %136 = vector.load %arg10[%c7_83, %c0_84] : memref<9x256xf32, #tpu.memory_space<vmem>>, vector<1x256xf32>
    %137 = vector.broadcast %136 : vector<1x256xf32> to vector<32x256xf32>
    %138 = arith.mulf %135, %137 : vector<32x256xf32>
    %139 = arith.truncf %138 : vector<32x256xf32> to vector<32x256xbf16>
    %c224 = arith.constant 224 : index
    %c0_85 = arith.constant 0 : index
    %140 = vector.load %arg15[%c224, %c0_85] : memref<288x256xbf16, #tpu.memory_space<vmem>>, vector<32x256xbf16>
    tpu.vector_store %arg15[%c224, %c0_85], %139 {strides = array<i32>} : memref<288x256xbf16, #tpu.memory_space<vmem>>, vector<32x256xbf16>,
    %c239_i32_86 = arith.constant 239 : i32
    %141 = tpu.dynamic_rotate %94 by %c239_i32_86 dim 1 : vector<32x256xf32>, i32 -> vector<32x256xf32>
    %c8_87 = arith.constant 8 : index
    %c0_88 = arith.constant 0 : index
    %142 = vector.load %arg10[%c8_87, %c0_88] : memref<9x256xf32, #tpu.memory_space<vmem>>, vector<1x256xf32>
    %143 = vector.broadcast %142 : vector<1x256xf32> to vector<32x256xf32>
    %144 = arith.mulf %141, %143 : vector<32x256xf32>
    %145 = arith.truncf %144 : vector<32x256xf32> to vector<32x256xbf16>
    %c256 = arith.constant 256 : index
    %c0_89 = arith.constant 0 : index
    %146 = vector.load %arg15[%c256, %c0_89] : memref<288x256xbf16, #tpu.memory_space<vmem>>, vector<32x256xbf16>
    tpu.vector_store %arg15[%c256, %c0_89], %145 {strides = array<i32>} : memref<288x256xbf16, #tpu.memory_space<vmem>>, vector<32x256xbf16>,
    %c0_90 = arith.constant 0 : index
    %c0_91 = arith.constant 0 : index
    %147 = vector.load %arg15[%c0_90, %c0_91] : memref<288x256xbf16, #tpu.memory_space<vmem>>, vector<288x256xbf16>
    %cst_92 = arith.constant dense<0.000000e+00> : vector<32x256xf32>
    %148 = tpu.matmul %95, %147, %cst_92 {dimension_numbers = #tpu.dot_dimension_numbers<[1], [0], [0], [1], [0, 0, 1, 1], [], []>} : vector<32x288xbf16>, vector<288x256xbf16>, vector<32x256xf32> -> vector<32x256xf32>
    %149 = vector.broadcast %96 : vector<32x1xf32> to vector<32x256xf32>
    %150 = arith.addf %148, %149 : vector<32x256xf32>
    %c0_93 = arith.constant 0 : index
    %c0_94 = arith.constant 0 : index
    %c0_95 = arith.constant 0 : index
    %151 = vector.load %arg2[%c0_93, %c0_94, %c0_95] : memref<1x32x1xf32, #tpu.memory_space<vmem>>, vector<1x32x1xf32>
    %152 = vector.shape_cast %151 : vector<1x32x1xf32> to vector<32x1xf32>
    %153 = vector.broadcast %152 : vector<32x1xf32> to vector<32x256xf32>
    %154 = arith.addf %150, %153 : vector<32x256xf32>
    %c0_96 = arith.constant 0 : index
    %c4_97 = arith.constant 4 : index
    %155 = vector.load %arg8[%c0_96, %c4_97] : memref<32x16xf32, #tpu.memory_space<vmem>>, vector<32x1xf32>
    %c0_98 = arith.constant 0 : index
    %c5_99 = arith.constant 5 : index
    %156 = vector.load %arg8[%c0_98, %c5_99] : memref<32x16xf32, #tpu.memory_space<vmem>>, vector<32x1xf32>
    %cst_100 = arith.constant dense<0.000000e+00> : vector<32x8xf32>
    %157 = tpu.matmul %154, %0, %cst_100 {dimension_numbers = #tpu.dot_dimension_numbers<[1], [0], [0], [1], [0, 0, 1, 1], [], []>} : vector<32x256xf32>, vector<256x8xf32>, vector<32x8xf32> -> vector<32x8xf32>
    %c0_101 = arith.constant 0 : index
    %c0_102 = arith.constant 0 : index
    %158 = vector.load %arg12[%c0_101, %c0_102] : memref<8x32xf32, #tpu.memory_space<vmem>>, vector<8x32xf32>
    %cst_103 = arith.constant dense<0.000000e+00> : vector<8x8xf32>
    %159 = tpu.matmul %158, %157, %cst_103 {dimension_numbers = #tpu.dot_dimension_numbers<[1], [0], [0], [1], [0, 0, 1, 1], [], []>} : vector<8x32xf32>, vector<32x8xf32>, vector<8x8xf32> -> vector<8x8xf32>
    %cst_104 = arith.constant 1.024000e+03 : f32
    %160 = vector.broadcast %cst_104 : f32 to vector<8x8xf32>
    %161 = arith.divf %159, %160 : vector<8x8xf32>
    %c0_105 = arith.constant 0 : index
    %c0_106 = arith.constant 0 : index
    %162 = vector.load %arg11[%c0_105, %c0_106] : memref<32x8xf32, #tpu.memory_space<vmem>>, vector<32x8xf32>
    %cst_107 = arith.constant dense<0.000000e+00> : vector<32x8xf32>
    %163 = tpu.matmul %162, %161, %cst_107 {dimension_numbers = #tpu.dot_dimension_numbers<[1], [0], [0], [1], [0, 0, 1, 1], [], []>} : vector<32x8xf32>, vector<8x8xf32>, vector<32x8xf32> -> vector<32x8xf32>
    %164 = vector.extract_strided_slice %163 {offsets = [0, 0], sizes = [32, 1], strides = [1, 1]} : vector<32x8xf32> to vector<32x1xf32>
    %165 = vector.broadcast %164 : vector<32x1xf32> to vector<32x256xf32>
    %166 = arith.subf %154, %165 : vector<32x256xf32>
    %167 = arith.mulf %166, %166 : vector<32x256xf32>
    %cst_108 = arith.constant dense<0.000000e+00> : vector<32x8xf32>
    %168 = tpu.matmul %167, %0, %cst_108 {dimension_numbers = #tpu.dot_dimension_numbers<[1], [0], [0], [1], [0, 0, 1, 1], [], []>} : vector<32x256xf32>, vector<256x8xf32>, vector<32x8xf32> -> vector<32x8xf32>
    %c0_109 = arith.constant 0 : index
    %c0_110 = arith.constant 0 : index
    %169 = vector.load %arg12[%c0_109, %c0_110] : memref<8x32xf32, #tpu.memory_space<vmem>>, vector<8x32xf32>
    %cst_111 = arith.constant dense<0.000000e+00> : vector<8x8xf32>
    %170 = tpu.matmul %169, %168, %cst_111 {dimension_numbers = #tpu.dot_dimension_numbers<[1], [0], [0], [1], [0, 0, 1, 1], [], []>} : vector<8x32xf32>, vector<32x8xf32>, vector<8x8xf32> -> vector<8x8xf32>
    %cst_112 = arith.constant 1.024000e+03 : f32
    %171 = vector.broadcast %cst_112 : f32 to vector<8x8xf32>
    %172 = arith.divf %170, %171 : vector<8x8xf32>
    %c0_113 = arith.constant 0 : index
    %c0_114 = arith.constant 0 : index
    %173 = vector.load %arg11[%c0_113, %c0_114] : memref<32x8xf32, #tpu.memory_space<vmem>>, vector<32x8xf32>
    %cst_115 = arith.constant 9.99999974E-6 : f32
    %174 = vector.broadcast %cst_115 : f32 to vector<8x8xf32>
    %175 = arith.addf %172, %174 : vector<8x8xf32>
    %176 = math.rsqrt %175 : vector<8x8xf32>
    %cst_116 = arith.constant dense<0.000000e+00> : vector<32x8xf32>
    %177 = tpu.matmul %173, %176, %cst_116 {dimension_numbers = #tpu.dot_dimension_numbers<[1], [0], [0], [1], [0, 0, 1, 1], [], []>} : vector<32x8xf32>, vector<8x8xf32>, vector<32x8xf32> -> vector<32x8xf32>
    %178 = vector.extract_strided_slice %177 {offsets = [0, 0], sizes = [32, 1], strides = [1, 1]} : vector<32x8xf32> to vector<32x1xf32>
    %179 = vector.broadcast %178 : vector<32x1xf32> to vector<32x256xf32>
    %180 = arith.mulf %166, %179 : vector<32x256xf32>
    %181 = vector.broadcast %155 : vector<32x1xf32> to vector<32x256xf32>
    %182 = arith.mulf %180, %181 : vector<32x256xf32>
    %183 = vector.broadcast %156 : vector<32x1xf32> to vector<32x256xf32>
    %184 = arith.addf %182, %183 : vector<32x256xf32>
    %185 = arith.negf %184 : vector<32x256xf32>
    %186 = math.exp %185 : vector<32x256xf32>
    %cst_117 = arith.constant 1.000000e+00 : f32
    %187 = vector.broadcast %cst_117 : f32 to vector<32x256xf32>
    %188 = arith.addf %187, %186 : vector<32x256xf32>
    %189 = arith.divf %187, %188 : vector<32x256xf32>
    %190 = arith.mulf %184, %189 : vector<32x256xf32>
    %c32_118 = arith.constant 32 : index
    %c0_119 = arith.constant 0 : index
    %191 = vector.load %arg6[%c32_118, %c0_119] : memref<72x288xbf16, #tpu.memory_space<vmem>>, vector<32x288xbf16>
    %c0_120 = arith.constant 0 : index
    %c6_121 = arith.constant 6 : index
    %192 = vector.load %arg8[%c0_120, %c6_121] : memref<32x16xf32, #tpu.memory_space<vmem>>, vector<32x1xf32>
    %c17_i32_122 = arith.constant 17 : i32
    %193 = tpu.dynamic_rotate %190 by %c17_i32_122 dim 1 : vector<32x256xf32>, i32 -> vector<32x256xf32>
    %c0_123 = arith.constant 0 : index
    %c0_124 = arith.constant 0 : index
    %194 = vector.load %arg10[%c0_123, %c0_124] : memref<9x256xf32, #tpu.memory_space<vmem>>, vector<1x256xf32>
    %195 = vector.broadcast %194 : vector<1x256xf32> to vector<32x256xf32>
    %196 = arith.mulf %193, %195 : vector<32x256xf32>
    %197 = arith.truncf %196 : vector<32x256xf32> to vector<32x256xbf16>
    %c0_125 = arith.constant 0 : index
    %c0_126 = arith.constant 0 : index
    %198 = vector.load %arg15[%c0_125, %c0_126] : memref<288x256xbf16, #tpu.memory_space<vmem>>, vector<32x256xbf16>
    tpu.vector_store %arg15[%c0_125, %c0_126], %197 {strides = array<i32>} : memref<288x256xbf16, #tpu.memory_space<vmem>>, vector<32x256xbf16>,
    %c16_i32_127 = arith.constant 16 : i32
    %199 = tpu.dynamic_rotate %190 by %c16_i32_127 dim 1 : vector<32x256xf32>, i32 -> vector<32x256xf32>
    %c1_128 = arith.constant 1 : index
    %c0_129 = arith.constant 0 : index
    %200 = vector.load %arg10[%c1_128, %c0_129] : memref<9x256xf32, #tpu.memory_space<vmem>>, vector<1x256xf32>
    %201 = vector.broadcast %200 : vector<1x256xf32> to vector<32x256xf32>
    %202 = arith.mulf %199, %201 : vector<32x256xf32>
    %203 = arith.truncf %202 : vector<32x256xf32> to vector<32x256xbf16>
    %c32_130 = arith.constant 32 : index
    %c0_131 = arith.constant 0 : index
    %204 = vector.load %arg15[%c32_130, %c0_131] : memref<288x256xbf16, #tpu.memory_space<vmem>>, vector<32x256xbf16>
    tpu.vector_store %arg15[%c32_130, %c0_131], %203 {strides = array<i32>} : memref<288x256xbf16, #tpu.memory_space<vmem>>, vector<32x256xbf16>,
    %c15_i32_132 = arith.constant 15 : i32
    %205 = tpu.dynamic_rotate %190 by %c15_i32_132 dim 1 : vector<32x256xf32>, i32 -> vector<32x256xf32>
    %c2_133 = arith.constant 2 : index
    %c0_134 = arith.constant 0 : index
    %206 = vector.load %arg10[%c2_133, %c0_134] : memref<9x256xf32, #tpu.memory_space<vmem>>, vector<1x256xf32>
    %207 = vector.broadcast %206 : vector<1x256xf32> to vector<32x256xf32>
    %208 = arith.mulf %205, %207 : vector<32x256xf32>
    %209 = arith.truncf %208 : vector<32x256xf32> to vector<32x256xbf16>
    %c64_135 = arith.constant 64 : index
    %c0_136 = arith.constant 0 : index
    %210 = vector.load %arg15[%c64_135, %c0_136] : memref<288x256xbf16, #tpu.memory_space<vmem>>, vector<32x256xbf16>
    tpu.vector_store %arg15[%c64_135, %c0_136], %209 {strides = array<i32>} : memref<288x256xbf16, #tpu.memory_space<vmem>>, vector<32x256xbf16>,
    %c1_i32_137 = arith.constant 1 : i32
    %211 = tpu.dynamic_rotate %190 by %c1_i32_137 dim 1 : vector<32x256xf32>, i32 -> vector<32x256xf32>
    %c3_138 = arith.constant 3 : index
    %c0_139 = arith.constant 0 : index
    %212 = vector.load %arg10[%c3_138, %c0_139] : memref<9x256xf32, #tpu.memory_space<vmem>>, vector<1x256xf32>
    %213 = vector.broadcast %212 : vector<1x256xf32> to vector<32x256xf32>
    %214 = arith.mulf %211, %213 : vector<32x256xf32>
    %215 = arith.truncf %214 : vector<32x256xf32> to vector<32x256xbf16>
    %c96_140 = arith.constant 96 : index
    %c0_141 = arith.constant 0 : index
    %216 = vector.load %arg15[%c96_140, %c0_141] : memref<288x256xbf16, #tpu.memory_space<vmem>>, vector<32x256xbf16>
    tpu.vector_store %arg15[%c96_140, %c0_141], %215 {strides = array<i32>} : memref<288x256xbf16, #tpu.memory_space<vmem>>, vector<32x256xbf16>,
    %217 = arith.truncf %190 : vector<32x256xf32> to vector<32x256xbf16>
    %c128_142 = arith.constant 128 : index
    %c0_143 = arith.constant 0 : index
    %218 = vector.load %arg15[%c128_142, %c0_143] : memref<288x256xbf16, #tpu.memory_space<vmem>>, vector<32x256xbf16>
    tpu.vector_store %arg15[%c128_142, %c0_143], %217 {strides = array<i32>} : memref<288x256xbf16, #tpu.memory_space<vmem>>, vector<32x256xbf16>,
    %c255_i32_144 = arith.constant 255 : i32
    %219 = tpu.dynamic_rotate %190 by %c255_i32_144 dim 1 : vector<32x256xf32>, i32 -> vector<32x256xf32>
    %c5_145 = arith.constant 5 : index
    %c0_146 = arith.constant 0 : index
    %220 = vector.load %arg10[%c5_145, %c0_146] : memref<9x256xf32, #tpu.memory_space<vmem>>, vector<1x256xf32>
    %221 = vector.broadcast %220 : vector<1x256xf32> to vector<32x256xf32>
    %222 = arith.mulf %219, %221 : vector<32x256xf32>
    %223 = arith.truncf %222 : vector<32x256xf32> to vector<32x256xbf16>
    %c160_147 = arith.constant 160 : index
    %c0_148 = arith.constant 0 : index
    %224 = vector.load %arg15[%c160_147, %c0_148] : memref<288x256xbf16, #tpu.memory_space<vmem>>, vector<32x256xbf16>
    tpu.vector_store %arg15[%c160_147, %c0_148], %223 {strides = array<i32>} : memref<288x256xbf16, #tpu.memory_space<vmem>>, vector<32x256xbf16>,
    %c241_i32_149 = arith.constant 241 : i32
    %225 = tpu.dynamic_rotate %190 by %c241_i32_149 dim 1 : vector<32x256xf32>, i32 -> vector<32x256xf32>
    %c6_150 = arith.constant 6 : index
    %c0_151 = arith.constant 0 : index
    %226 = vector.load %arg10[%c6_150, %c0_151] : memref<9x256xf32, #tpu.memory_space<vmem>>, vector<1x256xf32>
    %227 = vector.broadcast %226 : vector<1x256xf32> to vector<32x256xf32>
    %228 = arith.mulf %225, %227 : vector<32x256xf32>
    %229 = arith.truncf %228 : vector<32x256xf32> to vector<32x256xbf16>
    %c192_152 = arith.constant 192 : index
    %c0_153 = arith.constant 0 : index
    %230 = vector.load %arg15[%c192_152, %c0_153] : memref<288x256xbf16, #tpu.memory_space<vmem>>, vector<32x256xbf16>
    tpu.vector_store %arg15[%c192_152, %c0_153], %229 {strides = array<i32>} : memref<288x256xbf16, #tpu.memory_space<vmem>>, vector<32x256xbf16>,
    %c240_i32_154 = arith.constant 240 : i32
    %231 = tpu.dynamic_rotate %190 by %c240_i32_154 dim 1 : vector<32x256xf32>, i32 -> vector<32x256xf32>
    %c7_155 = arith.constant 7 : index
    %c0_156 = arith.constant 0 : index
    %232 = vector.load %arg10[%c7_155, %c0_156] : memref<9x256xf32, #tpu.memory_space<vmem>>, vector<1x256xf32>
    %233 = vector.broadcast %232 : vector<1x256xf32> to vector<32x256xf32>
    %234 = arith.mulf %231, %233 : vector<32x256xf32>
    %235 = arith.truncf %234 : vector<32x256xf32> to vector<32x256xbf16>
    %c224_157 = arith.constant 224 : index
    %c0_158 = arith.constant 0 : index
    %236 = vector.load %arg15[%c224_157, %c0_158] : memref<288x256xbf16, #tpu.memory_space<vmem>>, vector<32x256xbf16>
    tpu.vector_store %arg15[%c224_157, %c0_158], %235 {strides = array<i32>} : memref<288x256xbf16, #tpu.memory_space<vmem>>, vector<32x256xbf16>,
    %c239_i32_159 = arith.constant 239 : i32
    %237 = tpu.dynamic_rotate %190 by %c239_i32_159 dim 1 : vector<32x256xf32>, i32 -> vector<32x256xf32>
    %c8_160 = arith.constant 8 : index
    %c0_161 = arith.constant 0 : index
    %238 = vector.load %arg10[%c8_160, %c0_161] : memref<9x256xf32, #tpu.memory_space<vmem>>, vector<1x256xf32>
    %239 = vector.broadcast %238 : vector<1x256xf32> to vector<32x256xf32>
    %240 = arith.mulf %237, %239 : vector<32x256xf32>
    %241 = arith.truncf %240 : vector<32x256xf32> to vector<32x256xbf16>
    %c256_162 = arith.constant 256 : index
    %c0_163 = arith.constant 0 : index
    %242 = vector.load %arg15[%c256_162, %c0_163] : memref<288x256xbf16, #tpu.memory_space<vmem>>, vector<32x256xbf16>
    tpu.vector_store %arg15[%c256_162, %c0_163], %241 {strides = array<i32>} : memref<288x256xbf16, #tpu.memory_space<vmem>>, vector<32x256xbf16>,
    %c0_164 = arith.constant 0 : index
    %c0_165 = arith.constant 0 : index
    %243 = vector.load %arg15[%c0_164, %c0_165] : memref<288x256xbf16, #tpu.memory_space<vmem>>, vector<288x256xbf16>
    %cst_166 = arith.constant dense<0.000000e+00> : vector<32x256xf32>
    %244 = tpu.matmul %191, %243, %cst_166 {dimension_numbers = #tpu.dot_dimension_numbers<[1], [0], [0], [1], [0, 0, 1, 1], [], []>} : vector<32x288xbf16>, vector<288x256xbf16>, vector<32x256xf32> -> vector<32x256xf32>
    %245 = vector.broadcast %192 : vector<32x1xf32> to vector<32x256xf32>
    %246 = arith.addf %244, %245 : vector<32x256xf32>
    %247 = arith.addf %246, %58 : vector<32x256xf32>
    %c0_167 = arith.constant 0 : index
    %c7_168 = arith.constant 7 : index
    %248 = vector.load %arg8[%c0_167, %c7_168] : memref<32x16xf32, #tpu.memory_space<vmem>>, vector<32x1xf32>
    %c0_169 = arith.constant 0 : index
    %c8_170 = arith.constant 8 : index
    %249 = vector.load %arg8[%c0_169, %c8_170] : memref<32x16xf32, #tpu.memory_space<vmem>>, vector<32x1xf32>
    %cst_171 = arith.constant dense<0.000000e+00> : vector<32x8xf32>
    %250 = tpu.matmul %247, %0, %cst_171 {dimension_numbers = #tpu.dot_dimension_numbers<[1], [0], [0], [1], [0, 0, 1, 1], [], []>} : vector<32x256xf32>, vector<256x8xf32>, vector<32x8xf32> -> vector<32x8xf32>
    %c0_172 = arith.constant 0 : index
    %c0_173 = arith.constant 0 : index
    %251 = vector.load %arg12[%c0_172, %c0_173] : memref<8x32xf32, #tpu.memory_space<vmem>>, vector<8x32xf32>
    %cst_174 = arith.constant dense<0.000000e+00> : vector<8x8xf32>
    %252 = tpu.matmul %251, %250, %cst_174 {dimension_numbers = #tpu.dot_dimension_numbers<[1], [0], [0], [1], [0, 0, 1, 1], [], []>} : vector<8x32xf32>, vector<32x8xf32>, vector<8x8xf32> -> vector<8x8xf32>
    %cst_175 = arith.constant 1.024000e+03 : f32
    %253 = vector.broadcast %cst_175 : f32 to vector<8x8xf32>
    %254 = arith.divf %252, %253 : vector<8x8xf32>
    %c0_176 = arith.constant 0 : index
    %c0_177 = arith.constant 0 : index
    %255 = vector.load %arg11[%c0_176, %c0_177] : memref<32x8xf32, #tpu.memory_space<vmem>>, vector<32x8xf32>
    %cst_178 = arith.constant dense<0.000000e+00> : vector<32x8xf32>
    %256 = tpu.matmul %255, %254, %cst_178 {dimension_numbers = #tpu.dot_dimension_numbers<[1], [0], [0], [1], [0, 0, 1, 1], [], []>} : vector<32x8xf32>, vector<8x8xf32>, vector<32x8xf32> -> vector<32x8xf32>
    %257 = vector.extract_strided_slice %256 {offsets = [0, 0], sizes = [32, 1], strides = [1, 1]} : vector<32x8xf32> to vector<32x1xf32>
    %258 = vector.broadcast %257 : vector<32x1xf32> to vector<32x256xf32>
    %259 = arith.subf %247, %258 : vector<32x256xf32>
    %260 = arith.mulf %259, %259 : vector<32x256xf32>
    %cst_179 = arith.constant dense<0.000000e+00> : vector<32x8xf32>
    %261 = tpu.matmul %260, %0, %cst_179 {dimension_numbers = #tpu.dot_dimension_numbers<[1], [0], [0], [1], [0, 0, 1, 1], [], []>} : vector<32x256xf32>, vector<256x8xf32>, vector<32x8xf32> -> vector<32x8xf32>
    %c0_180 = arith.constant 0 : index
    %c0_181 = arith.constant 0 : index
    %262 = vector.load %arg12[%c0_180, %c0_181] : memref<8x32xf32, #tpu.memory_space<vmem>>, vector<8x32xf32>
    %cst_182 = arith.constant dense<0.000000e+00> : vector<8x8xf32>
    %263 = tpu.matmul %262, %261, %cst_182 {dimension_numbers = #tpu.dot_dimension_numbers<[1], [0], [0], [1], [0, 0, 1, 1], [], []>} : vector<8x32xf32>, vector<32x8xf32>, vector<8x8xf32> -> vector<8x8xf32>
    %cst_183 = arith.constant 1.024000e+03 : f32
    %264 = vector.broadcast %cst_183 : f32 to vector<8x8xf32>
    %265 = arith.divf %263, %264 : vector<8x8xf32>
    %c0_184 = arith.constant 0 : index
    %c0_185 = arith.constant 0 : index
    %266 = vector.load %arg11[%c0_184, %c0_185] : memref<32x8xf32, #tpu.memory_space<vmem>>, vector<32x8xf32>
    %cst_186 = arith.constant 9.99999974E-6 : f32
    %267 = vector.broadcast %cst_186 : f32 to vector<8x8xf32>
    %268 = arith.addf %265, %267 : vector<8x8xf32>
    %269 = math.rsqrt %268 : vector<8x8xf32>
    %cst_187 = arith.constant dense<0.000000e+00> : vector<32x8xf32>
    %270 = tpu.matmul %266, %269, %cst_187 {dimension_numbers = #tpu.dot_dimension_numbers<[1], [0], [0], [1], [0, 0, 1, 1], [], []>} : vector<32x8xf32>, vector<8x8xf32>, vector<32x8xf32> -> vector<32x8xf32>
    %271 = vector.extract_strided_slice %270 {offsets = [0, 0], sizes = [32, 1], strides = [1, 1]} : vector<32x8xf32> to vector<32x1xf32>
    %272 = vector.broadcast %271 : vector<32x1xf32> to vector<32x256xf32>
    %273 = arith.mulf %259, %272 : vector<32x256xf32>
    %274 = vector.broadcast %248 : vector<32x1xf32> to vector<32x256xf32>
    %275 = arith.mulf %273, %274 : vector<32x256xf32>
    %276 = vector.broadcast %249 : vector<32x1xf32> to vector<32x256xf32>
    %277 = arith.addf %275, %276 : vector<32x256xf32>
    %c0_188 = arith.constant 0 : index
    %c0_189 = arith.constant 0 : index
    %278 = vector.load %arg7[%c0_188, %c0_189] : memref<128x32xbf16, #tpu.memory_space<vmem>>, vector<32x32xbf16>
    %279 = arith.truncf %277 : vector<32x256xf32> to vector<32x256xbf16>
    %cst_190 = arith.constant dense<0.000000e+00> : vector<32x256xf32>
    %280 = tpu.matmul %278, %279, %cst_190 {dimension_numbers = #tpu.dot_dimension_numbers<[1], [0], [0], [1], [0, 0, 1, 1], [], []>} : vector<32x32xbf16>, vector<32x256xbf16>, vector<32x256xf32> -> vector<32x256xf32>
    %c0_191 = arith.constant 0 : index
    %c9 = arith.constant 9 : index
    %281 = vector.load %arg8[%c0_191, %c9] : memref<32x16xf32, #tpu.memory_space<vmem>>, vector<32x1xf32>
    %282 = vector.broadcast %281 : vector<32x1xf32> to vector<32x256xf32>
    %283 = arith.addf %280, %282 : vector<32x256xf32>
    %c0_192 = arith.constant 0 : index
    %c0_193 = arith.constant 0 : index
    %c0_194 = arith.constant 0 : index
    %284 = vector.load %arg3[%c0_192, %c0_193, %c0_194] : memref<1x8x32xf32, #tpu.memory_space<vmem>>, vector<1x8x32xf32>
    %285 = vector.shape_cast %284 : vector<1x8x32xf32> to vector<8x32xf32>
    %286 = arith.truncf %285 : vector<8x32xf32> to vector<8x32xbf16>
    %c0_195 = arith.constant 0 : index
    %c0_196 = arith.constant 0 : index
    %c0_197 = arith.constant 0 : index
    %287 = vector.load %arg4[%c0_195, %c0_196, %c0_197] : memref<1x32x8xf32, #tpu.memory_space<vmem>>, vector<1x32x8xf32>
    %288 = vector.shape_cast %287 : vector<1x32x8xf32> to vector<32x8xf32>
    %289 = arith.truncf %288 : vector<32x8xf32> to vector<32x8xbf16>
    %c32_198 = arith.constant 32 : index
    %c0_199 = arith.constant 0 : index
    %290 = vector.load %arg7[%c32_198, %c0_199] : memref<128x32xbf16, #tpu.memory_space<vmem>>, vector<32x32xbf16>
    %cst_200 = arith.constant dense<0.000000e+00> : vector<8x32xf32>
    %291 = tpu.matmul %286, %290, %cst_200 {dimension_numbers = #tpu.dot_dimension_numbers<[1], [0], [0], [1], [0, 0, 1, 1], [], []>} : vector<8x32xbf16>, vector<32x32xbf16>, vector<8x32xf32> -> vector<8x32xf32>
    %c0_201 = arith.constant 0 : index
    %c0_202 = arith.constant 0 : index
    %292 = vector.load %arg9[%c0_201, %c0_202] : memref<1x32xf32, #tpu.memory_space<vmem>>, vector<1x32xf32>
    %293 = vector.broadcast %292 : vector<1x32xf32> to vector<8x32xf32>
    %294 = arith.addf %291, %293 : vector<8x32xf32>
    %c64_203 = arith.constant 64 : index
    %c0_204 = arith.constant 0 : index
    %295 = vector.load %arg7[%c64_203, %c0_204] : memref<128x32xbf16, #tpu.memory_space<vmem>>, vector<32x32xbf16>
    %cst_205 = arith.constant dense<0.000000e+00> : vector<32x8xf32>
    %296 = tpu.matmul %295, %289, %cst_205 {dimension_numbers = #tpu.dot_dimension_numbers<[1], [0], [0], [1], [0, 0, 1, 1], [], []>} : vector<32x32xbf16>, vector<32x8xbf16>, vector<32x8xf32> -> vector<32x8xf32>
    %c0_206 = arith.constant 0 : index
    %c14 = arith.constant 14 : index
    %297 = vector.load %arg8[%c0_206, %c14] : memref<32x16xf32, #tpu.memory_space<vmem>>, vector<32x1xf32>
    %298 = vector.broadcast %297 : vector<32x1xf32> to vector<32x8xf32>
    %299 = arith.addf %296, %298 : vector<32x8xf32>
    %300 = arith.truncf %294 : vector<8x32xf32> to vector<8x32xbf16>
    %301 = arith.truncf %283 : vector<32x256xf32> to vector<32x256xbf16>
    %cst_207 = arith.constant dense<0.000000e+00> : vector<8x256xf32>
    %302 = tpu.matmul %300, %301, %cst_207 {dimension_numbers = #tpu.dot_dimension_numbers<[1], [0], [0], [1], [0, 0, 1, 1], [], []>} : vector<8x32xbf16>, vector<32x256xbf16>, vector<8x256xf32> -> vector<8x256xf32>
    %cst_208 = arith.constant 0.176776692 : f32
    %303 = vector.broadcast %cst_208 : f32 to vector<8x256xf32>
    %304 = arith.mulf %302, %303 : vector<8x256xf32>
    %cst_209 = arith.constant dense<0xFF800000> : vector<256xf32>
    %305 = vector.multi_reduction <maximumf>, %304, %cst_209 [0] : vector<8x256xf32> to vector<256xf32>
    %306 = vector.shape_cast %305 : vector<256xf32> to vector<1x256xf32>
    %307 = vector.broadcast %306 : vector<1x256xf32> to vector<8x256xf32>
    %308 = arith.subf %304, %307 : vector<8x256xf32>
    %309 = math.exp %308 : vector<8x256xf32>
    %cst_210 = arith.constant dense<0.000000e+00> : vector<256xf32>
    %310 = vector.multi_reduction <add>, %309, %cst_210 [0] : vector<8x256xf32> to vector<256xf32>
    %311 = vector.shape_cast %310 : vector<256xf32> to vector<1x256xf32>
    %312 = tpu.reciprocal %311 {approx = true} : vector<1x256xf32> -> vector<1x256xf32>
    %313 = vector.broadcast %312 : vector<1x256xf32> to vector<8x256xf32>
    %314 = arith.mulf %309, %313 : vector<8x256xf32>
    %315 = arith.truncf %299 : vector<32x8xf32> to vector<32x8xbf16>
    %316 = arith.truncf %314 : vector<8x256xf32> to vector<8x256xbf16>
    %cst_211 = arith.constant dense<0.000000e+00> : vector<32x256xf32>
    %317 = tpu.matmul %315, %316, %cst_211 {dimension_numbers = #tpu.dot_dimension_numbers<[1], [0], [0], [1], [0, 0, 1, 1], [], []>} : vector<32x8xbf16>, vector<8x256xbf16>, vector<32x256xf32> -> vector<32x256xf32>
    %c96_212 = arith.constant 96 : index
    %c0_213 = arith.constant 0 : index
    %318 = vector.load %arg7[%c96_212, %c0_213] : memref<128x32xbf16, #tpu.memory_space<vmem>>, vector<32x32xbf16>
    %319 = arith.truncf %317 : vector<32x256xf32> to vector<32x256xbf16>
    %cst_214 = arith.constant dense<0.000000e+00> : vector<32x256xf32>
    %320 = tpu.matmul %318, %319, %cst_214 {dimension_numbers = #tpu.dot_dimension_numbers<[1], [0], [0], [1], [0, 0, 1, 1], [], []>} : vector<32x32xbf16>, vector<32x256xbf16>, vector<32x256xf32> -> vector<32x256xf32>
    %321 = arith.addf %247, %320 : vector<32x256xf32>
    %c0_215 = arith.constant 0 : index
    %c10 = arith.constant 10 : index
    %322 = vector.load %arg8[%c0_215, %c10] : memref<32x16xf32, #tpu.memory_space<vmem>>, vector<32x1xf32>
    %323 = vector.broadcast %322 : vector<32x1xf32> to vector<32x256xf32>
    %324 = arith.addf %321, %323 : vector<32x256xf32>
    %c0_216 = arith.constant 0 : index
    %c11 = arith.constant 11 : index
    %325 = vector.load %arg8[%c0_216, %c11] : memref<32x16xf32, #tpu.memory_space<vmem>>, vector<32x1xf32>
    %c0_217 = arith.constant 0 : index
    %c12_218 = arith.constant 12 : index
    %326 = vector.load %arg8[%c0_217, %c12_218] : memref<32x16xf32, #tpu.memory_space<vmem>>, vector<32x1xf32>
    %cst_219 = arith.constant dense<0.000000e+00> : vector<32x8xf32>
    %327 = tpu.matmul %324, %0, %cst_219 {dimension_numbers = #tpu.dot_dimension_numbers<[1], [0], [0], [1], [0, 0, 1, 1], [], []>} : vector<32x256xf32>, vector<256x8xf32>, vector<32x8xf32> -> vector<32x8xf32>
    %c0_220 = arith.constant 0 : index
    %c0_221 = arith.constant 0 : index
    %328 = vector.load %arg12[%c0_220, %c0_221] : memref<8x32xf32, #tpu.memory_space<vmem>>, vector<8x32xf32>
    %cst_222 = arith.constant dense<0.000000e+00> : vector<8x8xf32>
    %329 = tpu.matmul %328, %327, %cst_222 {dimension_numbers = #tpu.dot_dimension_numbers<[1], [0], [0], [1], [0, 0, 1, 1], [], []>} : vector<8x32xf32>, vector<32x8xf32>, vector<8x8xf32> -> vector<8x8xf32>
    %cst_223 = arith.constant 1.024000e+03 : f32
    %330 = vector.broadcast %cst_223 : f32 to vector<8x8xf32>
    %331 = arith.divf %329, %330 : vector<8x8xf32>
    %c0_224 = arith.constant 0 : index
    %c0_225 = arith.constant 0 : index
    %332 = vector.load %arg11[%c0_224, %c0_225] : memref<32x8xf32, #tpu.memory_space<vmem>>, vector<32x8xf32>
    %cst_226 = arith.constant dense<0.000000e+00> : vector<32x8xf32>
    %333 = tpu.matmul %332, %331, %cst_226 {dimension_numbers = #tpu.dot_dimension_numbers<[1], [0], [0], [1], [0, 0, 1, 1], [], []>} : vector<32x8xf32>, vector<8x8xf32>, vector<32x8xf32> -> vector<32x8xf32>
    %334 = vector.extract_strided_slice %333 {offsets = [0, 0], sizes = [32, 1], strides = [1, 1]} : vector<32x8xf32> to vector<32x1xf32>
    %335 = vector.broadcast %334 : vector<32x1xf32> to vector<32x256xf32>
    %336 = arith.subf %324, %335 : vector<32x256xf32>
    %337 = arith.mulf %336, %336 : vector<32x256xf32>
    %cst_227 = arith.constant dense<0.000000e+00> : vector<32x8xf32>
    %338 = tpu.matmul %337, %0, %cst_227 {dimension_numbers = #tpu.dot_dimension_numbers<[1], [0], [0], [1], [0, 0, 1, 1], [], []>} : vector<32x256xf32>, vector<256x8xf32>, vector<32x8xf32> -> vector<32x8xf32>
    %c0_228 = arith.constant 0 : index
    %c0_229 = arith.constant 0 : index
    %339 = vector.load %arg12[%c0_228, %c0_229] : memref<8x32xf32, #tpu.memory_space<vmem>>, vector<8x32xf32>
    %cst_230 = arith.constant dense<0.000000e+00> : vector<8x8xf32>
    %340 = tpu.matmul %339, %338, %cst_230 {dimension_numbers = #tpu.dot_dimension_numbers<[1], [0], [0], [1], [0, 0, 1, 1], [], []>} : vector<8x32xf32>, vector<32x8xf32>, vector<8x8xf32> -> vector<8x8xf32>
    %cst_231 = arith.constant 1.024000e+03 : f32
    %341 = vector.broadcast %cst_231 : f32 to vector<8x8xf32>
    %342 = arith.divf %340, %341 : vector<8x8xf32>
    %c0_232 = arith.constant 0 : index
    %c0_233 = arith.constant 0 : index
    %343 = vector.load %arg11[%c0_232, %c0_233] : memref<32x8xf32, #tpu.memory_space<vmem>>, vector<32x8xf32>
    %cst_234 = arith.constant 9.99999974E-6 : f32
    %344 = vector.broadcast %cst_234 : f32 to vector<8x8xf32>
    %345 = arith.addf %342, %344 : vector<8x8xf32>
    %346 = math.rsqrt %345 : vector<8x8xf32>
    %cst_235 = arith.constant dense<0.000000e+00> : vector<32x8xf32>
    %347 = tpu.matmul %343, %346, %cst_235 {dimension_numbers = #tpu.dot_dimension_numbers<[1], [0], [0], [1], [0, 0, 1, 1], [], []>} : vector<32x8xf32>, vector<8x8xf32>, vector<32x8xf32> -> vector<32x8xf32>
    %348 = vector.extract_strided_slice %347 {offsets = [0, 0], sizes = [32, 1], strides = [1, 1]} : vector<32x8xf32> to vector<32x1xf32>
    %349 = vector.broadcast %348 : vector<32x1xf32> to vector<32x256xf32>
    %350 = arith.mulf %336, %349 : vector<32x256xf32>
    %351 = vector.broadcast %325 : vector<32x1xf32> to vector<32x256xf32>
    %352 = arith.mulf %350, %351 : vector<32x256xf32>
    %353 = vector.broadcast %326 : vector<32x1xf32> to vector<32x256xf32>
    %354 = arith.addf %352, %353 : vector<32x256xf32>
    %355 = arith.negf %354 : vector<32x256xf32>
    %356 = math.exp %355 : vector<32x256xf32>
    %cst_236 = arith.constant 1.000000e+00 : f32
    %357 = vector.broadcast %cst_236 : f32 to vector<32x256xf32>
    %358 = arith.addf %357, %356 : vector<32x256xf32>
    %359 = arith.divf %357, %358 : vector<32x256xf32>
    %360 = arith.mulf %354, %359 : vector<32x256xf32>
    %c64_237 = arith.constant 64 : index
    %c0_238 = arith.constant 0 : index
    %361 = vector.load %arg6[%c64_237, %c0_238] : memref<72x288xbf16, #tpu.memory_space<vmem>>, vector<8x288xbf16>
    %c0_239 = arith.constant 0 : index
    %c13 = arith.constant 13 : index
    %362 = vector.load %arg8[%c0_239, %c13] : memref<32x16xf32, #tpu.memory_space<vmem>>, vector<8x1xf32>
    %c17_i32_240 = arith.constant 17 : i32
    %363 = tpu.dynamic_rotate %360 by %c17_i32_240 dim 1 : vector<32x256xf32>, i32 -> vector<32x256xf32>
    %c0_241 = arith.constant 0 : index
    %c0_242 = arith.constant 0 : index
    %364 = vector.load %arg10[%c0_241, %c0_242] : memref<9x256xf32, #tpu.memory_space<vmem>>, vector<1x256xf32>
    %365 = vector.broadcast %364 : vector<1x256xf32> to vector<32x256xf32>
    %366 = arith.mulf %363, %365 : vector<32x256xf32>
    %367 = arith.truncf %366 : vector<32x256xf32> to vector<32x256xbf16>
    %c0_243 = arith.constant 0 : index
    %c0_244 = arith.constant 0 : index
    %368 = vector.load %arg15[%c0_243, %c0_244] : memref<288x256xbf16, #tpu.memory_space<vmem>>, vector<32x256xbf16>
    tpu.vector_store %arg15[%c0_243, %c0_244], %367 {strides = array<i32>} : memref<288x256xbf16, #tpu.memory_space<vmem>>, vector<32x256xbf16>,
    %c16_i32_245 = arith.constant 16 : i32
    %369 = tpu.dynamic_rotate %360 by %c16_i32_245 dim 1 : vector<32x256xf32>, i32 -> vector<32x256xf32>
    %c1_246 = arith.constant 1 : index
    %c0_247 = arith.constant 0 : index
    %370 = vector.load %arg10[%c1_246, %c0_247] : memref<9x256xf32, #tpu.memory_space<vmem>>, vector<1x256xf32>
    %371 = vector.broadcast %370 : vector<1x256xf32> to vector<32x256xf32>
    %372 = arith.mulf %369, %371 : vector<32x256xf32>
    %373 = arith.truncf %372 : vector<32x256xf32> to vector<32x256xbf16>
    %c32_248 = arith.constant 32 : index
    %c0_249 = arith.constant 0 : index
    %374 = vector.load %arg15[%c32_248, %c0_249] : memref<288x256xbf16, #tpu.memory_space<vmem>>, vector<32x256xbf16>
    tpu.vector_store %arg15[%c32_248, %c0_249], %373 {strides = array<i32>} : memref<288x256xbf16, #tpu.memory_space<vmem>>, vector<32x256xbf16>,
    %c15_i32_250 = arith.constant 15 : i32
    %375 = tpu.dynamic_rotate %360 by %c15_i32_250 dim 1 : vector<32x256xf32>, i32 -> vector<32x256xf32>
    %c2_251 = arith.constant 2 : index
    %c0_252 = arith.constant 0 : index
    %376 = vector.load %arg10[%c2_251, %c0_252] : memref<9x256xf32, #tpu.memory_space<vmem>>, vector<1x256xf32>
    %377 = vector.broadcast %376 : vector<1x256xf32> to vector<32x256xf32>
    %378 = arith.mulf %375, %377 : vector<32x256xf32>
    %379 = arith.truncf %378 : vector<32x256xf32> to vector<32x256xbf16>
    %c64_253 = arith.constant 64 : index
    %c0_254 = arith.constant 0 : index
    %380 = vector.load %arg15[%c64_253, %c0_254] : memref<288x256xbf16, #tpu.memory_space<vmem>>, vector<32x256xbf16>
    tpu.vector_store %arg15[%c64_253, %c0_254], %379 {strides = array<i32>} : memref<288x256xbf16, #tpu.memory_space<vmem>>, vector<32x256xbf16>,
    %c1_i32_255 = arith.constant 1 : i32
    %381 = tpu.dynamic_rotate %360 by %c1_i32_255 dim 1 : vector<32x256xf32>, i32 -> vector<32x256xf32>
    %c3_256 = arith.constant 3 : index
    %c0_257 = arith.constant 0 : index
    %382 = vector.load %arg10[%c3_256, %c0_257] : memref<9x256xf32, #tpu.memory_space<vmem>>, vector<1x256xf32>
    %383 = vector.broadcast %382 : vector<1x256xf32> to vector<32x256xf32>
    %384 = arith.mulf %381, %383 : vector<32x256xf32>
    %385 = arith.truncf %384 : vector<32x256xf32> to vector<32x256xbf16>
    %c96_258 = arith.constant 96 : index
    %c0_259 = arith.constant 0 : index
    %386 = vector.load %arg15[%c96_258, %c0_259] : memref<288x256xbf16, #tpu.memory_space<vmem>>, vector<32x256xbf16>
    tpu.vector_store %arg15[%c96_258, %c0_259], %385 {strides = array<i32>} : memref<288x256xbf16, #tpu.memory_space<vmem>>, vector<32x256xbf16>,
    %387 = arith.truncf %360 : vector<32x256xf32> to vector<32x256xbf16>
    %c128_260 = arith.constant 128 : index
    %c0_261 = arith.constant 0 : index
    %388 = vector.load %arg15[%c128_260, %c0_261] : memref<288x256xbf16, #tpu.memory_space<vmem>>, vector<32x256xbf16>
    tpu.vector_store %arg15[%c128_260, %c0_261], %387 {strides = array<i32>} : memref<288x256xbf16, #tpu.memory_space<vmem>>, vector<32x256xbf16>,
    %c255_i32_262 = arith.constant 255 : i32
    %389 = tpu.dynamic_rotate %360 by %c255_i32_262 dim 1 : vector<32x256xf32>, i32 -> vector<32x256xf32>
    %c5_263 = arith.constant 5 : index
    %c0_264 = arith.constant 0 : index
    %390 = vector.load %arg10[%c5_263, %c0_264] : memref<9x256xf32, #tpu.memory_space<vmem>>, vector<1x256xf32>
    %391 = vector.broadcast %390 : vector<1x256xf32> to vector<32x256xf32>
    %392 = arith.mulf %389, %391 : vector<32x256xf32>
    %393 = arith.truncf %392 : vector<32x256xf32> to vector<32x256xbf16>
    %c160_265 = arith.constant 160 : index
    %c0_266 = arith.constant 0 : index
    %394 = vector.load %arg15[%c160_265, %c0_266] : memref<288x256xbf16, #tpu.memory_space<vmem>>, vector<32x256xbf16>
    tpu.vector_store %arg15[%c160_265, %c0_266], %393 {strides = array<i32>} : memref<288x256xbf16, #tpu.memory_space<vmem>>, vector<32x256xbf16>,
    %c241_i32_267 = arith.constant 241 : i32
    %395 = tpu.dynamic_rotate %360 by %c241_i32_267 dim 1 : vector<32x256xf32>, i32 -> vector<32x256xf32>
    %c6_268 = arith.constant 6 : index
    %c0_269 = arith.constant 0 : index
    %396 = vector.load %arg10[%c6_268, %c0_269] : memref<9x256xf32, #tpu.memory_space<vmem>>, vector<1x256xf32>
    %397 = vector.broadcast %396 : vector<1x256xf32> to vector<32x256xf32>
    %398 = arith.mulf %395, %397 : vector<32x256xf32>
    %399 = arith.truncf %398 : vector<32x256xf32> to vector<32x256xbf16>
    %c192_270 = arith.constant 192 : index
    %c0_271 = arith.constant 0 : index
    %400 = vector.load %arg15[%c192_270, %c0_271] : memref<288x256xbf16, #tpu.memory_space<vmem>>, vector<32x256xbf16>
    tpu.vector_store %arg15[%c192_270, %c0_271], %399 {strides = array<i32>} : memref<288x256xbf16, #tpu.memory_space<vmem>>, vector<32x256xbf16>,
    %c240_i32_272 = arith.constant 240 : i32
    %401 = tpu.dynamic_rotate %360 by %c240_i32_272 dim 1 : vector<32x256xf32>, i32 -> vector<32x256xf32>
    %c7_273 = arith.constant 7 : index
    %c0_274 = arith.constant 0 : index
    %402 = vector.load %arg10[%c7_273, %c0_274] : memref<9x256xf32, #tpu.memory_space<vmem>>, vector<1x256xf32>
    %403 = vector.broadcast %402 : vector<1x256xf32> to vector<32x256xf32>
    %404 = arith.mulf %401, %403 : vector<32x256xf32>
    %405 = arith.truncf %404 : vector<32x256xf32> to vector<32x256xbf16>
    %c224_275 = arith.constant 224 : index
    %c0_276 = arith.constant 0 : index
    %406 = vector.load %arg15[%c224_275, %c0_276] : memref<288x256xbf16, #tpu.memory_space<vmem>>, vector<32x256xbf16>
    tpu.vector_store %arg15[%c224_275, %c0_276], %405 {strides = array<i32>} : memref<288x256xbf16, #tpu.memory_space<vmem>>, vector<32x256xbf16>,
    %c239_i32_277 = arith.constant 239 : i32
    %407 = tpu.dynamic_rotate %360 by %c239_i32_277 dim 1 : vector<32x256xf32>, i32 -> vector<32x256xf32>
    %c8_278 = arith.constant 8 : index
    %c0_279 = arith.constant 0 : index
    %408 = vector.load %arg10[%c8_278, %c0_279] : memref<9x256xf32, #tpu.memory_space<vmem>>, vector<1x256xf32>
    %409 = vector.broadcast %408 : vector<1x256xf32> to vector<32x256xf32>
    %410 = arith.mulf %407, %409 : vector<32x256xf32>
    %411 = arith.truncf %410 : vector<32x256xf32> to vector<32x256xbf16>
    %c256_280 = arith.constant 256 : index
    %c0_281 = arith.constant 0 : index
    %412 = vector.load %arg15[%c256_280, %c0_281] : memref<288x256xbf16, #tpu.memory_space<vmem>>, vector<32x256xbf16>
    tpu.vector_store %arg15[%c256_280, %c0_281], %411 {strides = array<i32>} : memref<288x256xbf16, #tpu.memory_space<vmem>>, vector<32x256xbf16>,
    %c0_282 = arith.constant 0 : index
    %c0_283 = arith.constant 0 : index
    %413 = vector.load %arg15[%c0_282, %c0_283] : memref<288x256xbf16, #tpu.memory_space<vmem>>, vector<288x256xbf16>
    %cst_284 = arith.constant dense<0.000000e+00> : vector<8x256xf32>
    %414 = tpu.matmul %361, %413, %cst_284 {dimension_numbers = #tpu.dot_dimension_numbers<[1], [0], [0], [1], [0, 0, 1, 1], [], []>} : vector<8x288xbf16>, vector<288x256xbf16>, vector<8x256xf32> -> vector<8x256xf32>
    %415 = vector.broadcast %362 : vector<8x1xf32> to vector<8x256xf32>
    %416 = arith.addf %414, %415 : vector<8x256xf32>
    %417 = vector.extract_strided_slice %416 {offsets = [0, 0], sizes = [4, 256], strides = [1, 1]} : vector<8x256xf32> to vector<4x256xf32>
    %c0_285 = arith.constant 0 : index
    %c0_286 = arith.constant 0 : index
    %c0_287 = arith.constant 0 : index
    %418 = vector.load %arg13[%c0_285, %c0_286, %c0_287] : memref<1x4x256xf32, #tpu.memory_space<vmem>>, vector<1x4x256xf32>
    %419 = vector.shape_cast %418 : vector<1x4x256xf32> to vector<4x256xf32>
    %420 = vector.shape_cast %417 : vector<4x256xf32> to vector<1x4x256xf32>
    tpu.vector_store %arg13[%c0_285, %c0_286, %c0_287], %420 {strides = array<i32>} : memref<1x4x256xf32, #tpu.memory_space<vmem>>, vector<1x4x256xf32>,
    return
  }
  func.func @transform_0(%arg0: i32) -> (i32, i32, i32) {
    %c0_i32 = arith.constant 0 : i32
    %c0_i32_0 = arith.constant 0 : i32
    %c0_i32_1 = arith.constant 0 : i32
    return %arg0, %c0_i32, %c0_i32_0 : i32, i32, i32
  }
  func.func @transform_1(%arg0: i32) -> (i32, i32, i32) {
    %c0_i32 = arith.constant 0 : i32
    %c0_i32_0 = arith.constant 0 : i32
    %c0_i32_1 = arith.constant 0 : i32
    return %arg0, %c0_i32, %c0_i32_0 : i32, i32, i32
  }
  func.func @transform_2(%arg0: i32) -> (i32, i32, i32) {
    %c0_i32 = arith.constant 0 : i32
    %c0_i32_0 = arith.constant 0 : i32
    %c0_i32_1 = arith.constant 0 : i32
    return %arg0, %c0_i32, %c0_i32_0 : i32, i32, i32
  }
  func.func @transform_3(%arg0: i32) -> (i32, i32, i32) {
    %c0_i32 = arith.constant 0 : i32
    %c0_i32_0 = arith.constant 0 : i32
    %c0_i32_1 = arith.constant 0 : i32
    return %arg0, %c0_i32, %c0_i32_0 : i32, i32, i32
  }
  func.func @transform_4(%arg0: i32) -> (i32, i32) {
    %c0_i32 = arith.constant 0 : i32
    %c0_i32_0 = arith.constant 0 : i32
    %c0_i32_1 = arith.constant 0 : i32
    return %c0_i32, %c0_i32_0 : i32, i32
  }
  func.func @transform_5(%arg0: i32) -> (i32, i32) {
    %c0_i32 = arith.constant 0 : i32
    %c0_i32_0 = arith.constant 0 : i32
    %c0_i32_1 = arith.constant 0 : i32
    return %c0_i32, %c0_i32_0 : i32, i32
  }
  func.func @transform_6(%arg0: i32) -> (i32, i32) {
    %c0_i32 = arith.constant 0 : i32
    %c0_i32_0 = arith.constant 0 : i32
    %c0_i32_1 = arith.constant 0 : i32
    return %c0_i32, %c0_i32_0 : i32, i32
  }
  func.func @transform_7(%arg0: i32) -> (i32, i32) {
    %c0_i32 = arith.constant 0 : i32
    %c0_i32_0 = arith.constant 0 : i32
    %c0_i32_1 = arith.constant 0 : i32
    return %c0_i32, %c0_i32_0 : i32, i32
  }
  func.func @transform_8(%arg0: i32) -> (i32, i32) {
    %c0_i32 = arith.constant 0 : i32
    %c0_i32_0 = arith.constant 0 : i32
    %c0_i32_1 = arith.constant 0 : i32
    return %c0_i32, %c0_i32_0 : i32, i32
  }
  func.func @transform_9(%arg0: i32) -> (i32, i32) {
    %c0_i32 = arith.constant 0 : i32
    %c0_i32_0 = arith.constant 0 : i32
    %c0_i32_1 = arith.constant 0 : i32
    return %c0_i32, %c0_i32_0 : i32, i32
  }
  func.func @transform_10(%arg0: i32) -> (i32, i32) {
    %c0_i32 = arith.constant 0 : i32
    %c0_i32_0 = arith.constant 0 : i32
    %c0_i32_1 = arith.constant 0 : i32
    return %c0_i32, %c0_i32_0 : i32, i32
  }
  func.func @transform_11(%arg0: i32) -> (i32, i32) {
    %c0_i32 = arith.constant 0 : i32
    %c0_i32_0 = arith.constant 0 : i32
    %c0_i32_1 = arith.constant 0 : i32
    return %c0_i32, %c0_i32_0 : i32, i32
  }
  func.func @transform_12(%arg0: i32) -> (i32, i32, i32) {
    %c0_i32 = arith.constant 0 : i32
    %c0_i32_0 = arith.constant 0 : i32
    %c0_i32_1 = arith.constant 0 : i32
    return %arg0, %c0_i32, %c0_i32_0 : i32, i32, i32
  }
}

</mosaic_0001>

<llo_original>
// kernel: _neuron_unet_forward_jit.1
$region0: #{_neuron_unet_forward_jit.1}
  #allocation0 [shape = 'u32[]', space=smem, size = 0x4, offset = 0x4, fixed_abs, tag = 'smem constant byte address 0x4 - core index']
  #allocation1 [shape = 'u32[144,128]{1,0:T(1,128)}', space=vmem, size = 0x12000, scoped, tag = 'internal scratch']
  #allocation2 [shape = 'bf16[36,256]{1,0:T(8,128)(2,1)}', space=vmem, size = 0x5000, scoped, tag = 'scratch operand']
  #allocation3 [shape = 'bf16[288,256]{1,0:T(16,128)(2,1)}', space=vmem, size = 0x24000, scoped, tag = 'scratch operand']
  %s0 = inlined_call_operand.vmem [shape: f32[2,4,256], index: 0, kind: input, shape index: {}]
  %s1 = inlined_call_operand.vmem [shape: f32[2,32,1], index: 1, kind: input, shape index: {}]
  %s2 = inlined_call_operand.vmem [shape: f32[2,8,32], index: 2, kind: input, shape index: {}]
  %s3 = inlined_call_operand.vmem [shape: f32[2,32,8], index: 3, kind: input, shape index: {}]
  %s4 = inlined_call_operand.vmem [shape: bf16[32,36], index: 4, kind: input, shape index: {}]
  %s5 = inlined_call_operand.vmem [shape: bf16[72,288], index: 5, kind: input, shape index: {}]
  %s6 = inlined_call_operand.vmem [shape: bf16[128,32], index: 6, kind: input, shape index: {}]
  %s7 = inlined_call_operand.vmem [shape: f32[32,16], index: 7, kind: input, shape index: {}]
  %s8 = inlined_call_operand.vmem [shape: f32[1,32], index: 8, kind: input, shape index: {}]
  %s9 = inlined_call_operand.vmem [shape: f32[9,256], index: 9, kind: input, shape index: {}]
  %s10 = inlined_call_operand.vmem [shape: f32[32,8], index: 10, kind: input, shape index: {}]
  %s11 = inlined_call_operand.vmem [shape: f32[8,32], index: 11, kind: input, shape index: {}]
  %s12 = inlined_call_operand.vmem [shape: f32[2,4,256], index: 12, kind: output, shape index: {}]
  %s13 = sld [smem:[#allocation0]]
  $region81: #{_neuron_unet_forward_jit.1} parent=0
    _
  %s15 = ssub.s32 1, %s13
  %s16 = scalar_select 0, %s15, %s13
  loop: start=0, step=1, limit=4
  $region2: #{_neuron_unet_forward_jit.1} parent=0 // loop_pre_header
    _
  $region3: #{_neuron_unet_forward_jit.1} parent=0 // loop_header
    %s18 = sphi 0, %s22
    %p19 = scmp.ge.s32.totalorder %s18, 4
    %s28 = sphi 0, %s30
    %s31 = sphi 0, %s28
    %s32 = sphi 0, %s31
    %s48 = sphi 0, %s32
    %s54 = sphi 0, %s56
    %s57 = sphi 0, %s54
    %s58 = sphi 0, %s57
    %s74 = sphi 0, %s58
    %s80 = sphi 0, %s82
    %s83 = sphi 0, %s80
    %s84 = sphi 0, %s83
    %s100 = sphi 0, %s84
    %s106 = sphi 0, %s108
    %s109 = sphi 0, %s106
    %s110 = sphi 0, %s109
    %s126 = sphi 0, %s110
    %s130 = sphi 0, %s130
    %s132 = sphi 0, %s130
    %s133 = sphi 0, %s132
    %s147 = sphi 0, %s133
    %s151 = sphi 0, %s151
    %s153 = sphi 0, %s151
    %s154 = sphi 0, %s153
    %s168 = sphi 0, %s154
    %s172 = sphi 0, %s172
    %s174 = sphi 0, %s172
    %s175 = sphi 0, %s174
    %s189 = sphi 0, %s175
    %s193 = sphi 0, %s193
    %s195 = sphi 0, %s193
    %s196 = sphi 0, %s195
    %s210 = sphi 0, %s196
    %s214 = sphi 0, %s214
    %s216 = sphi 0, %s214
    %s217 = sphi 0, %s216
    %s231 = sphi 0, %s217
    %s235 = sphi 0, %s235
    %s237 = sphi 0, %s235
    %s238 = sphi 0, %s237
    %s252 = sphi 0, %s238
    %s256 = sphi 0, %s256
    %s258 = sphi 0, %s256
    %s259 = sphi 0, %s258
    %s273 = sphi 0, %s259
    %s277 = sphi 0, %s277
    %s279 = sphi 0, %s277
    %s280 = sphi 0, %s279
    %s294 = sphi 0, %s280
    %s300 = sphi 0, %s302
    %s303 = sphi 0, %s300
    %s304 = sphi 0, %s303
    %s320 = sphi 0, %s304
  $region4: #{_neuron_unet_forward_jit.1} parent=0 // loop_header_branch
    %21 = sbr.rel (%p19) target = $region8
  $region5: #{_neuron_unet_forward_jit.1} parent=0 // loop_body
    %s23 = ssub.s32 %s18, 1
    %s24 = ssub.s32 %s18, 2
    %s25 = sadd.s32 %s18, 1
    %s26 = ssub.s32 %s18, %s25
    %p27 = scmp.eq.s32.totalorder %s26, 0
    %s29 = sadd.s32 %s28, 1
    %s30 = scalar_select %p27, %s28, %s29
    %p33 = pneg %p27
    %p34 = scmp.eq.s32.totalorder %s18, 1
    %p35 = por %p33, %p34
    %p36 = scmp.ne.s32.totalorder %s28, %s31
    %p37 = scmp.eq.s32.totalorder %s18, 0
    %p38 = por %p36, %p37
    %p39 = scmp.ne.s32.totalorder %s28, %s31
    %p40 = scmp.eq.s32.totalorder %s23, 1
    %p41 = por %p39, %p40
    %p42 = scmp.ne.s32.totalorder %s31, %s32
    %p43 = scmp.eq.s32.totalorder %s23, 0
    %p44 = por %p42, %p43
    %p45 = scmp.ne.s32.totalorder %s31, %s32
    %p46 = scmp.eq.s32.totalorder %s24, 1
    %p47 = por %p45, %p46
    %p49 = scmp.ne.s32.totalorder %s32, %s48
    %p50 = scmp.eq.s32.totalorder %s24, 0
    %p51 = por %p49, %p50
    %s52 = ssub.s32 %s18, %s25
    %p53 = scmp.eq.s32.totalorder %s52, 0
    %s55 = sadd.s32 %s54, 1
    %s56 = scalar_select %p53, %s54, %s55
    %p59 = pneg %p53
    %p60 = scmp.eq.s32.totalorder %s18, 1
    %p61 = por %p59, %p60
    %p62 = scmp.ne.s32.totalorder %s54, %s57
    %p63 = scmp.eq.s32.totalorder %s18, 0
    %p64 = por %p62, %p63
    %p65 = scmp.ne.s32.totalorder %s54, %s57
    %p66 = scmp.eq.s32.totalorder %s23, 1
    %p67 = por %p65, %p66
    %p68 = scmp.ne.s32.totalorder %s57, %s58
    %p69 = scmp.eq.s32.totalorder %s23, 0
    %p70 = por %p68, %p69
    %p71 = scmp.ne.s32.totalorder %s57, %s58
    %p72 = scmp.eq.s32.totalorder %s24, 1
    %p73 = por %p71, %p72
    %p75 = scmp.ne.s32.totalorder %s58, %s74
    %p76 = scmp.eq.s32.totalorder %s24, 0
    %p77 = por %p75, %p76
    %s78 = ssub.s32 %s18, %s25
    %p79 = scmp.eq.s32.totalorder %s78, 0
    %s81 = sadd.s32 %s80, 1
    %s82 = scalar_select %p79, %s80, %s81
    %p85 = pneg %p79
    %p86 = scmp.eq.s32.totalorder %s18, 1
    %p87 = por %p85, %p86
    %p88 = scmp.ne.s32.totalorder %s80, %s83
    %p89 = scmp.eq.s32.totalorder %s18, 0
    %p90 = por %p88, %p89
    %p91 = scmp.ne.s32.totalorder %s80, %s83
    %p92 = scmp.eq.s32.totalorder %s23, 1
    %p93 = por %p91, %p92
    %p94 = scmp.ne.s32.totalorder %s83, %s84
    %p95 = scmp.eq.s32.totalorder %s23, 0
    %p96 = por %p94, %p95
    %p97 = scmp.ne.s32.totalorder %s83, %s84
    %p98 = scmp.eq.s32.totalorder %s24, 1
    %p99 = por %p97, %p98
    %p101 = scmp.ne.s32.totalorder %s84, %s100
    %p102 = scmp.eq.s32.totalorder %s24, 0
    %p103 = por %p101, %p102
    %s104 = ssub.s32 %s18, %s25
    %p105 = scmp.eq.s32.totalorder %s104, 0
    %s107 = sadd.s32 %s106, 1
    %s108 = scalar_select %p105, %s106, %s107
    %p111 = pneg %p105
    %p112 = scmp.eq.s32.totalorder %s18, 1
    %p113 = por %p111, %p112
    %p114 = scmp.ne.s32.totalorder %s106, %s109
    %p115 = scmp.eq.s32.totalorder %s18, 0
    %p116 = por %p114, %p115
    %p117 = scmp.ne.s32.totalorder %s106, %s109
    %p118 = scmp.eq.s32.totalorder %s23, 1
    %p119 = por %p117, %p118
    %p120 = scmp.ne.s32.totalorder %s109, %s110
    %p121 = scmp.eq.s32.totalorder %s23, 0
    %p122 = por %p120, %p121
    %p123 = scmp.ne.s32.totalorder %s109, %s110
    %p124 = scmp.eq.s32.totalorder %s24, 1
    %p125 = por %p123, %p124
    %p127 = scmp.ne.s32.totalorder %s110, %s126
    %p128 = scmp.eq.s32.totalorder %s24, 0
    %p129 = por %p127, %p128
    %s131 = sadd.s32 %s130, 1
    %p134 = scmp.eq.s32.totalorder %s18, 1
    %p135 = scmp.ne.s32.totalorder %s130, %s132
    %p136 = scmp.eq.s32.totalorder %s18, 0
    %p137 = por %p135, %p136
    %p138 = scmp.ne.s32.totalorder %s130, %s132
    %p139 = scmp.eq.s32.totalorder %s23, 1
    %p140 = por %p138, %p139
    %p141 = scmp.ne.s32.totalorder %s132, %s133
    %p142 = scmp.eq.s32.totalorder %s23, 0
    %p143 = por %p141, %p142
    %p144 = scmp.ne.s32.totalorder %s132, %s133
    %p145 = scmp.eq.s32.totalorder %s24, 1
    %p146 = por %p144, %p145
    %p148 = scmp.ne.s32.totalorder %s133, %s147
    %p149 = scmp.eq.s32.totalorder %s24, 0
    %p150 = por %p148, %p149
    %s152 = sadd.s32 %s151, 1
    %p155 = scmp.eq.s32.totalorder %s18, 1
    %p156 = scmp.ne.s32.totalorder %s151, %s153
    %p157 = scmp.eq.s32.totalorder %s18, 0
    %p158 = por %p156, %p157
    %p159 = scmp.ne.s32.totalorder %s151, %s153
    %p160 = scmp.eq.s32.totalorder %s23, 1
    %p161 = por %p159, %p160
    %p162 = scmp.ne.s32.totalorder %s153, %s154
    %p163 = scmp.eq.s32.totalorder %s23, 0
    %p164 = por %p162, %p163
    %p165 = scmp.ne.s32.totalorder %s153, %s154
    %p166 = scmp.eq.s32.totalorder %s24, 1
    %p167 = por %p165, %p166
    %p169 = scmp.ne.s32.totalorder %s154, %s168
    %p170 = scmp.eq.s32.totalorder %s24, 0
    %p171 = por %p169, %p170
    %s173 = sadd.s32 %s172, 1
    %p176 = scmp.eq.s32.totalorder %s18, 1
    %p177 = scmp.ne.s32.totalorder %s172, %s174
    %p178 = scmp.eq.s32.totalorder %s18, 0
    %p179 = por %p177, %p178
    %p180 = scmp.ne.s32.totalorder %s172, %s174
    %p181 = scmp.eq.s32.totalorder %s23, 1
    %p182 = por %p180, %p181
    %p183 = scmp.ne.s32.totalorder %s174, %s175
    %p184 = scmp.eq.s32.totalorder %s23, 0
    %p185 = por %p183, %p184
    %p186 = scmp.ne.s32.totalorder %s174, %s175
    %p187 = scmp.eq.s32.totalorder %s24, 1
    %p188 = por %p186, %p187
    %p190 = scmp.ne.s32.totalorder %s175, %s189
    %p191 = scmp.eq.s32.totalorder %s24, 0
    %p192 = por %p190, %p191
    %s194 = sadd.s32 %s193, 1
    %p197 = scmp.eq.s32.totalorder %s18, 1
    %p198 = scmp.ne.s32.totalorder %s193, %s195
    %p199 = scmp.eq.s32.totalorder %s18, 0
    %p200 = por %p198, %p199
    %p201 = scmp.ne.s32.totalorder %s193, %s195
    %p202 = scmp.eq.s32.totalorder %s23, 1
    %p203 = por %p201, %p202
    %p204 = scmp.ne.s32.totalorder %s195, %s196
    %p205 = scmp.eq.s32.totalorder %s23, 0
    %p206 = por %p204, %p205
    %p207 = scmp.ne.s32.totalorder %s195, %s196
    %p208 = scmp.eq.s32.totalorder %s24, 1
    %p209 = por %p207, %p208
    %p211 = scmp.ne.s32.totalorder %s196, %s210
    %p212 = scmp.eq.s32.totalorder %s24, 0
    %p213 = por %p211, %p212
    %s215 = sadd.s32 %s214, 1
    %p218 = scmp.eq.s32.totalorder %s18, 1
    %p219 = scmp.ne.s32.totalorder %s214, %s216
    %p220 = scmp.eq.s32.totalorder %s18, 0
    %p221 = por %p219, %p220
    %p222 = scmp.ne.s32.totalorder %s214, %s216
    %p223 = scmp.eq.s32.totalorder %s23, 1
    %p224 = por %p222, %p223
    %p225 = scmp.ne.s32.totalorder %s216, %s217
    %p226 = scmp.eq.s32.totalorder %s23, 0
    %p227 = por %p225, %p226
    %p228 = scmp.ne.s32.totalorder %s216, %s217
    %p229 = scmp.eq.s32.totalorder %s24, 1
    %p230 = por %p228, %p229
    %p232 = scmp.ne.s32.totalorder %s217, %s231
    %p233 = scmp.eq.s32.totalorder %s24, 0
    %p234 = por %p232, %p233
    %s236 = sadd.s32 %s235, 1
    %p239 = scmp.eq.s32.totalorder %s18, 1
    %p240 = scmp.ne.s32.totalorder %s235, %s237
    %p241 = scmp.eq.s32.totalorder %s18, 0
    %p242 = por %p240, %p241
    %p243 = scmp.ne.s32.totalorder %s235, %s237
    %p244 = scmp.eq.s32.totalorder %s23, 1
    %p245 = por %p243, %p244
    %p246 = scmp.ne.s32.totalorder %s237, %s238
    %p247 = scmp.eq.s32.totalorder %s23, 0
    %p248 = por %p246, %p247
    %p249 = scmp.ne.s32.totalorder %s237, %s238
    %p250 = scmp.eq.s32.totalorder %s24, 1
    %p251 = por %p249, %p250
    %p253 = scmp.ne.s32.totalorder %s238, %s252
    %p254 = scmp.eq.s32.totalorder %s24, 0
    %p255 = por %p253, %p254
    %s257 = sadd.s32 %s256, 1
    %p260 = scmp.eq.s32.totalorder %s18, 1
    %p261 = scmp.ne.s32.totalorder %s256, %s258
    %p262 = scmp.eq.s32.totalorder %s18, 0
    %p263 = por %p261, %p262
    %p264 = scmp.ne.s32.totalorder %s256, %s258
    %p265 = scmp.eq.s32.totalorder %s23, 1
    %p266 = por %p264, %p265
    %p267 = scmp.ne.s32.totalorder %s258, %s259
    %p268 = scmp.eq.s32.totalorder %s23, 0
    %p269 = por %p267, %p268
    %p270 = scmp.ne.s32.totalorder %s258, %s259
    %p271 = scmp.eq.s32.totalorder %s24, 1
    %p272 = por %p270, %p271
    %p274 = scmp.ne.s32.totalorder %s259, %s273
    %p275 = scmp.eq.s32.totalorder %s24, 0
    %p276 = por %p274, %p275
    %s278 = sadd.s32 %s277, 1
    %p281 = scmp.eq.s32.totalorder %s18, 1
    %p282 = scmp.ne.s32.totalorder %s277, %s279
    %p283 = scmp.eq.s32.totalorder %s18, 0
    %p284 = por %p282, %p283
    %p285 = scmp.ne.s32.totalorder %s277, %s279
    %p286 = scmp.eq.s32.totalorder %s23, 1
    %p287 = por %p285, %p286
    %p288 = scmp.ne.s32.totalorder %s279, %s280
    %p289 = scmp.eq.s32.totalorder %s23, 0
    %p290 = por %p288, %p289
    %p291 = scmp.ne.s32.totalorder %s279, %s280
    %p292 = scmp.eq.s32.totalorder %s24, 1
    %p293 = por %p291, %p292
    %p295 = scmp.ne.s32.totalorder %s280, %s294
    %p296 = scmp.eq.s32.totalorder %s24, 0
    %p297 = por %p295, %p296
    %s298 = ssub.s32 %s18, %s25
    %p299 = scmp.eq.s32.totalorder %s298, 0
    %s301 = sadd.s32 %s300, 1
    %s302 = scalar_select %p299, %s300, %s301
    %p305 = pneg %p299
    %p306 = scmp.eq.s32.totalorder %s18, 1
    %p307 = por %p305, %p306
    %p308 = scmp.ne.s32.totalorder %s300, %s303
    %p309 = scmp.eq.s32.totalorder %s18, 0
    %p310 = por %p308, %p309
    %p311 = scmp.ne.s32.totalorder %s300, %s303
    %p312 = scmp.eq.s32.totalorder %s23, 1
    %p313 = por %p311, %p312
    %p314 = scmp.ne.s32.totalorder %s303, %s304
    %p315 = scmp.eq.s32.totalorder %s23, 0
    %p316 = por %p314, %p315
    %p317 = scmp.ne.s32.totalorder %s303, %s304
    %p318 = scmp.eq.s32.totalorder %s24, 1
    %p319 = por %p317, %p318
    %p321 = scmp.ne.s32.totalorder %s304, %s320
    %p322 = scmp.eq.s32.totalorder %s24, 0
    %p323 = por %p321, %p322
    %p324 = scmp.le.s32.totalorder 1, %s18
    %p325 = scmp.lt.s32.totalorder %s18, 3
    %p326 = pnand %p324, %p325
    %p327 = pneg %p326
    // Predicated region
    $region9: #{_neuron_unet_forward_jit.1} parent=5 // pred_check
      _
    $region10: #{_neuron_unet_forward_jit.1} parent=5 // pred_check_branch
      %329 = sbr.rel (%p326) target = $region12
    $region11: #{_neuron_unet_forward_jit.1} parent=5 // pred_region
      %s330 = ssub.s32 %s18, 1
      // Predicated region
      $region13: #{_neuron_unet_forward_jit.1} parent=11 // pred_check
        %p331 = pneg %p143
      $region14: #{_neuron_unet_forward_jit.1} parent=11 // pred_check_branch
        %333 = sbr.rel (%p331) target = $region16
      $region15: #{_neuron_unet_forward_jit.1} parent=11 // pred_region
        _
      $region16: #{_neuron_unet_forward_jit.1} parent=11 // pred_fallthru
        _
      // Predicated region
      $region17: #{_neuron_unet_forward_jit.1} parent=11 // pred_check
        %p334 = pneg %p164
      $region18: #{_neuron_unet_forward_jit.1} parent=11 // pred_check_branch
        %336 = sbr.rel (%p334) target = $region20
      $region19: #{_neuron_unet_forward_jit.1} parent=11 // pred_region
        _
      $region20: #{_neuron_unet_forward_jit.1} parent=11 // pred_fallthru
        _
      // Predicated region
      $region21: #{_neuron_unet_forward_jit.1} parent=11 // pred_check
        %p337 = pneg %p185
      $region22: #{_neuron_unet_forward_jit.1} parent=11 // pred_check_branch
        %339 = sbr.rel (%p337) target = $region24
      $region23: #{_neuron_unet_forward_jit.1} parent=11 // pred_region
        _
      $region24: #{_neuron_unet_forward_jit.1} parent=11 // pred_fallthru
        _
      // Predicated region
      $region25: #{_neuron_unet_forward_jit.1} parent=11 // pred_check
        %p340 = pneg %p206
      $region26: #{_neuron_unet_forward_jit.1} parent=11 // pred_check_branch
        %342 = sbr.rel (%p340) target = $region28
      $region27: #{_neuron_unet_forward_jit.1} parent=11 // pred_region
        _
      $region28: #{_neuron_unet_forward_jit.1} parent=11 // pred_fallthru
        _
      // Predicated region
      $region29: #{_neuron_unet_forward_jit.1} parent=11 // pred_check
        %p343 = pneg %p227
      $region30: #{_neuron_unet_forward_jit.1} parent=11 // pred_check_branch
        %345 = sbr.rel (%p343) target = $region32
      $region31: #{_neuron_unet_forward_jit.1} parent=11 // pred_region
        _
      $region32: #{_neuron_unet_forward_jit.1} parent=11 // pred_fallthru
        _
      // Predicated region
      $region33: #{_neuron_unet_forward_jit.1} parent=11 // pred_check
        %p346 = pneg %p248
      $region34: #{_neuron_unet_forward_jit.1} parent=11 // pred_check_branch
        %348 = sbr.rel (%p346) target = $region36
      $region35: #{_neuron_unet_forward_jit.1} parent=11 // pred_region
        _
      $region36: #{_neuron_unet_forward_jit.1} parent=11 // pred_fallthru
        _
      // Predicated region
      $region37: #{_neuron_unet_forward_jit.1} parent=11 // pred_check
        %p349 = pneg %p269
      $region38: #{_neuron_unet_forward_jit.1} parent=11 // pred_check_branch
        %351 = sbr.rel (%p349) target = $region40
      $region39: #{_neuron_unet_forward_jit.1} parent=11 // pred_region
        _
      $region40: #{_neuron_unet_forward_jit.1} parent=11 // pred_fallthru
        _
      // Predicated region
      $region41: #{_neuron_unet_forward_jit.1} parent=11 // pred_check
        %p352 = pneg %p290
      $region42: #{_neuron_unet_forward_jit.1} parent=11 // pred_check_branch
        %354 = sbr.rel (%p352) target = $region44
      $region43: #{_neuron_unet_forward_jit.1} parent=11 // pred_region
        _
      $region44: #{_neuron_unet_forward_jit.1} parent=11 // pred_fallthru
        _
    $region12: #{_neuron_unet_forward_jit.1} parent=5 // pred_fallthru
      _
    %p355 = scmp.lt.s32.totalorder %s18, 2
    // Predicated region
    $region45: #{_neuron_unet_forward_jit.1} parent=5 // pred_check
      %p356 = pneg %p355
    $region46: #{_neuron_unet_forward_jit.1} parent=5 // pred_check_branch
      %358 = sbr.rel (%p356) target = $region48
    $region47: #{_neuron_unet_forward_jit.1} parent=5 // pred_region
      // Predicated region
      $region49: #{_neuron_unet_forward_jit.1} parent=47 // pred_check
        %p359 = pneg %p38
      $region50: #{_neuron_unet_forward_jit.1} parent=47 // pred_check_branch
        %361 = sbr.rel (%p359) target = $region52
      $region51: #{_neuron_unet_forward_jit.1} parent=47 // pred_region
        %p362 = scmp.lt.s32.totalorder %s18, 1
        %s363 = scalar_select %p362, %s18, 1
        %s364 = smul.addr %s363, 2
        %s365 = smul.addr %s364, 4
        %s366 = scalar_lea.vmem %s0, %s365
      $region52: #{_neuron_unet_forward_jit.1} parent=47 // pred_fallthru
        _
      // Predicated region
      $region53: #{_neuron_unet_forward_jit.1} parent=47 // pred_check
        %p367 = pneg %p64
      $region54: #{_neuron_unet_forward_jit.1} parent=47 // pred_check_branch
        %369 = sbr.rel (%p367) target = $region56
      $region55: #{_neuron_unet_forward_jit.1} parent=47 // pred_region
        %p370 = scmp.lt.s32.totalorder %s18, 1
        %s371 = scalar_select %p370, %s18, 1
        %s372 = smul.addr %s371, 4
        %s373 = smul.addr %s372, 8
        %s374 = scalar_lea.vmem %s1, %s373
      $region56: #{_neuron_unet_forward_jit.1} parent=47 // pred_fallthru
        _
      // Predicated region
      $region57: #{_neuron_unet_forward_jit.1} parent=47 // pred_check
        %p375 = pneg %p90
      $region58: #{_neuron_unet_forward_jit.1} parent=47 // pred_check_branch
        %377 = sbr.rel (%p375) target = $region60
      $region59: #{_neuron_unet_forward_jit.1} parent=47 // pred_region
        %p378 = scmp.lt.s32.totalorder %s18, 1
        %s379 = scalar_select %p378, %s18, 1
        %s380 = smul.addr %s379, 8
        %s381 = scalar_lea.vmem %s2, %s380
      $region60: #{_neuron_unet_forward_jit.1} parent=47 // pred_fallthru
        _
      // Predicated region
      $region61: #{_neuron_unet_forward_jit.1} parent=47 // pred_check
        %p382 = pneg %p116
      $region62: #{_neuron_unet_forward_jit.1} parent=47 // pred_check_branch
        %384 = sbr.rel (%p382) target = $region64
      $region63: #{_neuron_unet_forward_jit.1} parent=47 // pred_region
        %p385 = scmp.lt.s32.totalorder %s18, 1
        %s386 = scalar_select %p385, %s18, 1
        %s387 = smul.addr %s386, 4
        %s388 = smul.addr %s387, 8
        %s389 = scalar_lea.vmem %s3, %s388
      $region64: #{_neuron_unet_forward_jit.1} parent=47 // pred_fallthru
        _
    $region48: #{_neuron_unet_forward_jit.1} parent=5 // pred_fallthru
      _
    %p390 = scmp.le.s32.totalorder 1, %s18
    %p391 = scmp.lt.s32.totalorder %s18, 3
    %p392 = pnand %p390, %p391
    %p393 = pneg %p392
    // Predicated region
    $region65: #{_neuron_unet_forward_jit.1} parent=5 // pred_check
      _
    $region66: #{_neuron_unet_forward_jit.1} parent=5 // pred_check_branch
      %395 = sbr.rel (%p392) target = $region68
    $region67: #{_neuron_unet_forward_jit.1} parent=5 // pred_region
      %s396 = ssub.s32 %s18, 1
      %p397 = scmp.lt.s32.totalorder %s23, 1
      %s398 = scalar_select %p397, %s23, 1
      %s399 = smul.addr %s398, 2
      %s400 = smul.addr %s399, 4
      %s401 = scalar_lea.vmem %s0, %s400
      %p402 = pneg %p44
      %p403 = pneg %p41
      %p404 = scmp.lt.s32.totalorder %s23, 1
      %s405 = scalar_select %p404, %s23, 1
      %s406 = smul.addr %s405, 4
      %s407 = smul.addr %s406, 8
      %s408 = scalar_lea.vmem %s1, %s407
      %p409 = pneg %p70
      %p410 = pneg %p67
      %p411 = scmp.lt.s32.totalorder %s23, 1
      %s412 = scalar_select %p411, %s23, 1
      %s413 = smul.addr %s412, 8
      %s414 = scalar_lea.vmem %s2, %s413
      %p415 = pneg %p96
      %p416 = pneg %p93
      %p417 = scmp.lt.s32.totalorder %s23, 1
      %s418 = scalar_select %p417, %s23, 1
      %s419 = smul.addr %s418, 4
      %s420 = smul.addr %s419, 8
      %s421 = scalar_lea.vmem %s3, %s420
      %p422 = pneg %p122
      %p423 = pneg %p119
      %p424 = pneg %p143
      %p425 = pneg %p140
      %p426 = pneg %p164
      %p427 = pneg %p161
      %p428 = pneg %p185
      %p429 = pneg %p182
      %p430 = pneg %p206
      %p431 = pneg %p203
      %p432 = pneg %p227
      %p433 = pneg %p224
      %p434 = pneg %p248
      %p435 = pneg %p245
      %p436 = pneg %p269
      %p437 = pneg %p266
      %p438 = pneg %p290
      %p439 = pneg %p287
      %p440 = pneg %p316
      %p441 = pneg %p313
      %p442 = scmp.lt.s32.totalorder %s23, 1
      %s443 = scalar_select %p442, %s23, 1
      %s444 = smul.addr %s443, 2
      %s445 = smul.addr %s444, 4
      %s446 = scalar_lea.vmem %s12, %s445
      %p447 = scmp.lt.s32.totalorder %s23, 1
      %s448 = scalar_select %p447, %s23, 1
      %s449 = smul.addr %s448, 2
      %s450 = smul.addr %s449, 4
      %s451 = scalar_lea.vmem %s0, %s450
      %p452 = scmp.lt.s32.totalorder %s23, 1
      %s453 = scalar_select %p452, %s23, 1
      %s454 = smul.addr %s453, 4
      %s455 = smul.addr %s454, 8
      %s456 = scalar_lea.vmem %s1, %s455
      %p457 = scmp.lt.s32.totalorder %s23, 1
      %s458 = scalar_select %p457, %s23, 1
      %s459 = smul.addr %s458, 8
      %s460 = scalar_lea.vmem %s2, %s459
      %p461 = scmp.lt.s32.totalorder %s23, 1
      %s462 = scalar_select %p461, %s23, 1
      %s463 = smul.addr %s462, 4
      %s464 = smul.addr %s463, 8
      %s465 = scalar_lea.vmem %s3, %s464
      %p466 = scmp.lt.s32.totalorder %s23, 1
      %s467 = scalar_select %p466, %s23, 1
      %s468 = smul.addr %s467, 2
      %s469 = smul.addr %s468, 4
      %s470 = scalar_lea.vmem %s12, %s469
      %v472 = vld [vmem:[%s451] sm:$0xff]
      %v473 = vld [vmem:[%s4] sm:$0xf]
      %v474 = vld [vmem:[%s4 + $0x4] sm:$0xf]
      %v475 = vld [vmem:[%s4 + $0x8] sm:$0xf]
      %v476 = vld [vmem:[%s4 + $0xc] sm:$0xf]
      %v477 = vld [vmem:[%s7] sm:$0xff]
      %v478 = vld [vmem:[%s7 + $0x8] sm:$0xff]
      %v479 = vld [vmem:[%s7 + $0x10] sm:$0xff]
      %v480 = vld [vmem:[%s7 + $0x18] sm:$0xff]
      %v482 = vcombine.high %v472, %v472
      %484 = vrot.lane.b32.xlu0 %v472, 17
      %v485 = vpop.permute.xlu0 %484
      %486 = vrot.lane.b32.xlu0 %v482, 17
      %v487 = vpop.permute.xlu0 %486
      %v488 = vlaneseq
      %v489 = vand.u32 %v488, 127
      %vm490 = vcmp.lt.s32.totalorder %v489, 17
      %v491 = vsel %vm490, %v485, %v487
      %v492 = vsel %vm490, %v487, %v485
      %v493 = vld [vmem:[%s9] ss:$8 sm:$0x3]
      %v495 = vlaneseq
      %v496 = vshrl.u32 %v495, 7
      %v497 = vsub.s32 0, %v496
      %v498 = vrot.slane %v493, %v497
      %v499 = vlaneseq
      %v500 = vshrl.u32 %v499, 7
      %v501 = vsub.s32 1, %v500
      %v502 = vrot.slane %v493, %v501
      %v505 = vmul.f32 %v492, %v498
      %v506 = vmul.f32 %v491, %v502
      %v507 = vpack.c.bf16 %v505, %v505
      %v508 = vpack.c.bf16 %v506, %v506
      %v511 = vunpack.c.l.b16 %v507
      %v512 = vunpack.c.l.b16 %v508
      %v513 = vpack.c.b16 %v512, %v511
      %515 = vst [vmem:[#allocation2] sm:$0x33] %v513
      %516 = vrot.lane.b32.xlu0 %v472, 16
      %v517 = vpop.permute.xlu0 %516
      %518 = vrot.lane.b32.xlu0 %v482, 16
      %v519 = vpop.permute.xlu0 %518
      %vm520 = vcmp.lt.s32.totalorder %v489, 16
      %v521 = vsel %vm520, %v517, %v519
      %v522 = vsel %vm520, %v519, %v517
      %s523 = scalar_lea.vmem %s9, 1
      %v524 = vld [vmem:[%s523] ss:$8 sm:$0x3]
      %v526 = vlaneseq
      %v527 = vshrl.u32 %v526, 7
      %v528 = vsub.s32 0, %v527
      %v529 = vrot.slane %v524, %v528
      %v530 = vlaneseq
      %v531 = vshrl.u32 %v530, 7
      %v532 = vsub.s32 1, %v531
      %v533 = vrot.slane %v524, %v532
      %v536 = vmul.f32 %v522, %v529
      %v537 = vmul.f32 %v521, %v533
      %v538 = vpack.c.bf16 %v536, %v536
      %v539 = vpack.c.bf16 %v537, %v537
      %v542 = vunpack.c.l.b16 %v538
      %v543 = vunpack.c.l.b16 %v539
      %v544 = vpack.c.b16 %v543, %v542
      %v545 = vrot.slane %v544, 6
      %547 = vst [vmem:[#allocation2] sm:$0xcc] %v545
      %548 = vrot.lane.b32.xlu0 %v472, 15
      %v549 = vpop.permute.xlu0 %548
      %550 = vrot.lane.b32.xlu0 %v482, 15
      %v551 = vpop.permute.xlu0 %550
      %vm552 = vcmp.lt.s32.totalorder %v489, 15
      %v553 = vsel %vm552, %v549, %v551
      %v554 = vsel %vm552, %v551, %v549
      %s555 = scalar_lea.vmem %s9, 2
      %v556 = vld [vmem:[%s555] ss:$8 sm:$0x3]
      %v558 = vlaneseq
      %v559 = vshrl.u32 %v558, 7
      %v560 = vsub.s32 0, %v559
      %v561 = vrot.slane %v556, %v560
      %v562 = vlaneseq
      %v563 = vshrl.u32 %v562, 7
      %v564 = vsub.s32 1, %v563
      %v565 = vrot.slane %v556, %v564
      %v568 = vmul.f32 %v554, %v561
      %v569 = vmul.f32 %v553, %v565
      %v570 = vpack.c.bf16 %v568, %v568
      %v571 = vpack.c.bf16 %v569, %v569
      %v574 = vunpack.c.l.b16 %v570
      %v575 = vunpack.c.l.b16 %v571
      %v576 = vpack.c.b16 %v575, %v574
      %578 = vst [vmem:[#allocation2 + $0x8] sm:$0x33] %v576
      %579 = vrot.lane.b32.xlu0 %v472, 1
      %v580 = vpop.permute.xlu0 %579
      %581 = vrot.lane.b32.xlu0 %v482, 1
      %v582 = vpop.permute.xlu0 %581
      %vm583 = vcmp.lt.s32.totalorder %v489, 1
      %v584 = vsel %vm583, %v580, %v582
      %v585 = vsel %vm583, %v582, %v580
      %s586 = scalar_lea.vmem %s9, 3
      %v587 = vld [vmem:[%s586] ss:$8 sm:$0x3]
      %v589 = vlaneseq
      %v590 = vshrl.u32 %v589, 7
      %v591 = vsub.s32 0, %v590
      %v592 = vrot.slane %v587, %v591
      %v593 = vlaneseq
      %v594 = vshrl.u32 %v593, 7
      %v595 = vsub.s32 1, %v594
      %v596 = vrot.slane %v587, %v595
      %v599 = vmul.f32 %v585, %v592
      %v600 = vmul.f32 %v584, %v596
      %v601 = vpack.c.bf16 %v599, %v599
      %v602 = vpack.c.bf16 %v600, %v600
      %v605 = vunpack.c.l.b16 %v601
      %v606 = vunpack.c.l.b16 %v602
      %v607 = vpack.c.b16 %v606, %v605
      %v608 = vrot.slane %v607, 6
      %610 = vst [vmem:[#allocation2 + $0x8] sm:$0xcc] %v608
      %v611 = vpack.c.bf16 %v472, %v472
      %v612 = vpack.c.bf16 %v482, %v482
      %v615 = vunpack.c.l.b16 %v611
      %v616 = vunpack.c.l.b16 %v612
      %v617 = vpack.c.b16 %v616, %v615
      %619 = vst [vmem:[#allocation2 + $0x10] sm:$0x33] %v617
      %620 = vrot.lane.b32.xlu0 %v472, 127
      %v621 = vpop.permute.xlu0 %620
      %622 = vrot.lane.b32.xlu0 %v482, 127
      %v623 = vpop.permute.xlu0 %622
      %vm624 = vcmp.lt.s32.totalorder %v489, 127
      %v625 = vsel %vm624, %v621, %v623
      %v626 = vsel %vm624, %v623, %v621
      %s627 = scalar_lea.vmem %s9, 5
      %v628 = vld [vmem:[%s627] ss:$8 sm:$0x3]
      %v630 = vlaneseq
      %v631 = vshrl.u32 %v630, 7
      %v632 = vsub.s32 0, %v631
      %v633 = vrot.slane %v628, %v632
      %v634 = vlaneseq
      %v635 = vshrl.u32 %v634, 7
      %v636 = vsub.s32 1, %v635
      %v637 = vrot.slane %v628, %v636
      %v640 = vmul.f32 %v625, %v633
      %v641 = vmul.f32 %v626, %v637
      %v642 = vpack.c.bf16 %v640, %v640
      %v643 = vpack.c.bf16 %v641, %v641
      %v646 = vunpack.c.l.b16 %v642
      %v647 = vunpack.c.l.b16 %v643
      %v648 = vpack.c.b16 %v647, %v646
      %v649 = vrot.slane %v648, 6
      %651 = vst [vmem:[#allocation2 + $0x10] sm:$0xcc] %v649
      %652 = vrot.lane.b32.xlu0 %v472, 113
      %v653 = vpop.permute.xlu0 %652
      %654 = vrot.lane.b32.xlu0 %v482, 113
      %v655 = vpop.permute.xlu0 %654
      %vm656 = vcmp.lt.s32.totalorder %v489, 113
      %v657 = vsel %vm656, %v653, %v655
      %v658 = vsel %vm656, %v655, %v653
      %s659 = scalar_lea.vmem %s9, 6
      %v660 = vld [vmem:[%s659] ss:$8 sm:$0x3]
      %v662 = vlaneseq
      %v663 = vshrl.u32 %v662, 7
      %v664 = vsub.s32 0, %v663
      %v665 = vrot.slane %v660, %v664
      %v666 = vlaneseq
      %v667 = vshrl.u32 %v666, 7
      %v668 = vsub.s32 1, %v667
      %v669 = vrot.slane %v660, %v668
      %v672 = vmul.f32 %v657, %v665
      %v673 = vmul.f32 %v658, %v669
      %v674 = vpack.c.bf16 %v672, %v672
      %v675 = vpack.c.bf16 %v673, %v673
      %v678 = vunpack.c.l.b16 %v674
      %v679 = vunpack.c.l.b16 %v675
      %v680 = vpack.c.b16 %v679, %v678
      %682 = vst [vmem:[#allocation2 + $0x18] sm:$0x33] %v680
      %683 = vrot.lane.b32.xlu0 %v472, 112
      %v684 = vpop.permute.xlu0 %683
      %685 = vrot.lane.b32.xlu0 %v482, 112
      %v686 = vpop.permute.xlu0 %685
      %vm687 = vcmp.lt.s32.totalorder %v489, 112
      %v688 = vsel %vm687, %v684, %v686
      %v689 = vsel %vm687, %v686, %v684
      %s690 = scalar_lea.vmem %s9, 7
      %v691 = vld [vmem:[%s690] ss:$8 sm:$0x3]
      %v693 = vlaneseq
      %v694 = vshrl.u32 %v693, 7
      %v695 = vsub.s32 0, %v694
      %v696 = vrot.slane %v691, %v695
      %v697 = vlaneseq
      %v698 = vshrl.u32 %v697, 7
      %v699 = vsub.s32 1, %v698
      %v700 = vrot.slane %v691, %v699
      %v703 = vmul.f32 %v688, %v696
      %v704 = vmul.f32 %v689, %v700
      %v705 = vpack.c.bf16 %v703, %v703
      %v706 = vpack.c.bf16 %v704, %v704
      %v709 = vunpack.c.l.b16 %v705
      %v710 = vunpack.c.l.b16 %v706
      %v711 = vpack.c.b16 %v710, %v709
      %v712 = vrot.slane %v711, 6
      %714 = vst [vmem:[#allocation2 + $0x18] sm:$0xcc] %v712
      %715 = vrot.lane.b32.xlu0 %v472, 111
      %v716 = vpop.permute.xlu0 %715
      %717 = vrot.lane.b32.xlu0 %v482, 111
      %v718 = vpop.permute.xlu0 %717
      %vm719 = vcmp.lt.s32.totalorder %v489, 111
      %v720 = vsel %vm719, %v716, %v718
      %v721 = vsel %vm719, %v718, %v716
      %s722 = scalar_lea.vmem %s9, 16
      %v723 = vld [vmem:[%s722] ss:$8 sm:$0x3]
      %v725 = vlaneseq
      %v726 = vshrl.u32 %v725, 7
      %v727 = vsub.s32 0, %v726
      %v728 = vrot.slane %v723, %v727
      %v729 = vlaneseq
      %v730 = vshrl.u32 %v729, 7
      %v731 = vsub.s32 1, %v730
      %v732 = vrot.slane %v723, %v731
      %v735 = vmul.f32 %v720, %v728
      %v736 = vmul.f32 %v721, %v732
      %v737 = vpack.c.bf16 %v735, %v735
      %v738 = vpack.c.bf16 %v736, %v736
      %v741 = vunpack.c.l.b16 %v737
      %v742 = vunpack.c.l.b16 %v738
      %v743 = vpack.c.b16 %v742, %v741
      %745 = vst [vmem:[#allocation2 + $0x20] sm:$0x33] %v743
      %v746 = vld [vmem:[#allocation2] sm:$0xff]
      %v747 = vld [vmem:[#allocation2 + $0x8] sm:$0xff]
      %v748 = vld [vmem:[#allocation2 + $0x10] sm:$0xff]
      %v749 = vld [vmem:[#allocation2 + $0x18] sm:$0xff]
      %v750 = vld [vmem:[#allocation2 + $0x20] sm:$0x33]
      %752 = vset.pattern.permute.xlu0 0
      %753 = vperm.xlu0 %752, %v477
      %v754 = vpop.permute.xlu0 %753
      %757 = vset.pattern.permute.xlu0 0
      %758 = vperm.xlu0 %757, %v478
      %v759 = vpop.permute.xlu0 %758
      %762 = vset.pattern.permute.xlu0 0
      %763 = vperm.xlu0 %762, %v479
      %v764 = vpop.permute.xlu0 %763
      %767 = vset.pattern.permute.xlu0 0
      %768 = vperm.xlu0 %767, %v480
      %v769 = vpop.permute.xlu0 %768
      %v775 = vunpack.c.l.b16 %v473
      %v776 = vunpack.c.l.b16 %v474
      %v777 = vunpack.c.l.b16 %v475
      %v778 = vunpack.c.l.b16 %v476
      %v779 = vpack.c.b16 %v776, %v775
      %v780 = vpack.c.b16 %v778, %v777
      %v786 = vunpack.c.l.b16 %v746
      %v787 = vunpack.c.h.b16 %v746
      %v788 = vunpack.c.l.b16 %v747
      %v789 = vunpack.c.h.b16 %v747
      %v790 = vunpack.c.l.b16 %v748
      %v791 = vunpack.c.h.b16 %v748
      %v792 = vunpack.c.l.b16 %v749
      %v793 = vunpack.c.h.b16 %v749
      %v794 = vunpack.c.l.b16 %v750
      %v795 = vunpack.c.h.b16 %v750
      %v796 = vpack.c.b16 %v788, %v786
      %v797 = vpack.c.b16 %v789, %v787
      %v798 = vpack.c.b16 %v792, %v790
      %v799 = vpack.c.b16 %v793, %v791
      %v800 = vpack.c.b16 %v794, %v794
      %v801 = vpack.c.b16 %v795, %v795
      %vm806 = vcmask 293888
      %v808 = vsel %vm806, %v779, 0
      %v811 = vsel %vm806, %v780, 0
      %vm813 = vcmask 1041408
      %v815 = vsel %vm813, %v800, 0
      %v818 = vsel %vm813, %v801, 0
      %820 = vmatprep.subr.bf16.mxu0 %v797
      %821 = vmatpush1.bf16.msra.mxu0 %v796
      %822 = vmatprep.subr.bf16.mxu0 %v799
      %823 = vmatpush1.bf16.msra.mxu0 %v798
      %824 = vmatprep.subr.bf16.mxu0 %v818
      %825 = vmatpush1.bf16.msra.mxu0 %v815
      %826 = vmatprep.subr.bf16.mxu0 0
      %827 = vmatpush1.bf16.msra.mxu0 0
      %828 = vmatprep.subr.bf16.mxu0 0
      %829 = vmatpush1.bf16.msra.mxu0 0
      %830 = vmatprep.subr.bf16.mxu0 0
      %831 = vmatpush1.bf16.msra.mxu0 0
      %832 = vmatprep.subr.bf16.mxu0 0
      %833 = vmatpush1.bf16.msra.mxu0 0
      %834 = vmatprep.subr.bf16.mxu0 0
      %835 = vmatpush1.bf16.msra.mxu0 0
      %836 = vmatprep.subr.bf16.mxu0 0
      %837 = vmatpush1.bf16.msra.mxu0 0
      %838 = vmatprep.subr.bf16.mxu0 0
      %839 = vmatpush1.bf16.msra.mxu0 0
      %840 = vmatprep.subr.bf16.mxu0 0
      %841 = vmatpush1.bf16.msra.mxu0 0
      %842 = vmatprep.subr.bf16.mxu0 0
      %843 = vmatpush1.bf16.msra.mxu0 0
      %844 = vmatprep.subr.bf16.mxu0 0
      %845 = vmatpush1.bf16.msra.mxu0 0
      %846 = vmatprep.subr.bf16.mxu0 0
      %847 = vmatpush1.bf16.msra.mxu0 0
      %848 = vmatprep.subr.bf16.mxu0 0
      %849 = vmatpush1.bf16.msra.mxu0 0
      %850 = vmatprep.subr.bf16.mxu0 0
      %851 = vmatpush1.bf16.msra.mxu0 0
      %852 = vmatprep.mubr.bf16.mxu0 0
      %853 = vmatmul.mubr.bf16.gmra.mrb[0].mxu0 %v808
      %v854 = vpop.f32.mrb[0].mxu0
      %v855 = vadd.f32 %v754, %v854
      %v856 = vpop.f32.mrb[0].mxu0
      %v857 = vadd.f32 %v754, %v856
      %v858 = vpop.f32.mrb[0].mxu0
      %v859 = vadd.f32 %v759, %v858
      %v860 = vpop.f32.mrb[0].mxu0
      %v861 = vadd.f32 %v759, %v860
      %862 = vmatprep.mubr.bf16.mxu0 0
      %863 = vmatmul.mubr.bf16.gmra.mrb[0].mxu0 %v811
      %v864 = vpop.f32.mrb[0].mxu0
      %v865 = vadd.f32 %v764, %v864
      %v866 = vpop.f32.mrb[0].mxu0
      %v867 = vadd.f32 %v764, %v866
      %v868 = vpop.f32.mrb[0].mxu0
      %v869 = vadd.f32 %v769, %v868
      %v870 = vpop.f32.mrb[0].mxu0
      %v871 = vadd.f32 %v769, %v870
      %872 = vdwg.mxu0
      %v873 = vld [vmem:[%s7] sm:$0xff]
      %v874 = vld [vmem:[%s7 + $0x8] sm:$0xff]
      %v875 = vld [vmem:[%s7 + $0x10] sm:$0xff]
      %v876 = vld [vmem:[%s7 + $0x18] sm:$0xff]
      %877 = vmatprep.subr.mxu0 0.0
      %878 = vmatpush1.msra.mxu0 1.0
      %879 = vmatprep.subr.mxu0 0.0
      %880 = vmatpush1.msra.mxu0 1.0
      %881 = vmatprep.subr.mxu0 0.0
      %882 = vmatpush1.msra.mxu0 1.0
      %883 = vmatprep.subr.mxu0 0.0
      %884 = vmatpush1.msra.mxu0 1.0
      %885 = vmatprep.subr.mxu0 0.0
      %886 = vmatpush1.msra.mxu0 1.0
      %887 = vmatprep.subr.mxu0 0.0
      %888 = vmatpush1.msra.mxu0 1.0
      %889 = vmatprep.subr.mxu0 0.0
      %890 = vmatpush1.msra.mxu0 1.0
      %891 = vmatprep.subr.mxu0 0.0
      %892 = vmatpush1.msra.mxu0 1.0
      %893 = vmatprep.subr.mxu0 0.0
      %894 = vmatpush1.msra.mxu0 1.0
      %895 = vmatprep.subr.mxu0 0.0
      %896 = vmatpush1.msra.mxu0 1.0
      %897 = vmatprep.subr.mxu0 0.0
      %898 = vmatpush1.msra.mxu0 1.0
      %899 = vmatprep.subr.mxu0 0.0
      %900 = vmatpush1.msra.mxu0 1.0
      %901 = vmatprep.subr.mxu0 0.0
      %902 = vmatpush1.msra.mxu0 1.0
      %903 = vmatprep.subr.mxu0 0.0
      %904 = vmatpush1.msra.mxu0 1.0
      %905 = vmatprep.subr.mxu0 0.0
      %906 = vmatpush1.msra.mxu0 1.0
      %907 = vmatprep.subr.mxu0 0.0
      %908 = vmatpush1.msra.mxu0 1.0
      %909 = vmatprep.subr.mxu0 0.0
      %910 = vmatpush1.msra.mxu0 1.0
      %911 = vmatprep.subr.mxu0 0.0
      %912 = vmatpush1.msra.mxu0 1.0
      %913 = vmatprep.subr.mxu0 0.0
      %914 = vmatpush1.msra.mxu0 1.0
      %915 = vmatprep.subr.mxu0 0.0
      %916 = vmatpush1.msra.mxu0 1.0
      %917 = vmatprep.subr.mxu0 0.0
      %918 = vmatpush1.msra.mxu0 1.0
      %919 = vmatprep.subr.mxu0 0.0
      %920 = vmatpush1.msra.mxu0 1.0
      %921 = vmatprep.subr.mxu0 0.0
      %922 = vmatpush1.msra.mxu0 1.0
      %923 = vmatprep.subr.mxu0 0.0
      %924 = vmatpush1.msra.mxu0 1.0
      %925 = vmatprep.subr.mxu0 0.0
      %926 = vmatpush1.msra.mxu0 1.0
      %927 = vmatprep.subr.mxu0 0.0
      %928 = vmatpush1.msra.mxu0 1.0
      %929 = vmatprep.subr.mxu0 0.0
      %930 = vmatpush1.msra.mxu0 1.0
      %931 = vmatprep.subr.mxu0 0.0
      %932 = vmatpush1.msra.mxu0 1.0
      %933 = vmatprep.subr.mxu0 0.0
      %934 = vmatpush1.msra.mxu0 1.0
      %935 = vmatprep.subr.mxu0 0.0
      %936 = vmatpush1.msra.mxu0 1.0
      %937 = vmatprep.subr.mxu0 0.0
      %938 = vmatpush1.msra.mxu0 1.0
      %939 = vmatprep.subr.mxu0 0.0
      %940 = vmatpush1.msra.mxu0 1.0
      %941 = vmatprep.mubr.f32.mxu0 %v857
      %942 = vmatmul.mubr.f32.gmra.mrb[0].mxu0 %v855
      %v943 = vpop.f32.mrb[0].mxu0
      %v944 = vadd.f32 0.0, %v943
      %v945 = vpop.f32.mrb[0].mxu0
      %946 = vmatprep.mubr.f32.mxu0 %v861
      %947 = vmatmul.mubr.f32.gmra.mrb[0].mxu0 %v859
      %v948 = vpop.f32.mrb[0].mxu0
      %v949 = vadd.f32 0.0, %v948
      %v950 = vpop.f32.mrb[0].mxu0
      %951 = vmatprep.mubr.f32.mxu0 %v867
      %952 = vmatmul.mubr.f32.gmra.mrb[0].mxu0 %v865
      %v953 = vpop.f32.mrb[0].mxu0
      %v954 = vadd.f32 0.0, %v953
      %v955 = vpop.f32.mrb[0].mxu0
      %956 = vmatprep.mubr.f32.mxu0 %v871
      %957 = vmatmul.mubr.f32.gmra.mrb[0].mxu0 %v869
      %v958 = vpop.f32.mrb[0].mxu0
      %v959 = vadd.f32 0.0, %v958
      %v960 = vpop.f32.mrb[0].mxu0
      %961 = vdwg.mxu0
      %v962 = vld [vmem:[%s11] sm:$0xff]
      %vm963 = vcmask 261120
      %v965 = vsel %vm963, %v962, 0
      %967 = vmatprep.subr.mxu0 0.0
      %968 = vmatpush1.msra.mxu0 %v944
      %969 = vmatprep.subr.mxu0 0.0
      %970 = vmatpush1.msra.mxu0 %v949
      %971 = vmatprep.subr.mxu0 0.0
      %972 = vmatpush1.msra.mxu0 %v954
      %973 = vmatprep.subr.mxu0 0.0
      %974 = vmatpush1.msra.mxu0 %v959
      %975 = vmatprep.subr.mxu0 0.0
      %976 = vmatpush1.msra.mxu0 0.0
      %977 = vmatprep.subr.mxu0 0.0
      %978 = vmatpush1.msra.mxu0 0.0
      %979 = vmatprep.subr.mxu0 0.0
      %980 = vmatpush1.msra.mxu0 0.0
      %981 = vmatprep.subr.mxu0 0.0
      %982 = vmatpush1.msra.mxu0 0.0
      %983 = vmatprep.subr.mxu0 0.0
      %984 = vmatpush1.msra.mxu0 0.0
      %985 = vmatprep.subr.mxu0 0.0
      %986 = vmatpush1.msra.mxu0 0.0
      %987 = vmatprep.subr.mxu0 0.0
      %988 = vmatpush1.msra.mxu0 0.0
      %989 = vmatprep.subr.mxu0 0.0
      %990 = vmatpush1.msra.mxu0 0.0
      %991 = vmatprep.subr.mxu0 0.0
      %992 = vmatpush1.msra.mxu0 0.0
      %993 = vmatprep.subr.mxu0 0.0
      %994 = vmatpush1.msra.mxu0 0.0
      %995 = vmatprep.subr.mxu0 0.0
      %996 = vmatpush1.msra.mxu0 0.0
      %997 = vmatprep.subr.mxu0 0.0
      %998 = vmatpush1.msra.mxu0 0.0
      %999 = vmatprep.subr.mxu0 0.0
      %1000 = vmatpush1.msra.mxu0 0.0
      %1001 = vmatprep.subr.mxu0 0.0
      %1002 = vmatpush1.msra.mxu0 0.0
      %1003 = vmatprep.subr.mxu0 0.0
      %1004 = vmatpush1.msra.mxu0 0.0
      %1005 = vmatprep.subr.mxu0 0.0
      %1006 = vmatpush1.msra.mxu0 0.0
      %1007 = vmatprep.subr.mxu0 0.0
      %1008 = vmatpush1.msra.mxu0 0.0
      %1009 = vmatprep.subr.mxu0 0.0
      %1010 = vmatpush1.msra.mxu0 0.0
      %1011 = vmatprep.subr.mxu0 0.0
      %1012 = vmatpush1.msra.mxu0 0.0
      %1013 = vmatprep.subr.mxu0 0.0
      %1014 = vmatpush1.msra.mxu0 0.0
      %1015 = vmatprep.subr.mxu0 0.0
      %1016 = vmatpush1.msra.mxu0 0.0
      %1017 = vmatprep.subr.mxu0 0.0
      %1018 = vmatpush1.msra.mxu0 0.0
      %1019 = vmatprep.subr.mxu0 0.0
      %1020 = vmatpush1.msra.mxu0 0.0
      %1021 = vmatprep.subr.mxu0 0.0
      %1022 = vmatpush1.msra.mxu0 0.0
      %1023 = vmatprep.subr.mxu0 0.0
      %1024 = vmatpush1.msra.mxu0 0.0
      %1025 = vmatprep.subr.mxu0 0.0
      %1026 = vmatpush1.msra.mxu0 0.0
      %1027 = vmatprep.subr.mxu0 0.0
      %1028 = vmatpush1.msra.mxu0 0.0
      %1029 = vmatprep.subr.mxu0 0.0
      %1030 = vmatpush1.msra.mxu0 0.0
      %1031 = vmatprep.mubr.f32.mxu0 0.0
      %1032 = vmatmul.mubr.f32.gmra.mrb[0].mxu0 %v965
      %v1033 = vpop.f32.mrb[0].mxu0
      %v1034 = vadd.f32 0.0, %v1033
      %v1035 = vpop.f32.mrb[0].mxu0
      %1036 = vdwg.mxu0
      %v1037 = vrcp.pop 1024.0
      %v1038 = vmul.f32 %v1034, %v1037
      %v1039 = vld [vmem:[%s10] sm:$0xff]
      %v1040 = vld [vmem:[%s10 + $0x8] sm:$0xff]
      %v1041 = vld [vmem:[%s10 + $0x10] sm:$0xff]
      %v1042 = vld [vmem:[%s10 + $0x18] sm:$0xff]
      %vm1043 = vcmask 64512
      %v1045 = vsel %vm1043, %v1039, 0
      %v1048 = vsel %vm1043, %v1040, 0
      %v1051 = vsel %vm1043, %v1041, 0
      %v1054 = vsel %vm1043, %v1042, 0
      %1056 = vmatprep.subr.mxu0 0.0
      %1057 = vmatpush1.msra.mxu0 %v1038
      %1058 = vmatprep.subr.mxu0 0.0
      %1059 = vmatpush1.msra.mxu0 0.0
      %1060 = vmatprep.subr.mxu0 0.0
      %1061 = vmatpush1.msra.mxu0 0.0
      %1062 = vmatprep.subr.mxu0 0.0
      %1063 = vmatpush1.msra.mxu0 0.0
      %1064 = vmatprep.subr.mxu0 0.0
      %1065 = vmatpush1.msra.mxu0 0.0
      %1066 = vmatprep.subr.mxu0 0.0
      %1067 = vmatpush1.msra.mxu0 0.0
      %1068 = vmatprep.subr.mxu0 0.0
      %1069 = vmatpush1.msra.mxu0 0.0
      %1070 = vmatprep.subr.mxu0 0.0
      %1071 = vmatpush1.msra.mxu0 0.0
      %1072 = vmatprep.subr.mxu0 0.0
      %1073 = vmatpush1.msra.mxu0 0.0
      %1074 = vmatprep.subr.mxu0 0.0
      %1075 = vmatpush1.msra.mxu0 0.0
      %1076 = vmatprep.subr.mxu0 0.0
      %1077 = vmatpush1.msra.mxu0 0.0
      %1078 = vmatprep.subr.mxu0 0.0
      %1079 = vmatpush1.msra.mxu0 0.0
      %1080 = vmatprep.subr.mxu0 0.0
      %1081 = vmatpush1.msra.mxu0 0.0
      %1082 = vmatprep.subr.mxu0 0.0
      %1083 = vmatpush1.msra.mxu0 0.0
      %1084 = vmatprep.subr.mxu0 0.0
      %1085 = vmatpush1.msra.mxu0 0.0
      %1086 = vmatprep.subr.mxu0 0.0
      %1087 = vmatpush1.msra.mxu0 0.0
      %1088 = vmatprep.subr.mxu0 0.0
      %1089 = vmatpush1.msra.mxu0 0.0
      %1090 = vmatprep.subr.mxu0 0.0
      %1091 = vmatpush1.msra.mxu0 0.0
      %1092 = vmatprep.subr.mxu0 0.0
      %1093 = vmatpush1.msra.mxu0 0.0
      %1094 = vmatprep.subr.mxu0 0.0
      %1095 = vmatpush1.msra.mxu0 0.0
      %1096 = vmatprep.subr.mxu0 0.0
      %1097 = vmatpush1.msra.mxu0 0.0
      %1098 = vmatprep.subr.mxu0 0.0
      %1099 = vmatpush1.msra.mxu0 0.0
      %1100 = vmatprep.subr.mxu0 0.0
      %1101 = vmatpush1.msra.mxu0 0.0
      %1102 = vmatprep.subr.mxu0 0.0
      %1103 = vmatpush1.msra.mxu0 0.0
      %1104 = vmatprep.subr.mxu0 0.0
      %1105 = vmatpush1.msra.mxu0 0.0
      %1106 = vmatprep.subr.mxu0 0.0
      %1107 = vmatpush1.msra.mxu0 0.0
      %1108 = vmatprep.subr.mxu0 0.0
      %1109 = vmatpush1.msra.mxu0 0.0
      %1110 = vmatprep.subr.mxu0 0.0
      %1111 = vmatpush1.msra.mxu0 0.0
      %1112 = vmatprep.subr.mxu0 0.0
      %1113 = vmatpush1.msra.mxu0 0.0
      %1114 = vmatprep.subr.mxu0 0.0
      %1115 = vmatpush1.msra.mxu0 0.0
      %1116 = vmatprep.subr.mxu0 0.0
      %1117 = vmatpush1.msra.mxu0 0.0
      %1118 = vmatprep.subr.mxu0 0.0
      %1119 = vmatpush1.msra.mxu0 0.0
      %1120 = vmatprep.mubr.f32.mxu0 0.0
      %1121 = vmatmul.mubr.f32.gmra.mrb[0].mxu0 %v1045
      %v1122 = vpop.f32.mrb[0].mxu0
      %v1123 = vadd.f32 0.0, %v1122
      %v1124 = vpop.f32.mrb[0].mxu0
      %1125 = vmatprep.mubr.f32.mxu0 0.0
      %1126 = vmatmul.mubr.f32.gmra.mrb[0].mxu0 %v1048
      %v1127 = vpop.f32.mrb[0].mxu0
      %v1128 = vadd.f32 0.0, %v1127
      %v1129 = vpop.f32.mrb[0].mxu0
      %1130 = vmatprep.mubr.f32.mxu0 0.0
      %1131 = vmatmul.mubr.f32.gmra.mrb[0].mxu0 %v1051
      %v1132 = vpop.f32.mrb[0].mxu0
      %v1133 = vadd.f32 0.0, %v1132
      %v1134 = vpop.f32.mrb[0].mxu0
      %1135 = vmatprep.mubr.f32.mxu0 0.0
      %1136 = vmatmul.mubr.f32.gmra.mrb[0].mxu0 %v1054
      %v1137 = vpop.f32.mrb[0].mxu0
      %v1138 = vadd.f32 0.0, %v1137
      %v1139 = vpop.f32.mrb[0].mxu0
      %1140 = vdwg.mxu0
      %1142 = vset.pattern.permute.xlu0 0
      %1143 = vperm.xlu0 %1142, %v1123
      %v1144 = vpop.permute.xlu0 %1143
      %1147 = vset.pattern.permute.xlu0 0
      %1148 = vperm.xlu0 %1147, %v1128
      %v1149 = vpop.permute.xlu0 %1148
      %1152 = vset.pattern.permute.xlu0 0
      %1153 = vperm.xlu0 %1152, %v1133
      %v1154 = vpop.permute.xlu0 %1153
      %1157 = vset.pattern.permute.xlu0 0
      %1158 = vperm.xlu0 %1157, %v1138
      %v1159 = vpop.permute.xlu0 %1158
      %v1161 = vsub.f32 %v855, %v1144
      %v1162 = vsub.f32 %v857, %v1144
      %v1163 = vsub.f32 %v859, %v1149
      %v1164 = vsub.f32 %v861, %v1149
      %v1165 = vsub.f32 %v865, %v1154
      %v1166 = vsub.f32 %v867, %v1154
      %v1167 = vsub.f32 %v869, %v1159
      %v1168 = vsub.f32 %v871, %v1159
      %v1169 = vmul.f32 %v1161, %v1161
      %v1170 = vmul.f32 %v1162, %v1162
      %v1171 = vmul.f32 %v1163, %v1163
      %v1172 = vmul.f32 %v1164, %v1164
      %v1173 = vmul.f32 %v1165, %v1165
      %v1174 = vmul.f32 %v1166, %v1166
      %v1175 = vmul.f32 %v1167, %v1167
      %v1176 = vmul.f32 %v1168, %v1168
      %1177 = vmatprep.subr.mxu0 0.0
      %1178 = vmatpush1.msra.mxu0 1.0
      %1179 = vmatprep.subr.mxu0 0.0
      %1180 = vmatpush1.msra.mxu0 1.0
      %1181 = vmatprep.subr.mxu0 0.0
      %1182 = vmatpush1.msra.mxu0 1.0
      %1183 = vmatprep.subr.mxu0 0.0
      %1184 = vmatpush1.msra.mxu0 1.0
      %1185 = vmatprep.subr.mxu0 0.0
      %1186 = vmatpush1.msra.mxu0 1.0
      %1187 = vmatprep.subr.mxu0 0.0
      %1188 = vmatpush1.msra.mxu0 1.0
      %1189 = vmatprep.subr.mxu0 0.0
      %1190 = vmatpush1.msra.mxu0 1.0
      %1191 = vmatprep.subr.mxu0 0.0
      %1192 = vmatpush1.msra.mxu0 1.0
      %1193 = vmatprep.subr.mxu0 0.0
      %1194 = vmatpush1.msra.mxu0 1.0
      %1195 = vmatprep.subr.mxu0 0.0
      %1196 = vmatpush1.msra.mxu0 1.0
      %1197 = vmatprep.subr.mxu0 0.0
      %1198 = vmatpush1.msra.mxu0 1.0
      %1199 = vmatprep.subr.mxu0 0.0
      %1200 = vmatpush1.msra.mxu0 1.0
      %1201 = vmatprep.subr.mxu0 0.0
      %1202 = vmatpush1.msra.mxu0 1.0
      %1203 = vmatprep.subr.mxu0 0.0
      %1204 = vmatpush1.msra.mxu0 1.0
      %1205 = vmatprep.subr.mxu0 0.0
      %1206 = vmatpush1.msra.mxu0 1.0
      %1207 = vmatprep.subr.mxu0 0.0
      %1208 = vmatpush1.msra.mxu0 1.0
      %1209 = vmatprep.subr.mxu0 0.0
      %1210 = vmatpush1.msra.mxu0 1.0
      %1211 = vmatprep.subr.mxu0 0.0
      %1212 = vmatpush1.msra.mxu0 1.0
      %1213 = vmatprep.subr.mxu0 0.0
      %1214 = vmatpush1.msra.mxu0 1.0
      %1215 = vmatprep.subr.mxu0 0.0
      %1216 = vmatpush1.msra.mxu0 1.0
      %1217 = vmatprep.subr.mxu0 0.0
      %1218 = vmatpush1.msra.mxu0 1.0
      %1219 = vmatprep.subr.mxu0 0.0
      %1220 = vmatpush1.msra.mxu0 1.0
      %1221 = vmatprep.subr.mxu0 0.0
      %1222 = vmatpush1.msra.mxu0 1.0
      %1223 = vmatprep.subr.mxu0 0.0
      %1224 = vmatpush1.msra.mxu0 1.0
      %1225 = vmatprep.subr.mxu0 0.0
      %1226 = vmatpush1.msra.mxu0 1.0
      %1227 = vmatprep.subr.mxu0 0.0
      %1228 = vmatpush1.msra.mxu0 1.0
      %1229 = vmatprep.subr.mxu0 0.0
      %1230 = vmatpush1.msra.mxu0 1.0
      %1231 = vmatprep.subr.mxu0 0.0
      %1232 = vmatpush1.msra.mxu0 1.0
      %1233 = vmatprep.subr.mxu0 0.0
      %1234 = vmatpush1.msra.mxu0 1.0
      %1235 = vmatprep.subr.mxu0 0.0
      %1236 = vmatpush1.msra.mxu0 1.0
      %1237 = vmatprep.subr.mxu0 0.0
      %1238 = vmatpush1.msra.mxu0 1.0
      %1239 = vmatprep.subr.mxu0 0.0
      %1240 = vmatpush1.msra.mxu0 1.0
      %1241 = vmatprep.mubr.f32.mxu0 %v1170
      %1242 = vmatmul.mubr.f32.gmra.mrb[0].mxu0 %v1169
      %v1243 = vpop.f32.mrb[0].mxu0
      %v1244 = vadd.f32 0.0, %v1243
      %v1245 = vpop.f32.mrb[0].mxu0
      %1246 = vmatprep.mubr.f32.mxu0 %v1172
      %1247 = vmatmul.mubr.f32.gmra.mrb[0].mxu0 %v1171
      %v1248 = vpop.f32.mrb[0].mxu0
      %v1249 = vadd.f32 0.0, %v1248
      %v1250 = vpop.f32.mrb[0].mxu0
      %1251 = vmatprep.mubr.f32.mxu0 %v1174
      %1252 = vmatmul.mubr.f32.gmra.mrb[0].mxu0 %v1173
      %v1253 = vpop.f32.mrb[0].mxu0
      %v1254 = vadd.f32 0.0, %v1253
      %v1255 = vpop.f32.mrb[0].mxu0
      %1256 = vmatprep.mubr.f32.mxu0 %v1176
      %1257 = vmatmul.mubr.f32.gmra.mrb[0].mxu0 %v1175
      %v1258 = vpop.f32.mrb[0].mxu0
      %v1259 = vadd.f32 0.0, %v1258
      %v1260 = vpop.f32.mrb[0].mxu0
      %1261 = vdwg.mxu0
      %1262 = vmatprep.subr.mxu0 0.0
      %1263 = vmatpush1.msra.mxu0 %v1244
      %1264 = vmatprep.subr.mxu0 0.0
      %1265 = vmatpush1.msra.mxu0 %v1249
      %1266 = vmatprep.subr.mxu0 0.0
      %1267 = vmatpush1.msra.mxu0 %v1254
      %1268 = vmatprep.subr.mxu0 0.0
      %1269 = vmatpush1.msra.mxu0 %v1259
      %1270 = vmatprep.subr.mxu0 0.0
      %1271 = vmatpush1.msra.mxu0 0.0
      %1272 = vmatprep.subr.mxu0 0.0
      %1273 = vmatpush1.msra.mxu0 0.0
      %1274 = vmatprep.subr.mxu0 0.0
      %1275 = vmatpush1.msra.mxu0 0.0
      %1276 = vmatprep.subr.mxu0 0.0
      %1277 = vmatpush1.msra.mxu0 0.0
      %1278 = vmatprep.subr.mxu0 0.0
      %1279 = vmatpush1.msra.mxu0 0.0
      %1280 = vmatprep.subr.mxu0 0.0
      %1281 = vmatpush1.msra.mxu0 0.0
      %1282 = vmatprep.subr.mxu0 0.0
      %1283 = vmatpush1.msra.mxu0 0.0
      %1284 = vmatprep.subr.mxu0 0.0
      %1285 = vmatpush1.msra.mxu0 0.0
      %1286 = vmatprep.subr.mxu0 0.0
      %1287 = vmatpush1.msra.mxu0 0.0
      %1288 = vmatprep.subr.mxu0 0.0
      %1289 = vmatpush1.msra.mxu0 0.0
      %1290 = vmatprep.subr.mxu0 0.0
      %1291 = vmatpush1.msra.mxu0 0.0
      %1292 = vmatprep.subr.mxu0 0.0
      %1293 = vmatpush1.msra.mxu0 0.0
      %1294 = vmatprep.subr.mxu0 0.0
      %1295 = vmatpush1.msra.mxu0 0.0
      %1296 = vmatprep.subr.mxu0 0.0
      %1297 = vmatpush1.msra.mxu0 0.0
      %1298 = vmatprep.subr.mxu0 0.0
      %1299 = vmatpush1.msra.mxu0 0.0
      %1300 = vmatprep.subr.mxu0 0.0
      %1301 = vmatpush1.msra.mxu0 0.0
      %1302 = vmatprep.subr.mxu0 0.0
      %1303 = vmatpush1.msra.mxu0 0.0
      %1304 = vmatprep.subr.mxu0 0.0
      %1305 = vmatpush1.msra.mxu0 0.0
      %1306 = vmatprep.subr.mxu0 0.0
      %1307 = vmatpush1.msra.mxu0 0.0
      %1308 = vmatprep.subr.mxu0 0.0
      %1309 = vmatpush1.msra.mxu0 0.0
      %1310 = vmatprep.subr.mxu0 0.0
      %1311 = vmatpush1.msra.mxu0 0.0
      %1312 = vmatprep.subr.mxu0 0.0
      %1313 = vmatpush1.msra.mxu0 0.0
      %1314 = vmatprep.subr.mxu0 0.0
      %1315 = vmatpush1.msra.mxu0 0.0
      %1316 = vmatprep.subr.mxu0 0.0
      %1317 = vmatpush1.msra.mxu0 0.0
      %1318 = vmatprep.subr.mxu0 0.0
      %1319 = vmatpush1.msra.mxu0 0.0
      %1320 = vmatprep.subr.mxu0 0.0
      %1321 = vmatpush1.msra.mxu0 0.0
      %1322 = vmatprep.subr.mxu0 0.0
      %1323 = vmatpush1.msra.mxu0 0.0
      %1324 = vmatprep.subr.mxu0 0.0
      %1325 = vmatpush1.msra.mxu0 0.0
      %1326 = vmatprep.mubr.f32.mxu0 0.0
      %1327 = vmatmul.mubr.f32.gmra.mrb[0].mxu0 %v965
      %v1328 = vpop.f32.mrb[0].mxu0
      %v1329 = vadd.f32 0.0, %v1328
      %v1330 = vpop.f32.mrb[0].mxu0
      %1331 = vdwg.mxu0
      %v1332 = vmul.f32 %v1329, %v1037
      %v1333 = vadd.f32 %v1332, 1e-05
      %v1334 = vrsqrt.pop %v1333
      %1335 = vmatprep.subr.mxu0 0.0
      %1336 = vmatpush1.msra.mxu0 %v1334
      %1337 = vmatprep.subr.mxu0 0.0
      %1338 = vmatpush1.msra.mxu0 0.0
      %1339 = vmatprep.subr.mxu0 0.0
      %1340 = vmatpush1.msra.mxu0 0.0
      %1341 = vmatprep.subr.mxu0 0.0
      %1342 = vmatpush1.msra.mxu0 0.0
      %1343 = vmatprep.subr.mxu0 0.0
      %1344 = vmatpush1.msra.mxu0 0.0
      %1345 = vmatprep.subr.mxu0 0.0
      %1346 = vmatpush1.msra.mxu0 0.0
      %1347 = vmatprep.subr.mxu0 0.0
      %1348 = vmatpush1.msra.mxu0 0.0
      %1349 = vmatprep.subr.mxu0 0.0
      %1350 = vmatpush1.msra.mxu0 0.0
      %1351 = vmatprep.subr.mxu0 0.0
      %1352 = vmatpush1.msra.mxu0 0.0
      %1353 = vmatprep.subr.mxu0 0.0
      %1354 = vmatpush1.msra.mxu0 0.0
      %1355 = vmatprep.subr.mxu0 0.0
      %1356 = vmatpush1.msra.mxu0 0.0
      %1357 = vmatprep.subr.mxu0 0.0
      %1358 = vmatpush1.msra.mxu0 0.0
      %1359 = vmatprep.subr.mxu0 0.0
      %1360 = vmatpush1.msra.mxu0 0.0
      %1361 = vmatprep.subr.mxu0 0.0
      %1362 = vmatpush1.msra.mxu0 0.0
      %1363 = vmatprep.subr.mxu0 0.0
      %1364 = vmatpush1.msra.mxu0 0.0
      %1365 = vmatprep.subr.mxu0 0.0
      %1366 = vmatpush1.msra.mxu0 0.0
      %1367 = vmatprep.subr.mxu0 0.0
      %1368 = vmatpush1.msra.mxu0 0.0
      %1369 = vmatprep.subr.mxu0 0.0
      %1370 = vmatpush1.msra.mxu0 0.0
      %1371 = vmatprep.subr.mxu0 0.0
      %1372 = vmatpush1.msra.mxu0 0.0
      %1373 = vmatprep.subr.mxu0 0.0
      %1374 = vmatpush1.msra.mxu0 0.0
      %1375 = vmatprep.subr.mxu0 0.0
      %1376 = vmatpush1.msra.mxu0 0.0
      %1377 = vmatprep.subr.mxu0 0.0
      %1378 = vmatpush1.msra.mxu0 0.0
      %1379 = vmatprep.subr.mxu0 0.0
      %1380 = vmatpush1.msra.mxu0 0.0
      %1381 = vmatprep.subr.mxu0 0.0
      %1382 = vmatpush1.msra.mxu0 0.0
      %1383 = vmatprep.subr.mxu0 0.0
      %1384 = vmatpush1.msra.mxu0 0.0
      %1385 = vmatprep.subr.mxu0 0.0
      %1386 = vmatpush1.msra.mxu0 0.0
      %1387 = vmatprep.subr.mxu0 0.0
      %1388 = vmatpush1.msra.mxu0 0.0
      %1389 = vmatprep.subr.mxu0 0.0
      %1390 = vmatpush1.msra.mxu0 0.0
      %1391 = vmatprep.subr.mxu0 0.0
      %1392 = vmatpush1.msra.mxu0 0.0
      %1393 = vmatprep.subr.mxu0 0.0
      %1394 = vmatpush1.msra.mxu0 0.0
      %1395 = vmatprep.subr.mxu0 0.0
      %1396 = vmatpush1.msra.mxu0 0.0
      %1397 = vmatprep.subr.mxu0 0.0
      %1398 = vmatpush1.msra.mxu0 0.0
      %1399 = vmatprep.mubr.f32.mxu0 0.0
      %1400 = vmatmul.mubr.f32.gmra.mrb[0].mxu0 %v1045
      %v1401 = vpop.f32.mrb[0].mxu0
      %v1402 = vadd.f32 0.0, %v1401
      %v1403 = vpop.f32.mrb[0].mxu0
      %1404 = vmatprep.mubr.f32.mxu0 0.0
      %1405 = vmatmul.mubr.f32.gmra.mrb[0].mxu0 %v1048
      %v1406 = vpop.f32.mrb[0].mxu0
      %v1407 = vadd.f32 0.0, %v1406
      %v1408 = vpop.f32.mrb[0].mxu0
      %1409 = vmatprep.mubr.f32.mxu0 0.0
      %1410 = vmatmul.mubr.f32.gmra.mrb[0].mxu0 %v1051
      %v1411 = vpop.f32.mrb[0].mxu0
      %v1412 = vadd.f32 0.0, %v1411
      %v1413 = vpop.f32.mrb[0].mxu0
      %1414 = vmatprep.mubr.f32.mxu0 0.0
      %1415 = vmatmul.mubr.f32.gmra.mrb[0].mxu0 %v1054
      %v1416 = vpop.f32.mrb[0].mxu0
      %v1417 = vadd.f32 0.0, %v1416
      %v1418 = vpop.f32.mrb[0].mxu0
      %1419 = vdwg.mxu0
      %1421 = vset.pattern.permute.xlu0 0
      %1422 = vperm.xlu0 %1421, %v1402
      %v1423 = vpop.permute.xlu0 %1422
      %1426 = vset.pattern.permute.xlu0 0
      %1427 = vperm.xlu0 %1426, %v1407
      %v1428 = vpop.permute.xlu0 %1427
      %1431 = vset.pattern.permute.xlu0 0
      %1432 = vperm.xlu0 %1431, %v1412
      %v1433 = vpop.permute.xlu0 %1432
      %1436 = vset.pattern.permute.xlu0 0
      %1437 = vperm.xlu0 %1436, %v1417
      %v1438 = vpop.permute.xlu0 %1437
      %v1440 = vmul.f32 %v1161, %v1423
      %v1441 = vmul.f32 %v1162, %v1423
      %v1442 = vmul.f32 %v1163, %v1428
      %v1443 = vmul.f32 %v1164, %v1428
      %v1444 = vmul.f32 %v1165, %v1433
      %v1445 = vmul.f32 %v1166, %v1433
      %v1446 = vmul.f32 %v1167, %v1438
      %v1447 = vmul.f32 %v1168, %v1438
      %1449 = vset.pattern.permute.xlu0 1
      %1450 = vperm.xlu0 %1449, %v873
      %v1451 = vpop.permute.xlu0 %1450
      %1454 = vset.pattern.permute.xlu0 1
      %1455 = vperm.xlu0 %1454, %v874
      %v1456 = vpop.permute.xlu0 %1455
      %1459 = vset.pattern.permute.xlu0 1
      %1460 = vperm.xlu0 %1459, %v875
      %v1461 = vpop.permute.xlu0 %1460
      %1464 = vset.pattern.permute.xlu0 1
      %1465 = vperm.xlu0 %1464, %v876
      %v1466 = vpop.permute.xlu0 %1465
      %v1468 = vmul.f32 %v1440, %v1451
      %v1469 = vmul.f32 %v1441, %v1451
      %v1470 = vmul.f32 %v1442, %v1456
      %v1471 = vmul.f32 %v1443, %v1456
      %v1472 = vmul.f32 %v1444, %v1461
      %v1473 = vmul.f32 %v1445, %v1461
      %v1474 = vmul.f32 %v1446, %v1466
      %v1475 = vmul.f32 %v1447, %v1466
      %1476 = vset.pattern.permute.xlu0 2
      %1477 = vperm.xlu0 %1476, %v873
      %v1478 = vpop.permute.xlu0 %1477
      %1480 = vset.pattern.permute.xlu0 2
      %1481 = vperm.xlu0 %1480, %v874
      %v1482 = vpop.permute.xlu0 %1481
      %1484 = vset.pattern.permute.xlu0 2
      %1485 = vperm.xlu0 %1484, %v875
      %v1486 = vpop.permute.xlu0 %1485
      %1488 = vset.pattern.permute.xlu0 2
      %1489 = vperm.xlu0 %1488, %v876
      %v1490 = vpop.permute.xlu0 %1489
      %v1492 = vadd.f32 %v1468, %v1478
      %v1493 = vadd.f32 %v1469, %v1478
      %v1494 = vadd.f32 %v1470, %v1482
      %v1495 = vadd.f32 %v1471, %v1482
      %v1496 = vadd.f32 %v1472, %v1486
      %v1497 = vadd.f32 %v1473, %v1486
      %v1498 = vadd.f32 %v1474, %v1490
      %v1499 = vadd.f32 %v1475, %v1490
      %v1500 = vxor.u32 %v1492, 2147483648
      %v1501 = vxor.u32 %v1493, 2147483648
      %v1502 = vxor.u32 %v1494, 2147483648
      %v1503 = vxor.u32 %v1495, 2147483648
      %v1504 = vxor.u32 %v1496, 2147483648
      %v1505 = vxor.u32 %v1497, 2147483648
      %v1506 = vxor.u32 %v1498, 2147483648
      %v1507 = vxor.u32 %v1499, 2147483648
      %v1508 = vmul.f32 %v1500, 1.442695
      %v1509 = vpow.pop %v1508
      %v1510 = vmul.f32 %v1501, 1.442695
      %v1511 = vpow.pop %v1510
      %v1512 = vmul.f32 %v1502, 1.442695
      %v1513 = vpow.pop %v1512
      %v1514 = vmul.f32 %v1503, 1.442695
      %v1515 = vpow.pop %v1514
      %v1516 = vmul.f32 %v1504, 1.442695
      %v1517 = vpow.pop %v1516
      %v1518 = vmul.f32 %v1505, 1.442695
      %v1519 = vpow.pop %v1518
      %v1520 = vmul.f32 %v1506, 1.442695
      %v1521 = vpow.pop %v1520
      %v1522 = vmul.f32 %v1507, 1.442695
      %v1523 = vpow.pop %v1522
      %v1524 = vadd.f32 %v1509, 1.0
      %v1525 = vadd.f32 %v1511, 1.0
      %v1526 = vadd.f32 %v1513, 1.0
      %v1527 = vadd.f32 %v1515, 1.0
      %v1528 = vadd.f32 %v1517, 1.0
      %v1529 = vadd.f32 %v1519, 1.0
      %v1530 = vadd.f32 %v1521, 1.0
      %v1531 = vadd.f32 %v1523, 1.0
      %v1532 = vrcp.pop %v1524
      %v1533 = vmul.f32 1.0, %v1532
      %v1534 = vrcp.pop %v1525
      %v1535 = vmul.f32 1.0, %v1534
      %v1536 = vrcp.pop %v1526
      %v1537 = vmul.f32 1.0, %v1536
      %v1538 = vrcp.pop %v1527
      %v1539 = vmul.f32 1.0, %v1538
      %v1540 = vrcp.pop %v1528
      %v1541 = vmul.f32 1.0, %v1540
      %v1542 = vrcp.pop %v1529
      %v1543 = vmul.f32 1.0, %v1542
      %v1544 = vrcp.pop %v1530
      %v1545 = vmul.f32 1.0, %v1544
      %v1546 = vrcp.pop %v1531
      %v1547 = vmul.f32 1.0, %v1546
      %v1548 = vmul.f32 %v1492, %v1533
      %v1549 = vmul.f32 %v1493, %v1535
      %v1550 = vmul.f32 %v1494, %v1537
      %v1551 = vmul.f32 %v1495, %v1539
      %v1552 = vmul.f32 %v1496, %v1541
      %v1553 = vmul.f32 %v1497, %v1543
      %v1554 = vmul.f32 %v1498, %v1545
      %v1555 = vmul.f32 %v1499, %v1547
      %v1556 = vld [vmem:[%s5] sm:$0xff]
      %v1557 = vld [vmem:[%s5 + $0x8] sm:$0xf]
      %v1558 = vld [vmem:[%s5 + $0xc] sm:$0xff]
      %v1559 = vld [vmem:[%s5 + $0x14] sm:$0xf]
      %v1560 = vld [vmem:[%s5 + $0x18] sm:$0xff]
      %v1561 = vld [vmem:[%s5 + $0x20] sm:$0xf]
      %v1562 = vld [vmem:[%s5 + $0x24] sm:$0xff]
      %v1563 = vld [vmem:[%s5 + $0x2c] sm:$0xf]
      %1564 = vrot.lane.b32.xlu0 %v1548, 17
      %v1565 = vpop.permute.xlu0 %1564
      %1566 = vrot.lane.b32.xlu0 %v1550, 17
      %v1567 = vpop.permute.xlu0 %1566
      %1568 = vrot.lane.b32.xlu0 %v1552, 17
      %v1569 = vpop.permute.xlu0 %1568
      %1570 = vrot.lane.b32.xlu0 %v1554, 17
      %v1571 = vpop.permute.xlu0 %1570
      %1572 = vrot.lane.b32.xlu0 %v1549, 17
      %v1573 = vpop.permute.xlu0 %1572
      %1574 = vrot.lane.b32.xlu0 %v1551, 17
      %v1575 = vpop.permute.xlu0 %1574
      %1576 = vrot.lane.b32.xlu0 %v1553, 17
      %v1577 = vpop.permute.xlu0 %1576
      %1578 = vrot.lane.b32.xlu0 %v1555, 17
      %v1579 = vpop.permute.xlu0 %1578
      %v1580 = vsel %vm490, %v1565, %v1573
      %v1581 = vsel %vm490, %v1567, %v1575
      %v1582 = vsel %vm490, %v1569, %v1577
      %v1583 = vsel %vm490, %v1571, %v1579
      %v1584 = vsel %vm490, %v1573, %v1565
      %v1585 = vsel %vm490, %v1575, %v1567
      %v1586 = vsel %vm490, %v1577, %v1569
      %v1587 = vsel %vm490, %v1579, %v1571
      %v1588 = vld [vmem:[%s9] ss:$8 sm:$0x3]
      %v1590 = vlaneseq
      %v1591 = vshrl.u32 %v1590, 7
      %v1592 = vsub.s32 0, %v1591
      %v1593 = vrot.slane %v1588, %v1592
      %v1594 = vlaneseq
      %v1595 = vshrl.u32 %v1594, 7
      %v1596 = vsub.s32 1, %v1595
      %v1597 = vrot.slane %v1588, %v1596
      %v1600 = vmul.f32 %v1584, %v1593
      %v1601 = vmul.f32 %v1580, %v1597
      %v1602 = vmul.f32 %v1585, %v1593
      %v1603 = vmul.f32 %v1581, %v1597
      %v1604 = vmul.f32 %v1586, %v1593
      %v1605 = vmul.f32 %v1582, %v1597
      %v1606 = vmul.f32 %v1587, %v1593
      %v1607 = vmul.f32 %v1583, %v1597
      %v1608 = vpack.c.bf16 %v1602, %v1600
      %v1609 = vpack.c.bf16 %v1603, %v1601
      %v1610 = vpack.c.bf16 %v1606, %v1604
      %v1611 = vpack.c.bf16 %v1607, %v1605
      %1612 = vst [vmem:[#allocation3] sm:$0xff] %v1608
      %1613 = vst [vmem:[#allocation3 + $0x8] sm:$0xff] %v1609
      %1614 = vst [vmem:[#allocation3 + $0x10] sm:$0xff] %v1610
      %1615 = vst [vmem:[#allocation3 + $0x18] sm:$0xff] %v1611
      %1616 = vrot.lane.b32.xlu0 %v1548, 16
      %v1617 = vpop.permute.xlu0 %1616
      %1618 = vrot.lane.b32.xlu0 %v1550, 16
      %v1619 = vpop.permute.xlu0 %1618
      %1620 = vrot.lane.b32.xlu0 %v1552, 16
      %v1621 = vpop.permute.xlu0 %1620
      %1622 = vrot.lane.b32.xlu0 %v1554, 16
      %v1623 = vpop.permute.xlu0 %1622
      %1624 = vrot.lane.b32.xlu0 %v1549, 16
      %v1625 = vpop.permute.xlu0 %1624
      %1626 = vrot.lane.b32.xlu0 %v1551, 16
      %v1627 = vpop.permute.xlu0 %1626
      %1628 = vrot.lane.b32.xlu0 %v1553, 16
      %v1629 = vpop.permute.xlu0 %1628
      %1630 = vrot.lane.b32.xlu0 %v1555, 16
      %v1631 = vpop.permute.xlu0 %1630
      %v1632 = vsel %vm520, %v1617, %v1625
      %v1633 = vsel %vm520, %v1619, %v1627
      %v1634 = vsel %vm520, %v1621, %v1629
      %v1635 = vsel %vm520, %v1623, %v1631
      %v1636 = vsel %vm520, %v1625, %v1617
      %v1637 = vsel %vm520, %v1627, %v1619
      %v1638 = vsel %vm520, %v1629, %v1621
      %v1639 = vsel %vm520, %v1631, %v1623
      %v1640 = vld [vmem:[%s523] ss:$8 sm:$0x3]
      %v1642 = vlaneseq
      %v1643 = vshrl.u32 %v1642, 7
      %v1644 = vsub.s32 0, %v1643
      %v1645 = vrot.slane %v1640, %v1644
      %v1646 = vlaneseq
      %v1647 = vshrl.u32 %v1646, 7
      %v1648 = vsub.s32 1, %v1647
      %v1649 = vrot.slane %v1640, %v1648
      %v1652 = vmul.f32 %v1636, %v1645
      %v1653 = vmul.f32 %v1632, %v1649
      %v1654 = vmul.f32 %v1637, %v1645
      %v1655 = vmul.f32 %v1633, %v1649
      %v1656 = vmul.f32 %v1638, %v1645
      %v1657 = vmul.f32 %v1634, %v1649
      %v1658 = vmul.f32 %v1639, %v1645
      %v1659 = vmul.f32 %v1635, %v1649
      %v1660 = vpack.c.bf16 %v1654, %v1652
      %v1661 = vpack.c.bf16 %v1655, %v1653
      %v1662 = vpack.c.bf16 %v1658, %v1656
      %v1663 = vpack.c.bf16 %v1659, %v1657
      %1664 = vst [vmem:[#allocation3 + $0x20] sm:$0xff] %v1660
      %1665 = vst [vmem:[#allocation3 + $0x28] sm:$0xff] %v1661
      %1666 = vst [vmem:[#allocation3 + $0x30] sm:$0xff] %v1662
      %1667 = vst [vmem:[#allocation3 + $0x38] sm:$0xff] %v1663
      %1668 = vrot.lane.b32.xlu0 %v1548, 15
      %v1669 = vpop.permute.xlu0 %1668
      %1670 = vrot.lane.b32.xlu0 %v1550, 15
      %v1671 = vpop.permute.xlu0 %1670
      %1672 = vrot.lane.b32.xlu0 %v1552, 15
      %v1673 = vpop.permute.xlu0 %1672
      %1674 = vrot.lane.b32.xlu0 %v1554, 15
      %v1675 = vpop.permute.xlu0 %1674
      %1676 = vrot.lane.b32.xlu0 %v1549, 15
      %v1677 = vpop.permute.xlu0 %1676
      %1678 = vrot.lane.b32.xlu0 %v1551, 15
      %v1679 = vpop.permute.xlu0 %1678
      %1680 = vrot.lane.b32.xlu0 %v1553, 15
      %v1681 = vpop.permute.xlu0 %1680
      %1682 = vrot.lane.b32.xlu0 %v1555, 15
      %v1683 = vpop.permute.xlu0 %1682
      %v1684 = vsel %vm552, %v1669, %v1677
      %v1685 = vsel %vm552, %v1671, %v1679
      %v1686 = vsel %vm552, %v1673, %v1681
      %v1687 = vsel %vm552, %v1675, %v1683
      %v1688 = vsel %vm552, %v1677, %v1669
      %v1689 = vsel %vm552, %v1679, %v1671
      %v1690 = vsel %vm552, %v1681, %v1673
      %v1691 = vsel %vm552, %v1683, %v1675
      %v1692 = vld [vmem:[%s555] ss:$8 sm:$0x3]
      %v1694 = vlaneseq
      %v1695 = vshrl.u32 %v1694, 7
      %v1696 = vsub.s32 0, %v1695
      %v1697 = vrot.slane %v1692, %v1696
      %v1698 = vlaneseq
      %v1699 = vshrl.u32 %v1698, 7
      %v1700 = vsub.s32 1, %v1699
      %v1701 = vrot.slane %v1692, %v1700
      %v1704 = vmul.f32 %v1688, %v1697
      %v1705 = vmul.f32 %v1684, %v1701
      %v1706 = vmul.f32 %v1689, %v1697
      %v1707 = vmul.f32 %v1685, %v1701
      %v1708 = vmul.f32 %v1690, %v1697
      %v1709 = vmul.f32 %v1686, %v1701
      %v1710 = vmul.f32 %v1691, %v1697
      %v1711 = vmul.f32 %v1687, %v1701
      %v1712 = vpack.c.bf16 %v1706, %v1704
      %v1713 = vpack.c.bf16 %v1707, %v1705
      %v1714 = vpack.c.bf16 %v1710, %v1708
      %v1715 = vpack.c.bf16 %v1711, %v1709
      %1716 = vst [vmem:[#allocation3 + $0x40] sm:$0xff] %v1712
      %1717 = vst [vmem:[#allocation3 + $0x48] sm:$0xff] %v1713
      %1718 = vst [vmem:[#allocation3 + $0x50] sm:$0xff] %v1714
      %1719 = vst [vmem:[#allocation3 + $0x58] sm:$0xff] %v1715
      %1720 = vrot.lane.b32.xlu0 %v1548, 1
      %v1721 = vpop.permute.xlu0 %1720
      %1722 = vrot.lane.b32.xlu0 %v1550, 1
      %v1723 = vpop.permute.xlu0 %1722
      %1724 = vrot.lane.b32.xlu0 %v1552, 1
      %v1725 = vpop.permute.xlu0 %1724
      %1726 = vrot.lane.b32.xlu0 %v1554, 1
      %v1727 = vpop.permute.xlu0 %1726
      %1728 = vrot.lane.b32.xlu0 %v1549, 1
      %v1729 = vpop.permute.xlu0 %1728
      %1730 = vrot.lane.b32.xlu0 %v1551, 1
      %v1731 = vpop.permute.xlu0 %1730
      %1732 = vrot.lane.b32.xlu0 %v1553, 1
      %v1733 = vpop.permute.xlu0 %1732
      %1734 = vrot.lane.b32.xlu0 %v1555, 1
      %v1735 = vpop.permute.xlu0 %1734
      %v1736 = vsel %vm583, %v1721, %v1729
      %v1737 = vsel %vm583, %v1723, %v1731
      %v1738 = vsel %vm583, %v1725, %v1733
      %v1739 = vsel %vm583, %v1727, %v1735
      %v1740 = vsel %vm583, %v1729, %v1721
      %v1741 = vsel %vm583, %v1731, %v1723
      %v1742 = vsel %vm583, %v1733, %v1725
      %v1743 = vsel %vm583, %v1735, %v1727
      %v1744 = vld [vmem:[%s586] ss:$8 sm:$0x3]
      %v1746 = vlaneseq
      %v1747 = vshrl.u32 %v1746, 7
      %v1748 = vsub.s32 0, %v1747
      %v1749 = vrot.slane %v1744, %v1748
      %v1750 = vlaneseq
      %v1751 = vshrl.u32 %v1750, 7
      %v1752 = vsub.s32 1, %v1751
      %v1753 = vrot.slane %v1744, %v1752
      %v1756 = vmul.f32 %v1740, %v1749
      %v1757 = vmul.f32 %v1736, %v1753
      %v1758 = vmul.f32 %v1741, %v1749
      %v1759 = vmul.f32 %v1737, %v1753
      %v1760 = vmul.f32 %v1742, %v1749
      %v1761 = vmul.f32 %v1738, %v1753
      %v1762 = vmul.f32 %v1743, %v1749
      %v1763 = vmul.f32 %v1739, %v1753
      %v1764 = vpack.c.bf16 %v1758, %v1756
      %v1765 = vpack.c.bf16 %v1759, %v1757
      %v1766 = vpack.c.bf16 %v1762, %v1760
      %v1767 = vpack.c.bf16 %v1763, %v1761
      %1768 = vst [vmem:[#allocation3 + $0x60] sm:$0xff] %v1764
      %1769 = vst [vmem:[#allocation3 + $0x68] sm:$0xff] %v1765
      %1770 = vst [vmem:[#allocation3 + $0x70] sm:$0xff] %v1766
      %1771 = vst [vmem:[#allocation3 + $0x78] sm:$0xff] %v1767
      %v1772 = vpack.c.bf16 %v1550, %v1548
      %v1773 = vpack.c.bf16 %v1551, %v1549
      %v1774 = vpack.c.bf16 %v1554, %v1552
      %v1775 = vpack.c.bf16 %v1555, %v1553
      %1776 = vst [vmem:[#allocation3 + $0x80] sm:$0xff] %v1772
      %1777 = vst [vmem:[#allocation3 + $0x88] sm:$0xff] %v1773
      %1778 = vst [vmem:[#allocation3 + $0x90] sm:$0xff] %v1774
      %1779 = vst [vmem:[#allocation3 + $0x98] sm:$0xff] %v1775
      %1780 = vrot.lane.b32.xlu0 %v1548, 127
      %v1781 = vpop.permute.xlu0 %1780
      %1782 = vrot.lane.b32.xlu0 %v1550, 127
      %v1783 = vpop.permute.xlu0 %1782
      %1784 = vrot.lane.b32.xlu0 %v1552, 127
      %v1785 = vpop.permute.xlu0 %1784
      %1786 = vrot.lane.b32.xlu0 %v1554, 127
      %v1787 = vpop.permute.xlu0 %1786
      %1788 = vrot.lane.b32.xlu0 %v1549, 127
      %v1789 = vpop.permute.xlu0 %1788
      %1790 = vrot.lane.b32.xlu0 %v1551, 127
      %v1791 = vpop.permute.xlu0 %1790
      %1792 = vrot.lane.b32.xlu0 %v1553, 127
      %v1793 = vpop.permute.xlu0 %1792
      %1794 = vrot.lane.b32.xlu0 %v1555, 127
      %v1795 = vpop.permute.xlu0 %1794
      %v1796 = vsel %vm624, %v1781, %v1789
      %v1797 = vsel %vm624, %v1783, %v1791
      %v1798 = vsel %vm624, %v1785, %v1793
      %v1799 = vsel %vm624, %v1787, %v1795
      %v1800 = vsel %vm624, %v1789, %v1781
      %v1801 = vsel %vm624, %v1791, %v1783
      %v1802 = vsel %vm624, %v1793, %v1785
      %v1803 = vsel %vm624, %v1795, %v1787
      %v1804 = vld [vmem:[%s627] ss:$8 sm:$0x3]
      %v1806 = vlaneseq
      %v1807 = vshrl.u32 %v1806, 7
      %v1808 = vsub.s32 0, %v1807
      %v1809 = vrot.slane %v1804, %v1808
      %v1810 = vlaneseq
      %v1811 = vshrl.u32 %v1810, 7
      %v1812 = vsub.s32 1, %v1811
      %v1813 = vrot.slane %v1804, %v1812
      %v1816 = vmul.f32 %v1796, %v1809
      %v1817 = vmul.f32 %v1800, %v1813
      %v1818 = vmul.f32 %v1797, %v1809
      %v1819 = vmul.f32 %v1801, %v1813
      %v1820 = vmul.f32 %v1798, %v1809
      %v1821 = vmul.f32 %v1802, %v1813
      %v1822 = vmul.f32 %v1799, %v1809
      %v1823 = vmul.f32 %v1803, %v1813
      %v1824 = vpack.c.bf16 %v1818, %v1816
      %v1825 = vpack.c.bf16 %v1819, %v1817
      %v1826 = vpack.c.bf16 %v1822, %v1820
      %v1827 = vpack.c.bf16 %v1823, %v1821
      %1828 = vst [vmem:[#allocation3 + $0xa0] sm:$0xff] %v1824
      %1829 = vst [vmem:[#allocation3 + $0xa8] sm:$0xff] %v1825
      %1830 = vst [vmem:[#allocation3 + $0xb0] sm:$0xff] %v1826
      %1831 = vst [vmem:[#allocation3 + $0xb8] sm:$0xff] %v1827
      %1832 = vrot.lane.b32.xlu0 %v1548, 113
      %v1833 = vpop.permute.xlu0 %1832
      %1834 = vrot.lane.b32.xlu0 %v1550, 113
      %v1835 = vpop.permute.xlu0 %1834
      %1836 = vrot.lane.b32.xlu0 %v1552, 113
      %v1837 = vpop.permute.xlu0 %1836
      %1838 = vrot.lane.b32.xlu0 %v1554, 113
      %v1839 = vpop.permute.xlu0 %1838
      %1840 = vrot.lane.b32.xlu0 %v1549, 113
      %v1841 = vpop.permute.xlu0 %1840
      %1842 = vrot.lane.b32.xlu0 %v1551, 113
      %v1843 = vpop.permute.xlu0 %1842
      %1844 = vrot.lane.b32.xlu0 %v1553, 113
      %v1845 = vpop.permute.xlu0 %1844
      %1846 = vrot.lane.b32.xlu0 %v1555, 113
      %v1847 = vpop.permute.xlu0 %1846
      %v1848 = vsel %vm656, %v1833, %v1841
      %v1849 = vsel %vm656, %v1835, %v1843
      %v1850 = vsel %vm656, %v1837, %v1845
      %v1851 = vsel %vm656, %v1839, %v1847
      %v1852 = vsel %vm656, %v1841, %v1833
      %v1853 = vsel %vm656, %v1843, %v1835
      %v1854 = vsel %vm656, %v1845, %v1837
      %v1855 = vsel %vm656, %v1847, %v1839
      %v1856 = vld [vmem:[%s659] ss:$8 sm:$0x3]
      %v1858 = vlaneseq
      %v1859 = vshrl.u32 %v1858, 7
      %v1860 = vsub.s32 0, %v1859
      %v1861 = vrot.slane %v1856, %v1860
      %v1862 = vlaneseq
      %v1863 = vshrl.u32 %v1862, 7
      %v1864 = vsub.s32 1, %v1863
      %v1865 = vrot.slane %v1856, %v1864
      %v1868 = vmul.f32 %v1848, %v1861
      %v1869 = vmul.f32 %v1852, %v1865
      %v1870 = vmul.f32 %v1849, %v1861
      %v1871 = vmul.f32 %v1853, %v1865
      %v1872 = vmul.f32 %v1850, %v1861
      %v1873 = vmul.f32 %v1854, %v1865
      %v1874 = vmul.f32 %v1851, %v1861
      %v1875 = vmul.f32 %v1855, %v1865
      %v1876 = vpack.c.bf16 %v1870, %v1868
      %v1877 = vpack.c.bf16 %v1871, %v1869
      %v1878 = vpack.c.bf16 %v1874, %v1872
      %v1879 = vpack.c.bf16 %v1875, %v1873
      %1880 = vst [vmem:[#allocation3 + $0xc0] sm:$0xff] %v1876
      %1881 = vst [vmem:[#allocation3 + $0xc8] sm:$0xff] %v1877
      %1882 = vst [vmem:[#allocation3 + $0xd0] sm:$0xff] %v1878
      %1883 = vst [vmem:[#allocation3 + $0xd8] sm:$0xff] %v1879
      %1884 = vrot.lane.b32.xlu0 %v1548, 112
      %v1885 = vpop.permute.xlu0 %1884
      %1886 = vrot.lane.b32.xlu0 %v1550, 112
      %v1887 = vpop.permute.xlu0 %1886
      %1888 = vrot.lane.b32.xlu0 %v1552, 112
      %v1889 = vpop.permute.xlu0 %1888
      %1890 = vrot.lane.b32.xlu0 %v1554, 112
      %v1891 = vpop.permute.xlu0 %1890
      %1892 = vrot.lane.b32.xlu0 %v1549, 112
      %v1893 = vpop.permute.xlu0 %1892
      %1894 = vrot.lane.b32.xlu0 %v1551, 112
      %v1895 = vpop.permute.xlu0 %1894
      %1896 = vrot.lane.b32.xlu0 %v1553, 112
      %v1897 = vpop.permute.xlu0 %1896
      %1898 = vrot.lane.b32.xlu0 %v1555, 112
      %v1899 = vpop.permute.xlu0 %1898
      %v1900 = vsel %vm687, %v1885, %v1893
      %v1901 = vsel %vm687, %v1887, %v1895
      %v1902 = vsel %vm687, %v1889, %v1897
      %v1903 = vsel %vm687, %v1891, %v1899
      %v1904 = vsel %vm687, %v1893, %v1885
      %v1905 = vsel %vm687, %v1895, %v1887
      %v1906 = vsel %vm687, %v1897, %v1889
      %v1907 = vsel %vm687, %v1899, %v1891
      %v1908 = vld [vmem:[%s690] ss:$8 sm:$0x3]
      %v1910 = vlaneseq
      %v1911 = vshrl.u32 %v1910, 7
      %v1912 = vsub.s32 0, %v1911
      %v1913 = vrot.slane %v1908, %v1912
      %v1914 = vlaneseq
      %v1915 = vshrl.u32 %v1914, 7
      %v1916 = vsub.s32 1, %v1915
      %v1917 = vrot.slane %v1908, %v1916
      %v1920 = vmul.f32 %v1900, %v1913
      %v1921 = vmul.f32 %v1904, %v1917
      %v1922 = vmul.f32 %v1901, %v1913
      %v1923 = vmul.f32 %v1905, %v1917
      %v1924 = vmul.f32 %v1902, %v1913
      %v1925 = vmul.f32 %v1906, %v1917
      %v1926 = vmul.f32 %v1903, %v1913
      %v1927 = vmul.f32 %v1907, %v1917
      %v1928 = vpack.c.bf16 %v1922, %v1920
      %v1929 = vpack.c.bf16 %v1923, %v1921
      %v1930 = vpack.c.bf16 %v1926, %v1924
      %v1931 = vpack.c.bf16 %v1927, %v1925
      %1932 = vst [vmem:[#allocation3 + $0xe0] sm:$0xff] %v1928
      %1933 = vst [vmem:[#allocation3 + $0xe8] sm:$0xff] %v1929
      %1934 = vst [vmem:[#allocation3 + $0xf0] sm:$0xff] %v1930
      %1935 = vst [vmem:[#allocation3 + $0xf8] sm:$0xff] %v1931
      %1936 = vrot.lane.b32.xlu0 %v1548, 111
      %v1937 = vpop.permute.xlu0 %1936
      %1938 = vrot.lane.b32.xlu0 %v1550, 111
      %v1939 = vpop.permute.xlu0 %1938
      %1940 = vrot.lane.b32.xlu0 %v1552, 111
      %v1941 = vpop.permute.xlu0 %1940
      %1942 = vrot.lane.b32.xlu0 %v1554, 111
      %v1943 = vpop.permute.xlu0 %1942
      %1944 = vrot.lane.b32.xlu0 %v1549, 111
      %v1945 = vpop.permute.xlu0 %1944
      %1946 = vrot.lane.b32.xlu0 %v1551, 111
      %v1947 = vpop.permute.xlu0 %1946
      %1948 = vrot.lane.b32.xlu0 %v1553, 111
      %v1949 = vpop.permute.xlu0 %1948
      %1950 = vrot.lane.b32.xlu0 %v1555, 111
      %v1951 = vpop.permute.xlu0 %1950
      %v1952 = vsel %vm719, %v1937, %v1945
      %v1953 = vsel %vm719, %v1939, %v1947
      %v1954 = vsel %vm719, %v1941, %v1949
      %v1955 = vsel %vm719, %v1943, %v1951
      %v1956 = vsel %vm719, %v1945, %v1937
      %v1957 = vsel %vm719, %v1947, %v1939
      %v1958 = vsel %vm719, %v1949, %v1941
      %v1959 = vsel %vm719, %v1951, %v1943
      %v1960 = vld [vmem:[%s722] ss:$8 sm:$0x3]
      %v1962 = vlaneseq
      %v1963 = vshrl.u32 %v1962, 7
      %v1964 = vsub.s32 0, %v1963
      %v1965 = vrot.slane %v1960, %v1964
      %v1966 = vlaneseq
      %v1967 = vshrl.u32 %v1966, 7
      %v1968 = vsub.s32 1, %v1967
      %v1969 = vrot.slane %v1960, %v1968
      %v1972 = vmul.f32 %v1952, %v1965
      %v1973 = vmul.f32 %v1956, %v1969
      %v1974 = vmul.f32 %v1953, %v1965
      %v1975 = vmul.f32 %v1957, %v1969
      %v1976 = vmul.f32 %v1954, %v1965
      %v1977 = vmul.f32 %v1958, %v1969
      %v1978 = vmul.f32 %v1955, %v1965
      %v1979 = vmul.f32 %v1959, %v1969
      %v1980 = vpack.c.bf16 %v1974, %v1972
      %v1981 = vpack.c.bf16 %v1975, %v1973
      %v1982 = vpack.c.bf16 %v1978, %v1976
      %v1983 = vpack.c.bf16 %v1979, %v1977
      %1984 = vst [vmem:[#allocation3 + $0x100] sm:$0xff] %v1980
      %1985 = vst [vmem:[#allocation3 + $0x108] sm:$0xff] %v1981
      %1986 = vst [vmem:[#allocation3 + $0x110] sm:$0xff] %v1982
      %1987 = vst [vmem:[#allocation3 + $0x118] sm:$0xff] %v1983
      %v1988 = vld [vmem:[#allocation3] sm:$0xff]
      %v1989 = vld [vmem:[#allocation3 + $0x8] sm:$0xff]
      %v1990 = vld [vmem:[#allocation3 + $0x10] sm:$0xff]
      %v1991 = vld [vmem:[#allocation3 + $0x18] sm:$0xff]
      %v1992 = vld [vmem:[#allocation3 + $0x20] sm:$0xff]
      %v1993 = vld [vmem:[#allocation3 + $0x28] sm:$0xff]
      %v1994 = vld [vmem:[#allocation3 + $0x30] sm:$0xff]
      %v1995 = vld [vmem:[#allocation3 + $0x38] sm:$0xff]
      %v1996 = vld [vmem:[#allocation3 + $0x40] sm:$0xff]
      %v1997 = vld [vmem:[#allocation3 + $0x48] sm:$0xff]
      %v1998 = vld [vmem:[#allocation3 + $0x50] sm:$0xff]
      %v1999 = vld [vmem:[#allocation3 + $0x58] sm:$0xff]
      %v2000 = vld [vmem:[#allocation3 + $0x60] sm:$0xff]
      %v2001 = vld [vmem:[#allocation3 + $0x68] sm:$0xff]
      %v2002 = vld [vmem:[#allocation3 + $0x70] sm:$0xff]
      %v2003 = vld [vmem:[#allocation3 + $0x78] sm:$0xff]
      %v2004 = vld [vmem:[#allocation3 + $0x80] sm:$0xff]
      %v2005 = vld [vmem:[#allocation3 + $0x88] sm:$0xff]
      %v2006 = vld [vmem:[#allocation3 + $0x90] sm:$0xff]
      %v2007 = vld [vmem:[#allocation3 + $0x98] sm:$0xff]
      %v2008 = vld [vmem:[#allocation3 + $0xa0] sm:$0xff]
      %v2009 = vld [vmem:[#allocation3 + $0xa8] sm:$0xff]
      %v2010 = vld [vmem:[#allocation3 + $0xb0] sm:$0xff]
      %v2011 = vld [vmem:[#allocation3 + $0xb8] sm:$0xff]
      %v2012 = vld [vmem:[#allocation3 + $0xc0] sm:$0xff]
      %v2013 = vld [vmem:[#allocation3 + $0xc8] sm:$0xff]
      %v2014 = vld [vmem:[#allocation3 + $0xd0] sm:$0xff]
      %v2015 = vld [vmem:[#allocation3 + $0xd8] sm:$0xff]
      %v2016 = vld [vmem:[#allocation3 + $0xe0] sm:$0xff]
      %v2017 = vld [vmem:[#allocation3 + $0xe8] sm:$0xff]
      %v2018 = vld [vmem:[#allocation3 + $0xf0] sm:$0xff]
      %v2019 = vld [vmem:[#allocation3 + $0xf8] sm:$0xff]
      %v2020 = vld [vmem:[#allocation3 + $0x100] sm:$0xff]
      %v2021 = vld [vmem:[#allocation3 + $0x108] sm:$0xff]
      %v2022 = vld [vmem:[#allocation3 + $0x110] sm:$0xff]
      %v2023 = vld [vmem:[#allocation3 + $0x118] sm:$0xff]
      %2024 = vset.pattern.permute.xlu0 3
      %2025 = vperm.xlu0 %2024, %v873
      %v2026 = vpop.permute.xlu0 %2025
      %2028 = vset.pattern.permute.xlu0 3
      %2029 = vperm.xlu0 %2028, %v874
      %v2030 = vpop.permute.xlu0 %2029
      %2032 = vset.pattern.permute.xlu0 3
      %2033 = vperm.xlu0 %2032, %v875
      %v2034 = vpop.permute.xlu0 %2033
      %2036 = vset.pattern.permute.xlu0 3
      %2037 = vperm.xlu0 %2036, %v876
      %v2038 = vpop.permute.xlu0 %2037
      %v2048 = vunpack.c.l.b16 %v1556
      %v2049 = vunpack.c.h.b16 %v1556
      %v2050 = vunpack.c.l.b16 %v1557
      %v2051 = vunpack.c.l.b16 %v1558
      %v2052 = vunpack.c.h.b16 %v1558
      %v2053 = vunpack.c.l.b16 %v1559
      %v2054 = vunpack.c.l.b16 %v1560
      %v2055 = vunpack.c.h.b16 %v1560
      %v2056 = vunpack.c.l.b16 %v1561
      %v2057 = vunpack.c.l.b16 %v1562
      %v2058 = vunpack.c.h.b16 %v1562
      %v2059 = vunpack.c.l.b16 %v1563
      %v2060 = vpack.c.b16 %v2051, %v2048
      %v2061 = vpack.c.b16 %v2052, %v2049
      %v2062 = vpack.c.b16 %v2053, %v2050
      %v2063 = vpack.c.b16 %v2057, %v2054
      %v2064 = vpack.c.b16 %v2058, %v2055
      %v2065 = vpack.c.b16 %v2059, %v2056
      %v2071 = vsel %vm963, %v2062, 0
      %v2074 = vsel %vm963, %v2065, 0
      %2076 = vmatprep.subr.bf16.mxu0 %v1989
      %2077 = vmatpush1.bf16.msra.mxu0 %v1988
      %2078 = vmatprep.subr.bf16.mxu0 %v1991
      %2079 = vmatpush1.bf16.msra.mxu0 %v1990
      %2080 = vmatprep.subr.bf16.mxu0 %v1993
      %2081 = vmatpush1.bf16.msra.mxu0 %v1992
      %2082 = vmatprep.subr.bf16.mxu0 %v1995
      %2083 = vmatpush1.bf16.msra.mxu0 %v1994
      %2084 = vmatprep.subr.bf16.mxu0 %v1997
      %2085 = vmatpush1.bf16.msra.mxu0 %v1996
      %2086 = vmatprep.subr.bf16.mxu0 %v1999
      %2087 = vmatpush1.bf16.msra.mxu0 %v1998
      %2088 = vmatprep.subr.bf16.mxu0 %v2001
      %2089 = vmatpush1.bf16.msra.mxu0 %v2000
      %2090 = vmatprep.subr.bf16.mxu0 %v2003
      %2091 = vmatpush1.bf16.msra.mxu0 %v2002
      %2092 = vmatprep.subr.bf16.mxu0 %v2005
      %2093 = vmatpush1.bf16.msra.mxu0 %v2004
      %2094 = vmatprep.subr.bf16.mxu0 %v2007
      %2095 = vmatpush1.bf16.msra.mxu0 %v2006
      %2096 = vmatprep.subr.bf16.mxu0 %v2009
      %2097 = vmatpush1.bf16.msra.mxu0 %v2008
      %2098 = vmatprep.subr.bf16.mxu0 %v2011
      %2099 = vmatpush1.bf16.msra.mxu0 %v2010
      %2100 = vmatprep.subr.bf16.mxu0 %v2013
      %2101 = vmatpush1.bf16.msra.mxu0 %v2012
      %2102 = vmatprep.subr.bf16.mxu0 %v2015
      %2103 = vmatpush1.bf16.msra.mxu0 %v2014
      %2104 = vmatprep.subr.bf16.mxu0 %v2017
      %2105 = vmatpush1.bf16.msra.mxu0 %v2016
      %2106 = vmatprep.subr.bf16.mxu0 %v2019
      %2107 = vmatpush1.bf16.msra.mxu0 %v2018
      %2108 = vmatprep.mubr.bf16.mxu0 %v2061
      %2109 = vmatmul.mubr.bf16.gmra.mrb[0].mxu0 %v2060
      %v2110 = vpop.f32.mrb[0].mxu0
      %v2111 = vadd.f32 %v2026, %v2110
      %v2112 = vpop.f32.mrb[0].mxu0
      %v2113 = vadd.f32 %v2026, %v2112
      %v2114 = vpop.f32.mrb[0].mxu0
      %v2115 = vadd.f32 %v2030, %v2114
      %v2116 = vpop.f32.mrb[0].mxu0
      %v2117 = vadd.f32 %v2030, %v2116
      %2118 = vmatprep.mubr.bf16.mxu0 %v2064
      %2119 = vmatmul.mubr.bf16.gmra.mrb[0].mxu0 %v2063
      %v2120 = vpop.f32.mrb[0].mxu0
      %v2121 = vadd.f32 %v2034, %v2120
      %v2122 = vpop.f32.mrb[0].mxu0
      %v2123 = vadd.f32 %v2034, %v2122
      %v2124 = vpop.f32.mrb[0].mxu0
      %v2125 = vadd.f32 %v2038, %v2124
      %v2126 = vpop.f32.mrb[0].mxu0
      %v2127 = vadd.f32 %v2038, %v2126
      %2128 = vdwg.mxu0
      %2129 = vmatprep.subr.bf16.mxu0 %v2021
      %2130 = vmatpush1.bf16.msra.mxu0 %v2020
      %2131 = vmatprep.subr.bf16.mxu0 %v2023
      %2132 = vmatpush1.bf16.msra.mxu0 %v2022
      %2133 = vmatprep.subr.bf16.mxu0 0
      %2134 = vmatpush1.bf16.msra.mxu0 0
      %2135 = vmatprep.subr.bf16.mxu0 0
      %2136 = vmatpush1.bf16.msra.mxu0 0
      %2137 = vmatprep.subr.bf16.mxu0 0
      %2138 = vmatpush1.bf16.msra.mxu0 0
      %2139 = vmatprep.subr.bf16.mxu0 0
      %2140 = vmatpush1.bf16.msra.mxu0 0
      %2141 = vmatprep.subr.bf16.mxu0 0
      %2142 = vmatpush1.bf16.msra.mxu0 0
      %2143 = vmatprep.subr.bf16.mxu0 0
      %2144 = vmatpush1.bf16.msra.mxu0 0
      %2145 = vmatprep.subr.bf16.mxu0 0
      %2146 = vmatpush1.bf16.msra.mxu0 0
      %2147 = vmatprep.subr.bf16.mxu0 0
      %2148 = vmatpush1.bf16.msra.mxu0 0
      %2149 = vmatprep.subr.bf16.mxu0 0
      %2150 = vmatpush1.bf16.msra.mxu0 0
      %2151 = vmatprep.subr.bf16.mxu0 0
      %2152 = vmatpush1.bf16.msra.mxu0 0
      %2153 = vmatprep.subr.bf16.mxu0 0
      %2154 = vmatpush1.bf16.msra.mxu0 0
      %2155 = vmatprep.subr.bf16.mxu0 0
      %2156 = vmatpush1.bf16.msra.mxu0 0
      %2157 = vmatprep.subr.bf16.mxu0 0
      %2158 = vmatpush1.bf16.msra.mxu0 0
      %2159 = vmatprep.subr.bf16.mxu0 0
      %2160 = vmatpush1.bf16.msra.mxu0 0
      %2161 = vmatprep.mubr.bf16.mxu0 0
      %2162 = vmatmul.mubr.bf16.gmra.mrb[0].mxu0 %v2071
      %v2163 = vpop.f32.mrb[0].mxu0
      %v2164 = vadd.f32 %v2111, %v2163
      %v2165 = vpop.f32.mrb[0].mxu0
      %v2166 = vadd.f32 %v2113, %v2165
      %v2167 = vpop.f32.mrb[0].mxu0
      %v2168 = vadd.f32 %v2115, %v2167
      %v2169 = vpop.f32.mrb[0].mxu0
      %v2170 = vadd.f32 %v2117, %v2169
      %2171 = vmatprep.mubr.bf16.mxu0 0
      %2172 = vmatmul.mubr.bf16.gmra.mrb[0].mxu0 %v2074
      %v2173 = vpop.f32.mrb[0].mxu0
      %v2174 = vadd.f32 %v2121, %v2173
      %v2175 = vpop.f32.mrb[0].mxu0
      %v2176 = vadd.f32 %v2123, %v2175
      %v2177 = vpop.f32.mrb[0].mxu0
      %v2178 = vadd.f32 %v2125, %v2177
      %v2179 = vpop.f32.mrb[0].mxu0
      %v2180 = vadd.f32 %v2127, %v2179
      %2181 = vdwg.mxu0
      %v2182 = vld [vmem:[%s456] sm:$0xff]
      %v2183 = vld [vmem:[%s456 + $0x8] sm:$0xff]
      %v2184 = vld [vmem:[%s456 + $0x10] sm:$0xff]
      %v2185 = vld [vmem:[%s456 + $0x18] sm:$0xff]
      %2187 = vset.pattern.permute.xlu0 0
      %2188 = vperm.xlu0 %2187, %v2182
      %v2189 = vpop.permute.xlu0 %2188
      %2192 = vset.pattern.permute.xlu0 0
      %2193 = vperm.xlu0 %2192, %v2183
      %v2194 = vpop.permute.xlu0 %2193
      %2197 = vset.pattern.permute.xlu0 0
      %2198 = vperm.xlu0 %2197, %v2184
      %v2199 = vpop.permute.xlu0 %2198
      %2202 = vset.pattern.permute.xlu0 0
      %2203 = vperm.xlu0 %2202, %v2185
      %v2204 = vpop.permute.xlu0 %2203
      %v2206 = vadd.f32 %v2164, %v2189
      %v2207 = vadd.f32 %v2166, %v2189
      %v2208 = vadd.f32 %v2168, %v2194
      %v2209 = vadd.f32 %v2170, %v2194
      %v2210 = vadd.f32 %v2174, %v2199
      %v2211 = vadd.f32 %v2176, %v2199
      %v2212 = vadd.f32 %v2178, %v2204
      %v2213 = vadd.f32 %v2180, %v2204
      %v2214 = vld [vmem:[%s7] sm:$0xff]
      %v2215 = vld [vmem:[%s7 + $0x8] sm:$0xff]
      %v2216 = vld [vmem:[%s7 + $0x10] sm:$0xff]
      %v2217 = vld [vmem:[%s7 + $0x18] sm:$0xff]
      %2218 = vmatprep.subr.mxu0 0.0
      %2219 = vmatpush1.msra.mxu0 1.0
      %2220 = vmatprep.subr.mxu0 0.0
      %2221 = vmatpush1.msra.mxu0 1.0
      %2222 = vmatprep.subr.mxu0 0.0
      %2223 = vmatpush1.msra.mxu0 1.0
      %2224 = vmatprep.subr.mxu0 0.0
      %2225 = vmatpush1.msra.mxu0 1.0
      %2226 = vmatprep.subr.mxu0 0.0
      %2227 = vmatpush1.msra.mxu0 1.0
      %2228 = vmatprep.subr.mxu0 0.0
      %2229 = vmatpush1.msra.mxu0 1.0
      %2230 = vmatprep.subr.mxu0 0.0
      %2231 = vmatpush1.msra.mxu0 1.0
      %2232 = vmatprep.subr.mxu0 0.0
      %2233 = vmatpush1.msra.mxu0 1.0
      %2234 = vmatprep.subr.mxu0 0.0
      %2235 = vmatpush1.msra.mxu0 1.0
      %2236 = vmatprep.subr.mxu0 0.0
      %2237 = vmatpush1.msra.mxu0 1.0
      %2238 = vmatprep.subr.mxu0 0.0
      %2239 = vmatpush1.msra.mxu0 1.0
      %2240 = vmatprep.subr.mxu0 0.0
      %2241 = vmatpush1.msra.mxu0 1.0
      %2242 = vmatprep.subr.mxu0 0.0
      %2243 = vmatpush1.msra.mxu0 1.0
      %2244 = vmatprep.subr.mxu0 0.0
      %2245 = vmatpush1.msra.mxu0 1.0
      %2246 = vmatprep.subr.mxu0 0.0
      %2247 = vmatpush1.msra.mxu0 1.0
      %2248 = vmatprep.subr.mxu0 0.0
      %2249 = vmatpush1.msra.mxu0 1.0
      %2250 = vmatprep.subr.mxu0 0.0
      %2251 = vmatpush1.msra.mxu0 1.0
      %2252 = vmatprep.subr.mxu0 0.0
      %2253 = vmatpush1.msra.mxu0 1.0
      %2254 = vmatprep.subr.mxu0 0.0
      %2255 = vmatpush1.msra.mxu0 1.0
      %2256 = vmatprep.subr.mxu0 0.0
      %2257 = vmatpush1.msra.mxu0 1.0
      %2258 = vmatprep.subr.mxu0 0.0
      %2259 = vmatpush1.msra.mxu0 1.0
      %2260 = vmatprep.subr.mxu0 0.0
      %2261 = vmatpush1.msra.mxu0 1.0
      %2262 = vmatprep.subr.mxu0 0.0
      %2263 = vmatpush1.msra.mxu0 1.0
      %2264 = vmatprep.subr.mxu0 0.0
      %2265 = vmatpush1.msra.mxu0 1.0
      %2266 = vmatprep.subr.mxu0 0.0
      %2267 = vmatpush1.msra.mxu0 1.0
      %2268 = vmatprep.subr.mxu0 0.0
      %2269 = vmatpush1.msra.mxu0 1.0
      %2270 = vmatprep.subr.mxu0 0.0
      %2271 = vmatpush1.msra.mxu0 1.0
      %2272 = vmatprep.subr.mxu0 0.0
      %2273 = vmatpush1.msra.mxu0 1.0
      %2274 = vmatprep.subr.mxu0 0.0
      %2275 = vmatpush1.msra.mxu0 1.0
      %2276 = vmatprep.subr.mxu0 0.0
      %2277 = vmatpush1.msra.mxu0 1.0
      %2278 = vmatprep.subr.mxu0 0.0
      %2279 = vmatpush1.msra.mxu0 1.0
      %2280 = vmatprep.subr.mxu0 0.0
      %2281 = vmatpush1.msra.mxu0 1.0
      %2282 = vmatprep.mubr.f32.mxu0 %v2207
      %2283 = vmatmul.mubr.f32.gmra.mrb[0].mxu0 %v2206
      %v2284 = vpop.f32.mrb[0].mxu0
      %v2285 = vadd.f32 0.0, %v2284
      %v2286 = vpop.f32.mrb[0].mxu0
      %2287 = vmatprep.mubr.f32.mxu0 %v2209
      %2288 = vmatmul.mubr.f32.gmra.mrb[0].mxu0 %v2208
      %v2289 = vpop.f32.mrb[0].mxu0
      %v2290 = vadd.f32 0.0, %v2289
      %v2291 = vpop.f32.mrb[0].mxu0
      %2292 = vmatprep.mubr.f32.mxu0 %v2211
      %2293 = vmatmul.mubr.f32.gmra.mrb[0].mxu0 %v2210
      %v2294 = vpop.f32.mrb[0].mxu0
      %v2295 = vadd.f32 0.0, %v2294
      %v2296 = vpop.f32.mrb[0].mxu0
      %2297 = vmatprep.mubr.f32.mxu0 %v2213
      %2298 = vmatmul.mubr.f32.gmra.mrb[0].mxu0 %v2212
      %v2299 = vpop.f32.mrb[0].mxu0
      %v2300 = vadd.f32 0.0, %v2299
      %v2301 = vpop.f32.mrb[0].mxu0
      %2302 = vdwg.mxu0
      %v2303 = vld [vmem:[%s11] sm:$0xff]
      %v2305 = vsel %vm963, %v2303, 0
      %2307 = vmatprep.subr.mxu0 0.0
      %2308 = vmatpush1.msra.mxu0 %v2285
      %2309 = vmatprep.subr.mxu0 0.0
      %2310 = vmatpush1.msra.mxu0 %v2290
      %2311 = vmatprep.subr.mxu0 0.0
      %2312 = vmatpush1.msra.mxu0 %v2295
      %2313 = vmatprep.subr.mxu0 0.0
      %2314 = vmatpush1.msra.mxu0 %v2300
      %2315 = vmatprep.subr.mxu0 0.0
      %2316 = vmatpush1.msra.mxu0 0.0
      %2317 = vmatprep.subr.mxu0 0.0
      %2318 = vmatpush1.msra.mxu0 0.0
      %2319 = vmatprep.subr.mxu0 0.0
      %2320 = vmatpush1.msra.mxu0 0.0
      %2321 = vmatprep.subr.mxu0 0.0
      %2322 = vmatpush1.msra.mxu0 0.0
      %2323 = vmatprep.subr.mxu0 0.0
      %2324 = vmatpush1.msra.mxu0 0.0
      %2325 = vmatprep.subr.mxu0 0.0
      %2326 = vmatpush1.msra.mxu0 0.0
      %2327 = vmatprep.subr.mxu0 0.0
      %2328 = vmatpush1.msra.mxu0 0.0
      %2329 = vmatprep.subr.mxu0 0.0
      %2330 = vmatpush1.msra.mxu0 0.0
      %2331 = vmatprep.subr.mxu0 0.0
      %2332 = vmatpush1.msra.mxu0 0.0
      %2333 = vmatprep.subr.mxu0 0.0
      %2334 = vmatpush1.msra.mxu0 0.0
      %2335 = vmatprep.subr.mxu0 0.0
      %2336 = vmatpush1.msra.mxu0 0.0
      %2337 = vmatprep.subr.mxu0 0.0
      %2338 = vmatpush1.msra.mxu0 0.0
      %2339 = vmatprep.subr.mxu0 0.0
      %2340 = vmatpush1.msra.mxu0 0.0
      %2341 = vmatprep.subr.mxu0 0.0
      %2342 = vmatpush1.msra.mxu0 0.0
      %2343 = vmatprep.subr.mxu0 0.0
      %2344 = vmatpush1.msra.mxu0 0.0
      %2345 = vmatprep.subr.mxu0 0.0
      %2346 = vmatpush1.msra.mxu0 0.0
      %2347 = vmatprep.subr.mxu0 0.0
      %2348 = vmatpush1.msra.mxu0 0.0
      %2349 = vmatprep.subr.mxu0 0.0
      %2350 = vmatpush1.msra.mxu0 0.0
      %2351 = vmatprep.subr.mxu0 0.0
      %2352 = vmatpush1.msra.mxu0 0.0
      %2353 = vmatprep.subr.mxu0 0.0
      %2354 = vmatpush1.msra.mxu0 0.0
      %2355 = vmatprep.subr.mxu0 0.0
      %2356 = vmatpush1.msra.mxu0 0.0
      %2357 = vmatprep.subr.mxu0 0.0
      %2358 = vmatpush1.msra.mxu0 0.0
      %2359 = vmatprep.subr.mxu0 0.0
      %2360 = vmatpush1.msra.mxu0 0.0
      %2361 = vmatprep.subr.mxu0 0.0
      %2362 = vmatpush1.msra.mxu0 0.0
      %2363 = vmatprep.subr.mxu0 0.0
      %2364 = vmatpush1.msra.mxu0 0.0
      %2365 = vmatprep.subr.mxu0 0.0
      %2366 = vmatpush1.msra.mxu0 0.0
      %2367 = vmatprep.subr.mxu0 0.0
      %2368 = vmatpush1.msra.mxu0 0.0
      %2369 = vmatprep.subr.mxu0 0.0
      %2370 = vmatpush1.msra.mxu0 0.0
      %2371 = vmatprep.mubr.f32.mxu0 0.0
      %2372 = vmatmul.mubr.f32.gmra.mrb[0].mxu0 %v2305
      %v2373 = vpop.f32.mrb[0].mxu0
      %v2374 = vadd.f32 0.0, %v2373
      %v2375 = vpop.f32.mrb[0].mxu0
      %2376 = vdwg.mxu0
      %v2377 = vmul.f32 %v2374, %v1037
      %v2378 = vld [vmem:[%s10] sm:$0xff]
      %v2379 = vld [vmem:[%s10 + $0x8] sm:$0xff]
      %v2380 = vld [vmem:[%s10 + $0x10] sm:$0xff]
      %v2381 = vld [vmem:[%s10 + $0x18] sm:$0xff]
      %v2383 = vsel %vm1043, %v2378, 0
      %v2386 = vsel %vm1043, %v2379, 0
      %v2389 = vsel %vm1043, %v2380, 0
      %v2392 = vsel %vm1043, %v2381, 0
      %2394 = vmatprep.subr.mxu0 0.0
      %2395 = vmatpush1.msra.mxu0 %v2377
      %2396 = vmatprep.subr.mxu0 0.0
      %2397 = vmatpush1.msra.mxu0 0.0
      %2398 = vmatprep.subr.mxu0 0.0
      %2399 = vmatpush1.msra.mxu0 0.0
      %2400 = vmatprep.subr.mxu0 0.0
      %2401 = vmatpush1.msra.mxu0 0.0
      %2402 = vmatprep.subr.mxu0 0.0
      %2403 = vmatpush1.msra.mxu0 0.0
      %2404 = vmatprep.subr.mxu0 0.0
      %2405 = vmatpush1.msra.mxu0 0.0
      %2406 = vmatprep.subr.mxu0 0.0
      %2407 = vmatpush1.msra.mxu0 0.0
      %2408 = vmatprep.subr.mxu0 0.0
      %2409 = vmatpush1.msra.mxu0 0.0
      %2410 = vmatprep.subr.mxu0 0.0
      %2411 = vmatpush1.msra.mxu0 0.0
      %2412 = vmatprep.subr.mxu0 0.0
      %2413 = vmatpush1.msra.mxu0 0.0
      %2414 = vmatprep.subr.mxu0 0.0
      %2415 = vmatpush1.msra.mxu0 0.0
      %2416 = vmatprep.subr.mxu0 0.0
      %2417 = vmatpush1.msra.mxu0 0.0
      %2418 = vmatprep.subr.mxu0 0.0
      %2419 = vmatpush1.msra.mxu0 0.0
      %2420 = vmatprep.subr.mxu0 0.0
      %2421 = vmatpush1.msra.mxu0 0.0
      %2422 = vmatprep.subr.mxu0 0.0
      %2423 = vmatpush1.msra.mxu0 0.0
      %2424 = vmatprep.subr.mxu0 0.0
      %2425 = vmatpush1.msra.mxu0 0.0
      %2426 = vmatprep.subr.mxu0 0.0
      %2427 = vmatpush1.msra.mxu0 0.0
      %2428 = vmatprep.subr.mxu0 0.0
      %2429 = vmatpush1.msra.mxu0 0.0
      %2430 = vmatprep.subr.mxu0 0.0
      %2431 = vmatpush1.msra.mxu0 0.0
      %2432 = vmatprep.subr.mxu0 0.0
      %2433 = vmatpush1.msra.mxu0 0.0
      %2434 = vmatprep.subr.mxu0 0.0
      %2435 = vmatpush1.msra.mxu0 0.0
      %2436 = vmatprep.subr.mxu0 0.0
      %2437 = vmatpush1.msra.mxu0 0.0
      %2438 = vmatprep.subr.mxu0 0.0
      %2439 = vmatpush1.msra.mxu0 0.0
      %2440 = vmatprep.subr.mxu0 0.0
      %2441 = vmatpush1.msra.mxu0 0.0
      %2442 = vmatprep.subr.mxu0 0.0
      %2443 = vmatpush1.msra.mxu0 0.0
      %2444 = vmatprep.subr.mxu0 0.0
      %2445 = vmatpush1.msra.mxu0 0.0
      %2446 = vmatprep.subr.mxu0 0.0
      %2447 = vmatpush1.msra.mxu0 0.0
      %2448 = vmatprep.subr.mxu0 0.0
      %2449 = vmatpush1.msra.mxu0 0.0
      %2450 = vmatprep.subr.mxu0 0.0
      %2451 = vmatpush1.msra.mxu0 0.0
      %2452 = vmatprep.subr.mxu0 0.0
      %2453 = vmatpush1.msra.mxu0 0.0
      %2454 = vmatprep.subr.mxu0 0.0
      %2455 = vmatpush1.msra.mxu0 0.0
      %2456 = vmatprep.subr.mxu0 0.0
      %2457 = vmatpush1.msra.mxu0 0.0
      %2458 = vmatprep.mubr.f32.mxu0 0.0
      %2459 = vmatmul.mubr.f32.gmra.mrb[0].mxu0 %v2383
      %v2460 = vpop.f32.mrb[0].mxu0
      %v2461 = vadd.f32 0.0, %v2460
      %v2462 = vpop.f32.mrb[0].mxu0
      %2463 = vmatprep.mubr.f32.mxu0 0.0
      %2464 = vmatmul.mubr.f32.gmra.mrb[0].mxu0 %v2386
      %v2465 = vpop.f32.mrb[0].mxu0
      %v2466 = vadd.f32 0.0, %v2465
      %v2467 = vpop.f32.mrb[0].mxu0
      %2468 = vmatprep.mubr.f32.mxu0 0.0
      %2469 = vmatmul.mubr.f32.gmra.mrb[0].mxu0 %v2389
      %v2470 = vpop.f32.mrb[0].mxu0
      %v2471 = vadd.f32 0.0, %v2470
      %v2472 = vpop.f32.mrb[0].mxu0
      %2473 = vmatprep.mubr.f32.mxu0 0.0
      %2474 = vmatmul.mubr.f32.gmra.mrb[0].mxu0 %v2392
      %v2475 = vpop.f32.mrb[0].mxu0
      %v2476 = vadd.f32 0.0, %v2475
      %v2477 = vpop.f32.mrb[0].mxu0
      %2478 = vdwg.mxu0
      %2480 = vset.pattern.permute.xlu0 0
      %2481 = vperm.xlu0 %2480, %v2461
      %v2482 = vpop.permute.xlu0 %2481
      %2485 = vset.pattern.permute.xlu0 0
      %2486 = vperm.xlu0 %2485, %v2466
      %v2487 = vpop.permute.xlu0 %2486
      %2490 = vset.pattern.permute.xlu0 0
      %2491 = vperm.xlu0 %2490, %v2471
      %v2492 = vpop.permute.xlu0 %2491
      %2495 = vset.pattern.permute.xlu0 0
      %2496 = vperm.xlu0 %2495, %v2476
      %v2497 = vpop.permute.xlu0 %2496
      %v2499 = vsub.f32 %v2206, %v2482
      %v2500 = vsub.f32 %v2207, %v2482
      %v2501 = vsub.f32 %v2208, %v2487
      %v2502 = vsub.f32 %v2209, %v2487
      %v2503 = vsub.f32 %v2210, %v2492
      %v2504 = vsub.f32 %v2211, %v2492
      %v2505 = vsub.f32 %v2212, %v2497
      %v2506 = vsub.f32 %v2213, %v2497
      %v2507 = vmul.f32 %v2499, %v2499
      %v2508 = vmul.f32 %v2500, %v2500
      %v2509 = vmul.f32 %v2501, %v2501
      %v2510 = vmul.f32 %v2502, %v2502
      %v2511 = vmul.f32 %v2503, %v2503
      %v2512 = vmul.f32 %v2504, %v2504
      %v2513 = vmul.f32 %v2505, %v2505
      %v2514 = vmul.f32 %v2506, %v2506
      %2515 = vmatprep.subr.mxu0 0.0
      %2516 = vmatpush1.msra.mxu0 1.0
      %2517 = vmatprep.subr.mxu0 0.0
      %2518 = vmatpush1.msra.mxu0 1.0
      %2519 = vmatprep.subr.mxu0 0.0
      %2520 = vmatpush1.msra.mxu0 1.0
      %2521 = vmatprep.subr.mxu0 0.0
      %2522 = vmatpush1.msra.mxu0 1.0
      %2523 = vmatprep.subr.mxu0 0.0
      %2524 = vmatpush1.msra.mxu0 1.0
      %2525 = vmatprep.subr.mxu0 0.0
      %2526 = vmatpush1.msra.mxu0 1.0
      %2527 = vmatprep.subr.mxu0 0.0
      %2528 = vmatpush1.msra.mxu0 1.0
      %2529 = vmatprep.subr.mxu0 0.0
      %2530 = vmatpush1.msra.mxu0 1.0
      %2531 = vmatprep.subr.mxu0 0.0
      %2532 = vmatpush1.msra.mxu0 1.0
      %2533 = vmatprep.subr.mxu0 0.0
      %2534 = vmatpush1.msra.mxu0 1.0
      %2535 = vmatprep.subr.mxu0 0.0
      %2536 = vmatpush1.msra.mxu0 1.0
      %2537 = vmatprep.subr.mxu0 0.0
      %2538 = vmatpush1.msra.mxu0 1.0
      %2539 = vmatprep.subr.mxu0 0.0
      %2540 = vmatpush1.msra.mxu0 1.0
      %2541 = vmatprep.subr.mxu0 0.0
      %2542 = vmatpush1.msra.mxu0 1.0
      %2543 = vmatprep.subr.mxu0 0.0
      %2544 = vmatpush1.msra.mxu0 1.0
      %2545 = vmatprep.subr.mxu0 0.0
      %2546 = vmatpush1.msra.mxu0 1.0
      %2547 = vmatprep.subr.mxu0 0.0
      %2548 = vmatpush1.msra.mxu0 1.0
      %2549 = vmatprep.subr.mxu0 0.0
      %2550 = vmatpush1.msra.mxu0 1.0
      %2551 = vmatprep.subr.mxu0 0.0
      %2552 = vmatpush1.msra.mxu0 1.0
      %2553 = vmatprep.subr.mxu0 0.0
      %2554 = vmatpush1.msra.mxu0 1.0
      %2555 = vmatprep.subr.mxu0 0.0
      %2556 = vmatpush1.msra.mxu0 1.0
      %2557 = vmatprep.subr.mxu0 0.0
      %2558 = vmatpush1.msra.mxu0 1.0
      %2559 = vmatprep.subr.mxu0 0.0
      %2560 = vmatpush1.msra.mxu0 1.0
      %2561 = vmatprep.subr.mxu0 0.0
      %2562 = vmatpush1.msra.mxu0 1.0
      %2563 = vmatprep.subr.mxu0 0.0
      %2564 = vmatpush1.msra.mxu0 1.0
      %2565 = vmatprep.subr.mxu0 0.0
      %2566 = vmatpush1.msra.mxu0 1.0
      %2567 = vmatprep.subr.mxu0 0.0
      %2568 = vmatpush1.msra.mxu0 1.0
      %2569 = vmatprep.subr.mxu0 0.0
      %2570 = vmatpush1.msra.mxu0 1.0
      %2571 = vmatprep.subr.mxu0 0.0
      %2572 = vmatpush1.msra.mxu0 1.0
      %2573 = vmatprep.subr.mxu0 0.0
      %2574 = vmatpush1.msra.mxu0 1.0
      %2575 = vmatprep.subr.mxu0 0.0
      %2576 = vmatpush1.msra.mxu0 1.0
      %2577 = vmatprep.subr.mxu0 0.0
      %2578 = vmatpush1.msra.mxu0 1.0
      %2579 = vmatprep.mubr.f32.mxu0 %v2508
      %2580 = vmatmul.mubr.f32.gmra.mrb[0].mxu0 %v2507
      %v2581 = vpop.f32.mrb[0].mxu0
      %v2582 = vadd.f32 0.0, %v2581
      %v2583 = vpop.f32.mrb[0].mxu0
      %2584 = vmatprep.mubr.f32.mxu0 %v2510
      %2585 = vmatmul.mubr.f32.gmra.mrb[0].mxu0 %v2509
      %v2586 = vpop.f32.mrb[0].mxu0
      %v2587 = vadd.f32 0.0, %v2586
      %v2588 = vpop.f32.mrb[0].mxu0
      %2589 = vmatprep.mubr.f32.mxu0 %v2512
      %2590 = vmatmul.mubr.f32.gmra.mrb[0].mxu0 %v2511
      %v2591 = vpop.f32.mrb[0].mxu0
      %v2592 = vadd.f32 0.0, %v2591
      %v2593 = vpop.f32.mrb[0].mxu0
      %2594 = vmatprep.mubr.f32.mxu0 %v2514
      %2595 = vmatmul.mubr.f32.gmra.mrb[0].mxu0 %v2513
      %v2596 = vpop.f32.mrb[0].mxu0
      %v2597 = vadd.f32 0.0, %v2596
      %v2598 = vpop.f32.mrb[0].mxu0
      %2599 = vdwg.mxu0
      %2600 = vmatprep.subr.mxu0 0.0
      %2601 = vmatpush1.msra.mxu0 %v2582
      %2602 = vmatprep.subr.mxu0 0.0
      %2603 = vmatpush1.msra.mxu0 %v2587
      %2604 = vmatprep.subr.mxu0 0.0
      %2605 = vmatpush1.msra.mxu0 %v2592
      %2606 = vmatprep.subr.mxu0 0.0
      %2607 = vmatpush1.msra.mxu0 %v2597
      %2608 = vmatprep.subr.mxu0 0.0
      %2609 = vmatpush1.msra.mxu0 0.0
      %2610 = vmatprep.subr.mxu0 0.0
      %2611 = vmatpush1.msra.mxu0 0.0
      %2612 = vmatprep.subr.mxu0 0.0
      %2613 = vmatpush1.msra.mxu0 0.0
      %2614 = vmatprep.subr.mxu0 0.0
      %2615 = vmatpush1.msra.mxu0 0.0
      %2616 = vmatprep.subr.mxu0 0.0
      %2617 = vmatpush1.msra.mxu0 0.0
      %2618 = vmatprep.subr.mxu0 0.0
      %2619 = vmatpush1.msra.mxu0 0.0
      %2620 = vmatprep.subr.mxu0 0.0
      %2621 = vmatpush1.msra.mxu0 0.0
      %2622 = vmatprep.subr.mxu0 0.0
      %2623 = vmatpush1.msra.mxu0 0.0
      %2624 = vmatprep.subr.mxu0 0.0
      %2625 = vmatpush1.msra.mxu0 0.0
      %2626 = vmatprep.subr.mxu0 0.0
      %2627 = vmatpush1.msra.mxu0 0.0
      %2628 = vmatprep.subr.mxu0 0.0
      %2629 = vmatpush1.msra.mxu0 0.0
      %2630 = vmatprep.subr.mxu0 0.0
      %2631 = vmatpush1.msra.mxu0 0.0
      %2632 = vmatprep.subr.mxu0 0.0
      %2633 = vmatpush1.msra.mxu0 0.0
      %2634 = vmatprep.subr.mxu0 0.0
      %2635 = vmatpush1.msra.mxu0 0.0
      %2636 = vmatprep.subr.mxu0 0.0
      %2637 = vmatpush1.msra.mxu0 0.0
      %2638 = vmatprep.subr.mxu0 0.0
      %2639 = vmatpush1.msra.mxu0 0.0
      %2640 = vmatprep.subr.mxu0 0.0
      %2641 = vmatpush1.msra.mxu0 0.0
      %2642 = vmatprep.subr.mxu0 0.0
      %2643 = vmatpush1.msra.mxu0 0.0
      %2644 = vmatprep.subr.mxu0 0.0
      %2645 = vmatpush1.msra.mxu0 0.0
      %2646 = vmatprep.subr.mxu0 0.0
      %2647 = vmatpush1.msra.mxu0 0.0
      %2648 = vmatprep.subr.mxu0 0.0
      %2649 = vmatpush1.msra.mxu0 0.0
      %2650 = vmatprep.subr.mxu0 0.0
      %2651 = vmatpush1.msra.mxu0 0.0
      %2652 = vmatprep.subr.mxu0 0.0
      %2653 = vmatpush1.msra.mxu0 0.0
      %2654 = vmatprep.subr.mxu0 0.0
      %2655 = vmatpush1.msra.mxu0 0.0
      %2656 = vmatprep.subr.mxu0 0.0
      %2657 = vmatpush1.msra.mxu0 0.0
      %2658 = vmatprep.subr.mxu0 0.0
      %2659 = vmatpush1.msra.mxu0 0.0
      %2660 = vmatprep.subr.mxu0 0.0
      %2661 = vmatpush1.msra.mxu0 0.0
      %2662 = vmatprep.subr.mxu0 0.0
      %2663 = vmatpush1.msra.mxu0 0.0
      %2664 = vmatprep.mubr.f32.mxu0 0.0
      %2665 = vmatmul.mubr.f32.gmra.mrb[0].mxu0 %v2305
      %v2666 = vpop.f32.mrb[0].mxu0
      %v2667 = vadd.f32 0.0, %v2666
      %v2668 = vpop.f32.mrb[0].mxu0
      %2669 = vdwg.mxu0
      %v2670 = vmul.f32 %v2667, %v1037
      %v2671 = vadd.f32 %v2670, 1e-05
      %v2672 = vrsqrt.pop %v2671
      %2673 = vmatprep.subr.mxu0 0.0
      %2674 = vmatpush1.msra.mxu0 %v2672
      %2675 = vmatprep.subr.mxu0 0.0
      %2676 = vmatpush1.msra.mxu0 0.0
      %2677 = vmatprep.subr.mxu0 0.0
      %2678 = vmatpush1.msra.mxu0 0.0
      %2679 = vmatprep.subr.mxu0 0.0
      %2680 = vmatpush1.msra.mxu0 0.0
      %2681 = vmatprep.subr.mxu0 0.0
      %2682 = vmatpush1.msra.mxu0 0.0
      %2683 = vmatprep.subr.mxu0 0.0
      %2684 = vmatpush1.msra.mxu0 0.0
      %2685 = vmatprep.subr.mxu0 0.0
      %2686 = vmatpush1.msra.mxu0 0.0
      %2687 = vmatprep.subr.mxu0 0.0
      %2688 = vmatpush1.msra.mxu0 0.0
      %2689 = vmatprep.subr.mxu0 0.0
      %2690 = vmatpush1.msra.mxu0 0.0
      %2691 = vmatprep.subr.mxu0 0.0
      %2692 = vmatpush1.msra.mxu0 0.0
      %2693 = vmatprep.subr.mxu0 0.0
      %2694 = vmatpush1.msra.mxu0 0.0
      %2695 = vmatprep.subr.mxu0 0.0
      %2696 = vmatpush1.msra.mxu0 0.0
      %2697 = vmatprep.subr.mxu0 0.0
      %2698 = vmatpush1.msra.mxu0 0.0
      %2699 = vmatprep.subr.mxu0 0.0
      %2700 = vmatpush1.msra.mxu0 0.0
      %2701 = vmatprep.subr.mxu0 0.0
      %2702 = vmatpush1.msra.mxu0 0.0
      %2703 = vmatprep.subr.mxu0 0.0
      %2704 = vmatpush1.msra.mxu0 0.0
      %2705 = vmatprep.subr.mxu0 0.0
      %2706 = vmatpush1.msra.mxu0 0.0
      %2707 = vmatprep.subr.mxu0 0.0
      %2708 = vmatpush1.msra.mxu0 0.0
      %2709 = vmatprep.subr.mxu0 0.0
      %2710 = vmatpush1.msra.mxu0 0.0
      %2711 = vmatprep.subr.mxu0 0.0
      %2712 = vmatpush1.msra.mxu0 0.0
      %2713 = vmatprep.subr.mxu0 0.0
      %2714 = vmatpush1.msra.mxu0 0.0
      %2715 = vmatprep.subr.mxu0 0.0
      %2716 = vmatpush1.msra.mxu0 0.0
      %2717 = vmatprep.subr.mxu0 0.0
      %2718 = vmatpush1.msra.mxu0 0.0
      %2719 = vmatprep.subr.mxu0 0.0
      %2720 = vmatpush1.msra.mxu0 0.0
      %2721 = vmatprep.subr.mxu0 0.0
      %2722 = vmatpush1.msra.mxu0 0.0
      %2723 = vmatprep.subr.mxu0 0.0
      %2724 = vmatpush1.msra.mxu0 0.0
      %2725 = vmatprep.subr.mxu0 0.0
      %2726 = vmatpush1.msra.mxu0 0.0
      %2727 = vmatprep.subr.mxu0 0.0
      %2728 = vmatpush1.msra.mxu0 0.0
      %2729 = vmatprep.subr.mxu0 0.0
      %2730 = vmatpush1.msra.mxu0 0.0
      %2731 = vmatprep.subr.mxu0 0.0
      %2732 = vmatpush1.msra.mxu0 0.0
      %2733 = vmatprep.subr.mxu0 0.0
      %2734 = vmatpush1.msra.mxu0 0.0
      %2735 = vmatprep.subr.mxu0 0.0
      %2736 = vmatpush1.msra.mxu0 0.0
      %2737 = vmatprep.mubr.f32.mxu0 0.0
      %2738 = vmatmul.mubr.f32.gmra.mrb[0].mxu0 %v2383
      %v2739 = vpop.f32.mrb[0].mxu0
      %v2740 = vadd.f32 0.0, %v2739
      %v2741 = vpop.f32.mrb[0].mxu0
      %2742 = vmatprep.mubr.f32.mxu0 0.0
      %2743 = vmatmul.mubr.f32.gmra.mrb[0].mxu0 %v2386
      %v2744 = vpop.f32.mrb[0].mxu0
      %v2745 = vadd.f32 0.0, %v2744
      %v2746 = vpop.f32.mrb[0].mxu0
      %2747 = vmatprep.mubr.f32.mxu0 0.0
      %2748 = vmatmul.mubr.f32.gmra.mrb[0].mxu0 %v2389
      %v2749 = vpop.f32.mrb[0].mxu0
      %v2750 = vadd.f32 0.0, %v2749
      %v2751 = vpop.f32.mrb[0].mxu0
      %2752 = vmatprep.mubr.f32.mxu0 0.0
      %2753 = vmatmul.mubr.f32.gmra.mrb[0].mxu0 %v2392
      %v2754 = vpop.f32.mrb[0].mxu0
      %v2755 = vadd.f32 0.0, %v2754
      %v2756 = vpop.f32.mrb[0].mxu0
      %2757 = vdwg.mxu0
      %2759 = vset.pattern.permute.xlu0 0
      %2760 = vperm.xlu0 %2759, %v2740
      %v2761 = vpop.permute.xlu0 %2760
      %2764 = vset.pattern.permute.xlu0 0
      %2765 = vperm.xlu0 %2764, %v2745
      %v2766 = vpop.permute.xlu0 %2765
      %2769 = vset.pattern.permute.xlu0 0
      %2770 = vperm.xlu0 %2769, %v2750
      %v2771 = vpop.permute.xlu0 %2770
      %2774 = vset.pattern.permute.xlu0 0
      %2775 = vperm.xlu0 %2774, %v2755
      %v2776 = vpop.permute.xlu0 %2775
      %v2778 = vmul.f32 %v2499, %v2761
      %v2779 = vmul.f32 %v2500, %v2761
      %v2780 = vmul.f32 %v2501, %v2766
      %v2781 = vmul.f32 %v2502, %v2766
      %v2782 = vmul.f32 %v2503, %v2771
      %v2783 = vmul.f32 %v2504, %v2771
      %v2784 = vmul.f32 %v2505, %v2776
      %v2785 = vmul.f32 %v2506, %v2776
      %2787 = vset.pattern.permute.xlu0 4
      %2788 = vperm.xlu0 %2787, %v2214
      %v2789 = vpop.permute.xlu0 %2788
      %2792 = vset.pattern.permute.xlu0 4
      %2793 = vperm.xlu0 %2792, %v2215
      %v2794 = vpop.permute.xlu0 %2793
      %2797 = vset.pattern.permute.xlu0 4
      %2798 = vperm.xlu0 %2797, %v2216
      %v2799 = vpop.permute.xlu0 %2798
      %2802 = vset.pattern.permute.xlu0 4
      %2803 = vperm.xlu0 %2802, %v2217
      %v2804 = vpop.permute.xlu0 %2803
      %v2806 = vmul.f32 %v2778, %v2789
      %v2807 = vmul.f32 %v2779, %v2789
      %v2808 = vmul.f32 %v2780, %v2794
      %v2809 = vmul.f32 %v2781, %v2794
      %v2810 = vmul.f32 %v2782, %v2799
      %v2811 = vmul.f32 %v2783, %v2799
      %v2812 = vmul.f32 %v2784, %v2804
      %v2813 = vmul.f32 %v2785, %v2804
      %2814 = vset.pattern.permute.xlu0 5
      %2815 = vperm.xlu0 %2814, %v2214
      %v2816 = vpop.permute.xlu0 %2815
      %2818 = vset.pattern.permute.xlu0 5
      %2819 = vperm.xlu0 %2818, %v2215
      %v2820 = vpop.permute.xlu0 %2819
      %2822 = vset.pattern.permute.xlu0 5
      %2823 = vperm.xlu0 %2822, %v2216
      %v2824 = vpop.permute.xlu0 %2823
      %2826 = vset.pattern.permute.xlu0 5
      %2827 = vperm.xlu0 %2826, %v2217
      %v2828 = vpop.permute.xlu0 %2827
      %v2830 = vadd.f32 %v2806, %v2816
      %v2831 = vadd.f32 %v2807, %v2816
      %v2832 = vadd.f32 %v2808, %v2820
      %v2833 = vadd.f32 %v2809, %v2820
      %v2834 = vadd.f32 %v2810, %v2824
      %v2835 = vadd.f32 %v2811, %v2824
      %v2836 = vadd.f32 %v2812, %v2828
      %v2837 = vadd.f32 %v2813, %v2828
      %v2838 = vxor.u32 %v2830, 2147483648
      %v2839 = vxor.u32 %v2831, 2147483648
      %v2840 = vxor.u32 %v2832, 2147483648
      %v2841 = vxor.u32 %v2833, 2147483648
      %v2842 = vxor.u32 %v2834, 2147483648
      %v2843 = vxor.u32 %v2835, 2147483648
      %v2844 = vxor.u32 %v2836, 2147483648
      %v2845 = vxor.u32 %v2837, 2147483648
      %v2846 = vmul.f32 %v2838, 1.442695
      %v2847 = vpow.pop %v2846
      %v2848 = vmul.f32 %v2839, 1.442695
      %v2849 = vpow.pop %v2848
      %v2850 = vmul.f32 %v2840, 1.442695
      %v2851 = vpow.pop %v2850
      %v2852 = vmul.f32 %v2841, 1.442695
      %v2853 = vpow.pop %v2852
      %v2854 = vmul.f32 %v2842, 1.442695
      %v2855 = vpow.pop %v2854
      %v2856 = vmul.f32 %v2843, 1.442695
      %v2857 = vpow.pop %v2856
      %v2858 = vmul.f32 %v2844, 1.442695
      %v2859 = vpow.pop %v2858
      %v2860 = vmul.f32 %v2845, 1.442695
      %v2861 = vpow.pop %v2860
      %v2862 = vadd.f32 %v2847, 1.0
      %v2863 = vadd.f32 %v2849, 1.0
      %v2864 = vadd.f32 %v2851, 1.0
      %v2865 = vadd.f32 %v2853, 1.0
      %v2866 = vadd.f32 %v2855, 1.0
      %v2867 = vadd.f32 %v2857, 1.0
      %v2868 = vadd.f32 %v2859, 1.0
      %v2869 = vadd.f32 %v2861, 1.0
      %v2870 = vrcp.pop %v2862
      %v2871 = vmul.f32 1.0, %v2870
      %v2872 = vrcp.pop %v2863
      %v2873 = vmul.f32 1.0, %v2872
      %v2874 = vrcp.pop %v2864
      %v2875 = vmul.f32 1.0, %v2874
      %v2876 = vrcp.pop %v2865
      %v2877 = vmul.f32 1.0, %v2876
      %v2878 = vrcp.pop %v2866
      %v2879 = vmul.f32 1.0, %v2878
      %v2880 = vrcp.pop %v2867
      %v2881 = vmul.f32 1.0, %v2880
      %v2882 = vrcp.pop %v2868
      %v2883 = vmul.f32 1.0, %v2882
      %v2884 = vrcp.pop %v2869
      %v2885 = vmul.f32 1.0, %v2884
      %v2886 = vmul.f32 %v2830, %v2871
      %v2887 = vmul.f32 %v2831, %v2873
      %v2888 = vmul.f32 %v2832, %v2875
      %v2889 = vmul.f32 %v2833, %v2877
      %v2890 = vmul.f32 %v2834, %v2879
      %v2891 = vmul.f32 %v2835, %v2881
      %v2892 = vmul.f32 %v2836, %v2883
      %v2893 = vmul.f32 %v2837, %v2885
      %v2894 = vld [vmem:[%s5 + $0x30] sm:$0xff]
      %v2895 = vld [vmem:[%s5 + $0x38] sm:$0xf]
      %v2896 = vld [vmem:[%s5 + $0x3c] sm:$0xff]
      %v2897 = vld [vmem:[%s5 + $0x44] sm:$0xf]
      %v2898 = vld [vmem:[%s5 + $0x48] sm:$0xff]
      %v2899 = vld [vmem:[%s5 + $0x50] sm:$0xf]
      %v2900 = vld [vmem:[%s5 + $0x54] sm:$0xff]
      %v2901 = vld [vmem:[%s5 + $0x5c] sm:$0xf]
      %2902 = vrot.lane.b32.xlu0 %v2886, 17
      %v2903 = vpop.permute.xlu0 %2902
      %2904 = vrot.lane.b32.xlu0 %v2888, 17
      %v2905 = vpop.permute.xlu0 %2904
      %2906 = vrot.lane.b32.xlu0 %v2890, 17
      %v2907 = vpop.permute.xlu0 %2906
      %2908 = vrot.lane.b32.xlu0 %v2892, 17
      %v2909 = vpop.permute.xlu0 %2908
      %2910 = vrot.lane.b32.xlu0 %v2887, 17
      %v2911 = vpop.permute.xlu0 %2910
      %2912 = vrot.lane.b32.xlu0 %v2889, 17
      %v2913 = vpop.permute.xlu0 %2912
      %2914 = vrot.lane.b32.xlu0 %v2891, 17
      %v2915 = vpop.permute.xlu0 %2914
      %2916 = vrot.lane.b32.xlu0 %v2893, 17
      %v2917 = vpop.permute.xlu0 %2916
      %v2918 = vsel %vm490, %v2903, %v2911
      %v2919 = vsel %vm490, %v2905, %v2913
      %v2920 = vsel %vm490, %v2907, %v2915
      %v2921 = vsel %vm490, %v2909, %v2917
      %v2922 = vsel %vm490, %v2911, %v2903
      %v2923 = vsel %vm490, %v2913, %v2905
      %v2924 = vsel %vm490, %v2915, %v2907
      %v2925 = vsel %vm490, %v2917, %v2909
      %v2926 = vld [vmem:[%s9] ss:$8 sm:$0x3]
      %v2928 = vlaneseq
      %v2929 = vshrl.u32 %v2928, 7
      %v2930 = vsub.s32 0, %v2929
      %v2931 = vrot.slane %v2926, %v2930
      %v2932 = vlaneseq
      %v2933 = vshrl.u32 %v2932, 7
      %v2934 = vsub.s32 1, %v2933
      %v2935 = vrot.slane %v2926, %v2934
      %v2938 = vmul.f32 %v2922, %v2931
      %v2939 = vmul.f32 %v2918, %v2935
      %v2940 = vmul.f32 %v2923, %v2931
      %v2941 = vmul.f32 %v2919, %v2935
      %v2942 = vmul.f32 %v2924, %v2931
      %v2943 = vmul.f32 %v2920, %v2935
      %v2944 = vmul.f32 %v2925, %v2931
      %v2945 = vmul.f32 %v2921, %v2935
      %v2946 = vpack.c.bf16 %v2940, %v2938
      %v2947 = vpack.c.bf16 %v2941, %v2939
      %v2948 = vpack.c.bf16 %v2944, %v2942
      %v2949 = vpack.c.bf16 %v2945, %v2943
      %2950 = vst [vmem:[#allocation3] sm:$0xff] %v2946
      %2951 = vst [vmem:[#allocation3 + $0x8] sm:$0xff] %v2947
      %2952 = vst [vmem:[#allocation3 + $0x10] sm:$0xff] %v2948
      %2953 = vst [vmem:[#allocation3 + $0x18] sm:$0xff] %v2949
      %2954 = vrot.lane.b32.xlu0 %v2886, 16
      %v2955 = vpop.permute.xlu0 %2954
      %2956 = vrot.lane.b32.xlu0 %v2888, 16
      %v2957 = vpop.permute.xlu0 %2956
      %2958 = vrot.lane.b32.xlu0 %v2890, 16
      %v2959 = vpop.permute.xlu0 %2958
      %2960 = vrot.lane.b32.xlu0 %v2892, 16
      %v2961 = vpop.permute.xlu0 %2960
      %2962 = vrot.lane.b32.xlu0 %v2887, 16
      %v2963 = vpop.permute.xlu0 %2962
      %2964 = vrot.lane.b32.xlu0 %v2889, 16
      %v2965 = vpop.permute.xlu0 %2964
      %2966 = vrot.lane.b32.xlu0 %v2891, 16
      %v2967 = vpop.permute.xlu0 %2966
      %2968 = vrot.lane.b32.xlu0 %v2893, 16
      %v2969 = vpop.permute.xlu0 %2968
      %v2970 = vsel %vm520, %v2955, %v2963
      %v2971 = vsel %vm520, %v2957, %v2965
      %v2972 = vsel %vm520, %v2959, %v2967
      %v2973 = vsel %vm520, %v2961, %v2969
      %v2974 = vsel %vm520, %v2963, %v2955
      %v2975 = vsel %vm520, %v2965, %v2957
      %v2976 = vsel %vm520, %v2967, %v2959
      %v2977 = vsel %vm520, %v2969, %v2961
      %v2978 = vld [vmem:[%s523] ss:$8 sm:$0x3]
      %v2980 = vlaneseq
      %v2981 = vshrl.u32 %v2980, 7
      %v2982 = vsub.s32 0, %v2981
      %v2983 = vrot.slane %v2978, %v2982
      %v2984 = vlaneseq
      %v2985 = vshrl.u32 %v2984, 7
      %v2986 = vsub.s32 1, %v2985
      %v2987 = vrot.slane %v2978, %v2986
      %v2990 = vmul.f32 %v2974, %v2983
      %v2991 = vmul.f32 %v2970, %v2987
      %v2992 = vmul.f32 %v2975, %v2983
      %v2993 = vmul.f32 %v2971, %v2987
      %v2994 = vmul.f32 %v2976, %v2983
      %v2995 = vmul.f32 %v2972, %v2987
      %v2996 = vmul.f32 %v2977, %v2983
      %v2997 = vmul.f32 %v2973, %v2987
      %v2998 = vpack.c.bf16 %v2992, %v2990
      %v2999 = vpack.c.bf16 %v2993, %v2991
      %v3000 = vpack.c.bf16 %v2996, %v2994
      %v3001 = vpack.c.bf16 %v2997, %v2995
      %3002 = vst [vmem:[#allocation3 + $0x20] sm:$0xff] %v2998
      %3003 = vst [vmem:[#allocation3 + $0x28] sm:$0xff] %v2999
      %3004 = vst [vmem:[#allocation3 + $0x30] sm:$0xff] %v3000
      %3005 = vst [vmem:[#allocation3 + $0x38] sm:$0xff] %v3001
      %3006 = vrot.lane.b32.xlu0 %v2886, 15
      %v3007 = vpop.permute.xlu0 %3006
      %3008 = vrot.lane.b32.xlu0 %v2888, 15
      %v3009 = vpop.permute.xlu0 %3008
      %3010 = vrot.lane.b32.xlu0 %v2890, 15
      %v3011 = vpop.permute.xlu0 %3010
      %3012 = vrot.lane.b32.xlu0 %v2892, 15
      %v3013 = vpop.permute.xlu0 %3012
      %3014 = vrot.lane.b32.xlu0 %v2887, 15
      %v3015 = vpop.permute.xlu0 %3014
      %3016 = vrot.lane.b32.xlu0 %v2889, 15
      %v3017 = vpop.permute.xlu0 %3016
      %3018 = vrot.lane.b32.xlu0 %v2891, 15
      %v3019 = vpop.permute.xlu0 %3018
      %3020 = vrot.lane.b32.xlu0 %v2893, 15
      %v3021 = vpop.permute.xlu0 %3020
      %v3022 = vsel %vm552, %v3007, %v3015
      %v3023 = vsel %vm552, %v3009, %v3017
      %v3024 = vsel %vm552, %v3011, %v3019
      %v3025 = vsel %vm552, %v3013, %v3021
      %v3026 = vsel %vm552, %v3015, %v3007
      %v3027 = vsel %vm552, %v3017, %v3009
      %v3028 = vsel %vm552, %v3019, %v3011
      %v3029 = vsel %vm552, %v3021, %v3013
      %v3030 = vld [vmem:[%s555] ss:$8 sm:$0x3]
      %v3032 = vlaneseq
      %v3033 = vshrl.u32 %v3032, 7
      %v3034 = vsub.s32 0, %v3033
      %v3035 = vrot.slane %v3030, %v3034
      %v3036 = vlaneseq
      %v3037 = vshrl.u32 %v3036, 7
      %v3038 = vsub.s32 1, %v3037
      %v3039 = vrot.slane %v3030, %v3038
      %v3042 = vmul.f32 %v3026, %v3035
      %v3043 = vmul.f32 %v3022, %v3039
      %v3044 = vmul.f32 %v3027, %v3035
      %v3045 = vmul.f32 %v3023, %v3039
      %v3046 = vmul.f32 %v3028, %v3035
      %v3047 = vmul.f32 %v3024, %v3039
      %v3048 = vmul.f32 %v3029, %v3035
      %v3049 = vmul.f32 %v3025, %v3039
      %v3050 = vpack.c.bf16 %v3044, %v3042
      %v3051 = vpack.c.bf16 %v3045, %v3043
      %v3052 = vpack.c.bf16 %v3048, %v3046
      %v3053 = vpack.c.bf16 %v3049, %v3047
      %3054 = vst [vmem:[#allocation3 + $0x40] sm:$0xff] %v3050
      %3055 = vst [vmem:[#allocation3 + $0x48] sm:$0xff] %v3051
      %3056 = vst [vmem:[#allocation3 + $0x50] sm:$0xff] %v3052
      %3057 = vst [vmem:[#allocation3 + $0x58] sm:$0xff] %v3053
      %3058 = vrot.lane.b32.xlu0 %v2886, 1
      %v3059 = vpop.permute.xlu0 %3058
      %3060 = vrot.lane.b32.xlu0 %v2888, 1
      %v3061 = vpop.permute.xlu0 %3060
      %3062 = vrot.lane.b32.xlu0 %v2890, 1
      %v3063 = vpop.permute.xlu0 %3062
      %3064 = vrot.lane.b32.xlu0 %v2892, 1
      %v3065 = vpop.permute.xlu0 %3064
      %3066 = vrot.lane.b32.xlu0 %v2887, 1
      %v3067 = vpop.permute.xlu0 %3066
      %3068 = vrot.lane.b32.xlu0 %v2889, 1
      %v3069 = vpop.permute.xlu0 %3068
      %3070 = vrot.lane.b32.xlu0 %v2891, 1
      %v3071 = vpop.permute.xlu0 %3070
      %3072 = vrot.lane.b32.xlu0 %v2893, 1
      %v3073 = vpop.permute.xlu0 %3072
      %v3074 = vsel %vm583, %v3059, %v3067
      %v3075 = vsel %vm583, %v3061, %v3069
      %v3076 = vsel %vm583, %v3063, %v3071
      %v3077 = vsel %vm583, %v3065, %v3073
      %v3078 = vsel %vm583, %v3067, %v3059
      %v3079 = vsel %vm583, %v3069, %v3061
      %v3080 = vsel %vm583, %v3071, %v3063
      %v3081 = vsel %vm583, %v3073, %v3065
      %v3082 = vld [vmem:[%s586] ss:$8 sm:$0x3]
      %v3084 = vlaneseq
      %v3085 = vshrl.u32 %v3084, 7
      %v3086 = vsub.s32 0, %v3085
      %v3087 = vrot.slane %v3082, %v3086
      %v3088 = vlaneseq
      %v3089 = vshrl.u32 %v3088, 7
      %v3090 = vsub.s32 1, %v3089
      %v3091 = vrot.slane %v3082, %v3090
      %v3094 = vmul.f32 %v3078, %v3087
      %v3095 = vmul.f32 %v3074, %v3091
      %v3096 = vmul.f32 %v3079, %v3087
      %v3097 = vmul.f32 %v3075, %v3091
      %v3098 = vmul.f32 %v3080, %v3087
      %v3099 = vmul.f32 %v3076, %v3091
      %v3100 = vmul.f32 %v3081, %v3087
      %v3101 = vmul.f32 %v3077, %v3091
      %v3102 = vpack.c.bf16 %v3096, %v3094
      %v3103 = vpack.c.bf16 %v3097, %v3095
      %v3104 = vpack.c.bf16 %v3100, %v3098
      %v3105 = vpack.c.bf16 %v3101, %v3099
      %3106 = vst [vmem:[#allocation3 + $0x60] sm:$0xff] %v3102
      %3107 = vst [vmem:[#allocation3 + $0x68] sm:$0xff] %v3103
      %3108 = vst [vmem:[#allocation3 + $0x70] sm:$0xff] %v3104
      %3109 = vst [vmem:[#allocation3 + $0x78] sm:$0xff] %v3105
      %v3110 = vpack.c.bf16 %v2888, %v2886
      %v3111 = vpack.c.bf16 %v2889, %v2887
      %v3112 = vpack.c.bf16 %v2892, %v2890
      %v3113 = vpack.c.bf16 %v2893, %v2891
      %3114 = vst [vmem:[#allocation3 + $0x80] sm:$0xff] %v3110
      %3115 = vst [vmem:[#allocation3 + $0x88] sm:$0xff] %v3111
      %3116 = vst [vmem:[#allocation3 + $0x90] sm:$0xff] %v3112
      %3117 = vst [vmem:[#allocation3 + $0x98] sm:$0xff] %v3113
      %3118 = vrot.lane.b32.xlu0 %v2886, 127
      %v3119 = vpop.permute.xlu0 %3118
      %3120 = vrot.lane.b32.xlu0 %v2888, 127
      %v3121 = vpop.permute.xlu0 %3120
      %3122 = vrot.lane.b32.xlu0 %v2890, 127
      %v3123 = vpop.permute.xlu0 %3122
      %3124 = vrot.lane.b32.xlu0 %v2892, 127
      %v3125 = vpop.permute.xlu0 %3124
      %3126 = vrot.lane.b32.xlu0 %v2887, 127
      %v3127 = vpop.permute.xlu0 %3126
      %3128 = vrot.lane.b32.xlu0 %v2889, 127
      %v3129 = vpop.permute.xlu0 %3128
      %3130 = vrot.lane.b32.xlu0 %v2891, 127
      %v3131 = vpop.permute.xlu0 %3130
      %3132 = vrot.lane.b32.xlu0 %v2893, 127
      %v3133 = vpop.permute.xlu0 %3132
      %v3134 = vsel %vm624, %v3119, %v3127
      %v3135 = vsel %vm624, %v3121, %v3129
      %v3136 = vsel %vm624, %v3123, %v3131
      %v3137 = vsel %vm624, %v3125, %v3133
      %v3138 = vsel %vm624, %v3127, %v3119
      %v3139 = vsel %vm624, %v3129, %v3121
      %v3140 = vsel %vm624, %v3131, %v3123
      %v3141 = vsel %vm624, %v3133, %v3125
      %v3142 = vld [vmem:[%s627] ss:$8 sm:$0x3]
      %v3144 = vlaneseq
      %v3145 = vshrl.u32 %v3144, 7
      %v3146 = vsub.s32 0, %v3145
      %v3147 = vrot.slane %v3142, %v3146
      %v3148 = vlaneseq
      %v3149 = vshrl.u32 %v3148, 7
      %v3150 = vsub.s32 1, %v3149
      %v3151 = vrot.slane %v3142, %v3150
      %v3154 = vmul.f32 %v3134, %v3147
      %v3155 = vmul.f32 %v3138, %v3151
      %v3156 = vmul.f32 %v3135, %v3147
      %v3157 = vmul.f32 %v3139, %v3151
      %v3158 = vmul.f32 %v3136, %v3147
      %v3159 = vmul.f32 %v3140, %v3151
      %v3160 = vmul.f32 %v3137, %v3147
      %v3161 = vmul.f32 %v3141, %v3151
      %v3162 = vpack.c.bf16 %v3156, %v3154
      %v3163 = vpack.c.bf16 %v3157, %v3155
      %v3164 = vpack.c.bf16 %v3160, %v3158
      %v3165 = vpack.c.bf16 %v3161, %v3159
      %3166 = vst [vmem:[#allocation3 + $0xa0] sm:$0xff] %v3162
      %3167 = vst [vmem:[#allocation3 + $0xa8] sm:$0xff] %v3163
      %3168 = vst [vmem:[#allocation3 + $0xb0] sm:$0xff] %v3164
      %3169 = vst [vmem:[#allocation3 + $0xb8] sm:$0xff] %v3165
      %3170 = vrot.lane.b32.xlu0 %v2886, 113
      %v3171 = vpop.permute.xlu0 %3170
      %3172 = vrot.lane.b32.xlu0 %v2888, 113
      %v3173 = vpop.permute.xlu0 %3172
      %3174 = vrot.lane.b32.xlu0 %v2890, 113
      %v3175 = vpop.permute.xlu0 %3174
      %3176 = vrot.lane.b32.xlu0 %v2892, 113
      %v3177 = vpop.permute.xlu0 %3176
      %3178 = vrot.lane.b32.xlu0 %v2887, 113
      %v3179 = vpop.permute.xlu0 %3178
      %3180 = vrot.lane.b32.xlu0 %v2889, 113
      %v3181 = vpop.permute.xlu0 %3180
      %3182 = vrot.lane.b32.xlu0 %v2891, 113
      %v3183 = vpop.permute.xlu0 %3182
      %3184 = vrot.lane.b32.xlu0 %v2893, 113
      %v3185 = vpop.permute.xlu0 %3184
      %v3186 = vsel %vm656, %v3171, %v3179
      %v3187 = vsel %vm656, %v3173, %v3181
      %v3188 = vsel %vm656, %v3175, %v3183
      %v3189 = vsel %vm656, %v3177, %v3185
      %v3190 = vsel %vm656, %v3179, %v3171
      %v3191 = vsel %vm656, %v3181, %v3173
      %v3192 = vsel %vm656, %v3183, %v3175
      %v3193 = vsel %vm656, %v3185, %v3177
      %v3194 = vld [vmem:[%s659] ss:$8 sm:$0x3]
      %v3196 = vlaneseq
      %v3197 = vshrl.u32 %v3196, 7
      %v3198 = vsub.s32 0, %v3197
      %v3199 = vrot.slane %v3194, %v3198
      %v3200 = vlaneseq
      %v3201 = vshrl.u32 %v3200, 7
      %v3202 = vsub.s32 1, %v3201
      %v3203 = vrot.slane %v3194, %v3202
      %v3206 = vmul.f32 %v3186, %v3199
      %v3207 = vmul.f32 %v3190, %v3203
      %v3208 = vmul.f32 %v3187, %v3199
      %v3209 = vmul.f32 %v3191, %v3203
      %v3210 = vmul.f32 %v3188, %v3199
      %v3211 = vmul.f32 %v3192, %v3203
      %v3212 = vmul.f32 %v3189, %v3199
      %v3213 = vmul.f32 %v3193, %v3203
      %v3214 = vpack.c.bf16 %v3208, %v3206
      %v3215 = vpack.c.bf16 %v3209, %v3207
      %v3216 = vpack.c.bf16 %v3212, %v3210
      %v3217 = vpack.c.bf16 %v3213, %v3211
      %3218 = vst [vmem:[#allocation3 + $0xc0] sm:$0xff] %v3214
      %3219 = vst [vmem:[#allocation3 + $0xc8] sm:$0xff] %v3215
      %3220 = vst [vmem:[#allocation3 + $0xd0] sm:$0xff] %v3216
      %3221 = vst [vmem:[#allocation3 + $0xd8] sm:$0xff] %v3217
      %3222 = vrot.lane.b32.xlu0 %v2886, 112
      %v3223 = vpop.permute.xlu0 %3222
      %3224 = vrot.lane.b32.xlu0 %v2888, 112
      %v3225 = vpop.permute.xlu0 %3224
      %3226 = vrot.lane.b32.xlu0 %v2890, 112
      %v3227 = vpop.permute.xlu0 %3226
      %3228 = vrot.lane.b32.xlu0 %v2892, 112
      %v3229 = vpop.permute.xlu0 %3228
      %3230 = vrot.lane.b32.xlu0 %v2887, 112
      %v3231 = vpop.permute.xlu0 %3230
      %3232 = vrot.lane.b32.xlu0 %v2889, 112
      %v3233 = vpop.permute.xlu0 %3232
      %3234 = vrot.lane.b32.xlu0 %v2891, 112
      %v3235 = vpop.permute.xlu0 %3234
      %3236 = vrot.lane.b32.xlu0 %v2893, 112
      %v3237 = vpop.permute.xlu0 %3236
      %v3238 = vsel %vm687, %v3223, %v3231
      %v3239 = vsel %vm687, %v3225, %v3233
      %v3240 = vsel %vm687, %v3227, %v3235
      %v3241 = vsel %vm687, %v3229, %v3237
      %v3242 = vsel %vm687, %v3231, %v3223
      %v3243 = vsel %vm687, %v3233, %v3225
      %v3244 = vsel %vm687, %v3235, %v3227
      %v3245 = vsel %vm687, %v3237, %v3229
      %v3246 = vld [vmem:[%s690] ss:$8 sm:$0x3]
      %v3248 = vlaneseq
      %v3249 = vshrl.u32 %v3248, 7
      %v3250 = vsub.s32 0, %v3249
      %v3251 = vrot.slane %v3246, %v3250
      %v3252 = vlaneseq
      %v3253 = vshrl.u32 %v3252, 7
      %v3254 = vsub.s32 1, %v3253
      %v3255 = vrot.slane %v3246, %v3254
      %v3258 = vmul.f32 %v3238, %v3251
      %v3259 = vmul.f32 %v3242, %v3255
      %v3260 = vmul.f32 %v3239, %v3251
      %v3261 = vmul.f32 %v3243, %v3255
      %v3262 = vmul.f32 %v3240, %v3251
      %v3263 = vmul.f32 %v3244, %v3255
      %v3264 = vmul.f32 %v3241, %v3251
      %v3265 = vmul.f32 %v3245, %v3255
      %v3266 = vpack.c.bf16 %v3260, %v3258
      %v3267 = vpack.c.bf16 %v3261, %v3259
      %v3268 = vpack.c.bf16 %v3264, %v3262
      %v3269 = vpack.c.bf16 %v3265, %v3263
      %3270 = vst [vmem:[#allocation3 + $0xe0] sm:$0xff] %v3266
      %3271 = vst [vmem:[#allocation3 + $0xe8] sm:$0xff] %v3267
      %3272 = vst [vmem:[#allocation3 + $0xf0] sm:$0xff] %v3268
      %3273 = vst [vmem:[#allocation3 + $0xf8] sm:$0xff] %v3269
      %3274 = vrot.lane.b32.xlu0 %v2886, 111
      %v3275 = vpop.permute.xlu0 %3274
      %3276 = vrot.lane.b32.xlu0 %v2888, 111
      %v3277 = vpop.permute.xlu0 %3276
      %3278 = vrot.lane.b32.xlu0 %v2890, 111
      %v3279 = vpop.permute.xlu0 %3278
      %3280 = vrot.lane.b32.xlu0 %v2892, 111
      %v3281 = vpop.permute.xlu0 %3280
      %3282 = vrot.lane.b32.xlu0 %v2887, 111
      %v3283 = vpop.permute.xlu0 %3282
      %3284 = vrot.lane.b32.xlu0 %v2889, 111
      %v3285 = vpop.permute.xlu0 %3284
      %3286 = vrot.lane.b32.xlu0 %v2891, 111
      %v3287 = vpop.permute.xlu0 %3286
      %3288 = vrot.lane.b32.xlu0 %v2893, 111
      %v3289 = vpop.permute.xlu0 %3288
      %v3290 = vsel %vm719, %v3275, %v3283
      %v3291 = vsel %vm719, %v3277, %v3285
      %v3292 = vsel %vm719, %v3279, %v3287
      %v3293 = vsel %vm719, %v3281, %v3289
      %v3294 = vsel %vm719, %v3283, %v3275
      %v3295 = vsel %vm719, %v3285, %v3277
      %v3296 = vsel %vm719, %v3287, %v3279
      %v3297 = vsel %vm719, %v3289, %v3281
      %v3298 = vld [vmem:[%s722] ss:$8 sm:$0x3]
      %v3300 = vlaneseq
      %v3301 = vshrl.u32 %v3300, 7
      %v3302 = vsub.s32 0, %v3301
      %v3303 = vrot.slane %v3298, %v3302
      %v3304 = vlaneseq
      %v3305 = vshrl.u32 %v3304, 7
      %v3306 = vsub.s32 1, %v3305
      %v3307 = vrot.slane %v3298, %v3306
      %v3310 = vmul.f32 %v3290, %v3303
      %v3311 = vmul.f32 %v3294, %v3307
      %v3312 = vmul.f32 %v3291, %v3303
      %v3313 = vmul.f32 %v3295, %v3307
      %v3314 = vmul.f32 %v3292, %v3303
      %v3315 = vmul.f32 %v3296, %v3307
      %v3316 = vmul.f32 %v3293, %v3303
      %v3317 = vmul.f32 %v3297, %v3307
      %v3318 = vpack.c.bf16 %v3312, %v3310
      %v3319 = vpack.c.bf16 %v3313, %v3311
      %v3320 = vpack.c.bf16 %v3316, %v3314
      %v3321 = vpack.c.bf16 %v3317, %v3315
      %3322 = vst [vmem:[#allocation3 + $0x100] sm:$0xff] %v3318
      %3323 = vst [vmem:[#allocation3 + $0x108] sm:$0xff] %v3319
      %3324 = vst [vmem:[#allocation3 + $0x110] sm:$0xff] %v3320
      %3325 = vst [vmem:[#allocation3 + $0x118] sm:$0xff] %v3321
      %v3326 = vld [vmem:[#allocation3] sm:$0xff]
      %v3327 = vld [vmem:[#allocation3 + $0x8] sm:$0xff]
      %v3328 = vld [vmem:[#allocation3 + $0x10] sm:$0xff]
      %v3329 = vld [vmem:[#allocation3 + $0x18] sm:$0xff]
      %v3330 = vld [vmem:[#allocation3 + $0x20] sm:$0xff]
      %v3331 = vld [vmem:[#allocation3 + $0x28] sm:$0xff]
      %v3332 = vld [vmem:[#allocation3 + $0x30] sm:$0xff]
      %v3333 = vld [vmem:[#allocation3 + $0x38] sm:$0xff]
      %v3334 = vld [vmem:[#allocation3 + $0x40] sm:$0xff]
      %v3335 = vld [vmem:[#allocation3 + $0x48] sm:$0xff]
      %v3336 = vld [vmem:[#allocation3 + $0x50] sm:$0xff]
      %v3337 = vld [vmem:[#allocation3 + $0x58] sm:$0xff]
      %v3338 = vld [vmem:[#allocation3 + $0x60] sm:$0xff]
      %v3339 = vld [vmem:[#allocation3 + $0x68] sm:$0xff]
      %v3340 = vld [vmem:[#allocation3 + $0x70] sm:$0xff]
      %v3341 = vld [vmem:[#allocation3 + $0x78] sm:$0xff]
      %v3342 = vld [vmem:[#allocation3 + $0x80] sm:$0xff]
      %v3343 = vld [vmem:[#allocation3 + $0x88] sm:$0xff]
      %v3344 = vld [vmem:[#allocation3 + $0x90] sm:$0xff]
      %v3345 = vld [vmem:[#allocation3 + $0x98] sm:$0xff]
      %v3346 = vld [vmem:[#allocation3 + $0xa0] sm:$0xff]
      %v3347 = vld [vmem:[#allocation3 + $0xa8] sm:$0xff]
      %v3348 = vld [vmem:[#allocation3 + $0xb0] sm:$0xff]
      %v3349 = vld [vmem:[#allocation3 + $0xb8] sm:$0xff]
      %v3350 = vld [vmem:[#allocation3 + $0xc0] sm:$0xff]
      %v3351 = vld [vmem:[#allocation3 + $0xc8] sm:$0xff]
      %v3352 = vld [vmem:[#allocation3 + $0xd0] sm:$0xff]
      %v3353 = vld [vmem:[#allocation3 + $0xd8] sm:$0xff]
      %v3354 = vld [vmem:[#allocation3 + $0xe0] sm:$0xff]
      %v3355 = vld [vmem:[#allocation3 + $0xe8] sm:$0xff]
      %v3356 = vld [vmem:[#allocation3 + $0xf0] sm:$0xff]
      %v3357 = vld [vmem:[#allocation3 + $0xf8] sm:$0xff]
      %v3358 = vld [vmem:[#allocation3 + $0x100] sm:$0xff]
      %v3359 = vld [vmem:[#allocation3 + $0x108] sm:$0xff]
      %v3360 = vld [vmem:[#allocation3 + $0x110] sm:$0xff]
      %v3361 = vld [vmem:[#allocation3 + $0x118] sm:$0xff]
      %3362 = vset.pattern.permute.xlu0 6
      %3363 = vperm.xlu0 %3362, %v2214
      %v3364 = vpop.permute.xlu0 %3363
      %3366 = vset.pattern.permute.xlu0 6
      %3367 = vperm.xlu0 %3366, %v2215
      %v3368 = vpop.permute.xlu0 %3367
      %3370 = vset.pattern.permute.xlu0 6
      %3371 = vperm.xlu0 %3370, %v2216
      %v3372 = vpop.permute.xlu0 %3371
      %3374 = vset.pattern.permute.xlu0 6
      %3375 = vperm.xlu0 %3374, %v2217
      %v3376 = vpop.permute.xlu0 %3375
      %v3386 = vunpack.c.l.b16 %v2894
      %v3387 = vunpack.c.h.b16 %v2894
      %v3388 = vunpack.c.l.b16 %v2895
      %v3389 = vunpack.c.l.b16 %v2896
      %v3390 = vunpack.c.h.b16 %v2896
      %v3391 = vunpack.c.l.b16 %v2897
      %v3392 = vunpack.c.l.b16 %v2898
      %v3393 = vunpack.c.h.b16 %v2898
      %v3394 = vunpack.c.l.b16 %v2899
      %v3395 = vunpack.c.l.b16 %v2900
      %v3396 = vunpack.c.h.b16 %v2900
      %v3397 = vunpack.c.l.b16 %v2901
      %v3398 = vpack.c.b16 %v3389, %v3386
      %v3399 = vpack.c.b16 %v3390, %v3387
      %v3400 = vpack.c.b16 %v3391, %v3388
      %v3401 = vpack.c.b16 %v3395, %v3392
      %v3402 = vpack.c.b16 %v3396, %v3393
      %v3403 = vpack.c.b16 %v3397, %v3394
      %v3409 = vsel %vm963, %v3400, 0
      %v3412 = vsel %vm963, %v3403, 0
      %3414 = vmatprep.subr.bf16.mxu0 %v3327
      %3415 = vmatpush1.bf16.msra.mxu0 %v3326
      %3416 = vmatprep.subr.bf16.mxu0 %v3329
      %3417 = vmatpush1.bf16.msra.mxu0 %v3328
      %3418 = vmatprep.subr.bf16.mxu0 %v3331
      %3419 = vmatpush1.bf16.msra.mxu0 %v3330
      %3420 = vmatprep.subr.bf16.mxu0 %v3333
      %3421 = vmatpush1.bf16.msra.mxu0 %v3332
      %3422 = vmatprep.subr.bf16.mxu0 %v3335
      %3423 = vmatpush1.bf16.msra.mxu0 %v3334
      %3424 = vmatprep.subr.bf16.mxu0 %v3337
      %3425 = vmatpush1.bf16.msra.mxu0 %v3336
      %3426 = vmatprep.subr.bf16.mxu0 %v3339
      %3427 = vmatpush1.bf16.msra.mxu0 %v3338
      %3428 = vmatprep.subr.bf16.mxu0 %v3341
      %3429 = vmatpush1.bf16.msra.mxu0 %v3340
      %3430 = vmatprep.subr.bf16.mxu0 %v3343
      %3431 = vmatpush1.bf16.msra.mxu0 %v3342
      %3432 = vmatprep.subr.bf16.mxu0 %v3345
      %3433 = vmatpush1.bf16.msra.mxu0 %v3344
      %3434 = vmatprep.subr.bf16.mxu0 %v3347
      %3435 = vmatpush1.bf16.msra.mxu0 %v3346
      %3436 = vmatprep.subr.bf16.mxu0 %v3349
      %3437 = vmatpush1.bf16.msra.mxu0 %v3348
      %3438 = vmatprep.subr.bf16.mxu0 %v3351
      %3439 = vmatpush1.bf16.msra.mxu0 %v3350
      %3440 = vmatprep.subr.bf16.mxu0 %v3353
      %3441 = vmatpush1.bf16.msra.mxu0 %v3352
      %3442 = vmatprep.subr.bf16.mxu0 %v3355
      %3443 = vmatpush1.bf16.msra.mxu0 %v3354
      %3444 = vmatprep.subr.bf16.mxu0 %v3357
      %3445 = vmatpush1.bf16.msra.mxu0 %v3356
      %3446 = vmatprep.mubr.bf16.mxu0 %v3399
      %3447 = vmatmul.mubr.bf16.gmra.mrb[0].mxu0 %v3398
      %v3448 = vpop.f32.mrb[0].mxu0
      %v3449 = vadd.f32 %v3364, %v3448
      %v3450 = vpop.f32.mrb[0].mxu0
      %v3451 = vadd.f32 %v3364, %v3450
      %v3452 = vpop.f32.mrb[0].mxu0
      %v3453 = vadd.f32 %v3368, %v3452
      %v3454 = vpop.f32.mrb[0].mxu0
      %v3455 = vadd.f32 %v3368, %v3454
      %3456 = vmatprep.mubr.bf16.mxu0 %v3402
      %3457 = vmatmul.mubr.bf16.gmra.mrb[0].mxu0 %v3401
      %v3458 = vpop.f32.mrb[0].mxu0
      %v3459 = vadd.f32 %v3372, %v3458
      %v3460 = vpop.f32.mrb[0].mxu0
      %v3461 = vadd.f32 %v3372, %v3460
      %v3462 = vpop.f32.mrb[0].mxu0
      %v3463 = vadd.f32 %v3376, %v3462
      %v3464 = vpop.f32.mrb[0].mxu0
      %v3465 = vadd.f32 %v3376, %v3464
      %3466 = vdwg.mxu0
      %3467 = vmatprep.subr.bf16.mxu0 %v3359
      %3468 = vmatpush1.bf16.msra.mxu0 %v3358
      %3469 = vmatprep.subr.bf16.mxu0 %v3361
      %3470 = vmatpush1.bf16.msra.mxu0 %v3360
      %3471 = vmatprep.subr.bf16.mxu0 0
      %3472 = vmatpush1.bf16.msra.mxu0 0
      %3473 = vmatprep.subr.bf16.mxu0 0
      %3474 = vmatpush1.bf16.msra.mxu0 0
      %3475 = vmatprep.subr.bf16.mxu0 0
      %3476 = vmatpush1.bf16.msra.mxu0 0
      %3477 = vmatprep.subr.bf16.mxu0 0
      %3478 = vmatpush1.bf16.msra.mxu0 0
      %3479 = vmatprep.subr.bf16.mxu0 0
      %3480 = vmatpush1.bf16.msra.mxu0 0
      %3481 = vmatprep.subr.bf16.mxu0 0
      %3482 = vmatpush1.bf16.msra.mxu0 0
      %3483 = vmatprep.subr.bf16.mxu0 0
      %3484 = vmatpush1.bf16.msra.mxu0 0
      %3485 = vmatprep.subr.bf16.mxu0 0
      %3486 = vmatpush1.bf16.msra.mxu0 0
      %3487 = vmatprep.subr.bf16.mxu0 0
      %3488 = vmatpush1.bf16.msra.mxu0 0
      %3489 = vmatprep.subr.bf16.mxu0 0
      %3490 = vmatpush1.bf16.msra.mxu0 0
      %3491 = vmatprep.subr.bf16.mxu0 0
      %3492 = vmatpush1.bf16.msra.mxu0 0
      %3493 = vmatprep.subr.bf16.mxu0 0
      %3494 = vmatpush1.bf16.msra.mxu0 0
      %3495 = vmatprep.subr.bf16.mxu0 0
      %3496 = vmatpush1.bf16.msra.mxu0 0
      %3497 = vmatprep.subr.bf16.mxu0 0
      %3498 = vmatpush1.bf16.msra.mxu0 0
      %3499 = vmatprep.mubr.bf16.mxu0 0
      %3500 = vmatmul.mubr.bf16.gmra.mrb[0].mxu0 %v3409
      %v3501 = vpop.f32.mrb[0].mxu0
      %v3502 = vadd.f32 %v3449, %v3501
      %v3503 = vpop.f32.mrb[0].mxu0
      %v3504 = vadd.f32 %v3451, %v3503
      %v3505 = vpop.f32.mrb[0].mxu0
      %v3506 = vadd.f32 %v3453, %v3505
      %v3507 = vpop.f32.mrb[0].mxu0
      %v3508 = vadd.f32 %v3455, %v3507
      %3509 = vmatprep.mubr.bf16.mxu0 0
      %3510 = vmatmul.mubr.bf16.gmra.mrb[0].mxu0 %v3412
      %v3511 = vpop.f32.mrb[0].mxu0
      %v3512 = vadd.f32 %v3459, %v3511
      %v3513 = vpop.f32.mrb[0].mxu0
      %v3514 = vadd.f32 %v3461, %v3513
      %v3515 = vpop.f32.mrb[0].mxu0
      %v3516 = vadd.f32 %v3463, %v3515
      %v3517 = vpop.f32.mrb[0].mxu0
      %v3518 = vadd.f32 %v3465, %v3517
      %3519 = vdwg.mxu0
      %v3520 = vadd.f32 %v3502, %v855
      %v3521 = vadd.f32 %v3504, %v857
      %v3522 = vadd.f32 %v3506, %v859
      %v3523 = vadd.f32 %v3508, %v861
      %v3524 = vadd.f32 %v3512, %v865
      %v3525 = vadd.f32 %v3514, %v867
      %v3526 = vadd.f32 %v3516, %v869
      %v3527 = vadd.f32 %v3518, %v871
      %v3528 = vld [vmem:[%s7] sm:$0xff]
      %v3529 = vld [vmem:[%s7 + $0x8] sm:$0xff]
      %v3530 = vld [vmem:[%s7 + $0x10] sm:$0xff]
      %v3531 = vld [vmem:[%s7 + $0x18] sm:$0xff]
      %3532 = vmatprep.subr.mxu0 0.0
      %3533 = vmatpush1.msra.mxu0 1.0
      %3534 = vmatprep.subr.mxu0 0.0
      %3535 = vmatpush1.msra.mxu0 1.0
      %3536 = vmatprep.subr.mxu0 0.0
      %3537 = vmatpush1.msra.mxu0 1.0
      %3538 = vmatprep.subr.mxu0 0.0
      %3539 = vmatpush1.msra.mxu0 1.0
      %3540 = vmatprep.subr.mxu0 0.0
      %3541 = vmatpush1.msra.mxu0 1.0
      %3542 = vmatprep.subr.mxu0 0.0
      %3543 = vmatpush1.msra.mxu0 1.0
      %3544 = vmatprep.subr.mxu0 0.0
      %3545 = vmatpush1.msra.mxu0 1.0
      %3546 = vmatprep.subr.mxu0 0.0
      %3547 = vmatpush1.msra.mxu0 1.0
      %3548 = vmatprep.subr.mxu0 0.0
      %3549 = vmatpush1.msra.mxu0 1.0
      %3550 = vmatprep.subr.mxu0 0.0
      %3551 = vmatpush1.msra.mxu0 1.0
      %3552 = vmatprep.subr.mxu0 0.0
      %3553 = vmatpush1.msra.mxu0 1.0
      %3554 = vmatprep.subr.mxu0 0.0
      %3555 = vmatpush1.msra.mxu0 1.0
      %3556 = vmatprep.subr.mxu0 0.0
      %3557 = vmatpush1.msra.mxu0 1.0
      %3558 = vmatprep.subr.mxu0 0.0
      %3559 = vmatpush1.msra.mxu0 1.0
      %3560 = vmatprep.subr.mxu0 0.0
      %3561 = vmatpush1.msra.mxu0 1.0
      %3562 = vmatprep.subr.mxu0 0.0
      %3563 = vmatpush1.msra.mxu0 1.0
      %3564 = vmatprep.subr.mxu0 0.0
      %3565 = vmatpush1.msra.mxu0 1.0
      %3566 = vmatprep.subr.mxu0 0.0
      %3567 = vmatpush1.msra.mxu0 1.0
      %3568 = vmatprep.subr.mxu0 0.0
      %3569 = vmatpush1.msra.mxu0 1.0
      %3570 = vmatprep.subr.mxu0 0.0
      %3571 = vmatpush1.msra.mxu0 1.0
      %3572 = vmatprep.subr.mxu0 0.0
      %3573 = vmatpush1.msra.mxu0 1.0
      %3574 = vmatprep.subr.mxu0 0.0
      %3575 = vmatpush1.msra.mxu0 1.0
      %3576 = vmatprep.subr.mxu0 0.0
      %3577 = vmatpush1.msra.mxu0 1.0
      %3578 = vmatprep.subr.mxu0 0.0
      %3579 = vmatpush1.msra.mxu0 1.0
      %3580 = vmatprep.subr.mxu0 0.0
      %3581 = vmatpush1.msra.mxu0 1.0
      %3582 = vmatprep.subr.mxu0 0.0
      %3583 = vmatpush1.msra.mxu0 1.0
      %3584 = vmatprep.subr.mxu0 0.0
      %3585 = vmatpush1.msra.mxu0 1.0
      %3586 = vmatprep.subr.mxu0 0.0
      %3587 = vmatpush1.msra.mxu0 1.0
      %3588 = vmatprep.subr.mxu0 0.0
      %3589 = vmatpush1.msra.mxu0 1.0
      %3590 = vmatprep.subr.mxu0 0.0
      %3591 = vmatpush1.msra.mxu0 1.0
      %3592 = vmatprep.subr.mxu0 0.0
      %3593 = vmatpush1.msra.mxu0 1.0
      %3594 = vmatprep.subr.mxu0 0.0
      %3595 = vmatpush1.msra.mxu0 1.0
      %3596 = vmatprep.mubr.f32.mxu0 %v3521
      %3597 = vmatmul.mubr.f32.gmra.mrb[0].mxu0 %v3520
      %v3598 = vpop.f32.mrb[0].mxu0
      %v3599 = vadd.f32 0.0, %v3598
      %v3600 = vpop.f32.mrb[0].mxu0
      %3601 = vmatprep.mubr.f32.mxu0 %v3523
      %3602 = vmatmul.mubr.f32.gmra.mrb[0].mxu0 %v3522
      %v3603 = vpop.f32.mrb[0].mxu0
      %v3604 = vadd.f32 0.0, %v3603
      %v3605 = vpop.f32.mrb[0].mxu0
      %3606 = vmatprep.mubr.f32.mxu0 %v3525
      %3607 = vmatmul.mubr.f32.gmra.mrb[0].mxu0 %v3524
      %v3608 = vpop.f32.mrb[0].mxu0
      %v3609 = vadd.f32 0.0, %v3608
      %v3610 = vpop.f32.mrb[0].mxu0
      %3611 = vmatprep.mubr.f32.mxu0 %v3527
      %3612 = vmatmul.mubr.f32.gmra.mrb[0].mxu0 %v3526
      %v3613 = vpop.f32.mrb[0].mxu0
      %v3614 = vadd.f32 0.0, %v3613
      %v3615 = vpop.f32.mrb[0].mxu0
      %3616 = vdwg.mxu0
      %v3617 = vld [vmem:[%s11] sm:$0xff]
      %v3619 = vsel %vm963, %v3617, 0
      %3621 = vmatprep.subr.mxu0 0.0
      %3622 = vmatpush1.msra.mxu0 %v3599
      %3623 = vmatprep.subr.mxu0 0.0
      %3624 = vmatpush1.msra.mxu0 %v3604
      %3625 = vmatprep.subr.mxu0 0.0
      %3626 = vmatpush1.msra.mxu0 %v3609
      %3627 = vmatprep.subr.mxu0 0.0
      %3628 = vmatpush1.msra.mxu0 %v3614
      %3629 = vmatprep.subr.mxu0 0.0
      %3630 = vmatpush1.msra.mxu0 0.0
      %3631 = vmatprep.subr.mxu0 0.0
      %3632 = vmatpush1.msra.mxu0 0.0
      %3633 = vmatprep.subr.mxu0 0.0
      %3634 = vmatpush1.msra.mxu0 0.0
      %3635 = vmatprep.subr.mxu0 0.0
      %3636 = vmatpush1.msra.mxu0 0.0
      %3637 = vmatprep.subr.mxu0 0.0
      %3638 = vmatpush1.msra.mxu0 0.0
      %3639 = vmatprep.subr.mxu0 0.0
      %3640 = vmatpush1.msra.mxu0 0.0
      %3641 = vmatprep.subr.mxu0 0.0
      %3642 = vmatpush1.msra.mxu0 0.0
      %3643 = vmatprep.subr.mxu0 0.0
      %3644 = vmatpush1.msra.mxu0 0.0
      %3645 = vmatprep.subr.mxu0 0.0
      %3646 = vmatpush1.msra.mxu0 0.0
      %3647 = vmatprep.subr.mxu0 0.0
      %3648 = vmatpush1.msra.mxu0 0.0
      %3649 = vmatprep.subr.mxu0 0.0
      %3650 = vmatpush1.msra.mxu0 0.0
      %3651 = vmatprep.subr.mxu0 0.0
      %3652 = vmatpush1.msra.mxu0 0.0
      %3653 = vmatprep.subr.mxu0 0.0
      %3654 = vmatpush1.msra.mxu0 0.0
      %3655 = vmatprep.subr.mxu0 0.0
      %3656 = vmatpush1.msra.mxu0 0.0
      %3657 = vmatprep.subr.mxu0 0.0
      %3658 = vmatpush1.msra.mxu0 0.0
      %3659 = vmatprep.subr.mxu0 0.0
      %3660 = vmatpush1.msra.mxu0 0.0
      %3661 = vmatprep.subr.mxu0 0.0
      %3662 = vmatpush1.msra.mxu0 0.0
      %3663 = vmatprep.subr.mxu0 0.0
      %3664 = vmatpush1.msra.mxu0 0.0
      %3665 = vmatprep.subr.mxu0 0.0
      %3666 = vmatpush1.msra.mxu0 0.0
      %3667 = vmatprep.subr.mxu0 0.0
      %3668 = vmatpush1.msra.mxu0 0.0
      %3669 = vmatprep.subr.mxu0 0.0
      %3670 = vmatpush1.msra.mxu0 0.0
      %3671 = vmatprep.subr.mxu0 0.0
      %3672 = vmatpush1.msra.mxu0 0.0
      %3673 = vmatprep.subr.mxu0 0.0
      %3674 = vmatpush1.msra.mxu0 0.0
      %3675 = vmatprep.subr.mxu0 0.0
      %3676 = vmatpush1.msra.mxu0 0.0
      %3677 = vmatprep.subr.mxu0 0.0
      %3678 = vmatpush1.msra.mxu0 0.0
      %3679 = vmatprep.subr.mxu0 0.0
      %3680 = vmatpush1.msra.mxu0 0.0
      %3681 = vmatprep.subr.mxu0 0.0
      %3682 = vmatpush1.msra.mxu0 0.0
      %3683 = vmatprep.subr.mxu0 0.0
      %3684 = vmatpush1.msra.mxu0 0.0
      %3685 = vmatprep.mubr.f32.mxu0 0.0
      %3686 = vmatmul.mubr.f32.gmra.mrb[0].mxu0 %v3619
      %v3687 = vpop.f32.mrb[0].mxu0
      %v3688 = vadd.f32 0.0, %v3687
      %v3689 = vpop.f32.mrb[0].mxu0
      %3690 = vdwg.mxu0
      %v3691 = vmul.f32 %v3688, %v1037
      %v3692 = vld [vmem:[%s10] sm:$0xff]
      %v3693 = vld [vmem:[%s10 + $0x8] sm:$0xff]
      %v3694 = vld [vmem:[%s10 + $0x10] sm:$0xff]
      %v3695 = vld [vmem:[%s10 + $0x18] sm:$0xff]
      %v3697 = vsel %vm1043, %v3692, 0
      %v3700 = vsel %vm1043, %v3693, 0
      %v3703 = vsel %vm1043, %v3694, 0
      %v3706 = vsel %vm1043, %v3695, 0
      %3708 = vmatprep.subr.mxu0 0.0
      %3709 = vmatpush1.msra.mxu0 %v3691
      %3710 = vmatprep.subr.mxu0 0.0
      %3711 = vmatpush1.msra.mxu0 0.0
      %3712 = vmatprep.subr.mxu0 0.0
      %3713 = vmatpush1.msra.mxu0 0.0
      %3714 = vmatprep.subr.mxu0 0.0
      %3715 = vmatpush1.msra.mxu0 0.0
      %3716 = vmatprep.subr.mxu0 0.0
      %3717 = vmatpush1.msra.mxu0 0.0
      %3718 = vmatprep.subr.mxu0 0.0
      %3719 = vmatpush1.msra.mxu0 0.0
      %3720 = vmatprep.subr.mxu0 0.0
      %3721 = vmatpush1.msra.mxu0 0.0
      %3722 = vmatprep.subr.mxu0 0.0
      %3723 = vmatpush1.msra.mxu0 0.0
      %3724 = vmatprep.subr.mxu0 0.0
      %3725 = vmatpush1.msra.mxu0 0.0
      %3726 = vmatprep.subr.mxu0 0.0
      %3727 = vmatpush1.msra.mxu0 0.0
      %3728 = vmatprep.subr.mxu0 0.0
      %3729 = vmatpush1.msra.mxu0 0.0
      %3730 = vmatprep.subr.mxu0 0.0
      %3731 = vmatpush1.msra.mxu0 0.0
      %3732 = vmatprep.subr.mxu0 0.0
      %3733 = vmatpush1.msra.mxu0 0.0
      %3734 = vmatprep.subr.mxu0 0.0
      %3735 = vmatpush1.msra.mxu0 0.0
      %3736 = vmatprep.subr.mxu0 0.0
      %3737 = vmatpush1.msra.mxu0 0.0
      %3738 = vmatprep.subr.mxu0 0.0
      %3739 = vmatpush1.msra.mxu0 0.0
      %3740 = vmatprep.subr.mxu0 0.0
      %3741 = vmatpush1.msra.mxu0 0.0
      %3742 = vmatprep.subr.mxu0 0.0
      %3743 = vmatpush1.msra.mxu0 0.0
      %3744 = vmatprep.subr.mxu0 0.0
      %3745 = vmatpush1.msra.mxu0 0.0
      %3746 = vmatprep.subr.mxu0 0.0
      %3747 = vmatpush1.msra.mxu0 0.0
      %3748 = vmatprep.subr.mxu0 0.0
      %3749 = vmatpush1.msra.mxu0 0.0
      %3750 = vmatprep.subr.mxu0 0.0
      %3751 = vmatpush1.msra.mxu0 0.0
      %3752 = vmatprep.subr.mxu0 0.0
      %3753 = vmatpush1.msra.mxu0 0.0
      %3754 = vmatprep.subr.mxu0 0.0
      %3755 = vmatpush1.msra.mxu0 0.0
      %3756 = vmatprep.subr.mxu0 0.0
      %3757 = vmatpush1.msra.mxu0 0.0
      %3758 = vmatprep.subr.mxu0 0.0
      %3759 = vmatpush1.msra.mxu0 0.0
      %3760 = vmatprep.subr.mxu0 0.0
      %3761 = vmatpush1.msra.mxu0 0.0
      %3762 = vmatprep.subr.mxu0 0.0
      %3763 = vmatpush1.msra.mxu0 0.0
      %3764 = vmatprep.subr.mxu0 0.0
      %3765 = vmatpush1.msra.mxu0 0.0
      %3766 = vmatprep.subr.mxu0 0.0
      %3767 = vmatpush1.msra.mxu0 0.0
      %3768 = vmatprep.subr.mxu0 0.0
      %3769 = vmatpush1.msra.mxu0 0.0
      %3770 = vmatprep.subr.mxu0 0.0
      %3771 = vmatpush1.msra.mxu0 0.0
      %3772 = vmatprep.mubr.f32.mxu0 0.0
      %3773 = vmatmul.mubr.f32.gmra.mrb[0].mxu0 %v3697
      %v3774 = vpop.f32.mrb[0].mxu0
      %v3775 = vadd.f32 0.0, %v3774
      %v3776 = vpop.f32.mrb[0].mxu0
      %3777 = vmatprep.mubr.f32.mxu0 0.0
      %3778 = vmatmul.mubr.f32.gmra.mrb[0].mxu0 %v3700
      %v3779 = vpop.f32.mrb[0].mxu0
      %v3780 = vadd.f32 0.0, %v3779
      %v3781 = vpop.f32.mrb[0].mxu0
      %3782 = vmatprep.mubr.f32.mxu0 0.0
      %3783 = vmatmul.mubr.f32.gmra.mrb[0].mxu0 %v3703
      %v3784 = vpop.f32.mrb[0].mxu0
      %v3785 = vadd.f32 0.0, %v3784
      %v3786 = vpop.f32.mrb[0].mxu0
      %3787 = vmatprep.mubr.f32.mxu0 0.0
      %3788 = vmatmul.mubr.f32.gmra.mrb[0].mxu0 %v3706
      %v3789 = vpop.f32.mrb[0].mxu0
      %v3790 = vadd.f32 0.0, %v3789
      %v3791 = vpop.f32.mrb[0].mxu0
      %3792 = vdwg.mxu0
      %3794 = vset.pattern.permute.xlu0 0
      %3795 = vperm.xlu0 %3794, %v3775
      %v3796 = vpop.permute.xlu0 %3795
      %3799 = vset.pattern.permute.xlu0 0
      %3800 = vperm.xlu0 %3799, %v3780
      %v3801 = vpop.permute.xlu0 %3800
      %3804 = vset.pattern.permute.xlu0 0
      %3805 = vperm.xlu0 %3804, %v3785
      %v3806 = vpop.permute.xlu0 %3805
      %3809 = vset.pattern.permute.xlu0 0
      %3810 = vperm.xlu0 %3809, %v3790
      %v3811 = vpop.permute.xlu0 %3810
      %v3813 = vsub.f32 %v3520, %v3796
      %v3814 = vsub.f32 %v3521, %v3796
      %v3815 = vsub.f32 %v3522, %v3801
      %v3816 = vsub.f32 %v3523, %v3801
      %v3817 = vsub.f32 %v3524, %v3806
      %v3818 = vsub.f32 %v3525, %v3806
      %v3819 = vsub.f32 %v3526, %v3811
      %v3820 = vsub.f32 %v3527, %v3811
      %v3821 = vmul.f32 %v3813, %v3813
      %v3822 = vmul.f32 %v3814, %v3814
      %v3823 = vmul.f32 %v3815, %v3815
      %v3824 = vmul.f32 %v3816, %v3816
      %v3825 = vmul.f32 %v3817, %v3817
      %v3826 = vmul.f32 %v3818, %v3818
      %v3827 = vmul.f32 %v3819, %v3819
      %v3828 = vmul.f32 %v3820, %v3820
      %3829 = vmatprep.subr.mxu0 0.0
      %3830 = vmatpush1.msra.mxu0 1.0
      %3831 = vmatprep.subr.mxu0 0.0
      %3832 = vmatpush1.msra.mxu0 1.0
      %3833 = vmatprep.subr.mxu0 0.0
      %3834 = vmatpush1.msra.mxu0 1.0
      %3835 = vmatprep.subr.mxu0 0.0
      %3836 = vmatpush1.msra.mxu0 1.0
      %3837 = vmatprep.subr.mxu0 0.0
      %3838 = vmatpush1.msra.mxu0 1.0
      %3839 = vmatprep.subr.mxu0 0.0
      %3840 = vmatpush1.msra.mxu0 1.0
      %3841 = vmatprep.subr.mxu0 0.0
      %3842 = vmatpush1.msra.mxu0 1.0
      %3843 = vmatprep.subr.mxu0 0.0
      %3844 = vmatpush1.msra.mxu0 1.0
      %3845 = vmatprep.subr.mxu0 0.0
      %3846 = vmatpush1.msra.mxu0 1.0
      %3847 = vmatprep.subr.mxu0 0.0
      %3848 = vmatpush1.msra.mxu0 1.0
      %3849 = vmatprep.subr.mxu0 0.0
      %3850 = vmatpush1.msra.mxu0 1.0
      %3851 = vmatprep.subr.mxu0 0.0
      %3852 = vmatpush1.msra.mxu0 1.0
      %3853 = vmatprep.subr.mxu0 0.0
      %3854 = vmatpush1.msra.mxu0 1.0
      %3855 = vmatprep.subr.mxu0 0.0
      %3856 = vmatpush1.msra.mxu0 1.0
      %3857 = vmatprep.subr.mxu0 0.0
      %3858 = vmatpush1.msra.mxu0 1.0
      %3859 = vmatprep.subr.mxu0 0.0
      %3860 = vmatpush1.msra.mxu0 1.0
      %3861 = vmatprep.subr.mxu0 0.0
      %3862 = vmatpush1.msra.mxu0 1.0
      %3863 = vmatprep.subr.mxu0 0.0
      %3864 = vmatpush1.msra.mxu0 1.0
      %3865 = vmatprep.subr.mxu0 0.0
      %3866 = vmatpush1.msra.mxu0 1.0
      %3867 = vmatprep.subr.mxu0 0.0
      %3868 = vmatpush1.msra.mxu0 1.0
      %3869 = vmatprep.subr.mxu0 0.0
      %3870 = vmatpush1.msra.mxu0 1.0
      %3871 = vmatprep.subr.mxu0 0.0
      %3872 = vmatpush1.msra.mxu0 1.0
      %3873 = vmatprep.subr.mxu0 0.0
      %3874 = vmatpush1.msra.mxu0 1.0
      %3875 = vmatprep.subr.mxu0 0.0
      %3876 = vmatpush1.msra.mxu0 1.0
      %3877 = vmatprep.subr.mxu0 0.0
      %3878 = vmatpush1.msra.mxu0 1.0
      %3879 = vmatprep.subr.mxu0 0.0
      %3880 = vmatpush1.msra.mxu0 1.0
      %3881 = vmatprep.subr.mxu0 0.0
      %3882 = vmatpush1.msra.mxu0 1.0
      %3883 = vmatprep.subr.mxu0 0.0
      %3884 = vmatpush1.msra.mxu0 1.0
      %3885 = vmatprep.subr.mxu0 0.0
      %3886 = vmatpush1.msra.mxu0 1.0
      %3887 = vmatprep.subr.mxu0 0.0
      %3888 = vmatpush1.msra.mxu0 1.0
      %3889 = vmatprep.subr.mxu0 0.0
      %3890 = vmatpush1.msra.mxu0 1.0
      %3891 = vmatprep.subr.mxu0 0.0
      %3892 = vmatpush1.msra.mxu0 1.0
      %3893 = vmatprep.mubr.f32.mxu0 %v3822
      %3894 = vmatmul.mubr.f32.gmra.mrb[0].mxu0 %v3821
      %v3895 = vpop.f32.mrb[0].mxu0
      %v3896 = vadd.f32 0.0, %v3895
      %v3897 = vpop.f32.mrb[0].mxu0
      %3898 = vmatprep.mubr.f32.mxu0 %v3824
      %3899 = vmatmul.mubr.f32.gmra.mrb[0].mxu0 %v3823
      %v3900 = vpop.f32.mrb[0].mxu0
      %v3901 = vadd.f32 0.0, %v3900
      %v3902 = vpop.f32.mrb[0].mxu0
      %3903 = vmatprep.mubr.f32.mxu0 %v3826
      %3904 = vmatmul.mubr.f32.gmra.mrb[0].mxu0 %v3825
      %v3905 = vpop.f32.mrb[0].mxu0
      %v3906 = vadd.f32 0.0, %v3905
      %v3907 = vpop.f32.mrb[0].mxu0
      %3908 = vmatprep.mubr.f32.mxu0 %v3828
      %3909 = vmatmul.mubr.f32.gmra.mrb[0].mxu0 %v3827
      %v3910 = vpop.f32.mrb[0].mxu0
      %v3911 = vadd.f32 0.0, %v3910
      %v3912 = vpop.f32.mrb[0].mxu0
      %3913 = vdwg.mxu0
      %3914 = vmatprep.subr.mxu0 0.0
      %3915 = vmatpush1.msra.mxu0 %v3896
      %3916 = vmatprep.subr.mxu0 0.0
      %3917 = vmatpush1.msra.mxu0 %v3901
      %3918 = vmatprep.subr.mxu0 0.0
      %3919 = vmatpush1.msra.mxu0 %v3906
      %3920 = vmatprep.subr.mxu0 0.0
      %3921 = vmatpush1.msra.mxu0 %v3911
      %3922 = vmatprep.subr.mxu0 0.0
      %3923 = vmatpush1.msra.mxu0 0.0
      %3924 = vmatprep.subr.mxu0 0.0
      %3925 = vmatpush1.msra.mxu0 0.0
      %3926 = vmatprep.subr.mxu0 0.0
      %3927 = vmatpush1.msra.mxu0 0.0
      %3928 = vmatprep.subr.mxu0 0.0
      %3929 = vmatpush1.msra.mxu0 0.0
      %3930 = vmatprep.subr.mxu0 0.0
      %3931 = vmatpush1.msra.mxu0 0.0
      %3932 = vmatprep.subr.mxu0 0.0
      %3933 = vmatpush1.msra.mxu0 0.0
      %3934 = vmatprep.subr.mxu0 0.0
      %3935 = vmatpush1.msra.mxu0 0.0
      %3936 = vmatprep.subr.mxu0 0.0
      %3937 = vmatpush1.msra.mxu0 0.0
      %3938 = vmatprep.subr.mxu0 0.0
      %3939 = vmatpush1.msra.mxu0 0.0
      %3940 = vmatprep.subr.mxu0 0.0
      %3941 = vmatpush1.msra.mxu0 0.0
      %3942 = vmatprep.subr.mxu0 0.0
      %3943 = vmatpush1.msra.mxu0 0.0
      %3944 = vmatprep.subr.mxu0 0.0
      %3945 = vmatpush1.msra.mxu0 0.0
      %3946 = vmatprep.subr.mxu0 0.0
      %3947 = vmatpush1.msra.mxu0 0.0
      %3948 = vmatprep.subr.mxu0 0.0
      %3949 = vmatpush1.msra.mxu0 0.0
      %3950 = vmatprep.subr.mxu0 0.0
      %3951 = vmatpush1.msra.mxu0 0.0
      %3952 = vmatprep.subr.mxu0 0.0
      %3953 = vmatpush1.msra.mxu0 0.0
      %3954 = vmatprep.subr.mxu0 0.0
      %3955 = vmatpush1.msra.mxu0 0.0
      %3956 = vmatprep.subr.mxu0 0.0
      %3957 = vmatpush1.msra.mxu0 0.0
      %3958 = vmatprep.subr.mxu0 0.0
      %3959 = vmatpush1.msra.mxu0 0.0
      %3960 = vmatprep.subr.mxu0 0.0
      %3961 = vmatpush1.msra.mxu0 0.0
      %3962 = vmatprep.subr.mxu0 0.0
      %3963 = vmatpush1.msra.mxu0 0.0
      %3964 = vmatprep.subr.mxu0 0.0
      %3965 = vmatpush1.msra.mxu0 0.0
      %3966 = vmatprep.subr.mxu0 0.0
      %3967 = vmatpush1.msra.mxu0 0.0
      %3968 = vmatprep.subr.mxu0 0.0
      %3969 = vmatpush1.msra.mxu0 0.0
      %3970 = vmatprep.subr.mxu0 0.0
      %3971 = vmatpush1.msra.mxu0 0.0
      %3972 = vmatprep.subr.mxu0 0.0
      %3973 = vmatpush1.msra.mxu0 0.0
      %3974 = vmatprep.subr.mxu0 0.0
      %3975 = vmatpush1.msra.mxu0 0.0
      %3976 = vmatprep.subr.mxu0 0.0
      %3977 = vmatpush1.msra.mxu0 0.0
      %3978 = vmatprep.mubr.f32.mxu0 0.0
      %3979 = vmatmul.mubr.f32.gmra.mrb[0].mxu0 %v3619
      %v3980 = vpop.f32.mrb[0].mxu0
      %v3981 = vadd.f32 0.0, %v3980
      %v3982 = vpop.f32.mrb[0].mxu0
      %3983 = vdwg.mxu0
      %v3984 = vmul.f32 %v3981, %v1037
      %v3985 = vadd.f32 %v3984, 1e-05
      %v3986 = vrsqrt.pop %v3985
      %3987 = vmatprep.subr.mxu0 0.0
      %3988 = vmatpush1.msra.mxu0 %v3986
      %3989 = vmatprep.subr.mxu0 0.0
      %3990 = vmatpush1.msra.mxu0 0.0
      %3991 = vmatprep.subr.mxu0 0.0
      %3992 = vmatpush1.msra.mxu0 0.0
      %3993 = vmatprep.subr.mxu0 0.0
      %3994 = vmatpush1.msra.mxu0 0.0
      %3995 = vmatprep.subr.mxu0 0.0
      %3996 = vmatpush1.msra.mxu0 0.0
      %3997 = vmatprep.subr.mxu0 0.0
      %3998 = vmatpush1.msra.mxu0 0.0
      %3999 = vmatprep.subr.mxu0 0.0
      %4000 = vmatpush1.msra.mxu0 0.0
      %4001 = vmatprep.subr.mxu0 0.0
      %4002 = vmatpush1.msra.mxu0 0.0
      %4003 = vmatprep.subr.mxu0 0.0
      %4004 = vmatpush1.msra.mxu0 0.0
      %4005 = vmatprep.subr.mxu0 0.0
      %4006 = vmatpush1.msra.mxu0 0.0
      %4007 = vmatprep.subr.mxu0 0.0
      %4008 = vmatpush1.msra.mxu0 0.0
      %4009 = vmatprep.subr.mxu0 0.0
      %4010 = vmatpush1.msra.mxu0 0.0
      %4011 = vmatprep.subr.mxu0 0.0
      %4012 = vmatpush1.msra.mxu0 0.0
      %4013 = vmatprep.subr.mxu0 0.0
      %4014 = vmatpush1.msra.mxu0 0.0
      %4015 = vmatprep.subr.mxu0 0.0
      %4016 = vmatpush1.msra.mxu0 0.0
      %4017 = vmatprep.subr.mxu0 0.0
      %4018 = vmatpush1.msra.mxu0 0.0
      %4019 = vmatprep.subr.mxu0 0.0
      %4020 = vmatpush1.msra.mxu0 0.0
      %4021 = vmatprep.subr.mxu0 0.0
      %4022 = vmatpush1.msra.mxu0 0.0
      %4023 = vmatprep.subr.mxu0 0.0
      %4024 = vmatpush1.msra.mxu0 0.0
      %4025 = vmatprep.subr.mxu0 0.0
      %4026 = vmatpush1.msra.mxu0 0.0
      %4027 = vmatprep.subr.mxu0 0.0
      %4028 = vmatpush1.msra.mxu0 0.0
      %4029 = vmatprep.subr.mxu0 0.0
      %4030 = vmatpush1.msra.mxu0 0.0
      %4031 = vmatprep.subr.mxu0 0.0
      %4032 = vmatpush1.msra.mxu0 0.0
      %4033 = vmatprep.subr.mxu0 0.0
      %4034 = vmatpush1.msra.mxu0 0.0
      %4035 = vmatprep.subr.mxu0 0.0
      %4036 = vmatpush1.msra.mxu0 0.0
      %4037 = vmatprep.subr.mxu0 0.0
      %4038 = vmatpush1.msra.mxu0 0.0
      %4039 = vmatprep.subr.mxu0 0.0
      %4040 = vmatpush1.msra.mxu0 0.0
      %4041 = vmatprep.subr.mxu0 0.0
      %4042 = vmatpush1.msra.mxu0 0.0
      %4043 = vmatprep.subr.mxu0 0.0
      %4044 = vmatpush1.msra.mxu0 0.0
      %4045 = vmatprep.subr.mxu0 0.0
      %4046 = vmatpush1.msra.mxu0 0.0
      %4047 = vmatprep.subr.mxu0 0.0
      %4048 = vmatpush1.msra.mxu0 0.0
      %4049 = vmatprep.subr.mxu0 0.0
      %4050 = vmatpush1.msra.mxu0 0.0
      %4051 = vmatprep.mubr.f32.mxu0 0.0
      %4052 = vmatmul.mubr.f32.gmra.mrb[0].mxu0 %v3697
      %v4053 = vpop.f32.mrb[0].mxu0
      %v4054 = vadd.f32 0.0, %v4053
      %v4055 = vpop.f32.mrb[0].mxu0
      %4056 = vmatprep.mubr.f32.mxu0 0.0
      %4057 = vmatmul.mubr.f32.gmra.mrb[0].mxu0 %v3700
      %v4058 = vpop.f32.mrb[0].mxu0
      %v4059 = vadd.f32 0.0, %v4058
      %v4060 = vpop.f32.mrb[0].mxu0
      %4061 = vmatprep.mubr.f32.mxu0 0.0
      %4062 = vmatmul.mubr.f32.gmra.mrb[0].mxu0 %v3703
      %v4063 = vpop.f32.mrb[0].mxu0
      %v4064 = vadd.f32 0.0, %v4063
      %v4065 = vpop.f32.mrb[0].mxu0
      %4066 = vmatprep.mubr.f32.mxu0 0.0
      %4067 = vmatmul.mubr.f32.gmra.mrb[0].mxu0 %v3706
      %v4068 = vpop.f32.mrb[0].mxu0
      %v4069 = vadd.f32 0.0, %v4068
      %v4070 = vpop.f32.mrb[0].mxu0
      %4071 = vdwg.mxu0
      %4073 = vset.pattern.permute.xlu0 0
      %4074 = vperm.xlu0 %4073, %v4054
      %v4075 = vpop.permute.xlu0 %4074
      %4078 = vset.pattern.permute.xlu0 0
      %4079 = vperm.xlu0 %4078, %v4059
      %v4080 = vpop.permute.xlu0 %4079
      %4083 = vset.pattern.permute.xlu0 0
      %4084 = vperm.xlu0 %4083, %v4064
      %v4085 = vpop.permute.xlu0 %4084
      %4088 = vset.pattern.permute.xlu0 0
      %4089 = vperm.xlu0 %4088, %v4069
      %v4090 = vpop.permute.xlu0 %4089
      %v4092 = vmul.f32 %v3813, %v4075
      %v4093 = vmul.f32 %v3814, %v4075
      %v4094 = vmul.f32 %v3815, %v4080
      %v4095 = vmul.f32 %v3816, %v4080
      %v4096 = vmul.f32 %v3817, %v4085
      %v4097 = vmul.f32 %v3818, %v4085
      %v4098 = vmul.f32 %v3819, %v4090
      %v4099 = vmul.f32 %v3820, %v4090
      %4101 = vset.pattern.permute.xlu0 7
      %4102 = vperm.xlu0 %4101, %v3528
      %v4103 = vpop.permute.xlu0 %4102
      %4106 = vset.pattern.permute.xlu0 7
      %4107 = vperm.xlu0 %4106, %v3529
      %v4108 = vpop.permute.xlu0 %4107
      %4111 = vset.pattern.permute.xlu0 7
      %4112 = vperm.xlu0 %4111, %v3530
      %v4113 = vpop.permute.xlu0 %4112
      %4116 = vset.pattern.permute.xlu0 7
      %4117 = vperm.xlu0 %4116, %v3531
      %v4118 = vpop.permute.xlu0 %4117
      %v4120 = vmul.f32 %v4092, %v4103
      %v4121 = vmul.f32 %v4093, %v4103
      %v4122 = vmul.f32 %v4094, %v4108
      %v4123 = vmul.f32 %v4095, %v4108
      %v4124 = vmul.f32 %v4096, %v4113
      %v4125 = vmul.f32 %v4097, %v4113
      %v4126 = vmul.f32 %v4098, %v4118
      %v4127 = vmul.f32 %v4099, %v4118
      %4128 = vset.pattern.permute.xlu0 8
      %4129 = vperm.xlu0 %4128, %v3528
      %v4130 = vpop.permute.xlu0 %4129
      %4132 = vset.pattern.permute.xlu0 8
      %4133 = vperm.xlu0 %4132, %v3529
      %v4134 = vpop.permute.xlu0 %4133
      %4136 = vset.pattern.permute.xlu0 8
      %4137 = vperm.xlu0 %4136, %v3530
      %v4138 = vpop.permute.xlu0 %4137
      %4140 = vset.pattern.permute.xlu0 8
      %4141 = vperm.xlu0 %4140, %v3531
      %v4142 = vpop.permute.xlu0 %4141
      %v4144 = vadd.f32 %v4120, %v4130
      %v4145 = vadd.f32 %v4121, %v4130
      %v4146 = vadd.f32 %v4122, %v4134
      %v4147 = vadd.f32 %v4123, %v4134
      %v4148 = vadd.f32 %v4124, %v4138
      %v4149 = vadd.f32 %v4125, %v4138
      %v4150 = vadd.f32 %v4126, %v4142
      %v4151 = vadd.f32 %v4127, %v4142
      %v4152 = vld [vmem:[%s6] sm:$0xf]
      %v4153 = vld [vmem:[%s6 + $0x4] sm:$0xf]
      %v4154 = vld [vmem:[%s6 + $0x8] sm:$0xf]
      %v4155 = vld [vmem:[%s6 + $0xc] sm:$0xf]
      %v4156 = vpack.c.bf16 %v4146, %v4144
      %v4157 = vpack.c.bf16 %v4147, %v4145
      %v4158 = vpack.c.bf16 %v4150, %v4148
      %v4159 = vpack.c.bf16 %v4151, %v4149
      %4160 = vset.pattern.permute.xlu0 9
      %4161 = vperm.xlu0 %4160, %v3528
      %v4162 = vpop.permute.xlu0 %4161
      %4164 = vset.pattern.permute.xlu0 9
      %4165 = vperm.xlu0 %4164, %v3529
      %v4166 = vpop.permute.xlu0 %4165
      %4168 = vset.pattern.permute.xlu0 9
      %4169 = vperm.xlu0 %4168, %v3530
      %v4170 = vpop.permute.xlu0 %4169
      %4172 = vset.pattern.permute.xlu0 9
      %4173 = vperm.xlu0 %4172, %v3531
      %v4174 = vpop.permute.xlu0 %4173
      %v4180 = vunpack.c.l.b16 %v4152
      %v4181 = vunpack.c.l.b16 %v4153
      %v4182 = vunpack.c.l.b16 %v4154
      %v4183 = vunpack.c.l.b16 %v4155
      %v4184 = vpack.c.b16 %v4181, %v4180
      %v4185 = vpack.c.b16 %v4183, %v4182
      %v4187 = vsel %vm963, %v4184, 0
      %v4190 = vsel %vm963, %v4185, 0
      %4192 = vmatprep.subr.bf16.mxu0 %v4157
      %4193 = vmatpush1.bf16.msra.mxu0 %v4156
      %4194 = vmatprep.subr.bf16.mxu0 %v4159
      %4195 = vmatpush1.bf16.msra.mxu0 %v4158
      %4196 = vmatprep.subr.bf16.mxu0 0
      %4197 = vmatpush1.bf16.msra.mxu0 0
      %4198 = vmatprep.subr.bf16.mxu0 0
      %4199 = vmatpush1.bf16.msra.mxu0 0
      %4200 = vmatprep.subr.bf16.mxu0 0
      %4201 = vmatpush1.bf16.msra.mxu0 0
      %4202 = vmatprep.subr.bf16.mxu0 0
      %4203 = vmatpush1.bf16.msra.mxu0 0
      %4204 = vmatprep.subr.bf16.mxu0 0
      %4205 = vmatpush1.bf16.msra.mxu0 0
      %4206 = vmatprep.subr.bf16.mxu0 0
      %4207 = vmatpush1.bf16.msra.mxu0 0
      %4208 = vmatprep.subr.bf16.mxu0 0
      %4209 = vmatpush1.bf16.msra.mxu0 0
      %4210 = vmatprep.subr.bf16.mxu0 0
      %4211 = vmatpush1.bf16.msra.mxu0 0
      %4212 = vmatprep.subr.bf16.mxu0 0
      %4213 = vmatpush1.bf16.msra.mxu0 0
      %4214 = vmatprep.subr.bf16.mxu0 0
      %4215 = vmatpush1.bf16.msra.mxu0 0
      %4216 = vmatprep.subr.bf16.mxu0 0
      %4217 = vmatpush1.bf16.msra.mxu0 0
      %4218 = vmatprep.subr.bf16.mxu0 0
      %4219 = vmatpush1.bf16.msra.mxu0 0
      %4220 = vmatprep.subr.bf16.mxu0 0
      %4221 = vmatpush1.bf16.msra.mxu0 0
      %4222 = vmatprep.subr.bf16.mxu0 0
      %4223 = vmatpush1.bf16.msra.mxu0 0
      %4224 = vmatprep.mubr.bf16.mxu0 0
      %4225 = vmatmul.mubr.bf16.gmra.mrb[0].mxu0 %v4187
      %v4226 = vpop.f32.mrb[0].mxu0
      %v4227 = vadd.f32 %v4162, %v4226
      %v4228 = vpop.f32.mrb[0].mxu0
      %v4229 = vadd.f32 %v4162, %v4228
      %v4230 = vpop.f32.mrb[0].mxu0
      %v4231 = vadd.f32 %v4166, %v4230
      %v4232 = vpop.f32.mrb[0].mxu0
      %v4233 = vadd.f32 %v4166, %v4232
      %4234 = vmatprep.mubr.bf16.mxu0 0
      %4235 = vmatmul.mubr.bf16.gmra.mrb[0].mxu0 %v4190
      %v4236 = vpop.f32.mrb[0].mxu0
      %v4237 = vadd.f32 %v4170, %v4236
      %v4238 = vpop.f32.mrb[0].mxu0
      %v4239 = vadd.f32 %v4170, %v4238
      %v4240 = vpop.f32.mrb[0].mxu0
      %v4241 = vadd.f32 %v4174, %v4240
      %v4242 = vpop.f32.mrb[0].mxu0
      %v4243 = vadd.f32 %v4174, %v4242
      %4244 = vdwg.mxu0
      %v4245 = vld [vmem:[%s460] sm:$0xff]
      %v4246 = vpack.c.bf16 %v4245, %v4245
      %v4247 = vld [vmem:[%s465] sm:$0xff]
      %v4248 = vld [vmem:[%s465 + $0x8] sm:$0xff]
      %v4249 = vld [vmem:[%s465 + $0x10] sm:$0xff]
      %v4250 = vld [vmem:[%s465 + $0x18] sm:$0xff]
      %v4251 = vpack.c.bf16 %v4248, %v4247
      %v4252 = vpack.c.bf16 %v4250, %v4249
      %v4253 = vld [vmem:[%s6 + $0x10] sm:$0xf]
      %v4254 = vld [vmem:[%s6 + $0x14] sm:$0xf]
      %v4255 = vld [vmem:[%s6 + $0x18] sm:$0xf]
      %v4256 = vld [vmem:[%s6 + $0x1c] sm:$0xf]
      %v4257 = vld [vmem:[%s8] sm:$0x1]
      %v4259 = vlaneseq
      %v4260 = vshrl.u32 %v4259, 7
      %v4261 = vsub.s32 0, %v4260
      %v4262 = vrot.slane %v4257, %v4261
      %v4268 = vunpack.c.l.b16 %v4253
      %v4269 = vunpack.c.l.b16 %v4254
      %v4270 = vunpack.c.l.b16 %v4255
      %v4271 = vunpack.c.l.b16 %v4256
      %v4272 = vpack.c.b16 %v4269, %v4268
      %v4273 = vpack.c.b16 %v4271, %v4270
      %v4277 = vsel %vm963, %v4246, 0
      %4279 = vmatprep.subr.bf16.mxu0 0
      %4280 = vmatpush1.bf16.msra.mxu0 %v4272
      %4281 = vmatprep.subr.bf16.mxu0 0
      %4282 = vmatpush1.bf16.msra.mxu0 %v4273
      %4283 = vmatprep.subr.bf16.mxu0 0
      %4284 = vmatpush1.bf16.msra.mxu0 0
      %4285 = vmatprep.subr.bf16.mxu0 0
      %4286 = vmatpush1.bf16.msra.mxu0 0
      %4287 = vmatprep.subr.bf16.mxu0 0
      %4288 = vmatpush1.bf16.msra.mxu0 0
      %4289 = vmatprep.subr.bf16.mxu0 0
      %4290 = vmatpush1.bf16.msra.mxu0 0
      %4291 = vmatprep.subr.bf16.mxu0 0
      %4292 = vmatpush1.bf16.msra.mxu0 0
      %4293 = vmatprep.subr.bf16.mxu0 0
      %4294 = vmatpush1.bf16.msra.mxu0 0
      %4295 = vmatprep.subr.bf16.mxu0 0
      %4296 = vmatpush1.bf16.msra.mxu0 0
      %4297 = vmatprep.subr.bf16.mxu0 0
      %4298 = vmatpush1.bf16.msra.mxu0 0
      %4299 = vmatprep.subr.bf16.mxu0 0
      %4300 = vmatpush1.bf16.msra.mxu0 0
      %4301 = vmatprep.subr.bf16.mxu0 0
      %4302 = vmatpush1.bf16.msra.mxu0 0
      %4303 = vmatprep.subr.bf16.mxu0 0
      %4304 = vmatpush1.bf16.msra.mxu0 0
      %4305 = vmatprep.subr.bf16.mxu0 0
      %4306 = vmatpush1.bf16.msra.mxu0 0
      %4307 = vmatprep.subr.bf16.mxu0 0
      %4308 = vmatpush1.bf16.msra.mxu0 0
      %4309 = vmatprep.subr.bf16.mxu0 0
      %4310 = vmatpush1.bf16.msra.mxu0 0
      %4311 = vmatprep.mubr.bf16.mxu0 0
      %4312 = vmatmul.mubr.bf16.gmra.mrb[0].mxu0 %v4277
      %v4313 = vpop.f32.mrb[0].mxu0
      %v4314 = vadd.f32 %v4262, %v4313
      %v4315 = vpop.f32.mrb[0].mxu0
      %v4316 = vpop.f32.mrb[0].mxu0
      %v4317 = vpop.f32.mrb[0].mxu0
      %4318 = vdwg.mxu0
      %v4319 = vld [vmem:[%s6 + $0x20] sm:$0xf]
      %v4320 = vld [vmem:[%s6 + $0x24] sm:$0xf]
      %v4321 = vld [vmem:[%s6 + $0x28] sm:$0xf]
      %v4322 = vld [vmem:[%s6 + $0x2c] sm:$0xf]
      %4323 = vset.pattern.permute.xlu0 14
      %4324 = vperm.xlu0 %4323, %v3528
      %v4325 = vpop.permute.xlu0 %4324
      %4327 = vset.pattern.permute.xlu0 14
      %4328 = vperm.xlu0 %4327, %v3529
      %v4329 = vpop.permute.xlu0 %4328
      %4331 = vset.pattern.permute.xlu0 14
      %4332 = vperm.xlu0 %4331, %v3530
      %v4333 = vpop.permute.xlu0 %4332
      %4335 = vset.pattern.permute.xlu0 14
      %4336 = vperm.xlu0 %4335, %v3531
      %v4337 = vpop.permute.xlu0 %4336
      %v4343 = vunpack.c.l.b16 %v4319
      %v4344 = vunpack.c.l.b16 %v4320
      %v4345 = vunpack.c.l.b16 %v4321
      %v4346 = vunpack.c.l.b16 %v4322
      %v4347 = vpack.c.b16 %v4344, %v4343
      %v4348 = vpack.c.b16 %v4346, %v4345
      %v4350 = vsel %vm963, %v4347, 0
      %v4353 = vsel %vm963, %v4348, 0
      %4355 = vmatprep.subr.bf16.mxu0 0
      %4356 = vmatpush1.bf16.msra.mxu0 %v4251
      %4357 = vmatprep.subr.bf16.mxu0 0
      %4358 = vmatpush1.bf16.msra.mxu0 %v4252
      %4359 = vmatprep.subr.bf16.mxu0 0
      %4360 = vmatpush1.bf16.msra.mxu0 0
      %4361 = vmatprep.subr.bf16.mxu0 0
      %4362 = vmatpush1.bf16.msra.mxu0 0
      %4363 = vmatprep.subr.bf16.mxu0 0
      %4364 = vmatpush1.bf16.msra.mxu0 0
      %4365 = vmatprep.subr.bf16.mxu0 0
      %4366 = vmatpush1.bf16.msra.mxu0 0
      %4367 = vmatprep.subr.bf16.mxu0 0
      %4368 = vmatpush1.bf16.msra.mxu0 0
      %4369 = vmatprep.subr.bf16.mxu0 0
      %4370 = vmatpush1.bf16.msra.mxu0 0
      %4371 = vmatprep.subr.bf16.mxu0 0
      %4372 = vmatpush1.bf16.msra.mxu0 0
      %4373 = vmatprep.subr.bf16.mxu0 0
      %4374 = vmatpush1.bf16.msra.mxu0 0
      %4375 = vmatprep.subr.bf16.mxu0 0
      %4376 = vmatpush1.bf16.msra.mxu0 0
      %4377 = vmatprep.subr.bf16.mxu0 0
      %4378 = vmatpush1.bf16.msra.mxu0 0
      %4379 = vmatprep.subr.bf16.mxu0 0
      %4380 = vmatpush1.bf16.msra.mxu0 0
      %4381 = vmatprep.subr.bf16.mxu0 0
      %4382 = vmatpush1.bf16.msra.mxu0 0
      %4383 = vmatprep.subr.bf16.mxu0 0
      %4384 = vmatpush1.bf16.msra.mxu0 0
      %4385 = vmatprep.subr.bf16.mxu0 0
      %4386 = vmatpush1.bf16.msra.mxu0 0
      %4387 = vmatprep.mubr.bf16.mxu0 0
      %4388 = vmatmul.mubr.bf16.gmra.mrb[0].mxu0 %v4350
      %v4389 = vpop.f32.mrb[0].mxu0
      %v4390 = vadd.f32 %v4325, %v4389
      %v4391 = vpop.f32.mrb[0].mxu0
      %v4392 = vpop.f32.mrb[0].mxu0
      %v4393 = vadd.f32 %v4329, %v4392
      %v4394 = vpop.f32.mrb[0].mxu0
      %4395 = vmatprep.mubr.bf16.mxu0 0
      %4396 = vmatmul.mubr.bf16.gmra.mrb[0].mxu0 %v4353
      %v4397 = vpop.f32.mrb[0].mxu0
      %v4398 = vadd.f32 %v4333, %v4397
      %v4399 = vpop.f32.mrb[0].mxu0
      %v4400 = vpop.f32.mrb[0].mxu0
      %v4401 = vadd.f32 %v4337, %v4400
      %v4402 = vpop.f32.mrb[0].mxu0
      %4403 = vdwg.mxu0
      %v4404 = vpack.c.bf16 %v4314, %v4314
      %v4405 = vpack.c.bf16 %v4231, %v4227
      %v4406 = vpack.c.bf16 %v4233, %v4229
      %v4407 = vpack.c.bf16 %v4241, %v4237
      %v4408 = vpack.c.bf16 %v4243, %v4239
      %v4410 = vsel %vm963, %v4404, 0
      %4412 = vmatprep.subr.bf16.mxu0 %v4406
      %4413 = vmatpush1.bf16.msra.mxu0 %v4405
      %4414 = vmatprep.subr.bf16.mxu0 %v4408
      %4415 = vmatpush1.bf16.msra.mxu0 %v4407
      %4416 = vmatprep.subr.bf16.mxu0 0
      %4417 = vmatpush1.bf16.msra.mxu0 0
      %4418 = vmatprep.subr.bf16.mxu0 0
      %4419 = vmatpush1.bf16.msra.mxu0 0
      %4420 = vmatprep.subr.bf16.mxu0 0
      %4421 = vmatpush1.bf16.msra.mxu0 0
      %4422 = vmatprep.subr.bf16.mxu0 0
      %4423 = vmatpush1.bf16.msra.mxu0 0
      %4424 = vmatprep.subr.bf16.mxu0 0
      %4425 = vmatpush1.bf16.msra.mxu0 0
      %4426 = vmatprep.subr.bf16.mxu0 0
      %4427 = vmatpush1.bf16.msra.mxu0 0
      %4428 = vmatprep.subr.bf16.mxu0 0
      %4429 = vmatpush1.bf16.msra.mxu0 0
      %4430 = vmatprep.subr.bf16.mxu0 0
      %4431 = vmatpush1.bf16.msra.mxu0 0
      %4432 = vmatprep.subr.bf16.mxu0 0
      %4433 = vmatpush1.bf16.msra.mxu0 0
      %4434 = vmatprep.subr.bf16.mxu0 0
      %4435 = vmatpush1.bf16.msra.mxu0 0
      %4436 = vmatprep.subr.bf16.mxu0 0
      %4437 = vmatpush1.bf16.msra.mxu0 0
      %4438 = vmatprep.subr.bf16.mxu0 0
      %4439 = vmatpush1.bf16.msra.mxu0 0
      %4440 = vmatprep.subr.bf16.mxu0 0
      %4441 = vmatpush1.bf16.msra.mxu0 0
      %4442 = vmatprep.subr.bf16.mxu0 0
      %4443 = vmatpush1.bf16.msra.mxu0 0
      %4444 = vmatprep.mubr.bf16.mxu0 0
      %4445 = vmatmul.mubr.bf16.gmra.mrb[0].mxu0 %v4410
      %v4446 = vpop.f32.mrb[0].mxu0
      %v4447 = vadd.f32 0.0, %v4446
      %v4448 = vpop.f32.mrb[0].mxu0
      %v4449 = vadd.f32 0.0, %v4448
      %v4450 = vpop.f32.mrb[0].mxu0
      %v4451 = vpop.f32.mrb[0].mxu0
      %4452 = vdwg.mxu0
      %v4453 = vmul.f32 %v4447, 0.17677669
      %v4454 = vmul.f32 %v4449, 0.17677669
      %v4455 = vrot.slane %v4453, 4
      %v4456 = vmax.f32 %v4453, %v4455
      %v4457 = vrot.slane %v4456, 2
      %v4458 = vmax.f32 %v4456, %v4457
      %v4459 = vrot.slane %v4458, 1
      %v4460 = vmax.f32 %v4458, %v4459
      %v4461 = vrot.slane %v4454, 4
      %v4462 = vmax.f32 %v4454, %v4461
      %v4463 = vrot.slane %v4462, 2
      %v4464 = vmax.f32 %v4462, %v4463
      %v4465 = vrot.slane %v4464, 1
      %v4466 = vmax.f32 %v4464, %v4465
      %v4467 = vsub.f32 %v4453, %v4460
      %v4468 = vsub.f32 %v4454, %v4466
      %v4469 = vmul.f32 %v4467, 1.442695
      %v4470 = vpow.pop %v4469
      %v4471 = vmul.f32 %v4468, 1.442695
      %v4472 = vpow.pop %v4471
      %v4473 = vrot.slane %v4470, 4
      %v4474 = vadd.f32 %v4470, %v4473
      %v4475 = vrot.slane %v4474, 2
      %v4476 = vadd.f32 %v4474, %v4475
      %v4477 = vrot.slane %v4476, 1
      %v4478 = vadd.f32 %v4476, %v4477
      %v4479 = vrot.slane %v4472, 4
      %v4480 = vadd.f32 %v4472, %v4479
      %v4481 = vrot.slane %v4480, 2
      %v4482 = vadd.f32 %v4480, %v4481
      %v4483 = vrot.slane %v4482, 1
      %v4484 = vadd.f32 %v4482, %v4483
      %v4485 = vrcp.pop %v4478
      %v4486 = vrcp.pop %v4484
      %v4487 = vmul.f32 %v4470, %v4485
      %v4488 = vmul.f32 %v4472, %v4486
      %v4489 = vpack.c.bf16 %v4393, %v4390
      %v4490 = vpack.c.bf16 %v4401, %v4398
      %v4491 = vpack.c.bf16 %v4487, %v4487
      %v4492 = vpack.c.bf16 %v4488, %v4488
      %v4494 = vsel %vm1043, %v4489, 0
      %v4497 = vsel %vm1043, %v4490, 0
      %vm4499 = vcmask 1043456
      %v4501 = vsel %vm4499, %v4491, 0
      %v4504 = vsel %vm4499, %v4492, 0
      %4506 = vmatprep.subr.bf16.mxu0 %v4504
      %4507 = vmatpush1.bf16.msra.mxu0 %v4501
      %4508 = vmatprep.subr.bf16.mxu0 0
      %4509 = vmatpush1.bf16.msra.mxu0 0
      %4510 = vmatprep.subr.bf16.mxu0 0
      %4511 = vmatpush1.bf16.msra.mxu0 0
      %4512 = vmatprep.subr.bf16.mxu0 0
      %4513 = vmatpush1.bf16.msra.mxu0 0
      %4514 = vmatprep.subr.bf16.mxu0 0
      %4515 = vmatpush1.bf16.msra.mxu0 0
      %4516 = vmatprep.subr.bf16.mxu0 0
      %4517 = vmatpush1.bf16.msra.mxu0 0
      %4518 = vmatprep.subr.bf16.mxu0 0
      %4519 = vmatpush1.bf16.msra.mxu0 0
      %4520 = vmatprep.subr.bf16.mxu0 0
      %4521 = vmatpush1.bf16.msra.mxu0 0
      %4522 = vmatprep.subr.bf16.mxu0 0
      %4523 = vmatpush1.bf16.msra.mxu0 0
      %4524 = vmatprep.subr.bf16.mxu0 0
      %4525 = vmatpush1.bf16.msra.mxu0 0
      %4526 = vmatprep.subr.bf16.mxu0 0
      %4527 = vmatpush1.bf16.msra.mxu0 0
      %4528 = vmatprep.subr.bf16.mxu0 0
      %4529 = vmatpush1.bf16.msra.mxu0 0
      %4530 = vmatprep.subr.bf16.mxu0 0
      %4531 = vmatpush1.bf16.msra.mxu0 0
      %4532 = vmatprep.subr.bf16.mxu0 0
      %4533 = vmatpush1.bf16.msra.mxu0 0
      %4534 = vmatprep.subr.bf16.mxu0 0
      %4535 = vmatpush1.bf16.msra.mxu0 0
      %4536 = vmatprep.subr.bf16.mxu0 0
      %4537 = vmatpush1.bf16.msra.mxu0 0
      %4538 = vmatprep.mubr.bf16.mxu0 0
      %4539 = vmatmul.mubr.bf16.gmra.mrb[0].mxu0 %v4494
      %v4540 = vpop.f32.mrb[0].mxu0
      %v4541 = vadd.f32 0.0, %v4540
      %v4542 = vpop.f32.mrb[0].mxu0
      %v4543 = vadd.f32 0.0, %v4542
      %v4544 = vpop.f32.mrb[0].mxu0
      %v4545 = vadd.f32 0.0, %v4544
      %v4546 = vpop.f32.mrb[0].mxu0
      %v4547 = vadd.f32 0.0, %v4546
      %4548 = vmatprep.mubr.bf16.mxu0 0
      %4549 = vmatmul.mubr.bf16.gmra.mrb[0].mxu0 %v4497
      %v4550 = vpop.f32.mrb[0].mxu0
      %v4551 = vadd.f32 0.0, %v4550
      %v4552 = vpop.f32.mrb[0].mxu0
      %v4553 = vadd.f32 0.0, %v4552
      %v4554 = vpop.f32.mrb[0].mxu0
      %v4555 = vadd.f32 0.0, %v4554
      %v4556 = vpop.f32.mrb[0].mxu0
      %v4557 = vadd.f32 0.0, %v4556
      %4558 = vdwg.mxu0
      %v4559 = vld [vmem:[%s6 + $0x30] sm:$0xf]
      %v4560 = vld [vmem:[%s6 + $0x34] sm:$0xf]
      %v4561 = vld [vmem:[%s6 + $0x38] sm:$0xf]
      %v4562 = vld [vmem:[%s6 + $0x3c] sm:$0xf]
      %v4563 = vpack.c.bf16 %v4545, %v4541
      %v4564 = vpack.c.bf16 %v4547, %v4543
      %v4565 = vpack.c.bf16 %v4555, %v4551
      %v4566 = vpack.c.bf16 %v4557, %v4553
      %v4571 = vunpack.c.l.b16 %v4559
      %v4572 = vunpack.c.l.b16 %v4560
      %v4573 = vunpack.c.l.b16 %v4561
      %v4574 = vunpack.c.l.b16 %v4562
      %v4575 = vpack.c.b16 %v4572, %v4571
      %v4576 = vpack.c.b16 %v4574, %v4573
      %v4578 = vsel %vm963, %v4575, 0
      %v4581 = vsel %vm963, %v4576, 0
      %4583 = vmatprep.subr.bf16.mxu0 %v4564
      %4584 = vmatpush1.bf16.msra.mxu0 %v4563
      %4585 = vmatprep.subr.bf16.mxu0 %v4566
      %4586 = vmatpush1.bf16.msra.mxu0 %v4565
      %4587 = vmatprep.subr.bf16.mxu0 0
      %4588 = vmatpush1.bf16.msra.mxu0 0
      %4589 = vmatprep.subr.bf16.mxu0 0
      %4590 = vmatpush1.bf16.msra.mxu0 0
      %4591 = vmatprep.subr.bf16.mxu0 0
      %4592 = vmatpush1.bf16.msra.mxu0 0
      %4593 = vmatprep.subr.bf16.mxu0 0
      %4594 = vmatpush1.bf16.msra.mxu0 0
      %4595 = vmatprep.subr.bf16.mxu0 0
      %4596 = vmatpush1.bf16.msra.mxu0 0
      %4597 = vmatprep.subr.bf16.mxu0 0
      %4598 = vmatpush1.bf16.msra.mxu0 0
      %4599 = vmatprep.subr.bf16.mxu0 0
      %4600 = vmatpush1.bf16.msra.mxu0 0
      %4601 = vmatprep.subr.bf16.mxu0 0
      %4602 = vmatpush1.bf16.msra.mxu0 0
      %4603 = vmatprep.subr.bf16.mxu0 0
      %4604 = vmatpush1.bf16.msra.mxu0 0
      %4605 = vmatprep.subr.bf16.mxu0 0
      %4606 = vmatpush1.bf16.msra.mxu0 0
      %4607 = vmatprep.subr.bf16.mxu0 0
      %4608 = vmatpush1.bf16.msra.mxu0 0
      %4609 = vmatprep.subr.bf16.mxu0 0
      %4610 = vmatpush1.bf16.msra.mxu0 0
      %4611 = vmatprep.subr.bf16.mxu0 0
      %4612 = vmatpush1.bf16.msra.mxu0 0
      %4613 = vmatprep.subr.bf16.mxu0 0
      %4614 = vmatpush1.bf16.msra.mxu0 0
      %4615 = vmatprep.mubr.bf16.mxu0 0
      %4616 = vmatmul.mubr.bf16.gmra.mrb[0].mxu0 %v4578
      %v4617 = vpop.f32.mrb[0].mxu0
      %v4618 = vadd.f32 0.0, %v4617
      %v4619 = vpop.f32.mrb[0].mxu0
      %v4620 = vadd.f32 0.0, %v4619
      %v4621 = vpop.f32.mrb[0].mxu0
      %v4622 = vadd.f32 0.0, %v4621
      %v4623 = vpop.f32.mrb[0].mxu0
      %v4624 = vadd.f32 0.0, %v4623
      %4625 = vmatprep.mubr.bf16.mxu0 0
      %4626 = vmatmul.mubr.bf16.gmra.mrb[0].mxu0 %v4581
      %v4627 = vpop.f32.mrb[0].mxu0
      %v4628 = vadd.f32 0.0, %v4627
      %v4629 = vpop.f32.mrb[0].mxu0
      %v4630 = vadd.f32 0.0, %v4629
      %v4631 = vpop.f32.mrb[0].mxu0
      %v4632 = vadd.f32 0.0, %v4631
      %v4633 = vpop.f32.mrb[0].mxu0
      %v4634 = vadd.f32 0.0, %v4633
      %4635 = vdwg.mxu0
      %v4636 = vadd.f32 %v3520, %v4618
      %v4637 = vadd.f32 %v3521, %v4620
      %v4638 = vadd.f32 %v3522, %v4622
      %v4639 = vadd.f32 %v3523, %v4624
      %v4640 = vadd.f32 %v3524, %v4628
      %v4641 = vadd.f32 %v3525, %v4630
      %v4642 = vadd.f32 %v3526, %v4632
      %v4643 = vadd.f32 %v3527, %v4634
      %4644 = vset.pattern.permute.xlu0 10
      %4645 = vperm.xlu0 %4644, %v3528
      %v4646 = vpop.permute.xlu0 %4645
      %4648 = vset.pattern.permute.xlu0 10
      %4649 = vperm.xlu0 %4648, %v3529
      %v4650 = vpop.permute.xlu0 %4649
      %4652 = vset.pattern.permute.xlu0 10
      %4653 = vperm.xlu0 %4652, %v3530
      %v4654 = vpop.permute.xlu0 %4653
      %4656 = vset.pattern.permute.xlu0 10
      %4657 = vperm.xlu0 %4656, %v3531
      %v4658 = vpop.permute.xlu0 %4657
      %v4660 = vadd.f32 %v4636, %v4646
      %v4661 = vadd.f32 %v4637, %v4646
      %v4662 = vadd.f32 %v4638, %v4650
      %v4663 = vadd.f32 %v4639, %v4650
      %v4664 = vadd.f32 %v4640, %v4654
      %v4665 = vadd.f32 %v4641, %v4654
      %v4666 = vadd.f32 %v4642, %v4658
      %v4667 = vadd.f32 %v4643, %v4658
      %4668 = vmatprep.subr.mxu0 0.0
      %4669 = vmatpush1.msra.mxu0 1.0
      %4670 = vmatprep.subr.mxu0 0.0
      %4671 = vmatpush1.msra.mxu0 1.0
      %4672 = vmatprep.subr.mxu0 0.0
      %4673 = vmatpush1.msra.mxu0 1.0
      %4674 = vmatprep.subr.mxu0 0.0
      %4675 = vmatpush1.msra.mxu0 1.0
      %4676 = vmatprep.subr.mxu0 0.0
      %4677 = vmatpush1.msra.mxu0 1.0
      %4678 = vmatprep.subr.mxu0 0.0
      %4679 = vmatpush1.msra.mxu0 1.0
      %4680 = vmatprep.subr.mxu0 0.0
      %4681 = vmatpush1.msra.mxu0 1.0
      %4682 = vmatprep.subr.mxu0 0.0
      %4683 = vmatpush1.msra.mxu0 1.0
      %4684 = vmatprep.subr.mxu0 0.0
      %4685 = vmatpush1.msra.mxu0 1.0
      %4686 = vmatprep.subr.mxu0 0.0
      %4687 = vmatpush1.msra.mxu0 1.0
      %4688 = vmatprep.subr.mxu0 0.0
      %4689 = vmatpush1.msra.mxu0 1.0
      %4690 = vmatprep.subr.mxu0 0.0
      %4691 = vmatpush1.msra.mxu0 1.0
      %4692 = vmatprep.subr.mxu0 0.0
      %4693 = vmatpush1.msra.mxu0 1.0
      %4694 = vmatprep.subr.mxu0 0.0
      %4695 = vmatpush1.msra.mxu0 1.0
      %4696 = vmatprep.subr.mxu0 0.0
      %4697 = vmatpush1.msra.mxu0 1.0
      %4698 = vmatprep.subr.mxu0 0.0
      %4699 = vmatpush1.msra.mxu0 1.0
      %4700 = vmatprep.subr.mxu0 0.0
      %4701 = vmatpush1.msra.mxu0 1.0
      %4702 = vmatprep.subr.mxu0 0.0
      %4703 = vmatpush1.msra.mxu0 1.0
      %4704 = vmatprep.subr.mxu0 0.0
      %4705 = vmatpush1.msra.mxu0 1.0
      %4706 = vmatprep.subr.mxu0 0.0
      %4707 = vmatpush1.msra.mxu0 1.0
      %4708 = vmatprep.subr.mxu0 0.0
      %4709 = vmatpush1.msra.mxu0 1.0
      %4710 = vmatprep.subr.mxu0 0.0
      %4711 = vmatpush1.msra.mxu0 1.0
      %4712 = vmatprep.subr.mxu0 0.0
      %4713 = vmatpush1.msra.mxu0 1.0
      %4714 = vmatprep.subr.mxu0 0.0
      %4715 = vmatpush1.msra.mxu0 1.0
      %4716 = vmatprep.subr.mxu0 0.0
      %4717 = vmatpush1.msra.mxu0 1.0
      %4718 = vmatprep.subr.mxu0 0.0
      %4719 = vmatpush1.msra.mxu0 1.0
      %4720 = vmatprep.subr.mxu0 0.0
      %4721 = vmatpush1.msra.mxu0 1.0
      %4722 = vmatprep.subr.mxu0 0.0
      %4723 = vmatpush1.msra.mxu0 1.0
      %4724 = vmatprep.subr.mxu0 0.0
      %4725 = vmatpush1.msra.mxu0 1.0
      %4726 = vmatprep.subr.mxu0 0.0
      %4727 = vmatpush1.msra.mxu0 1.0
      %4728 = vmatprep.subr.mxu0 0.0
      %4729 = vmatpush1.msra.mxu0 1.0
      %4730 = vmatprep.subr.mxu0 0.0
      %4731 = vmatpush1.msra.mxu0 1.0
      %4732 = vmatprep.mubr.f32.mxu0 %v4661
      %4733 = vmatmul.mubr.f32.gmra.mrb[0].mxu0 %v4660
      %v4734 = vpop.f32.mrb[0].mxu0
      %v4735 = vadd.f32 0.0, %v4734
      %v4736 = vpop.f32.mrb[0].mxu0
      %4737 = vmatprep.mubr.f32.mxu0 %v4663
      %4738 = vmatmul.mubr.f32.gmra.mrb[0].mxu0 %v4662
      %v4739 = vpop.f32.mrb[0].mxu0
      %v4740 = vadd.f32 0.0, %v4739
      %v4741 = vpop.f32.mrb[0].mxu0
      %4742 = vmatprep.mubr.f32.mxu0 %v4665
      %4743 = vmatmul.mubr.f32.gmra.mrb[0].mxu0 %v4664
      %v4744 = vpop.f32.mrb[0].mxu0
      %v4745 = vadd.f32 0.0, %v4744
      %v4746 = vpop.f32.mrb[0].mxu0
      %4747 = vmatprep.mubr.f32.mxu0 %v4667
      %4748 = vmatmul.mubr.f32.gmra.mrb[0].mxu0 %v4666
      %v4749 = vpop.f32.mrb[0].mxu0
      %v4750 = vadd.f32 0.0, %v4749
      %v4751 = vpop.f32.mrb[0].mxu0
      %4752 = vdwg.mxu0
      %4753 = vmatprep.subr.mxu0 0.0
      %4754 = vmatpush1.msra.mxu0 %v4735
      %4755 = vmatprep.subr.mxu0 0.0
      %4756 = vmatpush1.msra.mxu0 %v4740
      %4757 = vmatprep.subr.mxu0 0.0
      %4758 = vmatpush1.msra.mxu0 %v4745
      %4759 = vmatprep.subr.mxu0 0.0
      %4760 = vmatpush1.msra.mxu0 %v4750
      %4761 = vmatprep.subr.mxu0 0.0
      %4762 = vmatpush1.msra.mxu0 0.0
      %4763 = vmatprep.subr.mxu0 0.0
      %4764 = vmatpush1.msra.mxu0 0.0
      %4765 = vmatprep.subr.mxu0 0.0
      %4766 = vmatpush1.msra.mxu0 0.0
      %4767 = vmatprep.subr.mxu0 0.0
      %4768 = vmatpush1.msra.mxu0 0.0
      %4769 = vmatprep.subr.mxu0 0.0
      %4770 = vmatpush1.msra.mxu0 0.0
      %4771 = vmatprep.subr.mxu0 0.0
      %4772 = vmatpush1.msra.mxu0 0.0
      %4773 = vmatprep.subr.mxu0 0.0
      %4774 = vmatpush1.msra.mxu0 0.0
      %4775 = vmatprep.subr.mxu0 0.0
      %4776 = vmatpush1.msra.mxu0 0.0
      %4777 = vmatprep.subr.mxu0 0.0
      %4778 = vmatpush1.msra.mxu0 0.0
      %4779 = vmatprep.subr.mxu0 0.0
      %4780 = vmatpush1.msra.mxu0 0.0
      %4781 = vmatprep.subr.mxu0 0.0
      %4782 = vmatpush1.msra.mxu0 0.0
      %4783 = vmatprep.subr.mxu0 0.0
      %4784 = vmatpush1.msra.mxu0 0.0
      %4785 = vmatprep.subr.mxu0 0.0
      %4786 = vmatpush1.msra.mxu0 0.0
      %4787 = vmatprep.subr.mxu0 0.0
      %4788 = vmatpush1.msra.mxu0 0.0
      %4789 = vmatprep.subr.mxu0 0.0
      %4790 = vmatpush1.msra.mxu0 0.0
      %4791 = vmatprep.subr.mxu0 0.0
      %4792 = vmatpush1.msra.mxu0 0.0
      %4793 = vmatprep.subr.mxu0 0.0
      %4794 = vmatpush1.msra.mxu0 0.0
      %4795 = vmatprep.subr.mxu0 0.0
      %4796 = vmatpush1.msra.mxu0 0.0
      %4797 = vmatprep.subr.mxu0 0.0
      %4798 = vmatpush1.msra.mxu0 0.0
      %4799 = vmatprep.subr.mxu0 0.0
      %4800 = vmatpush1.msra.mxu0 0.0
      %4801 = vmatprep.subr.mxu0 0.0
      %4802 = vmatpush1.msra.mxu0 0.0
      %4803 = vmatprep.subr.mxu0 0.0
      %4804 = vmatpush1.msra.mxu0 0.0
      %4805 = vmatprep.subr.mxu0 0.0
      %4806 = vmatpush1.msra.mxu0 0.0
      %4807 = vmatprep.subr.mxu0 0.0
      %4808 = vmatpush1.msra.mxu0 0.0
      %4809 = vmatprep.subr.mxu0 0.0
      %4810 = vmatpush1.msra.mxu0 0.0
      %4811 = vmatprep.subr.mxu0 0.0
      %4812 = vmatpush1.msra.mxu0 0.0
      %4813 = vmatprep.subr.mxu0 0.0
      %4814 = vmatpush1.msra.mxu0 0.0
      %4815 = vmatprep.subr.mxu0 0.0
      %4816 = vmatpush1.msra.mxu0 0.0
      %4817 = vmatprep.mubr.f32.mxu0 0.0
      %4818 = vmatmul.mubr.f32.gmra.mrb[0].mxu0 %v3619
      %v4819 = vpop.f32.mrb[0].mxu0
      %v4820 = vadd.f32 0.0, %v4819
      %v4821 = vpop.f32.mrb[0].mxu0
      %4822 = vdwg.mxu0
      %v4823 = vmul.f32 %v4820, %v1037
      %4824 = vmatprep.subr.mxu0 0.0
      %4825 = vmatpush1.msra.mxu0 %v4823
      %4826 = vmatprep.subr.mxu0 0.0
      %4827 = vmatpush1.msra.mxu0 0.0
      %4828 = vmatprep.subr.mxu0 0.0
      %4829 = vmatpush1.msra.mxu0 0.0
      %4830 = vmatprep.subr.mxu0 0.0
      %4831 = vmatpush1.msra.mxu0 0.0
      %4832 = vmatprep.subr.mxu0 0.0
      %4833 = vmatpush1.msra.mxu0 0.0
      %4834 = vmatprep.subr.mxu0 0.0
      %4835 = vmatpush1.msra.mxu0 0.0
      %4836 = vmatprep.subr.mxu0 0.0
      %4837 = vmatpush1.msra.mxu0 0.0
      %4838 = vmatprep.subr.mxu0 0.0
      %4839 = vmatpush1.msra.mxu0 0.0
      %4840 = vmatprep.subr.mxu0 0.0
      %4841 = vmatpush1.msra.mxu0 0.0
      %4842 = vmatprep.subr.mxu0 0.0
      %4843 = vmatpush1.msra.mxu0 0.0
      %4844 = vmatprep.subr.mxu0 0.0
      %4845 = vmatpush1.msra.mxu0 0.0
      %4846 = vmatprep.subr.mxu0 0.0
      %4847 = vmatpush1.msra.mxu0 0.0
      %4848 = vmatprep.subr.mxu0 0.0
      %4849 = vmatpush1.msra.mxu0 0.0
      %4850 = vmatprep.subr.mxu0 0.0
      %4851 = vmatpush1.msra.mxu0 0.0
      %4852 = vmatprep.subr.mxu0 0.0
      %4853 = vmatpush1.msra.mxu0 0.0
      %4854 = vmatprep.subr.mxu0 0.0
      %4855 = vmatpush1.msra.mxu0 0.0
      %4856 = vmatprep.subr.mxu0 0.0
      %4857 = vmatpush1.msra.mxu0 0.0
      %4858 = vmatprep.subr.mxu0 0.0
      %4859 = vmatpush1.msra.mxu0 0.0
      %4860 = vmatprep.subr.mxu0 0.0
      %4861 = vmatpush1.msra.mxu0 0.0
      %4862 = vmatprep.subr.mxu0 0.0
      %4863 = vmatpush1.msra.mxu0 0.0
      %4864 = vmatprep.subr.mxu0 0.0
      %4865 = vmatpush1.msra.mxu0 0.0
      %4866 = vmatprep.subr.mxu0 0.0
      %4867 = vmatpush1.msra.mxu0 0.0
      %4868 = vmatprep.subr.mxu0 0.0
      %4869 = vmatpush1.msra.mxu0 0.0
      %4870 = vmatprep.subr.mxu0 0.0
      %4871 = vmatpush1.msra.mxu0 0.0
      %4872 = vmatprep.subr.mxu0 0.0
      %4873 = vmatpush1.msra.mxu0 0.0
      %4874 = vmatprep.subr.mxu0 0.0
      %4875 = vmatpush1.msra.mxu0 0.0
      %4876 = vmatprep.subr.mxu0 0.0
      %4877 = vmatpush1.msra.mxu0 0.0
      %4878 = vmatprep.subr.mxu0 0.0
      %4879 = vmatpush1.msra.mxu0 0.0
      %4880 = vmatprep.subr.mxu0 0.0
      %4881 = vmatpush1.msra.mxu0 0.0
      %4882 = vmatprep.subr.mxu0 0.0
      %4883 = vmatpush1.msra.mxu0 0.0
      %4884 = vmatprep.subr.mxu0 0.0
      %4885 = vmatpush1.msra.mxu0 0.0
      %4886 = vmatprep.subr.mxu0 0.0
      %4887 = vmatpush1.msra.mxu0 0.0
      %4888 = vmatprep.mubr.f32.mxu0 0.0
      %4889 = vmatmul.mubr.f32.gmra.mrb[0].mxu0 %v3697
      %v4890 = vpop.f32.mrb[0].mxu0
      %v4891 = vadd.f32 0.0, %v4890
      %v4892 = vpop.f32.mrb[0].mxu0
      %4893 = vmatprep.mubr.f32.mxu0 0.0
      %4894 = vmatmul.mubr.f32.gmra.mrb[0].mxu0 %v3700
      %v4895 = vpop.f32.mrb[0].mxu0
      %v4896 = vadd.f32 0.0, %v4895
      %v4897 = vpop.f32.mrb[0].mxu0
      %4898 = vmatprep.mubr.f32.mxu0 0.0
      %4899 = vmatmul.mubr.f32.gmra.mrb[0].mxu0 %v3703
      %v4900 = vpop.f32.mrb[0].mxu0
      %v4901 = vadd.f32 0.0, %v4900
      %v4902 = vpop.f32.mrb[0].mxu0
      %4903 = vmatprep.mubr.f32.mxu0 0.0
      %4904 = vmatmul.mubr.f32.gmra.mrb[0].mxu0 %v3706
      %v4905 = vpop.f32.mrb[0].mxu0
      %v4906 = vadd.f32 0.0, %v4905
      %v4907 = vpop.f32.mrb[0].mxu0
      %4908 = vdwg.mxu0
      %4910 = vset.pattern.permute.xlu0 0
      %4911 = vperm.xlu0 %4910, %v4891
      %v4912 = vpop.permute.xlu0 %4911
      %4915 = vset.pattern.permute.xlu0 0
      %4916 = vperm.xlu0 %4915, %v4896
      %v4917 = vpop.permute.xlu0 %4916
      %4920 = vset.pattern.permute.xlu0 0
      %4921 = vperm.xlu0 %4920, %v4901
      %v4922 = vpop.permute.xlu0 %4921
      %4925 = vset.pattern.permute.xlu0 0
      %4926 = vperm.xlu0 %4925, %v4906
      %v4927 = vpop.permute.xlu0 %4926
      %v4929 = vsub.f32 %v4660, %v4912
      %v4930 = vsub.f32 %v4661, %v4912
      %v4931 = vsub.f32 %v4662, %v4917
      %v4932 = vsub.f32 %v4663, %v4917
      %v4933 = vsub.f32 %v4664, %v4922
      %v4934 = vsub.f32 %v4665, %v4922
      %v4935 = vsub.f32 %v4666, %v4927
      %v4936 = vsub.f32 %v4667, %v4927
      %v4937 = vmul.f32 %v4929, %v4929
      %v4938 = vmul.f32 %v4930, %v4930
      %v4939 = vmul.f32 %v4931, %v4931
      %v4940 = vmul.f32 %v4932, %v4932
      %v4941 = vmul.f32 %v4933, %v4933
      %v4942 = vmul.f32 %v4934, %v4934
      %v4943 = vmul.f32 %v4935, %v4935
      %v4944 = vmul.f32 %v4936, %v4936
      %4945 = vmatprep.subr.mxu0 0.0
      %4946 = vmatpush1.msra.mxu0 1.0
      %4947 = vmatprep.subr.mxu0 0.0
      %4948 = vmatpush1.msra.mxu0 1.0
      %4949 = vmatprep.subr.mxu0 0.0
      %4950 = vmatpush1.msra.mxu0 1.0
      %4951 = vmatprep.subr.mxu0 0.0
      %4952 = vmatpush1.msra.mxu0 1.0
      %4953 = vmatprep.subr.mxu0 0.0
      %4954 = vmatpush1.msra.mxu0 1.0
      %4955 = vmatprep.subr.mxu0 0.0
      %4956 = vmatpush1.msra.mxu0 1.0
      %4957 = vmatprep.subr.mxu0 0.0
      %4958 = vmatpush1.msra.mxu0 1.0
      %4959 = vmatprep.subr.mxu0 0.0
      %4960 = vmatpush1.msra.mxu0 1.0
      %4961 = vmatprep.subr.mxu0 0.0
      %4962 = vmatpush1.msra.mxu0 1.0
      %4963 = vmatprep.subr.mxu0 0.0
      %4964 = vmatpush1.msra.mxu0 1.0
      %4965 = vmatprep.subr.mxu0 0.0
      %4966 = vmatpush1.msra.mxu0 1.0
      %4967 = vmatprep.subr.mxu0 0.0
      %4968 = vmatpush1.msra.mxu0 1.0
      %4969 = vmatprep.subr.mxu0 0.0
      %4970 = vmatpush1.msra.mxu0 1.0
      %4971 = vmatprep.subr.mxu0 0.0
      %4972 = vmatpush1.msra.mxu0 1.0
      %4973 = vmatprep.subr.mxu0 0.0
      %4974 = vmatpush1.msra.mxu0 1.0
      %4975 = vmatprep.subr.mxu0 0.0
      %4976 = vmatpush1.msra.mxu0 1.0
      %4977 = vmatprep.subr.mxu0 0.0
      %4978 = vmatpush1.msra.mxu0 1.0
      %4979 = vmatprep.subr.mxu0 0.0
      %4980 = vmatpush1.msra.mxu0 1.0
      %4981 = vmatprep.subr.mxu0 0.0
      %4982 = vmatpush1.msra.mxu0 1.0
      %4983 = vmatprep.subr.mxu0 0.0
      %4984 = vmatpush1.msra.mxu0 1.0
      %4985 = vmatprep.subr.mxu0 0.0
      %4986 = vmatpush1.msra.mxu0 1.0
      %4987 = vmatprep.subr.mxu0 0.0
      %4988 = vmatpush1.msra.mxu0 1.0
      %4989 = vmatprep.subr.mxu0 0.0
      %4990 = vmatpush1.msra.mxu0 1.0
      %4991 = vmatprep.subr.mxu0 0.0
      %4992 = vmatpush1.msra.mxu0 1.0
      %4993 = vmatprep.subr.mxu0 0.0
      %4994 = vmatpush1.msra.mxu0 1.0
      %4995 = vmatprep.subr.mxu0 0.0
      %4996 = vmatpush1.msra.mxu0 1.0
      %4997 = vmatprep.subr.mxu0 0.0
      %4998 = vmatpush1.msra.mxu0 1.0
      %4999 = vmatprep.subr.mxu0 0.0
      %5000 = vmatpush1.msra.mxu0 1.0
      %5001 = vmatprep.subr.mxu0 0.0
      %5002 = vmatpush1.msra.mxu0 1.0
      %5003 = vmatprep.subr.mxu0 0.0
      %5004 = vmatpush1.msra.mxu0 1.0
      %5005 = vmatprep.subr.mxu0 0.0
      %5006 = vmatpush1.msra.mxu0 1.0
      %5007 = vmatprep.subr.mxu0 0.0
      %5008 = vmatpush1.msra.mxu0 1.0
      %5009 = vmatprep.mubr.f32.mxu0 %v4938
      %5010 = vmatmul.mubr.f32.gmra.mrb[0].mxu0 %v4937
      %v5011 = vpop.f32.mrb[0].mxu0
      %v5012 = vadd.f32 0.0, %v5011
      %v5013 = vpop.f32.mrb[0].mxu0
      %5014 = vmatprep.mubr.f32.mxu0 %v4940
      %5015 = vmatmul.mubr.f32.gmra.mrb[0].mxu0 %v4939
      %v5016 = vpop.f32.mrb[0].mxu0
      %v5017 = vadd.f32 0.0, %v5016
      %v5018 = vpop.f32.mrb[0].mxu0
      %5019 = vmatprep.mubr.f32.mxu0 %v4942
      %5020 = vmatmul.mubr.f32.gmra.mrb[0].mxu0 %v4941
      %v5021 = vpop.f32.mrb[0].mxu0
      %v5022 = vadd.f32 0.0, %v5021
      %v5023 = vpop.f32.mrb[0].mxu0
      %5024 = vmatprep.mubr.f32.mxu0 %v4944
      %5025 = vmatmul.mubr.f32.gmra.mrb[0].mxu0 %v4943
      %v5026 = vpop.f32.mrb[0].mxu0
      %v5027 = vadd.f32 0.0, %v5026
      %v5028 = vpop.f32.mrb[0].mxu0
      %5029 = vdwg.mxu0
      %5030 = vmatprep.subr.mxu0 0.0
      %5031 = vmatpush1.msra.mxu0 %v5012
      %5032 = vmatprep.subr.mxu0 0.0
      %5033 = vmatpush1.msra.mxu0 %v5017
      %5034 = vmatprep.subr.mxu0 0.0
      %5035 = vmatpush1.msra.mxu0 %v5022
      %5036 = vmatprep.subr.mxu0 0.0
      %5037 = vmatpush1.msra.mxu0 %v5027
      %5038 = vmatprep.subr.mxu0 0.0
      %5039 = vmatpush1.msra.mxu0 0.0
      %5040 = vmatprep.subr.mxu0 0.0
      %5041 = vmatpush1.msra.mxu0 0.0
      %5042 = vmatprep.subr.mxu0 0.0
      %5043 = vmatpush1.msra.mxu0 0.0
      %5044 = vmatprep.subr.mxu0 0.0
      %5045 = vmatpush1.msra.mxu0 0.0
      %5046 = vmatprep.subr.mxu0 0.0
      %5047 = vmatpush1.msra.mxu0 0.0
      %5048 = vmatprep.subr.mxu0 0.0
      %5049 = vmatpush1.msra.mxu0 0.0
      %5050 = vmatprep.subr.mxu0 0.0
      %5051 = vmatpush1.msra.mxu0 0.0
      %5052 = vmatprep.subr.mxu0 0.0
      %5053 = vmatpush1.msra.mxu0 0.0
      %5054 = vmatprep.subr.mxu0 0.0
      %5055 = vmatpush1.msra.mxu0 0.0
      %5056 = vmatprep.subr.mxu0 0.0
      %5057 = vmatpush1.msra.mxu0 0.0
      %5058 = vmatprep.subr.mxu0 0.0
      %5059 = vmatpush1.msra.mxu0 0.0
      %5060 = vmatprep.subr.mxu0 0.0
      %5061 = vmatpush1.msra.mxu0 0.0
      %5062 = vmatprep.subr.mxu0 0.0
      %5063 = vmatpush1.msra.mxu0 0.0
      %5064 = vmatprep.subr.mxu0 0.0
      %5065 = vmatpush1.msra.mxu0 0.0
      %5066 = vmatprep.subr.mxu0 0.0
      %5067 = vmatpush1.msra.mxu0 0.0
      %5068 = vmatprep.subr.mxu0 0.0
      %5069 = vmatpush1.msra.mxu0 0.0
      %5070 = vmatprep.subr.mxu0 0.0
      %5071 = vmatpush1.msra.mxu0 0.0
      %5072 = vmatprep.subr.mxu0 0.0
      %5073 = vmatpush1.msra.mxu0 0.0
      %5074 = vmatprep.subr.mxu0 0.0
      %5075 = vmatpush1.msra.mxu0 0.0
      %5076 = vmatprep.subr.mxu0 0.0
      %5077 = vmatpush1.msra.mxu0 0.0
      %5078 = vmatprep.subr.mxu0 0.0
      %5079 = vmatpush1.msra.mxu0 0.0
      %5080 = vmatprep.subr.mxu0 0.0
      %5081 = vmatpush1.msra.mxu0 0.0
      %5082 = vmatprep.subr.mxu0 0.0
      %5083 = vmatpush1.msra.mxu0 0.0
      %5084 = vmatprep.subr.mxu0 0.0
      %5085 = vmatpush1.msra.mxu0 0.0
      %5086 = vmatprep.subr.mxu0 0.0
      %5087 = vmatpush1.msra.mxu0 0.0
      %5088 = vmatprep.subr.mxu0 0.0
      %5089 = vmatpush1.msra.mxu0 0.0
      %5090 = vmatprep.subr.mxu0 0.0
      %5091 = vmatpush1.msra.mxu0 0.0
      %5092 = vmatprep.subr.mxu0 0.0
      %5093 = vmatpush1.msra.mxu0 0.0
      %5094 = vmatprep.mubr.f32.mxu0 0.0
      %5095 = vmatmul.mubr.f32.gmra.mrb[0].mxu0 %v3619
      %v5096 = vpop.f32.mrb[0].mxu0
      %v5097 = vadd.f32 0.0, %v5096
      %v5098 = vpop.f32.mrb[0].mxu0
      %5099 = vdwg.mxu0
      %v5100 = vmul.f32 %v5097, %v1037
      %v5101 = vadd.f32 %v5100, 1e-05
      %v5102 = vrsqrt.pop %v5101
      %5103 = vmatprep.subr.mxu0 0.0
      %5104 = vmatpush1.msra.mxu0 %v5102
      %5105 = vmatprep.subr.mxu0 0.0
      %5106 = vmatpush1.msra.mxu0 0.0
      %5107 = vmatprep.subr.mxu0 0.0
      %5108 = vmatpush1.msra.mxu0 0.0
      %5109 = vmatprep.subr.mxu0 0.0
      %5110 = vmatpush1.msra.mxu0 0.0
      %5111 = vmatprep.subr.mxu0 0.0
      %5112 = vmatpush1.msra.mxu0 0.0
      %5113 = vmatprep.subr.mxu0 0.0
      %5114 = vmatpush1.msra.mxu0 0.0
      %5115 = vmatprep.subr.mxu0 0.0
      %5116 = vmatpush1.msra.mxu0 0.0
      %5117 = vmatprep.subr.mxu0 0.0
      %5118 = vmatpush1.msra.mxu0 0.0
      %5119 = vmatprep.subr.mxu0 0.0
      %5120 = vmatpush1.msra.mxu0 0.0
      %5121 = vmatprep.subr.mxu0 0.0
      %5122 = vmatpush1.msra.mxu0 0.0
      %5123 = vmatprep.subr.mxu0 0.0
      %5124 = vmatpush1.msra.mxu0 0.0
      %5125 = vmatprep.subr.mxu0 0.0
      %5126 = vmatpush1.msra.mxu0 0.0
      %5127 = vmatprep.subr.mxu0 0.0
      %5128 = vmatpush1.msra.mxu0 0.0
      %5129 = vmatprep.subr.mxu0 0.0
      %5130 = vmatpush1.msra.mxu0 0.0
      %5131 = vmatprep.subr.mxu0 0.0
      %5132 = vmatpush1.msra.mxu0 0.0
      %5133 = vmatprep.subr.mxu0 0.0
      %5134 = vmatpush1.msra.mxu0 0.0
      %5135 = vmatprep.subr.mxu0 0.0
      %5136 = vmatpush1.msra.mxu0 0.0
      %5137 = vmatprep.subr.mxu0 0.0
      %5138 = vmatpush1.msra.mxu0 0.0
      %5139 = vmatprep.subr.mxu0 0.0
      %5140 = vmatpush1.msra.mxu0 0.0
      %5141 = vmatprep.subr.mxu0 0.0
      %5142 = vmatpush1.msra.mxu0 0.0
      %5143 = vmatprep.subr.mxu0 0.0
      %5144 = vmatpush1.msra.mxu0 0.0
      %5145 = vmatprep.subr.mxu0 0.0
      %5146 = vmatpush1.msra.mxu0 0.0
      %5147 = vmatprep.subr.mxu0 0.0
      %5148 = vmatpush1.msra.mxu0 0.0
      %5149 = vmatprep.subr.mxu0 0.0
      %5150 = vmatpush1.msra.mxu0 0.0
      %5151 = vmatprep.subr.mxu0 0.0
      %5152 = vmatpush1.msra.mxu0 0.0
      %5153 = vmatprep.subr.mxu0 0.0
      %5154 = vmatpush1.msra.mxu0 0.0
      %5155 = vmatprep.subr.mxu0 0.0
      %5156 = vmatpush1.msra.mxu0 0.0
      %5157 = vmatprep.subr.mxu0 0.0
      %5158 = vmatpush1.msra.mxu0 0.0
      %5159 = vmatprep.subr.mxu0 0.0
      %5160 = vmatpush1.msra.mxu0 0.0
      %5161 = vmatprep.subr.mxu0 0.0
      %5162 = vmatpush1.msra.mxu0 0.0
      %5163 = vmatprep.subr.mxu0 0.0
      %5164 = vmatpush1.msra.mxu0 0.0
      %5165 = vmatprep.subr.mxu0 0.0
      %5166 = vmatpush1.msra.mxu0 0.0
      %5167 = vmatprep.mubr.f32.mxu0 0.0
      %5168 = vmatmul.mubr.f32.gmra.mrb[0].mxu0 %v3697
      %v5169 = vpop.f32.mrb[0].mxu0
      %v5170 = vadd.f32 0.0, %v5169
      %v5171 = vpop.f32.mrb[0].mxu0
      %5172 = vmatprep.mubr.f32.mxu0 0.0
      %5173 = vmatmul.mubr.f32.gmra.mrb[0].mxu0 %v3700
      %v5174 = vpop.f32.mrb[0].mxu0
      %v5175 = vadd.f32 0.0, %v5174
      %v5176 = vpop.f32.mrb[0].mxu0
      %5177 = vmatprep.mubr.f32.mxu0 0.0
      %5178 = vmatmul.mubr.f32.gmra.mrb[0].mxu0 %v3703
      %v5179 = vpop.f32.mrb[0].mxu0
      %v5180 = vadd.f32 0.0, %v5179
      %v5181 = vpop.f32.mrb[0].mxu0
      %5182 = vmatprep.mubr.f32.mxu0 0.0
      %5183 = vmatmul.mubr.f32.gmra.mrb[0].mxu0 %v3706
      %v5184 = vpop.f32.mrb[0].mxu0
      %v5185 = vadd.f32 0.0, %v5184
      %v5186 = vpop.f32.mrb[0].mxu0
      %5187 = vdwg.mxu0
      %5189 = vset.pattern.permute.xlu0 0
      %5190 = vperm.xlu0 %5189, %v5170
      %v5191 = vpop.permute.xlu0 %5190
      %5194 = vset.pattern.permute.xlu0 0
      %5195 = vperm.xlu0 %5194, %v5175
      %v5196 = vpop.permute.xlu0 %5195
      %5199 = vset.pattern.permute.xlu0 0
      %5200 = vperm.xlu0 %5199, %v5180
      %v5201 = vpop.permute.xlu0 %5200
      %5204 = vset.pattern.permute.xlu0 0
      %5205 = vperm.xlu0 %5204, %v5185
      %v5206 = vpop.permute.xlu0 %5205
      %v5208 = vmul.f32 %v4929, %v5191
      %v5209 = vmul.f32 %v4930, %v5191
      %v5210 = vmul.f32 %v4931, %v5196
      %v5211 = vmul.f32 %v4932, %v5196
      %v5212 = vmul.f32 %v4933, %v5201
      %v5213 = vmul.f32 %v4934, %v5201
      %v5214 = vmul.f32 %v4935, %v5206
      %v5215 = vmul.f32 %v4936, %v5206
      %5216 = vset.pattern.permute.xlu0 11
      %5217 = vperm.xlu0 %5216, %v3528
      %v5218 = vpop.permute.xlu0 %5217
      %5220 = vset.pattern.permute.xlu0 11
      %5221 = vperm.xlu0 %5220, %v3529
      %v5222 = vpop.permute.xlu0 %5221
      %5224 = vset.pattern.permute.xlu0 11
      %5225 = vperm.xlu0 %5224, %v3530
      %v5226 = vpop.permute.xlu0 %5225
      %5228 = vset.pattern.permute.xlu0 11
      %5229 = vperm.xlu0 %5228, %v3531
      %v5230 = vpop.permute.xlu0 %5229
      %v5232 = vmul.f32 %v5208, %v5218
      %v5233 = vmul.f32 %v5209, %v5218
      %v5234 = vmul.f32 %v5210, %v5222
      %v5235 = vmul.f32 %v5211, %v5222
      %v5236 = vmul.f32 %v5212, %v5226
      %v5237 = vmul.f32 %v5213, %v5226
      %v5238 = vmul.f32 %v5214, %v5230
      %v5239 = vmul.f32 %v5215, %v5230
      %5240 = vset.pattern.permute.xlu0 12
      %5241 = vperm.xlu0 %5240, %v3528
      %v5242 = vpop.permute.xlu0 %5241
      %5244 = vset.pattern.permute.xlu0 12
      %5245 = vperm.xlu0 %5244, %v3529
      %v5246 = vpop.permute.xlu0 %5245
      %5248 = vset.pattern.permute.xlu0 12
      %5249 = vperm.xlu0 %5248, %v3530
      %v5250 = vpop.permute.xlu0 %5249
      %5252 = vset.pattern.permute.xlu0 12
      %5253 = vperm.xlu0 %5252, %v3531
      %v5254 = vpop.permute.xlu0 %5253
      %v5256 = vadd.f32 %v5232, %v5242
      %v5257 = vadd.f32 %v5233, %v5242
      %v5258 = vadd.f32 %v5234, %v5246
      %v5259 = vadd.f32 %v5235, %v5246
      %v5260 = vadd.f32 %v5236, %v5250
      %v5261 = vadd.f32 %v5237, %v5250
      %v5262 = vadd.f32 %v5238, %v5254
      %v5263 = vadd.f32 %v5239, %v5254
      %v5264 = vxor.u32 %v5256, 2147483648
      %v5265 = vxor.u32 %v5257, 2147483648
      %v5266 = vxor.u32 %v5258, 2147483648
      %v5267 = vxor.u32 %v5259, 2147483648
      %v5268 = vxor.u32 %v5260, 2147483648
      %v5269 = vxor.u32 %v5261, 2147483648
      %v5270 = vxor.u32 %v5262, 2147483648
      %v5271 = vxor.u32 %v5263, 2147483648
      %v5272 = vmul.f32 %v5264, 1.442695
      %v5273 = vpow.pop %v5272
      %v5274 = vmul.f32 %v5265, 1.442695
      %v5275 = vpow.pop %v5274
      %v5276 = vmul.f32 %v5266, 1.442695
      %v5277 = vpow.pop %v5276
      %v5278 = vmul.f32 %v5267, 1.442695
      %v5279 = vpow.pop %v5278
      %v5280 = vmul.f32 %v5268, 1.442695
      %v5281 = vpow.pop %v5280
      %v5282 = vmul.f32 %v5269, 1.442695
      %v5283 = vpow.pop %v5282
      %v5284 = vmul.f32 %v5270, 1.442695
      %v5285 = vpow.pop %v5284
      %v5286 = vmul.f32 %v5271, 1.442695
      %v5287 = vpow.pop %v5286
      %v5288 = vadd.f32 %v5273, 1.0
      %v5289 = vadd.f32 %v5275, 1.0
      %v5290 = vadd.f32 %v5277, 1.0
      %v5291 = vadd.f32 %v5279, 1.0
      %v5292 = vadd.f32 %v5281, 1.0
      %v5293 = vadd.f32 %v5283, 1.0
      %v5294 = vadd.f32 %v5285, 1.0
      %v5295 = vadd.f32 %v5287, 1.0
      %v5296 = vrcp.pop %v5288
      %v5297 = vmul.f32 1.0, %v5296
      %v5298 = vrcp.pop %v5289
      %v5299 = vmul.f32 1.0, %v5298
      %v5300 = vrcp.pop %v5290
      %v5301 = vmul.f32 1.0, %v5300
      %v5302 = vrcp.pop %v5291
      %v5303 = vmul.f32 1.0, %v5302
      %v5304 = vrcp.pop %v5292
      %v5305 = vmul.f32 1.0, %v5304
      %v5306 = vrcp.pop %v5293
      %v5307 = vmul.f32 1.0, %v5306
      %v5308 = vrcp.pop %v5294
      %v5309 = vmul.f32 1.0, %v5308
      %v5310 = vrcp.pop %v5295
      %v5311 = vmul.f32 1.0, %v5310
      %v5312 = vmul.f32 %v5256, %v5297
      %v5313 = vmul.f32 %v5257, %v5299
      %v5314 = vmul.f32 %v5258, %v5301
      %v5315 = vmul.f32 %v5259, %v5303
      %v5316 = vmul.f32 %v5260, %v5305
      %v5317 = vmul.f32 %v5261, %v5307
      %v5318 = vmul.f32 %v5262, %v5309
      %v5319 = vmul.f32 %v5263, %v5311
      %v5320 = vld [vmem:[%s5 + $0x60] sm:$0xff]
      %v5321 = vld [vmem:[%s5 + $0x68] sm:$0xf]
      %v5322 = vld [vmem:[%s7] sm:$0xff]
      %5323 = vrot.lane.b32.xlu0 %v5312, 17
      %v5324 = vpop.permute.xlu0 %5323
      %5325 = vrot.lane.b32.xlu0 %v5314, 17
      %v5326 = vpop.permute.xlu0 %5325
      %5327 = vrot.lane.b32.xlu0 %v5316, 17
      %v5328 = vpop.permute.xlu0 %5327
      %5329 = vrot.lane.b32.xlu0 %v5318, 17
      %v5330 = vpop.permute.xlu0 %5329
      %5331 = vrot.lane.b32.xlu0 %v5313, 17
      %v5332 = vpop.permute.xlu0 %5331
      %5333 = vrot.lane.b32.xlu0 %v5315, 17
      %v5334 = vpop.permute.xlu0 %5333
      %5335 = vrot.lane.b32.xlu0 %v5317, 17
      %v5336 = vpop.permute.xlu0 %5335
      %5337 = vrot.lane.b32.xlu0 %v5319, 17
      %v5338 = vpop.permute.xlu0 %5337
      %v5339 = vsel %vm490, %v5324, %v5332
      %v5340 = vsel %vm490, %v5326, %v5334
      %v5341 = vsel %vm490, %v5328, %v5336
      %v5342 = vsel %vm490, %v5330, %v5338
      %v5343 = vsel %vm490, %v5332, %v5324
      %v5344 = vsel %vm490, %v5334, %v5326
      %v5345 = vsel %vm490, %v5336, %v5328
      %v5346 = vsel %vm490, %v5338, %v5330
      %v5347 = vld [vmem:[%s9] ss:$8 sm:$0x3]
      %v5349 = vlaneseq
      %v5350 = vshrl.u32 %v5349, 7
      %v5351 = vsub.s32 0, %v5350
      %v5352 = vrot.slane %v5347, %v5351
      %v5353 = vlaneseq
      %v5354 = vshrl.u32 %v5353, 7
      %v5355 = vsub.s32 1, %v5354
      %v5356 = vrot.slane %v5347, %v5355
      %v5359 = vmul.f32 %v5343, %v5352
      %v5360 = vmul.f32 %v5339, %v5356
      %v5361 = vmul.f32 %v5344, %v5352
      %v5362 = vmul.f32 %v5340, %v5356
      %v5363 = vmul.f32 %v5345, %v5352
      %v5364 = vmul.f32 %v5341, %v5356
      %v5365 = vmul.f32 %v5346, %v5352
      %v5366 = vmul.f32 %v5342, %v5356
      %v5367 = vpack.c.bf16 %v5361, %v5359
      %v5368 = vpack.c.bf16 %v5362, %v5360
      %v5369 = vpack.c.bf16 %v5365, %v5363
      %v5370 = vpack.c.bf16 %v5366, %v5364
      %5371 = vst [vmem:[#allocation3] sm:$0xff] %v5367
      %5372 = vst [vmem:[#allocation3 + $0x8] sm:$0xff] %v5368
      %5373 = vst [vmem:[#allocation3 + $0x10] sm:$0xff] %v5369
      %5374 = vst [vmem:[#allocation3 + $0x18] sm:$0xff] %v5370
      %5375 = vrot.lane.b32.xlu0 %v5312, 16
      %v5376 = vpop.permute.xlu0 %5375
      %5377 = vrot.lane.b32.xlu0 %v5314, 16
      %v5378 = vpop.permute.xlu0 %5377
      %5379 = vrot.lane.b32.xlu0 %v5316, 16
      %v5380 = vpop.permute.xlu0 %5379
      %5381 = vrot.lane.b32.xlu0 %v5318, 16
      %v5382 = vpop.permute.xlu0 %5381
      %5383 = vrot.lane.b32.xlu0 %v5313, 16
      %v5384 = vpop.permute.xlu0 %5383
      %5385 = vrot.lane.b32.xlu0 %v5315, 16
      %v5386 = vpop.permute.xlu0 %5385
      %5387 = vrot.lane.b32.xlu0 %v5317, 16
      %v5388 = vpop.permute.xlu0 %5387
      %5389 = vrot.lane.b32.xlu0 %v5319, 16
      %v5390 = vpop.permute.xlu0 %5389
      %v5391 = vsel %vm520, %v5376, %v5384
      %v5392 = vsel %vm520, %v5378, %v5386
      %v5393 = vsel %vm520, %v5380, %v5388
      %v5394 = vsel %vm520, %v5382, %v5390
      %v5395 = vsel %vm520, %v5384, %v5376
      %v5396 = vsel %vm520, %v5386, %v5378
      %v5397 = vsel %vm520, %v5388, %v5380
      %v5398 = vsel %vm520, %v5390, %v5382
      %v5399 = vld [vmem:[%s523] ss:$8 sm:$0x3]
      %v5401 = vlaneseq
      %v5402 = vshrl.u32 %v5401, 7
      %v5403 = vsub.s32 0, %v5402
      %v5404 = vrot.slane %v5399, %v5403
      %v5405 = vlaneseq
      %v5406 = vshrl.u32 %v5405, 7
      %v5407 = vsub.s32 1, %v5406
      %v5408 = vrot.slane %v5399, %v5407
      %v5411 = vmul.f32 %v5395, %v5404
      %v5412 = vmul.f32 %v5391, %v5408
      %v5413 = vmul.f32 %v5396, %v5404
      %v5414 = vmul.f32 %v5392, %v5408
      %v5415 = vmul.f32 %v5397, %v5404
      %v5416 = vmul.f32 %v5393, %v5408
      %v5417 = vmul.f32 %v5398, %v5404
      %v5418 = vmul.f32 %v5394, %v5408
      %v5419 = vpack.c.bf16 %v5413, %v5411
      %v5420 = vpack.c.bf16 %v5414, %v5412
      %v5421 = vpack.c.bf16 %v5417, %v5415
      %v5422 = vpack.c.bf16 %v5418, %v5416
      %5423 = vst [vmem:[#allocation3 + $0x20] sm:$0xff] %v5419
      %5424 = vst [vmem:[#allocation3 + $0x28] sm:$0xff] %v5420
      %5425 = vst [vmem:[#allocation3 + $0x30] sm:$0xff] %v5421
      %5426 = vst [vmem:[#allocation3 + $0x38] sm:$0xff] %v5422
      %5427 = vrot.lane.b32.xlu0 %v5312, 15
      %v5428 = vpop.permute.xlu0 %5427
      %5429 = vrot.lane.b32.xlu0 %v5314, 15
      %v5430 = vpop.permute.xlu0 %5429
      %5431 = vrot.lane.b32.xlu0 %v5316, 15
      %v5432 = vpop.permute.xlu0 %5431
      %5433 = vrot.lane.b32.xlu0 %v5318, 15
      %v5434 = vpop.permute.xlu0 %5433
      %5435 = vrot.lane.b32.xlu0 %v5313, 15
      %v5436 = vpop.permute.xlu0 %5435
      %5437 = vrot.lane.b32.xlu0 %v5315, 15
      %v5438 = vpop.permute.xlu0 %5437
      %5439 = vrot.lane.b32.xlu0 %v5317, 15
      %v5440 = vpop.permute.xlu0 %5439
      %5441 = vrot.lane.b32.xlu0 %v5319, 15
      %v5442 = vpop.permute.xlu0 %5441
      %v5443 = vsel %vm552, %v5428, %v5436
      %v5444 = vsel %vm552, %v5430, %v5438
      %v5445 = vsel %vm552, %v5432, %v5440
      %v5446 = vsel %vm552, %v5434, %v5442
      %v5447 = vsel %vm552, %v5436, %v5428
      %v5448 = vsel %vm552, %v5438, %v5430
      %v5449 = vsel %vm552, %v5440, %v5432
      %v5450 = vsel %vm552, %v5442, %v5434
      %v5451 = vld [vmem:[%s555] ss:$8 sm:$0x3]
      %v5453 = vlaneseq
      %v5454 = vshrl.u32 %v5453, 7
      %v5455 = vsub.s32 0, %v5454
      %v5456 = vrot.slane %v5451, %v5455
      %v5457 = vlaneseq
      %v5458 = vshrl.u32 %v5457, 7
      %v5459 = vsub.s32 1, %v5458
      %v5460 = vrot.slane %v5451, %v5459
      %v5463 = vmul.f32 %v5447, %v5456
      %v5464 = vmul.f32 %v5443, %v5460
      %v5465 = vmul.f32 %v5448, %v5456
      %v5466 = vmul.f32 %v5444, %v5460
      %v5467 = vmul.f32 %v5449, %v5456
      %v5468 = vmul.f32 %v5445, %v5460
      %v5469 = vmul.f32 %v5450, %v5456
      %v5470 = vmul.f32 %v5446, %v5460
      %v5471 = vpack.c.bf16 %v5465, %v5463
      %v5472 = vpack.c.bf16 %v5466, %v5464
      %v5473 = vpack.c.bf16 %v5469, %v5467
      %v5474 = vpack.c.bf16 %v5470, %v5468
      %5475 = vst [vmem:[#allocation3 + $0x40] sm:$0xff] %v5471
      %5476 = vst [vmem:[#allocation3 + $0x48] sm:$0xff] %v5472
      %5477 = vst [vmem:[#allocation3 + $0x50] sm:$0xff] %v5473
      %5478 = vst [vmem:[#allocation3 + $0x58] sm:$0xff] %v5474
      %5479 = vrot.lane.b32.xlu0 %v5312, 1
      %v5480 = vpop.permute.xlu0 %5479
      %5481 = vrot.lane.b32.xlu0 %v5314, 1
      %v5482 = vpop.permute.xlu0 %5481
      %5483 = vrot.lane.b32.xlu0 %v5316, 1
      %v5484 = vpop.permute.xlu0 %5483
      %5485 = vrot.lane.b32.xlu0 %v5318, 1
      %v5486 = vpop.permute.xlu0 %5485
      %5487 = vrot.lane.b32.xlu0 %v5313, 1
      %v5488 = vpop.permute.xlu0 %5487
      %5489 = vrot.lane.b32.xlu0 %v5315, 1
      %v5490 = vpop.permute.xlu0 %5489
      %5491 = vrot.lane.b32.xlu0 %v5317, 1
      %v5492 = vpop.permute.xlu0 %5491
      %5493 = vrot.lane.b32.xlu0 %v5319, 1
      %v5494 = vpop.permute.xlu0 %5493
      %v5495 = vsel %vm583, %v5480, %v5488
      %v5496 = vsel %vm583, %v5482, %v5490
      %v5497 = vsel %vm583, %v5484, %v5492
      %v5498 = vsel %vm583, %v5486, %v5494
      %v5499 = vsel %vm583, %v5488, %v5480
      %v5500 = vsel %vm583, %v5490, %v5482
      %v5501 = vsel %vm583, %v5492, %v5484
      %v5502 = vsel %vm583, %v5494, %v5486
      %v5503 = vld [vmem:[%s586] ss:$8 sm:$0x3]
      %v5505 = vlaneseq
      %v5506 = vshrl.u32 %v5505, 7
      %v5507 = vsub.s32 0, %v5506
      %v5508 = vrot.slane %v5503, %v5507
      %v5509 = vlaneseq
      %v5510 = vshrl.u32 %v5509, 7
      %v5511 = vsub.s32 1, %v5510
      %v5512 = vrot.slane %v5503, %v5511
      %v5515 = vmul.f32 %v5499, %v5508
      %v5516 = vmul.f32 %v5495, %v5512
      %v5517 = vmul.f32 %v5500, %v5508
      %v5518 = vmul.f32 %v5496, %v5512
      %v5519 = vmul.f32 %v5501, %v5508
      %v5520 = vmul.f32 %v5497, %v5512
      %v5521 = vmul.f32 %v5502, %v5508
      %v5522 = vmul.f32 %v5498, %v5512
      %v5523 = vpack.c.bf16 %v5517, %v5515
      %v5524 = vpack.c.bf16 %v5518, %v5516
      %v5525 = vpack.c.bf16 %v5521, %v5519
      %v5526 = vpack.c.bf16 %v5522, %v5520
      %5527 = vst [vmem:[#allocation3 + $0x60] sm:$0xff] %v5523
      %5528 = vst [vmem:[#allocation3 + $0x68] sm:$0xff] %v5524
      %5529 = vst [vmem:[#allocation3 + $0x70] sm:$0xff] %v5525
      %5530 = vst [vmem:[#allocation3 + $0x78] sm:$0xff] %v5526
      %v5531 = vpack.c.bf16 %v5314, %v5312
      %v5532 = vpack.c.bf16 %v5315, %v5313
      %v5533 = vpack.c.bf16 %v5318, %v5316
      %v5534 = vpack.c.bf16 %v5319, %v5317
      %5535 = vst [vmem:[#allocation3 + $0x80] sm:$0xff] %v5531
      %5536 = vst [vmem:[#allocation3 + $0x88] sm:$0xff] %v5532
      %5537 = vst [vmem:[#allocation3 + $0x90] sm:$0xff] %v5533
      %5538 = vst [vmem:[#allocation3 + $0x98] sm:$0xff] %v5534
      %5539 = vrot.lane.b32.xlu0 %v5312, 127
      %v5540 = vpop.permute.xlu0 %5539
      %5541 = vrot.lane.b32.xlu0 %v5314, 127
      %v5542 = vpop.permute.xlu0 %5541
      %5543 = vrot.lane.b32.xlu0 %v5316, 127
      %v5544 = vpop.permute.xlu0 %5543
      %5545 = vrot.lane.b32.xlu0 %v5318, 127
      %v5546 = vpop.permute.xlu0 %5545
      %5547 = vrot.lane.b32.xlu0 %v5313, 127
      %v5548 = vpop.permute.xlu0 %5547
      %5549 = vrot.lane.b32.xlu0 %v5315, 127
      %v5550 = vpop.permute.xlu0 %5549
      %5551 = vrot.lane.b32.xlu0 %v5317, 127
      %v5552 = vpop.permute.xlu0 %5551
      %5553 = vrot.lane.b32.xlu0 %v5319, 127
      %v5554 = vpop.permute.xlu0 %5553
      %v5555 = vsel %vm624, %v5540, %v5548
      %v5556 = vsel %vm624, %v5542, %v5550
      %v5557 = vsel %vm624, %v5544, %v5552
      %v5558 = vsel %vm624, %v5546, %v5554
      %v5559 = vsel %vm624, %v5548, %v5540
      %v5560 = vsel %vm624, %v5550, %v5542
      %v5561 = vsel %vm624, %v5552, %v5544
      %v5562 = vsel %vm624, %v5554, %v5546
      %v5563 = vld [vmem:[%s627] ss:$8 sm:$0x3]
      %v5565 = vlaneseq
      %v5566 = vshrl.u32 %v5565, 7
      %v5567 = vsub.s32 0, %v5566
      %v5568 = vrot.slane %v5563, %v5567
      %v5569 = vlaneseq
      %v5570 = vshrl.u32 %v5569, 7
      %v5571 = vsub.s32 1, %v5570
      %v5572 = vrot.slane %v5563, %v5571
      %v5575 = vmul.f32 %v5555, %v5568
      %v5576 = vmul.f32 %v5559, %v5572
      %v5577 = vmul.f32 %v5556, %v5568
      %v5578 = vmul.f32 %v5560, %v5572
      %v5579 = vmul.f32 %v5557, %v5568
      %v5580 = vmul.f32 %v5561, %v5572
      %v5581 = vmul.f32 %v5558, %v5568
      %v5582 = vmul.f32 %v5562, %v5572
      %v5583 = vpack.c.bf16 %v5577, %v5575
      %v5584 = vpack.c.bf16 %v5578, %v5576
      %v5585 = vpack.c.bf16 %v5581, %v5579
      %v5586 = vpack.c.bf16 %v5582, %v5580
      %5587 = vst [vmem:[#allocation3 + $0xa0] sm:$0xff] %v5583
      %5588 = vst [vmem:[#allocation3 + $0xa8] sm:$0xff] %v5584
      %5589 = vst [vmem:[#allocation3 + $0xb0] sm:$0xff] %v5585
      %5590 = vst [vmem:[#allocation3 + $0xb8] sm:$0xff] %v5586
      %5591 = vrot.lane.b32.xlu0 %v5312, 113
      %v5592 = vpop.permute.xlu0 %5591
      %5593 = vrot.lane.b32.xlu0 %v5314, 113
      %v5594 = vpop.permute.xlu0 %5593
      %5595 = vrot.lane.b32.xlu0 %v5316, 113
      %v5596 = vpop.permute.xlu0 %5595
      %5597 = vrot.lane.b32.xlu0 %v5318, 113
      %v5598 = vpop.permute.xlu0 %5597
      %5599 = vrot.lane.b32.xlu0 %v5313, 113
      %v5600 = vpop.permute.xlu0 %5599
      %5601 = vrot.lane.b32.xlu0 %v5315, 113
      %v5602 = vpop.permute.xlu0 %5601
      %5603 = vrot.lane.b32.xlu0 %v5317, 113
      %v5604 = vpop.permute.xlu0 %5603
      %5605 = vrot.lane.b32.xlu0 %v5319, 113
      %v5606 = vpop.permute.xlu0 %5605
      %v5607 = vsel %vm656, %v5592, %v5600
      %v5608 = vsel %vm656, %v5594, %v5602
      %v5609 = vsel %vm656, %v5596, %v5604
      %v5610 = vsel %vm656, %v5598, %v5606
      %v5611 = vsel %vm656, %v5600, %v5592
      %v5612 = vsel %vm656, %v5602, %v5594
      %v5613 = vsel %vm656, %v5604, %v5596
      %v5614 = vsel %vm656, %v5606, %v5598
      %v5615 = vld [vmem:[%s659] ss:$8 sm:$0x3]
      %v5617 = vlaneseq
      %v5618 = vshrl.u32 %v5617, 7
      %v5619 = vsub.s32 0, %v5618
      %v5620 = vrot.slane %v5615, %v5619
      %v5621 = vlaneseq
      %v5622 = vshrl.u32 %v5621, 7
      %v5623 = vsub.s32 1, %v5622
      %v5624 = vrot.slane %v5615, %v5623
      %v5627 = vmul.f32 %v5607, %v5620
      %v5628 = vmul.f32 %v5611, %v5624
      %v5629 = vmul.f32 %v5608, %v5620
      %v5630 = vmul.f32 %v5612, %v5624
      %v5631 = vmul.f32 %v5609, %v5620
      %v5632 = vmul.f32 %v5613, %v5624
      %v5633 = vmul.f32 %v5610, %v5620
      %v5634 = vmul.f32 %v5614, %v5624
      %v5635 = vpack.c.bf16 %v5629, %v5627
      %v5636 = vpack.c.bf16 %v5630, %v5628
      %v5637 = vpack.c.bf16 %v5633, %v5631
      %v5638 = vpack.c.bf16 %v5634, %v5632
      %5639 = vst [vmem:[#allocation3 + $0xc0] sm:$0xff] %v5635
      %5640 = vst [vmem:[#allocation3 + $0xc8] sm:$0xff] %v5636
      %5641 = vst [vmem:[#allocation3 + $0xd0] sm:$0xff] %v5637
      %5642 = vst [vmem:[#allocation3 + $0xd8] sm:$0xff] %v5638
      %5643 = vrot.lane.b32.xlu0 %v5312, 112
      %v5644 = vpop.permute.xlu0 %5643
      %5645 = vrot.lane.b32.xlu0 %v5314, 112
      %v5646 = vpop.permute.xlu0 %5645
      %5647 = vrot.lane.b32.xlu0 %v5316, 112
      %v5648 = vpop.permute.xlu0 %5647
      %5649 = vrot.lane.b32.xlu0 %v5318, 112
      %v5650 = vpop.permute.xlu0 %5649
      %5651 = vrot.lane.b32.xlu0 %v5313, 112
      %v5652 = vpop.permute.xlu0 %5651
      %5653 = vrot.lane.b32.xlu0 %v5315, 112
      %v5654 = vpop.permute.xlu0 %5653
      %5655 = vrot.lane.b32.xlu0 %v5317, 112
      %v5656 = vpop.permute.xlu0 %5655
      %5657 = vrot.lane.b32.xlu0 %v5319, 112
      %v5658 = vpop.permute.xlu0 %5657
      %v5659 = vsel %vm687, %v5644, %v5652
      %v5660 = vsel %vm687, %v5646, %v5654
      %v5661 = vsel %vm687, %v5648, %v5656
      %v5662 = vsel %vm687, %v5650, %v5658
      %v5663 = vsel %vm687, %v5652, %v5644
      %v5664 = vsel %vm687, %v5654, %v5646
      %v5665 = vsel %vm687, %v5656, %v5648
      %v5666 = vsel %vm687, %v5658, %v5650
      %v5667 = vld [vmem:[%s690] ss:$8 sm:$0x3]
      %v5669 = vlaneseq
      %v5670 = vshrl.u32 %v5669, 7
      %v5671 = vsub.s32 0, %v5670
      %v5672 = vrot.slane %v5667, %v5671
      %v5673 = vlaneseq
      %v5674 = vshrl.u32 %v5673, 7
      %v5675 = vsub.s32 1, %v5674
      %v5676 = vrot.slane %v5667, %v5675
      %v5679 = vmul.f32 %v5659, %v5672
      %v5680 = vmul.f32 %v5663, %v5676
      %v5681 = vmul.f32 %v5660, %v5672
      %v5682 = vmul.f32 %v5664, %v5676
      %v5683 = vmul.f32 %v5661, %v5672
      %v5684 = vmul.f32 %v5665, %v5676
      %v5685 = vmul.f32 %v5662, %v5672
      %v5686 = vmul.f32 %v5666, %v5676
      %v5687 = vpack.c.bf16 %v5681, %v5679
      %v5688 = vpack.c.bf16 %v5682, %v5680
      %v5689 = vpack.c.bf16 %v5685, %v5683
      %v5690 = vpack.c.bf16 %v5686, %v5684
      %5691 = vst [vmem:[#allocation3 + $0xe0] sm:$0xff] %v5687
      %5692 = vst [vmem:[#allocation3 + $0xe8] sm:$0xff] %v5688
      %5693 = vst [vmem:[#allocation3 + $0xf0] sm:$0xff] %v5689
      %5694 = vst [vmem:[#allocation3 + $0xf8] sm:$0xff] %v5690
      %5695 = vrot.lane.b32.xlu0 %v5312, 111
      %v5696 = vpop.permute.xlu0 %5695
      %5697 = vrot.lane.b32.xlu0 %v5314, 111
      %v5698 = vpop.permute.xlu0 %5697
      %5699 = vrot.lane.b32.xlu0 %v5316, 111
      %v5700 = vpop.permute.xlu0 %5699
      %5701 = vrot.lane.b32.xlu0 %v5318, 111
      %v5702 = vpop.permute.xlu0 %5701
      %5703 = vrot.lane.b32.xlu0 %v5313, 111
      %v5704 = vpop.permute.xlu0 %5703
      %5705 = vrot.lane.b32.xlu0 %v5315, 111
      %v5706 = vpop.permute.xlu0 %5705
      %5707 = vrot.lane.b32.xlu0 %v5317, 111
      %v5708 = vpop.permute.xlu0 %5707
      %5709 = vrot.lane.b32.xlu0 %v5319, 111
      %v5710 = vpop.permute.xlu0 %5709
      %v5711 = vsel %vm719, %v5696, %v5704
      %v5712 = vsel %vm719, %v5698, %v5706
      %v5713 = vsel %vm719, %v5700, %v5708
      %v5714 = vsel %vm719, %v5702, %v5710
      %v5715 = vsel %vm719, %v5704, %v5696
      %v5716 = vsel %vm719, %v5706, %v5698
      %v5717 = vsel %vm719, %v5708, %v5700
      %v5718 = vsel %vm719, %v5710, %v5702
      %v5719 = vld [vmem:[%s722] ss:$8 sm:$0x3]
      %v5721 = vlaneseq
      %v5722 = vshrl.u32 %v5721, 7
      %v5723 = vsub.s32 0, %v5722
      %v5724 = vrot.slane %v5719, %v5723
      %v5725 = vlaneseq
      %v5726 = vshrl.u32 %v5725, 7
      %v5727 = vsub.s32 1, %v5726
      %v5728 = vrot.slane %v5719, %v5727
      %v5731 = vmul.f32 %v5711, %v5724
      %v5732 = vmul.f32 %v5715, %v5728
      %v5733 = vmul.f32 %v5712, %v5724
      %v5734 = vmul.f32 %v5716, %v5728
      %v5735 = vmul.f32 %v5713, %v5724
      %v5736 = vmul.f32 %v5717, %v5728
      %v5737 = vmul.f32 %v5714, %v5724
      %v5738 = vmul.f32 %v5718, %v5728
      %v5739 = vpack.c.bf16 %v5733, %v5731
      %v5740 = vpack.c.bf16 %v5734, %v5732
      %v5741 = vpack.c.bf16 %v5737, %v5735
      %v5742 = vpack.c.bf16 %v5738, %v5736
      %5743 = vst [vmem:[#allocation3 + $0x100] sm:$0xff] %v5739
      %5744 = vst [vmem:[#allocation3 + $0x108] sm:$0xff] %v5740
      %5745 = vst [vmem:[#allocation3 + $0x110] sm:$0xff] %v5741
      %5746 = vst [vmem:[#allocation3 + $0x118] sm:$0xff] %v5742
      %v5747 = vld [vmem:[#allocation3] sm:$0xff]
      %v5748 = vld [vmem:[#allocation3 + $0x8] sm:$0xff]
      %v5749 = vld [vmem:[#allocation3 + $0x10] sm:$0xff]
      %v5750 = vld [vmem:[#allocation3 + $0x18] sm:$0xff]
      %v5751 = vld [vmem:[#allocation3 + $0x20] sm:$0xff]
      %v5752 = vld [vmem:[#allocation3 + $0x28] sm:$0xff]
      %v5753 = vld [vmem:[#allocation3 + $0x30] sm:$0xff]
      %v5754 = vld [vmem:[#allocation3 + $0x38] sm:$0xff]
      %v5755 = vld [vmem:[#allocation3 + $0x40] sm:$0xff]
      %v5756 = vld [vmem:[#allocation3 + $0x48] sm:$0xff]
      %v5757 = vld [vmem:[#allocation3 + $0x50] sm:$0xff]
      %v5758 = vld [vmem:[#allocation3 + $0x58] sm:$0xff]
      %v5759 = vld [vmem:[#allocation3 + $0x60] sm:$0xff]
      %v5760 = vld [vmem:[#allocation3 + $0x68] sm:$0xff]
      %v5761 = vld [vmem:[#allocation3 + $0x70] sm:$0xff]
      %v5762 = vld [vmem:[#allocation3 + $0x78] sm:$0xff]
      %v5763 = vld [vmem:[#allocation3 + $0x80] sm:$0xff]
      %v5764 = vld [vmem:[#allocation3 + $0x88] sm:$0xff]
      %v5765 = vld [vmem:[#allocation3 + $0x90] sm:$0xff]
      %v5766 = vld [vmem:[#allocation3 + $0x98] sm:$0xff]
      %v5767 = vld [vmem:[#allocation3 + $0xa0] sm:$0xff]
      %v5768 = vld [vmem:[#allocation3 + $0xa8] sm:$0xff]
      %v5769 = vld [vmem:[#allocation3 + $0xb0] sm:$0xff]
      %v5770 = vld [vmem:[#allocation3 + $0xb8] sm:$0xff]
      %v5771 = vld [vmem:[#allocation3 + $0xc0] sm:$0xff]
      %v5772 = vld [vmem:[#allocation3 + $0xc8] sm:$0xff]
      %v5773 = vld [vmem:[#allocation3 + $0xd0] sm:$0xff]
      %v5774 = vld [vmem:[#allocation3 + $0xd8] sm:$0xff]
      %v5775 = vld [vmem:[#allocation3 + $0xe0] sm:$0xff]
      %v5776 = vld [vmem:[#allocation3 + $0xe8] sm:$0xff]
      %v5777 = vld [vmem:[#allocation3 + $0xf0] sm:$0xff]
      %v5778 = vld [vmem:[#allocation3 + $0xf8] sm:$0xff]
      %v5779 = vld [vmem:[#allocation3 + $0x100] sm:$0xff]
      %v5780 = vld [vmem:[#allocation3 + $0x108] sm:$0xff]
      %v5781 = vld [vmem:[#allocation3 + $0x110] sm:$0xff]
      %v5782 = vld [vmem:[#allocation3 + $0x118] sm:$0xff]
      %5784 = vset.pattern.permute.xlu0 13
      %5785 = vperm.xlu0 %5784, %v5322
      %v5786 = vpop.permute.xlu0 %5785
      %v5790 = vunpack.c.l.b16 %v5320
      %v5791 = vunpack.c.h.b16 %v5320
      %v5792 = vunpack.c.l.b16 %v5321
      %v5793 = vpack.c.b16 %v5790, %v5790
      %v5794 = vpack.c.b16 %v5791, %v5791
      %v5795 = vpack.c.b16 %v5792, %v5792
      %v5799 = vsel %vm963, %v5795, 0
      %5801 = vmatprep.subr.bf16.mxu0 %v5748
      %5802 = vmatpush1.bf16.msra.mxu0 %v5747
      %5803 = vmatprep.subr.bf16.mxu0 %v5750
      %5804 = vmatpush1.bf16.msra.mxu0 %v5749
      %5805 = vmatprep.subr.bf16.mxu0 %v5752
      %5806 = vmatpush1.bf16.msra.mxu0 %v5751
      %5807 = vmatprep.subr.bf16.mxu0 %v5754
      %5808 = vmatpush1.bf16.msra.mxu0 %v5753
      %5809 = vmatprep.subr.bf16.mxu0 %v5756
      %5810 = vmatpush1.bf16.msra.mxu0 %v5755
      %5811 = vmatprep.subr.bf16.mxu0 %v5758
      %5812 = vmatpush1.bf16.msra.mxu0 %v5757
      %5813 = vmatprep.subr.bf16.mxu0 %v5760
      %5814 = vmatpush1.bf16.msra.mxu0 %v5759
      %5815 = vmatprep.subr.bf16.mxu0 %v5762
      %5816 = vmatpush1.bf16.msra.mxu0 %v5761
      %5817 = vmatprep.subr.bf16.mxu0 %v5764
      %5818 = vmatpush1.bf16.msra.mxu0 %v5763
      %5819 = vmatprep.subr.bf16.mxu0 %v5766
      %5820 = vmatpush1.bf16.msra.mxu0 %v5765
      %5821 = vmatprep.subr.bf16.mxu0 %v5768
      %5822 = vmatpush1.bf16.msra.mxu0 %v5767
      %5823 = vmatprep.subr.bf16.mxu0 %v5770
      %5824 = vmatpush1.bf16.msra.mxu0 %v5769
      %5825 = vmatprep.subr.bf16.mxu0 %v5772
      %5826 = vmatpush1.bf16.msra.mxu0 %v5771
      %5827 = vmatprep.subr.bf16.mxu0 %v5774
      %5828 = vmatpush1.bf16.msra.mxu0 %v5773
      %5829 = vmatprep.subr.bf16.mxu0 %v5776
      %5830 = vmatpush1.bf16.msra.mxu0 %v5775
      %5831 = vmatprep.subr.bf16.mxu0 %v5778
      %5832 = vmatpush1.bf16.msra.mxu0 %v5777
      %5833 = vmatprep.mubr.bf16.mxu0 %v5794
      %5834 = vmatmul.mubr.bf16.gmra.mrb[0].mxu0 %v5793
      %v5835 = vpop.f32.mrb[0].mxu0
      %v5836 = vadd.f32 %v5786, %v5835
      %v5837 = vpop.f32.mrb[0].mxu0
      %v5838 = vadd.f32 %v5786, %v5837
      %v5839 = vpop.f32.mrb[0].mxu0
      %v5840 = vpop.f32.mrb[0].mxu0
      %5841 = vdwg.mxu0
      %5842 = vmatprep.subr.bf16.mxu0 %v5780
      %5843 = vmatpush1.bf16.msra.mxu0 %v5779
      %5844 = vmatprep.subr.bf16.mxu0 %v5782
      %5845 = vmatpush1.bf16.msra.mxu0 %v5781
      %5846 = vmatprep.subr.bf16.mxu0 0
      %5847 = vmatpush1.bf16.msra.mxu0 0
      %5848 = vmatprep.subr.bf16.mxu0 0
      %5849 = vmatpush1.bf16.msra.mxu0 0
      %5850 = vmatprep.subr.bf16.mxu0 0
      %5851 = vmatpush1.bf16.msra.mxu0 0
      %5852 = vmatprep.subr.bf16.mxu0 0
      %5853 = vmatpush1.bf16.msra.mxu0 0
      %5854 = vmatprep.subr.bf16.mxu0 0
      %5855 = vmatpush1.bf16.msra.mxu0 0
      %5856 = vmatprep.subr.bf16.mxu0 0
      %5857 = vmatpush1.bf16.msra.mxu0 0
      %5858 = vmatprep.subr.bf16.mxu0 0
      %5859 = vmatpush1.bf16.msra.mxu0 0
      %5860 = vmatprep.subr.bf16.mxu0 0
      %5861 = vmatpush1.bf16.msra.mxu0 0
      %5862 = vmatprep.subr.bf16.mxu0 0
      %5863 = vmatpush1.bf16.msra.mxu0 0
      %5864 = vmatprep.subr.bf16.mxu0 0
      %5865 = vmatpush1.bf16.msra.mxu0 0
      %5866 = vmatprep.subr.bf16.mxu0 0
      %5867 = vmatpush1.bf16.msra.mxu0 0
      %5868 = vmatprep.subr.bf16.mxu0 0
      %5869 = vmatpush1.bf16.msra.mxu0 0
      %5870 = vmatprep.subr.bf16.mxu0 0
      %5871 = vmatpush1.bf16.msra.mxu0 0
      %5872 = vmatprep.subr.bf16.mxu0 0
      %5873 = vmatpush1.bf16.msra.mxu0 0
      %5874 = vmatprep.mubr.bf16.mxu0 0
      %5875 = vmatmul.mubr.bf16.gmra.mrb[0].mxu0 %v5799
      %v5876 = vpop.f32.mrb[0].mxu0
      %v5877 = vadd.f32 %v5836, %v5876
      %v5878 = vpop.f32.mrb[0].mxu0
      %v5879 = vadd.f32 %v5838, %v5878
      %v5880 = vpop.f32.mrb[0].mxu0
      %v5881 = vpop.f32.mrb[0].mxu0
      %5882 = vdwg.mxu0
      %v5885 = vcombine.low %v5877, %v5879
      %5887 = vst [vmem:[%s470] sm:$0xff] %v5885
      %p5888 = scmp.lt.s32.totalorder %s23, 1
      %s5889 = scalar_select %p5888, %s23, 1
      %s5890 = smul.addr %s5889, 2
      %s5891 = smul.addr %s5890, 4
      %s5892 = scalar_lea.vmem %s12, %s5891
      // Predicated region
      $region69: #{_neuron_unet_forward_jit.1} parent=67 // pred_check
        %p5893 = pneg %p313
      $region70: #{_neuron_unet_forward_jit.1} parent=67 // pred_check_branch
        %5895 = sbr.rel (%p5893) target = $region72
      $region71: #{_neuron_unet_forward_jit.1} parent=67 // pred_region
        _
      $region72: #{_neuron_unet_forward_jit.1} parent=67 // pred_fallthru
        _
    $region68: #{_neuron_unet_forward_jit.1} parent=5 // pred_fallthru
      _
    %p5896 = scmp.le.s32.totalorder 2, %s18
    // Predicated region
    $region73: #{_neuron_unet_forward_jit.1} parent=5 // pred_check
      %p5897 = pneg %p5896
    $region74: #{_neuron_unet_forward_jit.1} parent=5 // pred_check_branch
      %5899 = sbr.rel (%p5897) target = $region76
    $region75: #{_neuron_unet_forward_jit.1} parent=5 // pred_region
      %s5900 = ssub.s32 %s18, 2
      // Predicated region
      $region77: #{_neuron_unet_forward_jit.1} parent=75 // pred_check
        %p5901 = pneg %p319
      $region78: #{_neuron_unet_forward_jit.1} parent=75 // pred_check_branch
        %5903 = sbr.rel (%p5901) target = $region80
      $region79: #{_neuron_unet_forward_jit.1} parent=75 // pred_region
        %p5904 = scmp.lt.s32.totalorder %s24, 1
        %s5905 = scalar_select %p5904, %s24, 1
        %s5906 = smul.addr %s5905, 2
        %s5907 = smul.addr %s5906, 4
        %s5908 = scalar_lea.vmem %s12, %s5907
      $region80: #{_neuron_unet_forward_jit.1} parent=75 // pred_fallthru
        _
    $region76: #{_neuron_unet_forward_jit.1} parent=5 // pred_fallthru
      _
  $region6: #{_neuron_unet_forward_jit.1} parent=0 // loop_footer
    %s22 = sadd.s32 1, %s18
  $region7: #{_neuron_unet_forward_jit.1} parent=0 // loop_footer_branch
    %17 = sbr.rel target = $region3
  $region8: #{_neuron_unet_forward_jit.1} parent=0 // loop_exit
    _

</llo_original>
